<compile_context>
chip_gen: v7x
topology: tpu7x:2x2x1
jax: 0.10.0
libtpu: 0.0.40
codegen_flags: <defaults>
</compile_context>

<pallas_src>
import functools
import math

import jax
import jax.numpy as jnp
from jax import lax
from jax.experimental import pallas as pl
from jax.experimental.pallas import tpu as pltpu


def _round_up(a, b):
    return (a + b - 1) // b * b


def _pad2(a, rows, cols):
    return jnp.pad(a, ((0, rows - a.shape[0]), (0, cols - a.shape[1])))


# ----------------------------- Pallas kernels -----------------------------

def _linear_kernel(*refs, act, fuse_ln, eps, n_true, n_pad):
    """Tiled matmul with f32 accumulator; bias/ReLU/residual+LN epilogue on last K step."""
    if fuse_ln:
        x_ref, w_ref, b_ref, res_ref, g_ref, bt_ref, o_ref, acc_ref = refs
    else:
        x_ref, w_ref, b_ref, o_ref, acc_ref = refs

    kk = pl.program_id(2)

    @pl.when(kk == 0)
    def _init():
        acc_ref[...] = jnp.zeros_like(acc_ref)

    acc_ref[...] += jnp.dot(x_ref[...], w_ref[...],
                            preferred_element_type=jnp.float32)

    @pl.when(kk == pl.num_programs(2) - 1)
    def _finalize():
        y = acc_ref[...] + b_ref[...]                       # bias only at the end
        if act == "relu":
            y = jnp.maximum(y, 0.0)
        if fuse_ln:
            # LayerNorm(y + residual) over the *true* feature width n_true.
            # Padded feature columns are exactly zero (zero-padded w/b/res),
            # so full-width sums with a padded-column correction give exact stats.
            y = y + res_ref[...].astype(jnp.float32)
            inv_n = 1.0 / n_true
            mean = jnp.sum(y, axis=-1, keepdims=True) * inv_n
            c = y - mean
            var = (jnp.sum(c * c, axis=-1, keepdims=True)
                   - float(n_pad) * mean * mean) * inv_n
            y = c * lax.rsqrt(var + eps)
            y = y * g_ref[...] + bt_ref[...]
        o_ref[...] = y.astype(o_ref.dtype)


def pallas_linear(x, w, b, *, act=None, residual=None, gamma=None, beta=None,
                  eps=1e-5, out_dtype=jnp.bfloat16, tm=256, tn=256, tk=512):
    """y = act(x @ w + b); optionally fused LayerNorm(y + residual).

    Operands are cast to bf16 (f32 accumulation).  All dims are padded so the
    lane axis is a multiple of 128 and the sublane axis a multiple of 8; the
    result is sliced back to the logical (M, N) shape.
    NOTE: tile defaults target v6e/v7x (256-wide N tiles); on v5e use 128-multiples,
    and on v7x keep 2*(tm*tk+tk*tn)*2 + tm*tn*4 well under the 64 MiB VMEM budget.
    """
    M, K = x.shape
    Kw, N = w.shape
    assert K == Kw
    fuse_ln = residual is not None

    tm = min(tm, _round_up(M, 8))
    Mp = _round_up(M, tm)
    Kp0 = _round_up(K, 128)
    tk = min(tk, Kp0)
    Kp = _round_up(K, tk)
    Np0 = _round_up(N, 128)
    if fuse_ln:
        tn = Np = Np0                       # LN reduces over the whole feature tile
    else:
        tn = min(tn, Np0)
        Np = _round_up(N, tn)

    xp = _pad2(x.astype(jnp.bfloat16), Mp, Kp)
    wp = _pad2(w.astype(jnp.bfloat16), Kp, Np)
    bp = jnp.pad(b.astype(jnp.float32), (0, Np - N)).reshape(1, Np)

    in_specs = [
        pl.BlockSpec((tm, tk), lambda i, j, k: (i, k)),
        pl.BlockSpec((tk, tn), lambda i, j, k: (k, j)),
        pl.BlockSpec((1, tn), lambda i, j, k: (0, j)),
    ]
    args = [xp, wp, bp]
    if fuse_ln:
        rp = _pad2(residual.astype(jnp.bfloat16), Mp, Np)
        gp = jnp.pad(gamma.astype(jnp.float32), (0, Np - N)).reshape(1, Np)
        btp = jnp.pad(beta.astype(jnp.float32), (0, Np - N)).reshape(1, Np)
        in_specs += [
            pl.BlockSpec((tm, tn), lambda i, j, k: (i, 0)),
            pl.BlockSpec((1, tn), lambda i, j, k: (0, 0)),
            pl.BlockSpec((1, tn), lambda i, j, k: (0, 0)),
        ]
        args += [rp, gp, btp]

    out = pl.pallas_call(
        functools.partial(_linear_kernel, act=act, fuse_ln=fuse_ln, eps=eps,
                          n_true=N, n_pad=Np - N),
        out_shape=jax.ShapeDtypeStruct((Mp, Np), out_dtype),
        grid=(Mp // tm, Np // tn, Kp // tk),
        in_specs=in_specs,
        out_specs=pl.BlockSpec((tm, tn), lambda i, j, k: (i, j)),
        scratch_shapes=[pltpu.VMEM((tm, tn), jnp.float32)],
        compiler_params=pltpu.CompilerParams(
            dimension_semantics=("parallel", "parallel", "arbitrary")),
    )(*args)
    return out[:M, :N]


def _attention_kernel(qkv_ref, o_ref, *, heads, e, scale):
    """Per (token, head) softmax(q k^T * scale) v over the batch axis.

    Block = (nb tokens, S, 3E) of the fused qkv projection; the q/k/v split and
    head split stay inside the kernel (no XLA-side reshuffle).
    """
    d = e // heads
    qkv = qkv_ref[...]                                   # (nb, S, 3E), bf16
    outs = []
    for h in range(heads):                               # static unroll over heads
        q = qkv[:, :, h * d:(h + 1) * d]
        k = qkv[:, :, e + h * d:e + (h + 1) * d]
        v = qkv[:, :, 2 * e + h * d:2 * e + (h + 1) * d]
        s = jnp.einsum("nsd,ntd->nst", q, k,
                       preferred_element_type=jnp.float32) * scale
        s = s - jnp.max(s, axis=-1, keepdims=True)
        p = jnp.exp(s)
        p = p * pl.reciprocal(jnp.sum(p, axis=-1, keepdims=True), approx=True)
        outs.append(jnp.einsum("nst,ntd->nsd", p.astype(qkv.dtype), v,
                               preferred_element_type=jnp.float32))
    o_ref[...] = jnp.concatenate(outs, axis=-1).astype(o_ref.dtype)


def pallas_attention(qkv, heads, scale, *, block_tokens=16):
    """qkv: (N_tokens, S, 3E) fused projection -> (N_tokens, S, E) attention output."""
    N, S, E3 = qkv.shape
    E = E3 // 3
    nb = min(block_tokens, N)
    Np = _round_up(N, nb)
    qkv_p = jnp.pad(qkv, ((0, Np - N), (0, 0), (0, 0)))   # padded tokens -> zeros
    out = pl.pallas_call(
        functools.partial(_attention_kernel, heads=heads, e=E, scale=scale),
        out_shape=jax.ShapeDtypeStruct((Np, S, E), qkv.dtype),
        grid=(Np // nb,),
        in_specs=[pl.BlockSpec((nb, S, E3), lambda i: (i, 0, 0))],
        out_specs=pl.BlockSpec((nb, S, E), lambda i: (i, 0, 0)),
        compiler_params=pltpu.CompilerParams(dimension_semantics=("parallel",)),
    )(qkv_p)
    return out[:N]


# ------------------------- pure-JAX reference ops -------------------------
# (mirror the bf16-operand / f32-accumulation scheme of the kernels)

def linear_ref(x, w, b, *, act=None, residual=None, gamma=None, beta=None,
               eps=1e-5, out_dtype=jnp.bfloat16, **_):
    y = jnp.dot(x.astype(jnp.bfloat16), w.astype(jnp.bfloat16),
                preferred_element_type=jnp.float32) + b.astype(jnp.float32)
    if act == "relu":
        y = jnp.maximum(y, 0.0)
    if residual is not None:
        y = y + residual.astype(jnp.float32)
        m = jnp.mean(y, axis=-1, keepdims=True)
        v = jnp.mean(jnp.square(y - m), axis=-1, keepdims=True)
        y = (y - m) * lax.rsqrt(v + eps) * gamma + beta
    return y.astype(out_dtype)


def attention_ref(qkv, heads, scale, **_):
    N, S, E3 = qkv.shape
    E = E3 // 3
    D = E // heads
    q = qkv[..., :E].reshape(N, S, heads, D)
    k = qkv[..., E:2 * E].reshape(N, S, heads, D)
    v = qkv[..., 2 * E:].reshape(N, S, heads, D)
    s = jnp.einsum("nqhd,nkhd->nhqk", q, k,
                   preferred_element_type=jnp.float32) * scale
    p = jax.nn.softmax(s, axis=-1)
    o = jnp.einsum("nhqk,nkhd->nqhd", p.astype(qkv.dtype), v,
                   preferred_element_type=jnp.float32)
    return o.reshape(N, S, E).astype(qkv.dtype)


# ------------------------------ ViT forward ------------------------------

def vit_forward(params, x, cfg, *, use_pallas=True):
    lin = pallas_linear if use_pallas else linear_ref
    attn = pallas_attention if use_pallas else attention_ref

    p = cfg["patch_size"]
    E = cfg["hidden_size"]
    H = cfg["heads"]
    D = E // H

    # --- patch embedding: Conv2d(3, E, kernel=p, stride=p) as patch-extract + matmul ---
    B, C, Him, Wim = x.shape
    hp, wp = Him // p, Wim // p
    patches = x.reshape(B, C, hp, p, wp, p)
    patches = jnp.transpose(patches, (0, 2, 4, 1, 3, 5))         # (B, hp, wp, C, p, p)
    patches = patches.reshape(B * hp * wp, C * p * p)
    emb = lin(patches, params["conv_w"], params["conv_b"])        # (B*np, E) bf16
    tokens = emb.reshape(B, hp * wp, E)                           # 'b c h w -> b (h w) c'

    # --- cls token + positional embedding ---
    cls = jnp.broadcast_to(params["cls"], (B, 1, E)).astype(tokens.dtype)
    xt = jnp.concatenate([cls, tokens], axis=1)                   # (B, n+1, E)
    n = hp * wp
    xt = (xt.astype(jnp.float32) + params["pos"][:, :n + 1]).astype(jnp.bfloat16)

    # --- transformer encoder (PyTorch batch_first=False: seq = image batch) ---
    # Keep a token-major layout (N, S, E) flattened to (N*S, E) so attention's
    # grouping is contiguous rows and no head/token transposes are needed per layer.
    S, N = B, n + 1
    h = jnp.transpose(xt, (1, 0, 2)).reshape(N * S, E)            # (N*S, E)
    scale = 1.0 / math.sqrt(D)

    for lp in params["layers"]:
        qkv = lin(h, lp["in_w"], lp["in_b"])                      # (N*S, 3E) fused qkv
        o = attn(qkv.reshape(N, S, 3 * E), H, scale)              # (N, S, E)
        o = o.reshape(N * S, E)
        h = lin(o, lp["out_w"], lp["out_b"],                      # out-proj + res + LN fused
                residual=h, gamma=lp["ln1_g"], beta=lp["ln1_b"])
        ff = lin(h, lp["ff1_w"], lp["ff1_b"], act="relu")
        h = lin(ff, lp["ff2_w"], lp["ff2_b"],                     # ff2 + res + LN fused
                residual=h, gamma=lp["ln2_g"], beta=lp["ln2_b"])

    cls_out = h.reshape(N, S, E)[0]                               # token 0 of every image
    return lin(cls_out, params["head_w"], params["head_b"],       # head N padded to 128,
               out_dtype=jnp.float32)                             # sliced back to classes


# --------------------------- parameter creation ---------------------------

def init_params(key, cfg):
    p = cfg["patch_size"]
    E = cfg["hidden_size"]
    M = cfg["mlp_dim"]
    nc = cfg["num_classes"]
    npat = cfg["num_patches"]
    depth = cfg["depth"]

    keys = iter(jax.random.split(key, 8 + depth * 8))

    def w(shape, scale=0.02):
        return jax.random.normal(next(keys), shape, jnp.float32) * scale

    params = dict(
        conv_w=w((3 * p * p, E)),        # Conv2d weight, flattened (cin*kh*kw, E)
        conv_b=w((E,)),
        pos=w((1, npat + 1, E), 1.0),    # nn.Parameter(torch.randn(...))
        cls=w((1, 1, E), 1.0),
        head_w=w((E, nc)),
        head_b=jnp.zeros((nc,), jnp.float32),
        layers=[],
    )
    for _ in range(depth):
        params["layers"].append(dict(
            in_w=w((E, 3 * E)), in_b=w((3 * E,)),
            out_w=w((E, E)), out_b=w((E,)),
            ff1_w=w((E, M)), ff1_b=w((M,)),
            ff2_w=w((M, E)), ff2_b=w((E,)),
            ln1_g=jnp.ones((E,), jnp.float32), ln1_b=jnp.zeros((E,), jnp.float32),
            ln2_g=jnp.ones((E,), jnp.float32), ln2_b=jnp.zeros((E,), jnp.float32),
        ))
    return params


# ----------------------------------- main ---------------------------------

if __name__ == "__main__":
    cfg = dict(image_size=16, patch_size=4, num_classes=10, depth=2, heads=4, mlp_dim=64)
    cfg["hidden_size"] = 3 * cfg["patch_size"] ** 2                       # 48
    cfg["num_patches"] = (cfg["image_size"] // cfg["patch_size"]) ** 2    # 16

    key = jax.random.PRNGKey(0)
    pkey, xkey = jax.random.split(key)
    params = init_params(pkey, cfg)
    x = jax.random.normal(xkey, (2, 3, cfg["image_size"], cfg["image_size"]), jnp.float32)

    fwd = jax.jit(functools.partial(vit_forward, cfg=cfg, use_pallas=True))
    ref_fwd = jax.jit(functools.partial(vit_forward, cfg=cfg, use_pallas=False))

    out = jax.block_until_ready(fwd(params, x))
    ref = jax.block_until_ready(ref_fwd(params, x))

    assert out.shape == (2, cfg["num_classes"]), out.shape
    assert bool(jnp.all(jnp.isfinite(out)))
    assert bool(jnp.allclose(out, ref, rtol=2e-2, atol=2e-2)), (out, ref)
    print("KERNEL_OK")
</pallas_src>

<mosaic_0001>
module attributes {stable_mosaic.version = 11 : i64} {
  func.func @_linear_kernel(%arg0: i32, %arg1: i32, %arg2: i32, %arg3: memref<32x128xbf16, #tpu.memory_space<vmem>>, %arg4: memref<128x128xbf16, #tpu.memory_space<vmem>>, %arg5: memref<1x128xf32, #tpu.memory_space<vmem>>, %arg6: memref<32x128xbf16, #tpu.memory_space<vmem>>, %arg7: memref<32x128xf32, #tpu.memory_space<vmem>>) attributes {dimension_semantics = [#tpu.dimension_semantics<parallel>, #tpu.dimension_semantics<parallel>, #tpu.dimension_semantics<arbitrary>], iteration_bounds = array<i64: 1, 1, 1>, scalar_prefetch = 0 : i64, scratch_operands = 1 : i64, tpu.core_type = #tpu.core_type<tc>, window_params = [{transform_indices = @transform_0, window_bounds = array<i64: 32, 128>}, {transform_indices = @transform_1, window_bounds = array<i64: 128, 128>}, {transform_indices = @transform_2, window_bounds = array<i64: 1, 128>}, {transform_indices = @transform_3, window_bounds = array<i64: 32, 128>}]} {
    %c0_i32 = arith.constant 0 : i32
    %0 = arith.cmpi eq, %arg2, %c0_i32 : i32
    %1 = arith.extui %0 : i1 to i32
    %c0_i32_0 = arith.constant 0 : i32
    %2 = arith.cmpi ne, %1, %c0_i32_0 : i32
    scf.if %2 {
      %cst_10 = arith.constant 0.000000e+00 : f32
      %12 = vector.broadcast %cst_10 : f32 to vector<32x128xf32>
      %c0_11 = arith.constant 0 : index
      %c0_12 = arith.constant 0 : index
      %13 = vector.load %arg7[%c0_11, %c0_12] : memref<32x128xf32, #tpu.memory_space<vmem>>, vector<32x128xf32>
      tpu.vector_store %arg7[%c0_11, %c0_12], %12 {strides = array<i32>} : memref<32x128xf32, #tpu.memory_space<vmem>>, vector<32x128xf32>,
    } else {
    }
    %c0 = arith.constant 0 : index
    %c0_1 = arith.constant 0 : index
    %3 = vector.load %arg7[%c0, %c0_1] : memref<32x128xf32, #tpu.memory_space<vmem>>, vector<32x128xf32>
    %c0_2 = arith.constant 0 : index
    %c0_3 = arith.constant 0 : index
    %4 = vector.load %arg3[%c0_2, %c0_3] : memref<32x128xbf16, #tpu.memory_space<vmem>>, vector<32x128xbf16>
    %c0_4 = arith.constant 0 : index
    %c0_5 = arith.constant 0 : index
    %5 = vector.load %arg4[%c0_4, %c0_5] : memref<128x128xbf16, #tpu.memory_space<vmem>>, vector<128x128xbf16>
    %cst = arith.constant dense<0.000000e+00> : vector<32x128xf32>
    %6 = tpu.matmul %4, %5, %cst {dimension_numbers = #tpu.dot_dimension_numbers<[1], [0], [0], [1], [0, 0, 1, 1], [], []>} : vector<32x128xbf16>, vector<128x128xbf16>, vector<32x128xf32> -> vector<32x128xf32>
    %7 = arith.addf %3, %6 : vector<32x128xf32>
    %c0_6 = arith.constant 0 : index
    %c0_7 = arith.constant 0 : index
    %8 = vector.load %arg7[%c0_6, %c0_7] : memref<32x128xf32, #tpu.memory_space<vmem>>, vector<32x128xf32>
    tpu.vector_store %arg7[%c0_6, %c0_7], %7 {strides = array<i32>} : memref<32x128xf32, #tpu.memory_space<vmem>>, vector<32x128xf32>,
    %c0_i32_8 = arith.constant 0 : i32
    %9 = arith.cmpi eq, %arg2, %c0_i32_8 : i32
    %10 = arith.extui %9 : i1 to i32
    %c0_i32_9 = arith.constant 0 : i32
    %11 = arith.cmpi ne, %10, %c0_i32_9 : i32
    scf.if %11 {
      %c0_10 = arith.constant 0 : index
      %c0_11 = arith.constant 0 : index
      %12 = vector.load %arg7[%c0_10, %c0_11] : memref<32x128xf32, #tpu.memory_space<vmem>>, vector<32x128xf32>
      %c0_12 = arith.constant 0 : index
      %c0_13 = arith.constant 0 : index
      %13 = vector.load %arg5[%c0_12, %c0_13] : memref<1x128xf32, #tpu.memory_space<vmem>>, vector<1x128xf32>
      %14 = vector.broadcast %13 : vector<1x128xf32> to vector<32x128xf32>
      %15 = arith.addf %12, %14 : vector<32x128xf32>
      %16 = arith.truncf %15 : vector<32x128xf32> to vector<32x128xbf16>
      %c0_14 = arith.constant 0 : index
      %c0_15 = arith.constant 0 : index
      %17 = vector.load %arg6[%c0_14, %c0_15] : memref<32x128xbf16, #tpu.memory_space<vmem>>, vector<32x128xbf16>
      tpu.vector_store %arg6[%c0_14, %c0_15], %16 {strides = array<i32>} : memref<32x128xbf16, #tpu.memory_space<vmem>>, vector<32x128xbf16>,
    } else {
    }
    return
  }
  func.func @transform_0(%arg0: i32, %arg1: i32, %arg2: i32) -> (i32, i32) {
    %c0_i32 = arith.constant 0 : i32
    return %arg0, %arg2 : i32, i32
  }
  func.func @transform_1(%arg0: i32, %arg1: i32, %arg2: i32) -> (i32, i32) {
    %c0_i32 = arith.constant 0 : i32
    return %arg2, %arg1 : i32, i32
  }
  func.func @transform_2(%arg0: i32, %arg1: i32, %arg2: i32) -> (i32, i32) {
    %c0_i32 = arith.constant 0 : i32
    %c0_i32_0 = arith.constant 0 : i32
    return %c0_i32, %arg1 : i32, i32
  }
  func.func @transform_3(%arg0: i32, %arg1: i32, %arg2: i32) -> (i32, i32) {
    %c0_i32 = arith.constant 0 : i32
    return %arg0, %arg1 : i32, i32
  }
}

module attributes {stable_mosaic.version = 11 : i64} {
  func.func @_attention_kernel(%arg0: i32, %arg1: memref<16x2x144xbf16, #tpu.memory_space<vmem>>, %arg2: memref<16x2x48xbf16, #tpu.memory_space<vmem>>) attributes {dimension_semantics = [#tpu.dimension_semantics<parallel>], iteration_bounds = array<i64: 2>, scalar_prefetch = 0 : i64, scratch_operands = 0 : i64, tpu.core_type = #tpu.core_type<tc>, window_params = [{transform_indices = @transform_0, window_bounds = array<i64: 16, 2, 144>}, {transform_indices = @transform_1, window_bounds = array<i64: 16, 2, 48>}]} {
    %c0 = arith.constant 0 : index
    %c0_0 = arith.constant 0 : index
    %c0_1 = arith.constant 0 : index
    %0 = vector.load %arg1[%c0, %c0_0, %c0_1] : memref<16x2x144xbf16, #tpu.memory_space<vmem>>, vector<16x2x144xbf16>
    %1 = vector.extract_strided_slice %0 {offsets = [0, 0, 0], sizes = [16, 2, 12], strides = [1, 1, 1]} : vector<16x2x144xbf16> to vector<16x2x12xbf16>
    %2 = vector.extract_strided_slice %0 {offsets = [0, 0, 48], sizes = [16, 2, 12], strides = [1, 1, 1]} : vector<16x2x144xbf16> to vector<16x2x12xbf16>
    %3 = vector.extract_strided_slice %0 {offsets = [0, 0, 96], sizes = [16, 2, 12], strides = [1, 1, 1]} : vector<16x2x144xbf16> to vector<16x2x12xbf16>
    "tpu.trace_start"() <{level = 10 : i32, message = "nsd,ntd->nst"}> : () -> ()
    %cst = arith.constant dense<0.000000e+00> : vector<16x2x2xf32>
    %4 = tpu.matmul %1, %2, %cst {dimension_numbers = #tpu.dot_dimension_numbers<[2], [2], [1], [1], [0, 0, 0, 1, 1, 1], [0], [0]>} : vector<16x2x12xbf16>, vector<16x2x12xbf16>, vector<16x2x2xf32> -> vector<16x2x2xf32>
    "tpu.trace_stop"() : () -> ()
    %cst_2 = arith.constant 0.288675129 : f32
    %5 = vector.broadcast %cst_2 : f32 to vector<16x2x2xf32>
    %6 = arith.mulf %4, %5 : vector<16x2x2xf32>
    %cst_3 = arith.constant dense<0xFF800000> : vector<16x2xf32>
    %7 = vector.multi_reduction <maximumf>, %6, %cst_3 [2] : vector<16x2x2xf32> to vector<16x2xf32>
    %8 = vector.shape_cast %7 : vector<16x2xf32> to vector<16x2x1xf32>
    %9 = vector.broadcast %8 : vector<16x2x1xf32> to vector<16x2x2xf32>
    %10 = arith.subf %6, %9 : vector<16x2x2xf32>
    %11 = math.exp %10 : vector<16x2x2xf32>
    %cst_4 = arith.constant dense<0.000000e+00> : vector<16x2xf32>
    %12 = vector.multi_reduction <add>, %11, %cst_4 [2] : vector<16x2x2xf32> to vector<16x2xf32>
    %13 = vector.shape_cast %12 : vector<16x2xf32> to vector<16x2x1xf32>
    %14 = tpu.reciprocal %13 {approx = true} : vector<16x2x1xf32> -> vector<16x2x1xf32>
    %15 = vector.broadcast %14 : vector<16x2x1xf32> to vector<16x2x2xf32>
    %16 = arith.mulf %11, %15 : vector<16x2x2xf32>
    %17 = arith.truncf %16 : vector<16x2x2xf32> to vector<16x2x2xbf16>
    "tpu.trace_start"() <{level = 10 : i32, message = "nst,ntd->nsd"}> : () -> ()
    %cst_5 = arith.constant dense<0.000000e+00> : vector<16x2x12xf32>
    %18 = tpu.matmul %17, %3, %cst_5 {dimension_numbers = #tpu.dot_dimension_numbers<[2], [1], [1], [2], [0, 0, 0, 1, 1, 2], [0], [0]>} : vector<16x2x2xbf16>, vector<16x2x12xbf16>, vector<16x2x12xf32> -> vector<16x2x12xf32>
    "tpu.trace_stop"() : () -> ()
    %19 = vector.extract_strided_slice %0 {offsets = [0, 0, 12], sizes = [16, 2, 12], strides = [1, 1, 1]} : vector<16x2x144xbf16> to vector<16x2x12xbf16>
    %20 = vector.extract_strided_slice %0 {offsets = [0, 0, 60], sizes = [16, 2, 12], strides = [1, 1, 1]} : vector<16x2x144xbf16> to vector<16x2x12xbf16>
    %21 = vector.extract_strided_slice %0 {offsets = [0, 0, 108], sizes = [16, 2, 12], strides = [1, 1, 1]} : vector<16x2x144xbf16> to vector<16x2x12xbf16>
    "tpu.trace_start"() <{level = 10 : i32, message = "nsd,ntd->nst"}> : () -> ()
    %cst_6 = arith.constant dense<0.000000e+00> : vector<16x2x2xf32>
    %22 = tpu.matmul %19, %20, %cst_6 {dimension_numbers = #tpu.dot_dimension_numbers<[2], [2], [1], [1], [0, 0, 0, 1, 1, 1], [0], [0]>} : vector<16x2x12xbf16>, vector<16x2x12xbf16>, vector<16x2x2xf32> -> vector<16x2x2xf32>
    "tpu.trace_stop"() : () -> ()
    %cst_7 = arith.constant 0.288675129 : f32
    %23 = vector.broadcast %cst_7 : f32 to vector<16x2x2xf32>
    %24 = arith.mulf %22, %23 : vector<16x2x2xf32>
    %cst_8 = arith.constant dense<0xFF800000> : vector<16x2xf32>
    %25 = vector.multi_reduction <maximumf>, %24, %cst_8 [2] : vector<16x2x2xf32> to vector<16x2xf32>
    %26 = vector.shape_cast %25 : vector<16x2xf32> to vector<16x2x1xf32>
    %27 = vector.broadcast %26 : vector<16x2x1xf32> to vector<16x2x2xf32>
    %28 = arith.subf %24, %27 : vector<16x2x2xf32>
    %29 = math.exp %28 : vector<16x2x2xf32>
    %cst_9 = arith.constant dense<0.000000e+00> : vector<16x2xf32>
    %30 = vector.multi_reduction <add>, %29, %cst_9 [2] : vector<16x2x2xf32> to vector<16x2xf32>
    %31 = vector.shape_cast %30 : vector<16x2xf32> to vector<16x2x1xf32>
    %32 = tpu.reciprocal %31 {approx = true} : vector<16x2x1xf32> -> vector<16x2x1xf32>
    %33 = vector.broadcast %32 : vector<16x2x1xf32> to vector<16x2x2xf32>
    %34 = arith.mulf %29, %33 : vector<16x2x2xf32>
    %35 = arith.truncf %34 : vector<16x2x2xf32> to vector<16x2x2xbf16>
    "tpu.trace_start"() <{level = 10 : i32, message = "nst,ntd->nsd"}> : () -> ()
    %cst_10 = arith.constant dense<0.000000e+00> : vector<16x2x12xf32>
    %36 = tpu.matmul %35, %21, %cst_10 {dimension_numbers = #tpu.dot_dimension_numbers<[2], [1], [1], [2], [0, 0, 0, 1, 1, 2], [0], [0]>} : vector<16x2x2xbf16>, vector<16x2x12xbf16>, vector<16x2x12xf32> -> vector<16x2x12xf32>
    "tpu.trace_stop"() : () -> ()
    %37 = vector.extract_strided_slice %0 {offsets = [0, 0, 24], sizes = [16, 2, 12], strides = [1, 1, 1]} : vector<16x2x144xbf16> to vector<16x2x12xbf16>
    %38 = vector.extract_strided_slice %0 {offsets = [0, 0, 72], sizes = [16, 2, 12], strides = [1, 1, 1]} : vector<16x2x144xbf16> to vector<16x2x12xbf16>
    %39 = vector.extract_strided_slice %0 {offsets = [0, 0, 120], sizes = [16, 2, 12], strides = [1, 1, 1]} : vector<16x2x144xbf16> to vector<16x2x12xbf16>
    "tpu.trace_start"() <{level = 10 : i32, message = "nsd,ntd->nst"}> : () -> ()
    %cst_11 = arith.constant dense<0.000000e+00> : vector<16x2x2xf32>
    %40 = tpu.matmul %37, %38, %cst_11 {dimension_numbers = #tpu.dot_dimension_numbers<[2], [2], [1], [1], [0, 0, 0, 1, 1, 1], [0], [0]>} : vector<16x2x12xbf16>, vector<16x2x12xbf16>, vector<16x2x2xf32> -> vector<16x2x2xf32>
    "tpu.trace_stop"() : () -> ()
    %cst_12 = arith.constant 0.288675129 : f32
    %41 = vector.broadcast %cst_12 : f32 to vector<16x2x2xf32>
    %42 = arith.mulf %40, %41 : vector<16x2x2xf32>
    %cst_13 = arith.constant dense<0xFF800000> : vector<16x2xf32>
    %43 = vector.multi_reduction <maximumf>, %42, %cst_13 [2] : vector<16x2x2xf32> to vector<16x2xf32>
    %44 = vector.shape_cast %43 : vector<16x2xf32> to vector<16x2x1xf32>
    %45 = vector.broadcast %44 : vector<16x2x1xf32> to vector<16x2x2xf32>
    %46 = arith.subf %42, %45 : vector<16x2x2xf32>
    %47 = math.exp %46 : vector<16x2x2xf32>
    %cst_14 = arith.constant dense<0.000000e+00> : vector<16x2xf32>
    %48 = vector.multi_reduction <add>, %47, %cst_14 [2] : vector<16x2x2xf32> to vector<16x2xf32>
    %49 = vector.shape_cast %48 : vector<16x2xf32> to vector<16x2x1xf32>
    %50 = tpu.reciprocal %49 {approx = true} : vector<16x2x1xf32> -> vector<16x2x1xf32>
    %51 = vector.broadcast %50 : vector<16x2x1xf32> to vector<16x2x2xf32>
    %52 = arith.mulf %47, %51 : vector<16x2x2xf32>
    %53 = arith.truncf %52 : vector<16x2x2xf32> to vector<16x2x2xbf16>
    "tpu.trace_start"() <{level = 10 : i32, message = "nst,ntd->nsd"}> : () -> ()
    %cst_15 = arith.constant dense<0.000000e+00> : vector<16x2x12xf32>
    %54 = tpu.matmul %53, %39, %cst_15 {dimension_numbers = #tpu.dot_dimension_numbers<[2], [1], [1], [2], [0, 0, 0, 1, 1, 2], [0], [0]>} : vector<16x2x2xbf16>, vector<16x2x12xbf16>, vector<16x2x12xf32> -> vector<16x2x12xf32>
    "tpu.trace_stop"() : () -> ()
    %55 = vector.extract_strided_slice %0 {offsets = [0, 0, 36], sizes = [16, 2, 12], strides = [1, 1, 1]} : vector<16x2x144xbf16> to vector<16x2x12xbf16>
    %56 = vector.extract_strided_slice %0 {offsets = [0, 0, 84], sizes = [16, 2, 12], strides = [1, 1, 1]} : vector<16x2x144xbf16> to vector<16x2x12xbf16>
    %57 = vector.extract_strided_slice %0 {offsets = [0, 0, 132], sizes = [16, 2, 12], strides = [1, 1, 1]} : vector<16x2x144xbf16> to vector<16x2x12xbf16>
    "tpu.trace_start"() <{level = 10 : i32, message = "nsd,ntd->nst"}> : () -> ()
    %cst_16 = arith.constant dense<0.000000e+00> : vector<16x2x2xf32>
    %58 = tpu.matmul %55, %56, %cst_16 {dimension_numbers = #tpu.dot_dimension_numbers<[2], [2], [1], [1], [0, 0, 0, 1, 1, 1], [0], [0]>} : vector<16x2x12xbf16>, vector<16x2x12xbf16>, vector<16x2x2xf32> -> vector<16x2x2xf32>
    "tpu.trace_stop"() : () -> ()
    %cst_17 = arith.constant 0.288675129 : f32
    %59 = vector.broadcast %cst_17 : f32 to vector<16x2x2xf32>
    %60 = arith.mulf %58, %59 : vector<16x2x2xf32>
    %cst_18 = arith.constant dense<0xFF800000> : vector<16x2xf32>
    %61 = vector.multi_reduction <maximumf>, %60, %cst_18 [2] : vector<16x2x2xf32> to vector<16x2xf32>
    %62 = vector.shape_cast %61 : vector<16x2xf32> to vector<16x2x1xf32>
    %63 = vector.broadcast %62 : vector<16x2x1xf32> to vector<16x2x2xf32>
    %64 = arith.subf %60, %63 : vector<16x2x2xf32>
    %65 = math.exp %64 : vector<16x2x2xf32>
    %cst_19 = arith.constant dense<0.000000e+00> : vector<16x2xf32>
    %66 = vector.multi_reduction <add>, %65, %cst_19 [2] : vector<16x2x2xf32> to vector<16x2xf32>
    %67 = vector.shape_cast %66 : vector<16x2xf32> to vector<16x2x1xf32>
    %68 = tpu.reciprocal %67 {approx = true} : vector<16x2x1xf32> -> vector<16x2x1xf32>
    %69 = vector.broadcast %68 : vector<16x2x1xf32> to vector<16x2x2xf32>
    %70 = arith.mulf %65, %69 : vector<16x2x2xf32>
    %71 = arith.truncf %70 : vector<16x2x2xf32> to vector<16x2x2xbf16>
    "tpu.trace_start"() <{level = 10 : i32, message = "nst,ntd->nsd"}> : () -> ()
    %cst_20 = arith.constant dense<0.000000e+00> : vector<16x2x12xf32>
    %72 = tpu.matmul %71, %57, %cst_20 {dimension_numbers = #tpu.dot_dimension_numbers<[2], [1], [1], [2], [0, 0, 0, 1, 1, 2], [0], [0]>} : vector<16x2x2xbf16>, vector<16x2x12xbf16>, vector<16x2x12xf32> -> vector<16x2x12xf32>
    "tpu.trace_stop"() : () -> ()
    %73 = tpu.concatenate %18, %36, %54, %72 in 2 : vector<16x2x12xf32>, vector<16x2x12xf32>, vector<16x2x12xf32>, vector<16x2x12xf32> -> vector<16x2x48xf32>
    %74 = arith.truncf %73 : vector<16x2x48xf32> to vector<16x2x48xbf16>
    %c0_21 = arith.constant 0 : index
    %c0_22 = arith.constant 0 : index
    %c0_23 = arith.constant 0 : index
    %75 = vector.load %arg2[%c0_21, %c0_22, %c0_23] : memref<16x2x48xbf16, #tpu.memory_space<vmem>>, vector<16x2x48xbf16>
    tpu.vector_store %arg2[%c0_21, %c0_22, %c0_23], %74 {strides = array<i32>} : memref<16x2x48xbf16, #tpu.memory_space<vmem>>, vector<16x2x48xbf16>,
    return
  }
  func.func @transform_0(%arg0: i32) -> (i32, i32, i32) {
    %c0_i32 = arith.constant 0 : i32
    %c0_i32_0 = arith.constant 0 : i32
    %c0_i32_1 = arith.constant 0 : i32
    return %arg0, %c0_i32, %c0_i32_0 : i32, i32, i32
  }
  func.func @transform_1(%arg0: i32) -> (i32, i32, i32) {
    %c0_i32 = arith.constant 0 : i32
    %c0_i32_0 = arith.constant 0 : i32
    %c0_i32_1 = arith.constant 0 : i32
    return %arg0, %c0_i32, %c0_i32_0 : i32, i32, i32
  }
}

module attributes {stable_mosaic.version = 11 : i64} {
  func.func @_linear_kernel(%arg0: i32, %arg1: i32, %arg2: i32, %arg3: memref<40x128xbf16, #tpu.memory_space<vmem>>, %arg4: memref<128x256xbf16, #tpu.memory_space<vmem>>, %arg5: memref<1x256xf32, #tpu.memory_space<vmem>>, %arg6: memref<40x256xbf16, #tpu.memory_space<vmem>>, %arg7: memref<40x256xf32, #tpu.memory_space<vmem>>) attributes {dimension_semantics = [#tpu.dimension_semantics<parallel>, #tpu.dimension_semantics<parallel>, #tpu.dimension_semantics<arbitrary>], iteration_bounds = array<i64: 1, 1, 1>, scalar_prefetch = 0 : i64, scratch_operands = 1 : i64, tpu.core_type = #tpu.core_type<tc>, window_params = [{transform_indices = @transform_0, window_bounds = array<i64: 40, 128>}, {transform_indices = @transform_1, window_bounds = array<i64: 128, 256>}, {transform_indices = @transform_2, window_bounds = array<i64: 1, 256>}, {transform_indices = @transform_3, window_bounds = array<i64: 40, 256>}]} {
    %c0_i32 = arith.constant 0 : i32
    %0 = arith.cmpi eq, %arg2, %c0_i32 : i32
    %1 = arith.extui %0 : i1 to i32
    %c0_i32_0 = arith.constant 0 : i32
    %2 = arith.cmpi ne, %1, %c0_i32_0 : i32
    scf.if %2 {
      %cst_10 = arith.constant 0.000000e+00 : f32
      %12 = vector.broadcast %cst_10 : f32 to vector<40x256xf32>
      %c0_11 = arith.constant 0 : index
      %c0_12 = arith.constant 0 : index
      %13 = vector.load %arg7[%c0_11, %c0_12] : memref<40x256xf32, #tpu.memory_space<vmem>>, vector<40x256xf32>
      tpu.vector_store %arg7[%c0_11, %c0_12], %12 {strides = array<i32>} : memref<40x256xf32, #tpu.memory_space<vmem>>, vector<40x256xf32>,
    } else {
    }
    %c0 = arith.constant 0 : index
    %c0_1 = arith.constant 0 : index
    %3 = vector.load %arg7[%c0, %c0_1] : memref<40x256xf32, #tpu.memory_space<vmem>>, vector<40x256xf32>
    %c0_2 = arith.constant 0 : index
    %c0_3 = arith.constant 0 : index
    %4 = vector.load %arg3[%c0_2, %c0_3] : memref<40x128xbf16, #tpu.memory_space<vmem>>, vector<40x128xbf16>
    %c0_4 = arith.constant 0 : index
    %c0_5 = arith.constant 0 : index
    %5 = vector.load %arg4[%c0_4, %c0_5] : memref<128x256xbf16, #tpu.memory_space<vmem>>, vector<128x256xbf16>
    %cst = arith.constant dense<0.000000e+00> : vector<40x256xf32>
    %6 = tpu.matmul %4, %5, %cst {dimension_numbers = #tpu.dot_dimension_numbers<[1], [0], [0], [1], [0, 0, 1, 1], [], []>} : vector<40x128xbf16>, vector<128x256xbf16>, vector<40x256xf32> -> vector<40x256xf32>
    %7 = arith.addf %3, %6 : vector<40x256xf32>
    %c0_6 = arith.constant 0 : index
    %c0_7 = arith.constant 0 : index
    %8 = vector.load %arg7[%c0_6, %c0_7] : memref<40x256xf32, #tpu.memory_space<vmem>>, vector<40x256xf32>
    tpu.vector_store %arg7[%c0_6, %c0_7], %7 {strides = array<i32>} : memref<40x256xf32, #tpu.memory_space<vmem>>, vector<40x256xf32>,
    %c0_i32_8 = arith.constant 0 : i32
    %9 = arith.cmpi eq, %arg2, %c0_i32_8 : i32
    %10 = arith.extui %9 : i1 to i32
    %c0_i32_9 = arith.constant 0 : i32
    %11 = arith.cmpi ne, %10, %c0_i32_9 : i32
    scf.if %11 {
      %c0_10 = arith.constant 0 : index
      %c0_11 = arith.constant 0 : index
      %12 = vector.load %arg7[%c0_10, %c0_11] : memref<40x256xf32, #tpu.memory_space<vmem>>, vector<40x256xf32>
      %c0_12 = arith.constant 0 : index
      %c0_13 = arith.constant 0 : index
      %13 = vector.load %arg5[%c0_12, %c0_13] : memref<1x256xf32, #tpu.memory_space<vmem>>, vector<1x256xf32>
      %14 = vector.broadcast %13 : vector<1x256xf32> to vector<40x256xf32>
      %15 = arith.addf %12, %14 : vector<40x256xf32>
      %16 = arith.truncf %15 : vector<40x256xf32> to vector<40x256xbf16>
      %c0_14 = arith.constant 0 : index
      %c0_15 = arith.constant 0 : index
      %17 = vector.load %arg6[%c0_14, %c0_15] : memref<40x256xbf16, #tpu.memory_space<vmem>>, vector<40x256xbf16>
      tpu.vector_store %arg6[%c0_14, %c0_15], %16 {strides = array<i32>} : memref<40x256xbf16, #tpu.memory_space<vmem>>, vector<40x256xbf16>,
    } else {
    }
    return
  }
  func.func @transform_0(%arg0: i32, %arg1: i32, %arg2: i32) -> (i32, i32) {
    %c0_i32 = arith.constant 0 : i32
    return %arg0, %arg2 : i32, i32
  }
  func.func @transform_1(%arg0: i32, %arg1: i32, %arg2: i32) -> (i32, i32) {
    %c0_i32 = arith.constant 0 : i32
    return %arg2, %arg1 : i32, i32
  }
  func.func @transform_2(%arg0: i32, %arg1: i32, %arg2: i32) -> (i32, i32) {
    %c0_i32 = arith.constant 0 : i32
    %c0_i32_0 = arith.constant 0 : i32
    return %c0_i32, %arg1 : i32, i32
  }
  func.func @transform_3(%arg0: i32, %arg1: i32, %arg2: i32) -> (i32, i32) {
    %c0_i32 = arith.constant 0 : i32
    return %arg0, %arg1 : i32, i32
  }
}

module attributes {stable_mosaic.version = 11 : i64} {
  func.func @_linear_kernel(%arg0: i32, %arg1: i32, %arg2: i32, %arg3: memref<40x128xbf16, #tpu.memory_space<vmem>>, %arg4: memref<128x128xbf16, #tpu.memory_space<vmem>>, %arg5: memref<1x128xf32, #tpu.memory_space<vmem>>, %arg6: memref<40x128xbf16, #tpu.memory_space<vmem>>, %arg7: memref<1x128xf32, #tpu.memory_space<vmem>>, %arg8: memref<1x128xf32, #tpu.memory_space<vmem>>, %arg9: memref<40x128xbf16, #tpu.memory_space<vmem>>, %arg10: memref<40x128xf32, #tpu.memory_space<vmem>>) attributes {dimension_semantics = [#tpu.dimension_semantics<parallel>, #tpu.dimension_semantics<parallel>, #tpu.dimension_semantics<arbitrary>], iteration_bounds = array<i64: 1, 1, 1>, scalar_prefetch = 0 : i64, scratch_operands = 1 : i64, tpu.core_type = #tpu.core_type<tc>, window_params = [{transform_indices = @transform_0, window_bounds = array<i64: 40, 128>}, {transform_indices = @transform_1, window_bounds = array<i64: 128, 128>}, {transform_indices = @transform_2, window_bounds = array<i64: 1, 128>}, {transform_indices = @transform_3, window_bounds = array<i64: 40, 128>}, {pipeline_mode = #tpu.pipeline_mode<synchronous>, transform_indices = @transform_4, window_bounds = array<i64: 1, 128>}, {pipeline_mode = #tpu.pipeline_mode<synchronous>, transform_indices = @transform_5, window_bounds = array<i64: 1, 128>}, {transform_indices = @transform_6, window_bounds = array<i64: 40, 128>}]} {
    %c0_i32 = arith.constant 0 : i32
    %0 = arith.cmpi eq, %arg2, %c0_i32 : i32
    %1 = arith.extui %0 : i1 to i32
    %c0_i32_0 = arith.constant 0 : i32
    %2 = arith.cmpi ne, %1, %c0_i32_0 : i32
    scf.if %2 {
      %cst_10 = arith.constant 0.000000e+00 : f32
      %12 = vector.broadcast %cst_10 : f32 to vector<40x128xf32>
      %c0_11 = arith.constant 0 : index
      %c0_12 = arith.constant 0 : index
      %13 = vector.load %arg10[%c0_11, %c0_12] : memref<40x128xf32, #tpu.memory_space<vmem>>, vector<40x128xf32>
      tpu.vector_store %arg10[%c0_11, %c0_12], %12 {strides = array<i32>} : memref<40x128xf32, #tpu.memory_space<vmem>>, vector<40x128xf32>,
    } else {
    }
    %c0 = arith.constant 0 : index
    %c0_1 = arith.constant 0 : index
    %3 = vector.load %arg10[%c0, %c0_1] : memref<40x128xf32, #tpu.memory_space<vmem>>, vector<40x128xf32>
    %c0_2 = arith.constant 0 : index
    %c0_3 = arith.constant 0 : index
    %4 = vector.load %arg3[%c0_2, %c0_3] : memref<40x128xbf16, #tpu.memory_space<vmem>>, vector<40x128xbf16>
    %c0_4 = arith.constant 0 : index
    %c0_5 = arith.constant 0 : index
    %5 = vector.load %arg4[%c0_4, %c0_5] : memref<128x128xbf16, #tpu.memory_space<vmem>>, vector<128x128xbf16>
    %cst = arith.constant dense<0.000000e+00> : vector<40x128xf32>
    %6 = tpu.matmul %4, %5, %cst {dimension_numbers = #tpu.dot_dimension_numbers<[1], [0], [0], [1], [0, 0, 1, 1], [], []>} : vector<40x128xbf16>, vector<128x128xbf16>, vector<40x128xf32> -> vector<40x128xf32>
    %7 = arith.addf %3, %6 : vector<40x128xf32>
    %c0_6 = arith.constant 0 : index
    %c0_7 = arith.constant 0 : index
    %8 = vector.load %arg10[%c0_6, %c0_7] : memref<40x128xf32, #tpu.memory_space<vmem>>, vector<40x128xf32>
    tpu.vector_store %arg10[%c0_6, %c0_7], %7 {strides = array<i32>} : memref<40x128xf32, #tpu.memory_space<vmem>>, vector<40x128xf32>,
    %c0_i32_8 = arith.constant 0 : i32
    %9 = arith.cmpi eq, %arg2, %c0_i32_8 : i32
    %10 = arith.extui %9 : i1 to i32
    %c0_i32_9 = arith.constant 0 : i32
    %11 = arith.cmpi ne, %10, %c0_i32_9 : i32
    scf.if %11 {
      %c0_10 = arith.constant 0 : index
      %c0_11 = arith.constant 0 : index
      %12 = vector.load %arg10[%c0_10, %c0_11] : memref<40x128xf32, #tpu.memory_space<vmem>>, vector<40x128xf32>
      %c0_12 = arith.constant 0 : index
      %c0_13 = arith.constant 0 : index
      %13 = vector.load %arg5[%c0_12, %c0_13] : memref<1x128xf32, #tpu.memory_space<vmem>>, vector<1x128xf32>
      %14 = vector.broadcast %13 : vector<1x128xf32> to vector<40x128xf32>
      %15 = arith.addf %12, %14 : vector<40x128xf32>
      %c0_14 = arith.constant 0 : index
      %c0_15 = arith.constant 0 : index
      %16 = vector.load %arg6[%c0_14, %c0_15] : memref<40x128xbf16, #tpu.memory_space<vmem>>, vector<40x128xbf16>
      %17 = arith.extf %16 : vector<40x128xbf16> to vector<40x128xf32>
      %18 = arith.addf %15, %17 : vector<40x128xf32>
      %cst_16 = arith.constant dense<0.000000e+00> : vector<40xf32>
      %19 = vector.multi_reduction <add>, %18, %cst_16 [1] : vector<40x128xf32> to vector<40xf32>
      %20 = vector.shape_cast %19 : vector<40xf32> to vector<40x1xf32>
      %cst_17 = arith.constant 0.020833334 : f32
      %21 = vector.broadcast %cst_17 : f32 to vector<40x1xf32>
      %22 = arith.mulf %20, %21 : vector<40x1xf32>
      %23 = vector.broadcast %22 : vector<40x1xf32> to vector<40x128xf32>
      %24 = arith.subf %18, %23 : vector<40x128xf32>
      %25 = arith.mulf %24, %24 : vector<40x128xf32>
      %cst_18 = arith.constant dense<0.000000e+00> : vector<40xf32>
      %26 = vector.multi_reduction <add>, %25, %cst_18 [1] : vector<40x128xf32> to vector<40xf32>
      %27 = vector.shape_cast %26 : vector<40xf32> to vector<40x1xf32>
      %cst_19 = arith.constant 8.000000e+01 : f32
      %28 = vector.broadcast %cst_19 : f32 to vector<40x1xf32>
      %29 = arith.mulf %28, %22 : vector<40x1xf32>
      %30 = arith.mulf %29, %22 : vector<40x1xf32>
      %31 = arith.subf %27, %30 : vector<40x1xf32>
      %cst_20 = arith.constant 0.020833334 : f32
      %32 = vector.broadcast %cst_20 : f32 to vector<40x1xf32>
      %33 = arith.mulf %31, %32 : vector<40x1xf32>
      %cst_21 = arith.constant 9.99999974E-6 : f32
      %34 = vector.broadcast %cst_21 : f32 to vector<40x1xf32>
      %35 = arith.addf %33, %34 : vector<40x1xf32>
      %36 = math.rsqrt %35 : vector<40x1xf32>
      %37 = vector.broadcast %36 : vector<40x1xf32> to vector<40x128xf32>
      %38 = arith.mulf %24, %37 : vector<40x128xf32>
      %c0_22 = arith.constant 0 : index
      %c0_23 = arith.constant 0 : index
      %39 = vector.load %arg7[%c0_22, %c0_23] : memref<1x128xf32, #tpu.memory_space<vmem>>, vector<1x128xf32>
      %40 = vector.broadcast %39 : vector<1x128xf32> to vector<40x128xf32>
      %41 = arith.mulf %38, %40 : vector<40x128xf32>
      %c0_24 = arith.constant 0 : index
      %c0_25 = arith.constant 0 : index
      %42 = vector.load %arg8[%c0_24, %c0_25] : memref<1x128xf32, #tpu.memory_space<vmem>>, vector<1x128xf32>
      %43 = vector.broadcast %42 : vector<1x128xf32> to vector<40x128xf32>
      %44 = arith.addf %41, %43 : vector<40x128xf32>
      %45 = arith.truncf %44 : vector<40x128xf32> to vector<40x128xbf16>
      %c0_26 = arith.constant 0 : index
      %c0_27 = arith.constant 0 : index
      %46 = vector.load %arg9[%c0_26, %c0_27] : memref<40x128xbf16, #tpu.memory_space<vmem>>, vector<40x128xbf16>
      tpu.vector_store %arg9[%c0_26, %c0_27], %45 {strides = array<i32>} : memref<40x128xbf16, #tpu.memory_space<vmem>>, vector<40x128xbf16>,
    } else {
    }
    return
  }
  func.func @transform_0(%arg0: i32, %arg1: i32, %arg2: i32) -> (i32, i32) {
    %c0_i32 = arith.constant 0 : i32
    return %arg0, %arg2 : i32, i32
  }
  func.func @transform_1(%arg0: i32, %arg1: i32, %arg2: i32) -> (i32, i32) {
    %c0_i32 = arith.constant 0 : i32
    return %arg2, %arg1 : i32, i32
  }
  func.func @transform_2(%arg0: i32, %arg1: i32, %arg2: i32) -> (i32, i32) {
    %c0_i32 = arith.constant 0 : i32
    %c0_i32_0 = arith.constant 0 : i32
    return %c0_i32, %arg1 : i32, i32
  }
  func.func @transform_3(%arg0: i32, %arg1: i32, %arg2: i32) -> (i32, i32) {
    %c0_i32 = arith.constant 0 : i32
    %c0_i32_0 = arith.constant 0 : i32
    return %arg0, %c0_i32 : i32, i32
  }
  func.func @transform_4(%arg0: i32, %arg1: i32, %arg2: i32) -> (i32, i32) {
    %c0_i32 = arith.constant 0 : i32
    %c0_i32_0 = arith.constant 0 : i32
    %c0_i32_1 = arith.constant 0 : i32
    return %c0_i32, %c0_i32_0 : i32, i32
  }
  func.func @transform_5(%arg0: i32, %arg1: i32, %arg2: i32) -> (i32, i32) {
    %c0_i32 = arith.constant 0 : i32
    %c0_i32_0 = arith.constant 0 : i32
    %c0_i32_1 = arith.constant 0 : i32
    return %c0_i32, %c0_i32_0 : i32, i32
  }
  func.func @transform_6(%arg0: i32, %arg1: i32, %arg2: i32) -> (i32, i32) {
    %c0_i32 = arith.constant 0 : i32
    return %arg0, %arg1 : i32, i32
  }
}

module attributes {stable_mosaic.version = 11 : i64} {
  func.func @_linear_kernel(%arg0: i32, %arg1: i32, %arg2: i32, %arg3: memref<40x128xbf16, #tpu.memory_space<vmem>>, %arg4: memref<128x128xbf16, #tpu.memory_space<vmem>>, %arg5: memref<1x128xf32, #tpu.memory_space<vmem>>, %arg6: memref<40x128xbf16, #tpu.memory_space<vmem>>, %arg7: memref<40x128xf32, #tpu.memory_space<vmem>>) attributes {dimension_semantics = [#tpu.dimension_semantics<parallel>, #tpu.dimension_semantics<parallel>, #tpu.dimension_semantics<arbitrary>], iteration_bounds = array<i64: 1, 1, 1>, scalar_prefetch = 0 : i64, scratch_operands = 1 : i64, tpu.core_type = #tpu.core_type<tc>, window_params = [{transform_indices = @transform_0, window_bounds = array<i64: 40, 128>}, {transform_indices = @transform_1, window_bounds = array<i64: 128, 128>}, {transform_indices = @transform_2, window_bounds = array<i64: 1, 128>}, {transform_indices = @transform_3, window_bounds = array<i64: 40, 128>}]} {
    %c0_i32 = arith.constant 0 : i32
    %0 = arith.cmpi eq, %arg2, %c0_i32 : i32
    %1 = arith.extui %0 : i1 to i32
    %c0_i32_0 = arith.constant 0 : i32
    %2 = arith.cmpi ne, %1, %c0_i32_0 : i32
    scf.if %2 {
      %cst_10 = arith.constant 0.000000e+00 : f32
      %12 = vector.broadcast %cst_10 : f32 to vector<40x128xf32>
      %c0_11 = arith.constant 0 : index
      %c0_12 = arith.constant 0 : index
      %13 = vector.load %arg7[%c0_11, %c0_12] : memref<40x128xf32, #tpu.memory_space<vmem>>, vector<40x128xf32>
      tpu.vector_store %arg7[%c0_11, %c0_12], %12 {strides = array<i32>} : memref<40x128xf32, #tpu.memory_space<vmem>>, vector<40x128xf32>,
    } else {
    }
    %c0 = arith.constant 0 : index
    %c0_1 = arith.constant 0 : index
    %3 = vector.load %arg7[%c0, %c0_1] : memref<40x128xf32, #tpu.memory_space<vmem>>, vector<40x128xf32>
    %c0_2 = arith.constant 0 : index
    %c0_3 = arith.constant 0 : index
    %4 = vector.load %arg3[%c0_2, %c0_3] : memref<40x128xbf16, #tpu.memory_space<vmem>>, vector<40x128xbf16>
    %c0_4 = arith.constant 0 : index
    %c0_5 = arith.constant 0 : index
    %5 = vector.load %arg4[%c0_4, %c0_5] : memref<128x128xbf16, #tpu.memory_space<vmem>>, vector<128x128xbf16>
    %cst = arith.constant dense<0.000000e+00> : vector<40x128xf32>
    %6 = tpu.matmul %4, %5, %cst {dimension_numbers = #tpu.dot_dimension_numbers<[1], [0], [0], [1], [0, 0, 1, 1], [], []>} : vector<40x128xbf16>, vector<128x128xbf16>, vector<40x128xf32> -> vector<40x128xf32>
    %7 = arith.addf %3, %6 : vector<40x128xf32>
    %c0_6 = arith.constant 0 : index
    %c0_7 = arith.constant 0 : index
    %8 = vector.load %arg7[%c0_6, %c0_7] : memref<40x128xf32, #tpu.memory_space<vmem>>, vector<40x128xf32>
    tpu.vector_store %arg7[%c0_6, %c0_7], %7 {strides = array<i32>} : memref<40x128xf32, #tpu.memory_space<vmem>>, vector<40x128xf32>,
    %c0_i32_8 = arith.constant 0 : i32
    %9 = arith.cmpi eq, %arg2, %c0_i32_8 : i32
    %10 = arith.extui %9 : i1 to i32
    %c0_i32_9 = arith.constant 0 : i32
    %11 = arith.cmpi ne, %10, %c0_i32_9 : i32
    scf.if %11 {
      %c0_10 = arith.constant 0 : index
      %c0_11 = arith.constant 0 : index
      %12 = vector.load %arg7[%c0_10, %c0_11] : memref<40x128xf32, #tpu.memory_space<vmem>>, vector<40x128xf32>
      %c0_12 = arith.constant 0 : index
      %c0_13 = arith.constant 0 : index
      %13 = vector.load %arg5[%c0_12, %c0_13] : memref<1x128xf32, #tpu.memory_space<vmem>>, vector<1x128xf32>
      %14 = vector.broadcast %13 : vector<1x128xf32> to vector<40x128xf32>
      %15 = arith.addf %12, %14 : vector<40x128xf32>
      %cst_14 = arith.constant 0.000000e+00 : f32
      %16 = vector.broadcast %cst_14 : f32 to vector<40x128xf32>
      %17 = arith.maximumf %15, %16 : vector<40x128xf32>
      %18 = arith.truncf %17 : vector<40x128xf32> to vector<40x128xbf16>
      %c0_15 = arith.constant 0 : index
      %c0_16 = arith.constant 0 : index
      %19 = vector.load %arg6[%c0_15, %c0_16] : memref<40x128xbf16, #tpu.memory_space<vmem>>, vector<40x128xbf16>
      tpu.vector_store %arg6[%c0_15, %c0_16], %18 {strides = array<i32>} : memref<40x128xbf16, #tpu.memory_space<vmem>>, vector<40x128xbf16>,
    } else {
    }
    return
  }
  func.func @transform_0(%arg0: i32, %arg1: i32, %arg2: i32) -> (i32, i32) {
    %c0_i32 = arith.constant 0 : i32
    return %arg0, %arg2 : i32, i32
  }
  func.func @transform_1(%arg0: i32, %arg1: i32, %arg2: i32) -> (i32, i32) {
    %c0_i32 = arith.constant 0 : i32
    return %arg2, %arg1 : i32, i32
  }
  func.func @transform_2(%arg0: i32, %arg1: i32, %arg2: i32) -> (i32, i32) {
    %c0_i32 = arith.constant 0 : i32
    %c0_i32_0 = arith.constant 0 : i32
    return %c0_i32, %arg1 : i32, i32
  }
  func.func @transform_3(%arg0: i32, %arg1: i32, %arg2: i32) -> (i32, i32) {
    %c0_i32 = arith.constant 0 : i32
    return %arg0, %arg1 : i32, i32
  }
}

module attributes {stable_mosaic.version = 11 : i64} {
  func.func @_linear_kernel(%arg0: i32, %arg1: i32, %arg2: i32, %arg3: memref<8x128xbf16, #tpu.memory_space<vmem>>, %arg4: memref<128x128xbf16, #tpu.memory_space<vmem>>, %arg5: memref<1x128xf32, #tpu.memory_space<vmem>>, %arg6: memref<8x128xf32, #tpu.memory_space<vmem>>, %arg7: memref<8x128xf32, #tpu.memory_space<vmem>>) attributes {dimension_semantics = [#tpu.dimension_semantics<parallel>, #tpu.dimension_semantics<parallel>, #tpu.dimension_semantics<arbitrary>], iteration_bounds = array<i64: 1, 1, 1>, scalar_prefetch = 0 : i64, scratch_operands = 1 : i64, tpu.core_type = #tpu.core_type<tc>, window_params = [{transform_indices = @transform_0, window_bounds = array<i64: 8, 128>}, {transform_indices = @transform_1, window_bounds = array<i64: 128, 128>}, {transform_indices = @transform_2, window_bounds = array<i64: 1, 128>}, {transform_indices = @transform_3, window_bounds = array<i64: 8, 128>}]} {
    %c0_i32 = arith.constant 0 : i32
    %0 = arith.cmpi eq, %arg2, %c0_i32 : i32
    %1 = arith.extui %0 : i1 to i32
    %c0_i32_0 = arith.constant 0 : i32
    %2 = arith.cmpi ne, %1, %c0_i32_0 : i32
    scf.if %2 {
      %cst_10 = arith.constant 0.000000e+00 : f32
      %12 = vector.broadcast %cst_10 : f32 to vector<8x128xf32>
      %c0_11 = arith.constant 0 : index
      %c0_12 = arith.constant 0 : index
      %13 = vector.load %arg7[%c0_11, %c0_12] : memref<8x128xf32, #tpu.memory_space<vmem>>, vector<8x128xf32>
      tpu.vector_store %arg7[%c0_11, %c0_12], %12 {strides = array<i32>} : memref<8x128xf32, #tpu.memory_space<vmem>>, vector<8x128xf32>,
    } else {
    }
    %c0 = arith.constant 0 : index
    %c0_1 = arith.constant 0 : index
    %3 = vector.load %arg7[%c0, %c0_1] : memref<8x128xf32, #tpu.memory_space<vmem>>, vector<8x128xf32>
    %c0_2 = arith.constant 0 : index
    %c0_3 = arith.constant 0 : index
    %4 = vector.load %arg3[%c0_2, %c0_3] : memref<8x128xbf16, #tpu.memory_space<vmem>>, vector<8x128xbf16>
    %c0_4 = arith.constant 0 : index
    %c0_5 = arith.constant 0 : index
    %5 = vector.load %arg4[%c0_4, %c0_5] : memref<128x128xbf16, #tpu.memory_space<vmem>>, vector<128x128xbf16>
    %cst = arith.constant dense<0.000000e+00> : vector<8x128xf32>
    %6 = tpu.matmul %4, %5, %cst {dimension_numbers = #tpu.dot_dimension_numbers<[1], [0], [0], [1], [0, 0, 1, 1], [], []>} : vector<8x128xbf16>, vector<128x128xbf16>, vector<8x128xf32> -> vector<8x128xf32>
    %7 = arith.addf %3, %6 : vector<8x128xf32>
    %c0_6 = arith.constant 0 : index
    %c0_7 = arith.constant 0 : index
    %8 = vector.load %arg7[%c0_6, %c0_7] : memref<8x128xf32, #tpu.memory_space<vmem>>, vector<8x128xf32>
    tpu.vector_store %arg7[%c0_6, %c0_7], %7 {strides = array<i32>} : memref<8x128xf32, #tpu.memory_space<vmem>>, vector<8x128xf32>,
    %c0_i32_8 = arith.constant 0 : i32
    %9 = arith.cmpi eq, %arg2, %c0_i32_8 : i32
    %10 = arith.extui %9 : i1 to i32
    %c0_i32_9 = arith.constant 0 : i32
    %11 = arith.cmpi ne, %10, %c0_i32_9 : i32
    scf.if %11 {
      %c0_10 = arith.constant 0 : index
      %c0_11 = arith.constant 0 : index
      %12 = vector.load %arg7[%c0_10, %c0_11] : memref<8x128xf32, #tpu.memory_space<vmem>>, vector<8x128xf32>
      %c0_12 = arith.constant 0 : index
      %c0_13 = arith.constant 0 : index
      %13 = vector.load %arg5[%c0_12, %c0_13] : memref<1x128xf32, #tpu.memory_space<vmem>>, vector<1x128xf32>
      %14 = vector.broadcast %13 : vector<1x128xf32> to vector<8x128xf32>
      %15 = arith.addf %12, %14 : vector<8x128xf32>
      %c0_14 = arith.constant 0 : index
      %c0_15 = arith.constant 0 : index
      %16 = vector.load %arg6[%c0_14, %c0_15] : memref<8x128xf32, #tpu.memory_space<vmem>>, vector<8x128xf32>
      tpu.vector_store %arg6[%c0_14, %c0_15], %15 {strides = array<i32>} : memref<8x128xf32, #tpu.memory_space<vmem>>, vector<8x128xf32>,
    } else {
    }
    return
  }
  func.func @transform_0(%arg0: i32, %arg1: i32, %arg2: i32) -> (i32, i32) {
    %c0_i32 = arith.constant 0 : i32
    return %arg0, %arg2 : i32, i32
  }
  func.func @transform_1(%arg0: i32, %arg1: i32, %arg2: i32) -> (i32, i32) {
    %c0_i32 = arith.constant 0 : i32
    return %arg2, %arg1 : i32, i32
  }
  func.func @transform_2(%arg0: i32, %arg1: i32, %arg2: i32) -> (i32, i32) {
    %c0_i32 = arith.constant 0 : i32
    %c0_i32_0 = arith.constant 0 : i32
    return %c0_i32, %arg1 : i32, i32
  }
  func.func @transform_3(%arg0: i32, %arg1: i32, %arg2: i32) -> (i32, i32) {
    %c0_i32 = arith.constant 0 : i32
    return %arg0, %arg1 : i32, i32
  }
}

</mosaic_0001>

<llo_original>
// kernel: vit_forward.13
$region0: #{vit_forward.13}
  #allocation0 [shape = 'u32[]', space=smem, size = 0x4, offset = 0x4, fixed_abs, tag = 'smem constant byte address 0x4 - core index']
  #allocation1 [shape = 'u32[144,128]{1,0:T(1,128)}', space=vmem, size = 0x12000, scoped, tag = 'internal scratch']
  #allocation2 [shape = 'f32[40,256]{1,0:T(8,128)}', space=vmem, size = 0xa000, scoped, tag = 'scratch operand']
  %s0 = inlined_call_operand.vmem [shape: bf16[40,128], index: 0, kind: input, shape index: {}]
  %s1 = inlined_call_operand.vmem [shape: bf16[128,256], index: 1, kind: input, shape index: {}]
  %s2 = inlined_call_operand.vmem [shape: f32[1,256], index: 2, kind: input, shape index: {}]
  %s3 = inlined_call_operand.vmem [shape: bf16[40,256], index: 3, kind: output, shape index: {}]
  %s4 = sld [smem:[#allocation0]]
  $region30: #{vit_forward.13} parent=0
    _
  %s6 = ssub.s32 1, %s4
  %s7 = scalar_select 0, %s6, %s4
  // Predicated region
  $region2: #{vit_forward.13} parent=0 // pred_check
    _
  $region3: #{vit_forward.13} parent=0 // pred_check_branch
    %9 = sbr.rel (0) target = $region5
  $region4: #{vit_forward.13} parent=0 // pred_region
    _
  $region5: #{vit_forward.13} parent=0 // pred_fallthru
    _
  // Predicated region
  $region6: #{vit_forward.13} parent=0 // pred_check
    _
  $region7: #{vit_forward.13} parent=0 // pred_check_branch
    %11 = sbr.rel (0) target = $region9
  $region8: #{vit_forward.13} parent=0 // pred_region
    _
  $region9: #{vit_forward.13} parent=0 // pred_fallthru
    _
  // Predicated region
  $region10: #{vit_forward.13} parent=0 // pred_check
    _
  $region11: #{vit_forward.13} parent=0 // pred_check_branch
    %13 = sbr.rel (0) target = $region13
  $region12: #{vit_forward.13} parent=0 // pred_region
    _
  $region13: #{vit_forward.13} parent=0 // pred_fallthru
    _
  %p15 = scmp.eq.s32.totalorder 0, 0
  // Predicated region
  $region14: #{vit_forward.13} parent=0 // pred_check
    %p16 = pneg %p15
  $region15: #{vit_forward.13} parent=0 // pred_check_branch
    %18 = sbr.rel (%p16) target = $region17
  $region16: #{vit_forward.13} parent=0 // pred_region
    %19 = vst [vmem:[#allocation2] sm:$0xff] 0.0
    %20 = vst [vmem:[#allocation2 + $0x8] sm:$0xff] 0.0
    %21 = vst [vmem:[#allocation2 + $0x10] sm:$0xff] 0.0
    %22 = vst [vmem:[#allocation2 + $0x18] sm:$0xff] 0.0
    %23 = vst [vmem:[#allocation2 + $0x20] sm:$0xff] 0.0
    %24 = vst [vmem:[#allocation2 + $0x28] sm:$0xff] 0.0
    %25 = vst [vmem:[#allocation2 + $0x30] sm:$0xff] 0.0
    %26 = vst [vmem:[#allocation2 + $0x38] sm:$0xff] 0.0
    %27 = vst [vmem:[#allocation2 + $0x40] sm:$0xff] 0.0
    %28 = vst [vmem:[#allocation2 + $0x48] sm:$0xff] 0.0
  $region17: #{vit_forward.13} parent=0 // pred_fallthru
    _
  %v29 = vld [vmem:[#allocation2] sm:$0xff]
  %v30 = vld [vmem:[#allocation2 + $0x8] sm:$0xff]
  %v31 = vld [vmem:[#allocation2 + $0x10] sm:$0xff]
  %v32 = vld [vmem:[#allocation2 + $0x18] sm:$0xff]
  %v33 = vld [vmem:[#allocation2 + $0x20] sm:$0xff]
  %v34 = vld [vmem:[#allocation2 + $0x28] sm:$0xff]
  %v35 = vld [vmem:[#allocation2 + $0x30] sm:$0xff]
  %v36 = vld [vmem:[#allocation2 + $0x38] sm:$0xff]
  %v37 = vld [vmem:[#allocation2 + $0x40] sm:$0xff]
  %v38 = vld [vmem:[#allocation2 + $0x48] sm:$0xff]
  %v39 = vld [vmem:[%s0] sm:$0xf]
  %v40 = vld [vmem:[%s0 + $0x4] sm:$0xf]
  %v41 = vld [vmem:[%s0 + $0x8] sm:$0xf]
  %v42 = vld [vmem:[%s0 + $0xc] sm:$0xf]
  %v43 = vld [vmem:[%s0 + $0x10] sm:$0xf]
  %v44 = vld [vmem:[%s1] sm:$0xff]
  %v45 = vld [vmem:[%s1 + $0x8] sm:$0xff]
  %v46 = vld [vmem:[%s1 + $0x10] sm:$0xff]
  %v47 = vld [vmem:[%s1 + $0x18] sm:$0xff]
  %v48 = vld [vmem:[%s1 + $0x20] sm:$0xff]
  %v49 = vld [vmem:[%s1 + $0x28] sm:$0xff]
  %v50 = vld [vmem:[%s1 + $0x30] sm:$0xff]
  %v51 = vld [vmem:[%s1 + $0x38] sm:$0xff]
  %v52 = vld [vmem:[%s1 + $0x40] sm:$0xff]
  %v53 = vld [vmem:[%s1 + $0x48] sm:$0xff]
  %v54 = vld [vmem:[%s1 + $0x50] sm:$0xff]
  %v55 = vld [vmem:[%s1 + $0x58] sm:$0xff]
  %v56 = vld [vmem:[%s1 + $0x60] sm:$0xff]
  %v57 = vld [vmem:[%s1 + $0x68] sm:$0xff]
  %v58 = vld [vmem:[%s1 + $0x70] sm:$0xff]
  %v59 = vld [vmem:[%s1 + $0x78] sm:$0xff]
  %v65 = vunpack.c.l.b16 %v39
  %v66 = vunpack.c.l.b16 %v40
  %v67 = vunpack.c.l.b16 %v41
  %v68 = vunpack.c.l.b16 %v42
  %v69 = vunpack.c.l.b16 %v43
  %v70 = vpack.c.b16 %v66, %v65
  %v71 = vpack.c.b16 %v68, %v67
  %v72 = vpack.c.b16 %v69, %v69
  %v92 = vunpack.c.l.b16 %v44
  %v93 = vunpack.c.h.b16 %v44
  %v94 = vunpack.c.l.b16 %v45
  %v95 = vunpack.c.h.b16 %v45
  %v96 = vunpack.c.l.b16 %v46
  %v97 = vunpack.c.h.b16 %v46
  %v98 = vunpack.c.l.b16 %v47
  %v99 = vunpack.c.h.b16 %v47
  %v100 = vunpack.c.l.b16 %v48
  %v101 = vunpack.c.h.b16 %v48
  %v102 = vunpack.c.l.b16 %v49
  %v103 = vunpack.c.h.b16 %v49
  %v104 = vunpack.c.l.b16 %v50
  %v105 = vunpack.c.h.b16 %v50
  %v106 = vunpack.c.l.b16 %v51
  %v107 = vunpack.c.h.b16 %v51
  %v108 = vunpack.c.l.b16 %v52
  %v109 = vunpack.c.h.b16 %v52
  %v110 = vunpack.c.l.b16 %v53
  %v111 = vunpack.c.h.b16 %v53
  %v112 = vunpack.c.l.b16 %v54
  %v113 = vunpack.c.h.b16 %v54
  %v114 = vunpack.c.l.b16 %v55
  %v115 = vunpack.c.h.b16 %v55
  %v116 = vunpack.c.l.b16 %v56
  %v117 = vunpack.c.h.b16 %v56
  %v118 = vunpack.c.l.b16 %v57
  %v119 = vunpack.c.h.b16 %v57
  %v120 = vunpack.c.l.b16 %v58
  %v121 = vunpack.c.h.b16 %v58
  %v122 = vunpack.c.l.b16 %v59
  %v123 = vunpack.c.h.b16 %v59
  %v124 = vpack.c.b16 %v94, %v92
  %v125 = vpack.c.b16 %v95, %v93
  %v126 = vpack.c.b16 %v98, %v96
  %v127 = vpack.c.b16 %v99, %v97
  %v128 = vpack.c.b16 %v102, %v100
  %v129 = vpack.c.b16 %v103, %v101
  %v130 = vpack.c.b16 %v106, %v104
  %v131 = vpack.c.b16 %v107, %v105
  %v132 = vpack.c.b16 %v110, %v108
  %v133 = vpack.c.b16 %v111, %v109
  %v134 = vpack.c.b16 %v114, %v112
  %v135 = vpack.c.b16 %v115, %v113
  %v136 = vpack.c.b16 %v118, %v116
  %v137 = vpack.c.b16 %v119, %v117
  %v138 = vpack.c.b16 %v122, %v120
  %v139 = vpack.c.b16 %v123, %v121
  %156 = vmatprep.subr.bf16.mxu0 %v125
  %157 = vmatpush1.bf16.msra.mxu0 %v124
  %158 = vmatprep.subr.bf16.mxu0 %v127
  %159 = vmatpush1.bf16.msra.mxu0 %v126
  %160 = vmatprep.subr.bf16.mxu0 %v129
  %161 = vmatpush1.bf16.msra.mxu0 %v128
  %162 = vmatprep.subr.bf16.mxu0 %v131
  %163 = vmatpush1.bf16.msra.mxu0 %v130
  %164 = vmatprep.subr.bf16.mxu0 %v133
  %165 = vmatpush1.bf16.msra.mxu0 %v132
  %166 = vmatprep.subr.bf16.mxu0 %v135
  %167 = vmatpush1.bf16.msra.mxu0 %v134
  %168 = vmatprep.subr.bf16.mxu0 %v137
  %169 = vmatpush1.bf16.msra.mxu0 %v136
  %170 = vmatprep.subr.bf16.mxu0 %v139
  %171 = vmatpush1.bf16.msra.mxu0 %v138
  %172 = vmatprep.subr.bf16.mxu0 0
  %173 = vmatpush1.bf16.msra.mxu0 0
  %174 = vmatprep.subr.bf16.mxu0 0
  %175 = vmatpush1.bf16.msra.mxu0 0
  %176 = vmatprep.subr.bf16.mxu0 0
  %177 = vmatpush1.bf16.msra.mxu0 0
  %178 = vmatprep.subr.bf16.mxu0 0
  %179 = vmatpush1.bf16.msra.mxu0 0
  %180 = vmatprep.subr.bf16.mxu0 0
  %181 = vmatpush1.bf16.msra.mxu0 0
  %182 = vmatprep.subr.bf16.mxu0 0
  %183 = vmatpush1.bf16.msra.mxu0 0
  %184 = vmatprep.subr.bf16.mxu0 0
  %185 = vmatpush1.bf16.msra.mxu0 0
  %186 = vmatprep.subr.bf16.mxu0 0
  %187 = vmatpush1.bf16.msra.mxu0 0
  %188 = vmatprep.mubr.bf16.mxu0 0
  %189 = vmatmul.mubr.bf16.gmra.mrb[0].mxu0 %v70
  %v190 = vpop.f32.mrb[0].mxu0
  %v191 = vadd.f32 0.0, %v190
  %v192 = vpop.f32.mrb[0].mxu0
  %v193 = vadd.f32 0.0, %v192
  %v194 = vpop.f32.mrb[0].mxu0
  %v195 = vadd.f32 0.0, %v194
  %v196 = vpop.f32.mrb[0].mxu0
  %v197 = vadd.f32 0.0, %v196
  %198 = vmatprep.mubr.bf16.mxu0 0
  %199 = vmatmul.mubr.bf16.gmra.mrb[0].mxu0 %v71
  %v200 = vpop.f32.mrb[0].mxu0
  %v201 = vadd.f32 0.0, %v200
  %v202 = vpop.f32.mrb[0].mxu0
  %v203 = vadd.f32 0.0, %v202
  %v204 = vpop.f32.mrb[0].mxu0
  %v205 = vadd.f32 0.0, %v204
  %v206 = vpop.f32.mrb[0].mxu0
  %v207 = vadd.f32 0.0, %v206
  %208 = vmatprep.mubr.bf16.mxu0 0
  %209 = vmatmul.mubr.bf16.gmra.mrb[0].mxu0 %v72
  %v210 = vpop.f32.mrb[0].mxu0
  %v211 = vadd.f32 0.0, %v210
  %v212 = vpop.f32.mrb[0].mxu0
  %v213 = vadd.f32 0.0, %v212
  %v214 = vpop.f32.mrb[0].mxu0
  %v215 = vpop.f32.mrb[0].mxu0
  %216 = vdwg.mxu0
  %v217 = vadd.f32 %v29, %v191
  %v218 = vadd.f32 %v30, %v193
  %v219 = vadd.f32 %v31, %v195
  %v220 = vadd.f32 %v32, %v197
  %v221 = vadd.f32 %v33, %v201
  %v222 = vadd.f32 %v34, %v203
  %v223 = vadd.f32 %v35, %v205
  %v224 = vadd.f32 %v36, %v207
  %v225 = vadd.f32 %v37, %v211
  %v226 = vadd.f32 %v38, %v213
  %227 = vst [vmem:[#allocation2] sm:$0xff] %v217
  %228 = vst [vmem:[#allocation2 + $0x8] sm:$0xff] %v218
  %229 = vst [vmem:[#allocation2 + $0x10] sm:$0xff] %v219
  %230 = vst [vmem:[#allocation2 + $0x18] sm:$0xff] %v220
  %231 = vst [vmem:[#allocation2 + $0x20] sm:$0xff] %v221
  %232 = vst [vmem:[#allocation2 + $0x28] sm:$0xff] %v222
  %233 = vst [vmem:[#allocation2 + $0x30] sm:$0xff] %v223
  %234 = vst [vmem:[#allocation2 + $0x38] sm:$0xff] %v224
  %235 = vst [vmem:[#allocation2 + $0x40] sm:$0xff] %v225
  %236 = vst [vmem:[#allocation2 + $0x48] sm:$0xff] %v226
  // Predicated region
  $region18: #{vit_forward.13} parent=0 // pred_check
    %p237 = pneg %p15
  $region19: #{vit_forward.13} parent=0 // pred_check_branch
    %239 = sbr.rel (%p237) target = $region21
  $region20: #{vit_forward.13} parent=0 // pred_region
    %v240 = vld [vmem:[#allocation2] sm:$0xff]
    %v241 = vld [vmem:[#allocation2 + $0x8] sm:$0xff]
    %v242 = vld [vmem:[#allocation2 + $0x10] sm:$0xff]
    %v243 = vld [vmem:[#allocation2 + $0x18] sm:$0xff]
    %v244 = vld [vmem:[#allocation2 + $0x20] sm:$0xff]
    %v245 = vld [vmem:[#allocation2 + $0x28] sm:$0xff]
    %v246 = vld [vmem:[#allocation2 + $0x30] sm:$0xff]
    %v247 = vld [vmem:[#allocation2 + $0x38] sm:$0xff]
    %v248 = vld [vmem:[#allocation2 + $0x40] sm:$0xff]
    %v249 = vld [vmem:[#allocation2 + $0x48] sm:$0xff]
    %v250 = vld [vmem:[%s2] sm:$0x3]
    %v252 = vlaneseq
    %v253 = vshrl.u32 %v252, 7
    %v254 = vsub.s32 0, %v253
    %v255 = vrot.slane %v250, %v254
    %v256 = vlaneseq
    %v257 = vshrl.u32 %v256, 7
    %v258 = vsub.s32 1, %v257
    %v259 = vrot.slane %v250, %v258
    %v262 = vadd.f32 %v240, %v255
    %v263 = vadd.f32 %v241, %v259
    %v264 = vadd.f32 %v242, %v255
    %v265 = vadd.f32 %v243, %v259
    %v266 = vadd.f32 %v244, %v255
    %v267 = vadd.f32 %v245, %v259
    %v268 = vadd.f32 %v246, %v255
    %v269 = vadd.f32 %v247, %v259
    %v270 = vadd.f32 %v248, %v255
    %v271 = vadd.f32 %v249, %v259
    %v272 = vpack.c.bf16 %v264, %v262
    %v273 = vpack.c.bf16 %v265, %v263
    %v274 = vpack.c.bf16 %v268, %v266
    %v275 = vpack.c.bf16 %v269, %v267
    %v276 = vpack.c.bf16 %v270, %v270
    %v277 = vpack.c.bf16 %v271, %v271
    %v284 = vunpack.c.l.b16 %v272
    %v285 = vunpack.c.l.b16 %v273
    %v286 = vunpack.c.h.b16 %v272
    %v287 = vunpack.c.h.b16 %v273
    %v288 = vunpack.c.l.b16 %v274
    %v289 = vunpack.c.l.b16 %v275
    %v290 = vunpack.c.h.b16 %v274
    %v291 = vunpack.c.h.b16 %v275
    %v292 = vunpack.c.l.b16 %v276
    %v293 = vunpack.c.l.b16 %v277
    %v294 = vpack.c.b16 %v285, %v284
    %v295 = vpack.c.b16 %v287, %v286
    %v296 = vpack.c.b16 %v289, %v288
    %v297 = vpack.c.b16 %v291, %v290
    %v298 = vpack.c.b16 %v293, %v292
    %304 = vst [vmem:[%s3] sm:$0xff] %v294
    %305 = vst [vmem:[%s3 + $0x8] sm:$0xff] %v295
    %306 = vst [vmem:[%s3 + $0x10] sm:$0xff] %v296
    %307 = vst [vmem:[%s3 + $0x18] sm:$0xff] %v297
    %308 = vst [vmem:[%s3 + $0x20] sm:$0xff] %v298
  $region21: #{vit_forward.13} parent=0 // pred_fallthru
    _
  // Predicated region
  $region22: #{vit_forward.13} parent=0 // pred_check
    _
  $region23: #{vit_forward.13} parent=0 // pred_check_branch
    %310 = sbr.rel (0) target = $region25
  $region24: #{vit_forward.13} parent=0 // pred_region
    _
  $region25: #{vit_forward.13} parent=0 // pred_fallthru
    _
  // Predicated region
  $region26: #{vit_forward.13} parent=0 // pred_check
    _
  $region27: #{vit_forward.13} parent=0 // pred_check_branch
    %312 = sbr.rel (0) target = $region29
  $region28: #{vit_forward.13} parent=0 // pred_region
    _
  $region29: #{vit_forward.13} parent=0 // pred_fallthru
    _

// kernel: vit_forward.12
$region0: #{vit_forward.12}
  #allocation0 [shape = 'u32[]', space=smem, size = 0x4, offset = 0x4, fixed_abs, tag = 'smem constant byte address 0x4 - core index']
  #allocation1 [shape = 'u32[144,128]{1,0:T(1,128)}', space=vmem, size = 0x12000, scoped, tag = 'internal scratch']
  #allocation2 [shape = 'f32[32,128]{1,0:T(8,128)}', space=vmem, size = 0x4000, scoped, tag = 'scratch operand']
  %s0 = inlined_call_operand.vmem [shape: bf16[32,128], index: 0, kind: input, shape index: {}]
  %s1 = inlined_call_operand.vmem [shape: bf16[128,128], index: 1, kind: input, shape index: {}]
  %s2 = inlined_call_operand.vmem [shape: f32[1,128], index: 2, kind: input, shape index: {}]
  %s3 = inlined_call_operand.vmem [shape: bf16[32,128], index: 3, kind: output, shape index: {}]
  %s4 = sld [smem:[#allocation0]]
  $region30: #{vit_forward.12} parent=0
    _
  %s6 = ssub.s32 1, %s4
  %s7 = scalar_select 0, %s6, %s4
  // Predicated region
  $region2: #{vit_forward.12} parent=0 // pred_check
    _
  $region3: #{vit_forward.12} parent=0 // pred_check_branch
    %9 = sbr.rel (0) target = $region5
  $region4: #{vit_forward.12} parent=0 // pred_region
    _
  $region5: #{vit_forward.12} parent=0 // pred_fallthru
    _
  // Predicated region
  $region6: #{vit_forward.12} parent=0 // pred_check
    _
  $region7: #{vit_forward.12} parent=0 // pred_check_branch
    %11 = sbr.rel (0) target = $region9
  $region8: #{vit_forward.12} parent=0 // pred_region
    _
  $region9: #{vit_forward.12} parent=0 // pred_fallthru
    _
  // Predicated region
  $region10: #{vit_forward.12} parent=0 // pred_check
    _
  $region11: #{vit_forward.12} parent=0 // pred_check_branch
    %13 = sbr.rel (0) target = $region13
  $region12: #{vit_forward.12} parent=0 // pred_region
    _
  $region13: #{vit_forward.12} parent=0 // pred_fallthru
    _
  %p15 = scmp.eq.s32.totalorder 0, 0
  // Predicated region
  $region14: #{vit_forward.12} parent=0 // pred_check
    %p16 = pneg %p15
  $region15: #{vit_forward.12} parent=0 // pred_check_branch
    %18 = sbr.rel (%p16) target = $region17
  $region16: #{vit_forward.12} parent=0 // pred_region
    %19 = vst [vmem:[#allocation2] sm:$0xff] 0.0
    %20 = vst [vmem:[#allocation2 + $0x8] sm:$0xff] 0.0
    %21 = vst [vmem:[#allocation2 + $0x10] sm:$0xff] 0.0
    %22 = vst [vmem:[#allocation2 + $0x18] sm:$0xff] 0.0
  $region17: #{vit_forward.12} parent=0 // pred_fallthru
    _
  %v23 = vld [vmem:[#allocation2] sm:$0xff]
  %v24 = vld [vmem:[#allocation2 + $0x8] sm:$0xff]
  %v25 = vld [vmem:[#allocation2 + $0x10] sm:$0xff]
  %v26 = vld [vmem:[#allocation2 + $0x18] sm:$0xff]
  %v27 = vld [vmem:[%s0] sm:$0xf]
  %v28 = vld [vmem:[%s0 + $0x4] sm:$0xf]
  %v29 = vld [vmem:[%s0 + $0x8] sm:$0xf]
  %v30 = vld [vmem:[%s0 + $0xc] sm:$0xf]
  %v31 = vld [vmem:[%s1] sm:$0xf]
  %v32 = vld [vmem:[%s1 + $0x4] sm:$0xf]
  %v33 = vld [vmem:[%s1 + $0x8] sm:$0xf]
  %v34 = vld [vmem:[%s1 + $0xc] sm:$0xf]
  %v35 = vld [vmem:[%s1 + $0x10] sm:$0xf]
  %v36 = vld [vmem:[%s1 + $0x14] sm:$0xf]
  %v37 = vld [vmem:[%s1 + $0x18] sm:$0xf]
  %v38 = vld [vmem:[%s1 + $0x1c] sm:$0xf]
  %v39 = vld [vmem:[%s1 + $0x20] sm:$0xf]
  %v40 = vld [vmem:[%s1 + $0x24] sm:$0xf]
  %v41 = vld [vmem:[%s1 + $0x28] sm:$0xf]
  %v42 = vld [vmem:[%s1 + $0x2c] sm:$0xf]
  %v43 = vld [vmem:[%s1 + $0x30] sm:$0xf]
  %v44 = vld [vmem:[%s1 + $0x34] sm:$0xf]
  %v45 = vld [vmem:[%s1 + $0x38] sm:$0xf]
  %v46 = vld [vmem:[%s1 + $0x3c] sm:$0xf]
  %v51 = vunpack.c.l.b16 %v27
  %v52 = vunpack.c.l.b16 %v28
  %v53 = vunpack.c.l.b16 %v29
  %v54 = vunpack.c.l.b16 %v30
  %v55 = vpack.c.b16 %v52, %v51
  %v56 = vpack.c.b16 %v54, %v53
  %v75 = vunpack.c.l.b16 %v31
  %v76 = vunpack.c.l.b16 %v32
  %v77 = vunpack.c.l.b16 %v33
  %v78 = vunpack.c.l.b16 %v34
  %v79 = vunpack.c.l.b16 %v35
  %v80 = vunpack.c.l.b16 %v36
  %v81 = vunpack.c.l.b16 %v37
  %v82 = vunpack.c.l.b16 %v38
  %v83 = vunpack.c.l.b16 %v39
  %v84 = vunpack.c.l.b16 %v40
  %v85 = vunpack.c.l.b16 %v41
  %v86 = vunpack.c.l.b16 %v42
  %v87 = vunpack.c.l.b16 %v43
  %v88 = vunpack.c.l.b16 %v44
  %v89 = vunpack.c.l.b16 %v45
  %v90 = vunpack.c.l.b16 %v46
  %v91 = vpack.c.b16 %v76, %v75
  %v92 = vpack.c.b16 %v78, %v77
  %v93 = vpack.c.b16 %v80, %v79
  %v94 = vpack.c.b16 %v82, %v81
  %v95 = vpack.c.b16 %v84, %v83
  %v96 = vpack.c.b16 %v86, %v85
  %v97 = vpack.c.b16 %v88, %v87
  %v98 = vpack.c.b16 %v90, %v89
  %107 = vmatprep.subr.bf16.mxu0 0
  %108 = vmatpush1.bf16.msra.mxu0 %v91
  %109 = vmatprep.subr.bf16.mxu0 0
  %110 = vmatpush1.bf16.msra.mxu0 %v92
  %111 = vmatprep.subr.bf16.mxu0 0
  %112 = vmatpush1.bf16.msra.mxu0 %v93
  %113 = vmatprep.subr.bf16.mxu0 0
  %114 = vmatpush1.bf16.msra.mxu0 %v94
  %115 = vmatprep.subr.bf16.mxu0 0
  %116 = vmatpush1.bf16.msra.mxu0 %v95
  %117 = vmatprep.subr.bf16.mxu0 0
  %118 = vmatpush1.bf16.msra.mxu0 %v96
  %119 = vmatprep.subr.bf16.mxu0 0
  %120 = vmatpush1.bf16.msra.mxu0 %v97
  %121 = vmatprep.subr.bf16.mxu0 0
  %122 = vmatpush1.bf16.msra.mxu0 %v98
  %123 = vmatprep.subr.bf16.mxu0 0
  %124 = vmatpush1.bf16.msra.mxu0 0
  %125 = vmatprep.subr.bf16.mxu0 0
  %126 = vmatpush1.bf16.msra.mxu0 0
  %127 = vmatprep.subr.bf16.mxu0 0
  %128 = vmatpush1.bf16.msra.mxu0 0
  %129 = vmatprep.subr.bf16.mxu0 0
  %130 = vmatpush1.bf16.msra.mxu0 0
  %131 = vmatprep.subr.bf16.mxu0 0
  %132 = vmatpush1.bf16.msra.mxu0 0
  %133 = vmatprep.subr.bf16.mxu0 0
  %134 = vmatpush1.bf16.msra.mxu0 0
  %135 = vmatprep.subr.bf16.mxu0 0
  %136 = vmatpush1.bf16.msra.mxu0 0
  %137 = vmatprep.subr.bf16.mxu0 0
  %138 = vmatpush1.bf16.msra.mxu0 0
  %139 = vmatprep.mubr.bf16.mxu0 0
  %140 = vmatmul.mubr.bf16.gmra.mrb[0].mxu0 %v55
  %v141 = vpop.f32.mrb[0].mxu0
  %v142 = vadd.f32 0.0, %v141
  %v143 = vpop.f32.mrb[0].mxu0
  %v144 = vpop.f32.mrb[0].mxu0
  %v145 = vadd.f32 0.0, %v144
  %v146 = vpop.f32.mrb[0].mxu0
  %147 = vmatprep.mubr.bf16.mxu0 0
  %148 = vmatmul.mubr.bf16.gmra.mrb[0].mxu0 %v56
  %v149 = vpop.f32.mrb[0].mxu0
  %v150 = vadd.f32 0.0, %v149
  %v151 = vpop.f32.mrb[0].mxu0
  %v152 = vpop.f32.mrb[0].mxu0
  %v153 = vadd.f32 0.0, %v152
  %v154 = vpop.f32.mrb[0].mxu0
  %155 = vdwg.mxu0
  %v156 = vadd.f32 %v23, %v142
  %v157 = vadd.f32 %v24, %v145
  %v158 = vadd.f32 %v25, %v150
  %v159 = vadd.f32 %v26, %v153
  %160 = vst [vmem:[#allocation2] sm:$0xff] %v156
  %161 = vst [vmem:[#allocation2 + $0x8] sm:$0xff] %v157
  %162 = vst [vmem:[#allocation2 + $0x10] sm:$0xff] %v158
  %163 = vst [vmem:[#allocation2 + $0x18] sm:$0xff] %v159
  // Predicated region
  $region18: #{vit_forward.12} parent=0 // pred_check
    %p164 = pneg %p15
  $region19: #{vit_forward.12} parent=0 // pred_check_branch
    %166 = sbr.rel (%p164) target = $region21
  $region20: #{vit_forward.12} parent=0 // pred_region
    %v167 = vld [vmem:[#allocation2] sm:$0xff]
    %v168 = vld [vmem:[#allocation2 + $0x8] sm:$0xff]
    %v169 = vld [vmem:[#allocation2 + $0x10] sm:$0xff]
    %v170 = vld [vmem:[#allocation2 + $0x18] sm:$0xff]
    %v171 = vld [vmem:[%s2] sm:$0x1]
    %v173 = vlaneseq
    %v174 = vshrl.u32 %v173, 7
    %v175 = vsub.s32 0, %v174
    %v176 = vrot.slane %v171, %v175
    %v178 = vadd.f32 %v167, %v176
    %v179 = vadd.f32 %v168, %v176
    %v180 = vadd.f32 %v169, %v176
    %v181 = vadd.f32 %v170, %v176
    %v182 = vpack.c.bf16 %v179, %v178
    %v183 = vpack.c.bf16 %v181, %v180
    %v186 = vunpack.c.l.b16 %v182
    %v187 = vunpack.c.h.b16 %v182
    %v188 = vunpack.c.l.b16 %v183
    %v189 = vunpack.c.h.b16 %v183
    %v190 = vpack.c.b16 %v186, %v186
    %v191 = vpack.c.b16 %v187, %v187
    %v192 = vpack.c.b16 %v188, %v188
    %v193 = vpack.c.b16 %v189, %v189
    %198 = vst [vmem:[%s3] sm:$0xf] %v190
    %199 = vst [vmem:[%s3 + $0x4] sm:$0xf] %v191
    %200 = vst [vmem:[%s3 + $0x8] sm:$0xf] %v192
    %201 = vst [vmem:[%s3 + $0xc] sm:$0xf] %v193
  $region21: #{vit_forward.12} parent=0 // pred_fallthru
    _
  // Predicated region
  $region22: #{vit_forward.12} parent=0 // pred_check
    _
  $region23: #{vit_forward.12} parent=0 // pred_check_branch
    %203 = sbr.rel (0) target = $region25
  $region24: #{vit_forward.12} parent=0 // pred_region
    _
  $region25: #{vit_forward.12} parent=0 // pred_fallthru
    _
  // Predicated region
  $region26: #{vit_forward.12} parent=0 // pred_check
    _
  $region27: #{vit_forward.12} parent=0 // pred_check_branch
    %205 = sbr.rel (0) target = $region29
  $region28: #{vit_forward.12} parent=0 // pred_region
    _
  $region29: #{vit_forward.12} parent=0 // pred_fallthru
    _

// kernel: vit_forward.15
$region0: #{vit_forward.15}
  #allocation0 [shape = 'u32[]', space=smem, size = 0x4, offset = 0x4, fixed_abs, tag = 'smem constant byte address 0x4 - core index']
  #allocation1 [shape = 'u32[144,128]{1,0:T(1,128)}', space=vmem, size = 0x12000, scoped, tag = 'internal scratch']
  #allocation2 [shape = 'f32[40,128]{1,0:T(8,128)}', space=vmem, size = 0x5000, scoped, tag = 'scratch operand']
  %s0 = inlined_call_operand.vmem [shape: bf16[40,128], index: 0, kind: input, shape index: {}]
  %s1 = inlined_call_operand.vmem [shape: bf16[128,128], index: 1, kind: input, shape index: {}]
  %s2 = inlined_call_operand.vmem [shape: f32[1,128], index: 2, kind: input, shape index: {}]
  %s3 = inlined_call_operand.vmem [shape: bf16[40,128], index: 3, kind: input, shape index: {}]
  %s4 = inlined_call_operand.vmem [shape: f32[1,128], index: 4, kind: input, shape index: {}]
  %s5 = inlined_call_operand.vmem [shape: f32[1,128], index: 5, kind: input, shape index: {}]
  %s6 = inlined_call_operand.vmem [shape: bf16[40,128], index: 6, kind: output, shape index: {}]
  %s7 = sld [smem:[#allocation0]]
  $region42: #{vit_forward.15} parent=0
    _
  %s9 = ssub.s32 1, %s7
  %s10 = scalar_select 0, %s9, %s7
  // Predicated region
  $region2: #{vit_forward.15} parent=0 // pred_check
    _
  $region3: #{vit_forward.15} parent=0 // pred_check_branch
    %12 = sbr.rel (0) target = $region5
  $region4: #{vit_forward.15} parent=0 // pred_region
    _
  $region5: #{vit_forward.15} parent=0 // pred_fallthru
    _
  // Predicated region
  $region6: #{vit_forward.15} parent=0 // pred_check
    _
  $region7: #{vit_forward.15} parent=0 // pred_check_branch
    %14 = sbr.rel (0) target = $region9
  $region8: #{vit_forward.15} parent=0 // pred_region
    _
  $region9: #{vit_forward.15} parent=0 // pred_fallthru
    _
  // Predicated region
  $region10: #{vit_forward.15} parent=0 // pred_check
    _
  $region11: #{vit_forward.15} parent=0 // pred_check_branch
    %16 = sbr.rel (0) target = $region13
  $region12: #{vit_forward.15} parent=0 // pred_region
    _
  $region13: #{vit_forward.15} parent=0 // pred_fallthru
    _
  // Predicated region
  $region14: #{vit_forward.15} parent=0 // pred_check
    _
  $region15: #{vit_forward.15} parent=0 // pred_check_branch
    %18 = sbr.rel (0) target = $region17
  $region16: #{vit_forward.15} parent=0 // pred_region
    _
  $region17: #{vit_forward.15} parent=0 // pred_fallthru
    _
  // Predicated region
  $region18: #{vit_forward.15} parent=0 // pred_check
    _
  $region19: #{vit_forward.15} parent=0 // pred_check_branch
    %20 = sbr.rel (0) target = $region21
  $region20: #{vit_forward.15} parent=0 // pred_region
    _
  $region21: #{vit_forward.15} parent=0 // pred_fallthru
    _
  // Predicated region
  $region22: #{vit_forward.15} parent=0 // pred_check
    _
  $region23: #{vit_forward.15} parent=0 // pred_check_branch
    %22 = sbr.rel (0) target = $region25
  $region24: #{vit_forward.15} parent=0 // pred_region
    _
  $region25: #{vit_forward.15} parent=0 // pred_fallthru
    _
  %p24 = scmp.eq.s32.totalorder 0, 0
  // Predicated region
  $region26: #{vit_forward.15} parent=0 // pred_check
    %p25 = pneg %p24
  $region27: #{vit_forward.15} parent=0 // pred_check_branch
    %27 = sbr.rel (%p25) target = $region29
  $region28: #{vit_forward.15} parent=0 // pred_region
    %28 = vst [vmem:[#allocation2] sm:$0xff] 0.0
    %29 = vst [vmem:[#allocation2 + $0x8] sm:$0xff] 0.0
    %30 = vst [vmem:[#allocation2 + $0x10] sm:$0xff] 0.0
    %31 = vst [vmem:[#allocation2 + $0x18] sm:$0xff] 0.0
    %32 = vst [vmem:[#allocation2 + $0x20] sm:$0xff] 0.0
  $region29: #{vit_forward.15} parent=0 // pred_fallthru
    _
  %v33 = vld [vmem:[#allocation2] sm:$0xff]
  %v34 = vld [vmem:[#allocation2 + $0x8] sm:$0xff]
  %v35 = vld [vmem:[#allocation2 + $0x10] sm:$0xff]
  %v36 = vld [vmem:[#allocation2 + $0x18] sm:$0xff]
  %v37 = vld [vmem:[#allocation2 + $0x20] sm:$0xff]
  %v38 = vld [vmem:[%s0] sm:$0xf]
  %v39 = vld [vmem:[%s0 + $0x4] sm:$0xf]
  %v40 = vld [vmem:[%s0 + $0x8] sm:$0xf]
  %v41 = vld [vmem:[%s0 + $0xc] sm:$0xf]
  %v42 = vld [vmem:[%s0 + $0x10] sm:$0xf]
  %v43 = vld [vmem:[%s1] sm:$0xf]
  %v44 = vld [vmem:[%s1 + $0x4] sm:$0xf]
  %v45 = vld [vmem:[%s1 + $0x8] sm:$0xf]
  %v46 = vld [vmem:[%s1 + $0xc] sm:$0xf]
  %v47 = vld [vmem:[%s1 + $0x10] sm:$0xf]
  %v48 = vld [vmem:[%s1 + $0x14] sm:$0xf]
  %v49 = vld [vmem:[%s1 + $0x18] sm:$0xf]
  %v50 = vld [vmem:[%s1 + $0x1c] sm:$0xf]
  %v51 = vld [vmem:[%s1 + $0x20] sm:$0xf]
  %v52 = vld [vmem:[%s1 + $0x24] sm:$0xf]
  %v53 = vld [vmem:[%s1 + $0x28] sm:$0xf]
  %v54 = vld [vmem:[%s1 + $0x2c] sm:$0xf]
  %v55 = vld [vmem:[%s1 + $0x30] sm:$0xf]
  %v56 = vld [vmem:[%s1 + $0x34] sm:$0xf]
  %v57 = vld [vmem:[%s1 + $0x38] sm:$0xf]
  %v58 = vld [vmem:[%s1 + $0x3c] sm:$0xf]
  %v64 = vunpack.c.l.b16 %v38
  %v65 = vunpack.c.l.b16 %v39
  %v66 = vunpack.c.l.b16 %v40
  %v67 = vunpack.c.l.b16 %v41
  %v68 = vunpack.c.l.b16 %v42
  %v69 = vpack.c.b16 %v65, %v64
  %v70 = vpack.c.b16 %v67, %v66
  %v71 = vpack.c.b16 %v68, %v68
  %v91 = vunpack.c.l.b16 %v43
  %v92 = vunpack.c.l.b16 %v44
  %v93 = vunpack.c.l.b16 %v45
  %v94 = vunpack.c.l.b16 %v46
  %v95 = vunpack.c.l.b16 %v47
  %v96 = vunpack.c.l.b16 %v48
  %v97 = vunpack.c.l.b16 %v49
  %v98 = vunpack.c.l.b16 %v50
  %v99 = vunpack.c.l.b16 %v51
  %v100 = vunpack.c.l.b16 %v52
  %v101 = vunpack.c.l.b16 %v53
  %v102 = vunpack.c.l.b16 %v54
  %v103 = vunpack.c.l.b16 %v55
  %v104 = vunpack.c.l.b16 %v56
  %v105 = vunpack.c.l.b16 %v57
  %v106 = vunpack.c.l.b16 %v58
  %v107 = vpack.c.b16 %v92, %v91
  %v108 = vpack.c.b16 %v94, %v93
  %v109 = vpack.c.b16 %v96, %v95
  %v110 = vpack.c.b16 %v98, %v97
  %v111 = vpack.c.b16 %v100, %v99
  %v112 = vpack.c.b16 %v102, %v101
  %v113 = vpack.c.b16 %v104, %v103
  %v114 = vpack.c.b16 %v106, %v105
  %123 = vmatprep.subr.bf16.mxu0 0
  %124 = vmatpush1.bf16.msra.mxu0 %v107
  %125 = vmatprep.subr.bf16.mxu0 0
  %126 = vmatpush1.bf16.msra.mxu0 %v108
  %127 = vmatprep.subr.bf16.mxu0 0
  %128 = vmatpush1.bf16.msra.mxu0 %v109
  %129 = vmatprep.subr.bf16.mxu0 0
  %130 = vmatpush1.bf16.msra.mxu0 %v110
  %131 = vmatprep.subr.bf16.mxu0 0
  %132 = vmatpush1.bf16.msra.mxu0 %v111
  %133 = vmatprep.subr.bf16.mxu0 0
  %134 = vmatpush1.bf16.msra.mxu0 %v112
  %135 = vmatprep.subr.bf16.mxu0 0
  %136 = vmatpush1.bf16.msra.mxu0 %v113
  %137 = vmatprep.subr.bf16.mxu0 0
  %138 = vmatpush1.bf16.msra.mxu0 %v114
  %139 = vmatprep.subr.bf16.mxu0 0
  %140 = vmatpush1.bf16.msra.mxu0 0
  %141 = vmatprep.subr.bf16.mxu0 0
  %142 = vmatpush1.bf16.msra.mxu0 0
  %143 = vmatprep.subr.bf16.mxu0 0
  %144 = vmatpush1.bf16.msra.mxu0 0
  %145 = vmatprep.subr.bf16.mxu0 0
  %146 = vmatpush1.bf16.msra.mxu0 0
  %147 = vmatprep.subr.bf16.mxu0 0
  %148 = vmatpush1.bf16.msra.mxu0 0
  %149 = vmatprep.subr.bf16.mxu0 0
  %150 = vmatpush1.bf16.msra.mxu0 0
  %151 = vmatprep.subr.bf16.mxu0 0
  %152 = vmatpush1.bf16.msra.mxu0 0
  %153 = vmatprep.subr.bf16.mxu0 0
  %154 = vmatpush1.bf16.msra.mxu0 0
  %155 = vmatprep.mubr.bf16.mxu0 0
  %156 = vmatmul.mubr.bf16.gmra.mrb[0].mxu0 %v69
  %v157 = vpop.f32.mrb[0].mxu0
  %v158 = vadd.f32 0.0, %v157
  %v159 = vpop.f32.mrb[0].mxu0
  %v160 = vpop.f32.mrb[0].mxu0
  %v161 = vadd.f32 0.0, %v160
  %v162 = vpop.f32.mrb[0].mxu0
  %163 = vmatprep.mubr.bf16.mxu0 0
  %164 = vmatmul.mubr.bf16.gmra.mrb[0].mxu0 %v70
  %v165 = vpop.f32.mrb[0].mxu0
  %v166 = vadd.f32 0.0, %v165
  %v167 = vpop.f32.mrb[0].mxu0
  %v168 = vpop.f32.mrb[0].mxu0
  %v169 = vadd.f32 0.0, %v168
  %v170 = vpop.f32.mrb[0].mxu0
  %171 = vmatprep.mubr.bf16.mxu0 0
  %172 = vmatmul.mubr.bf16.gmra.mrb[0].mxu0 %v71
  %v173 = vpop.f32.mrb[0].mxu0
  %v174 = vadd.f32 0.0, %v173
  %v175 = vpop.f32.mrb[0].mxu0
  %v176 = vpop.f32.mrb[0].mxu0
  %v177 = vpop.f32.mrb[0].mxu0
  %178 = vdwg.mxu0
  %v179 = vadd.f32 %v33, %v158
  %v180 = vadd.f32 %v34, %v161
  %v181 = vadd.f32 %v35, %v166
  %v182 = vadd.f32 %v36, %v169
  %v183 = vadd.f32 %v37, %v174
  %184 = vst [vmem:[#allocation2] sm:$0xff] %v179
  %185 = vst [vmem:[#allocation2 + $0x8] sm:$0xff] %v180
  %186 = vst [vmem:[#allocation2 + $0x10] sm:$0xff] %v181
  %187 = vst [vmem:[#allocation2 + $0x18] sm:$0xff] %v182
  %188 = vst [vmem:[#allocation2 + $0x20] sm:$0xff] %v183
  // Predicated region
  $region30: #{vit_forward.15} parent=0 // pred_check
    %p189 = pneg %p24
  $region31: #{vit_forward.15} parent=0 // pred_check_branch
    %191 = sbr.rel (%p189) target = $region33
  $region32: #{vit_forward.15} parent=0 // pred_region
    %v192 = vld [vmem:[#allocation2] sm:$0xff]
    %v193 = vld [vmem:[#allocation2 + $0x8] sm:$0xff]
    %v194 = vld [vmem:[#allocation2 + $0x10] sm:$0xff]
    %v195 = vld [vmem:[#allocation2 + $0x18] sm:$0xff]
    %v196 = vld [vmem:[#allocation2 + $0x20] sm:$0xff]
    %v197 = vld [vmem:[%s2] sm:$0x1]
    %v199 = vlaneseq
    %v200 = vshrl.u32 %v199, 7
    %v201 = vsub.s32 0, %v200
    %v202 = vrot.slane %v197, %v201
    %v204 = vadd.f32 %v192, %v202
    %v205 = vadd.f32 %v193, %v202
    %v206 = vadd.f32 %v194, %v202
    %v207 = vadd.f32 %v195, %v202
    %v208 = vadd.f32 %v196, %v202
    %v209 = vld [vmem:[%s3] sm:$0xf]
    %v210 = vld [vmem:[%s3 + $0x4] sm:$0xf]
    %v211 = vld [vmem:[%s3 + $0x8] sm:$0xf]
    %v212 = vld [vmem:[%s3 + $0xc] sm:$0xf]
    %v213 = vld [vmem:[%s3 + $0x10] sm:$0xf]
    %v214 = vunpack.c.l.bf16 %v209
    %v215 = vunpack.c.l.bf16 %v210
    %v216 = vunpack.c.l.bf16 %v211
    %v217 = vunpack.c.l.bf16 %v212
    %v218 = vunpack.c.l.bf16 %v213
    %v219 = vadd.f32 %v204, %v214
    %v220 = vadd.f32 %v205, %v215
    %v221 = vadd.f32 %v206, %v216
    %v222 = vadd.f32 %v207, %v217
    %v223 = vadd.f32 %v208, %v218
    %224 = vadd.xlane.f32.xlu0 %v219
    %v225 = vpop.xlane.xlu0 %224
    %226 = vadd.xlane.f32.xlu0 %v220
    %v227 = vpop.xlane.xlu0 %226
    %228 = vadd.xlane.f32.xlu0 %v221
    %v229 = vpop.xlane.xlu0 %228
    %230 = vadd.xlane.f32.xlu0 %v222
    %v231 = vpop.xlane.xlu0 %230
    %232 = vadd.xlane.f32.xlu0 %v223
    %v233 = vpop.xlane.xlu0 %232
    %v234 = vmul.f32 %v225, 0.020833334
    %v235 = vmul.f32 %v227, 0.020833334
    %v236 = vmul.f32 %v229, 0.020833334
    %v237 = vmul.f32 %v231, 0.020833334
    %v238 = vmul.f32 %v233, 0.020833334
    %v239 = vsub.f32 %v219, %v234
    %v240 = vsub.f32 %v220, %v235
    %v241 = vsub.f32 %v221, %v236
    %v242 = vsub.f32 %v222, %v237
    %v243 = vsub.f32 %v223, %v238
    %v244 = vmul.f32 %v239, %v239
    %v245 = vmul.f32 %v240, %v240
    %v246 = vmul.f32 %v241, %v241
    %v247 = vmul.f32 %v242, %v242
    %v248 = vmul.f32 %v243, %v243
    %249 = vadd.xlane.f32.xlu0 %v244
    %v250 = vpop.xlane.xlu0 %249
    %251 = vadd.xlane.f32.xlu0 %v245
    %v252 = vpop.xlane.xlu0 %251
    %253 = vadd.xlane.f32.xlu0 %v246
    %v254 = vpop.xlane.xlu0 %253
    %255 = vadd.xlane.f32.xlu0 %v247
    %v256 = vpop.xlane.xlu0 %255
    %257 = vadd.xlane.f32.xlu0 %v248
    %v258 = vpop.xlane.xlu0 %257
    %v259 = vmul.f32 %v234, 80.0
    %v260 = vmul.f32 %v235, 80.0
    %v261 = vmul.f32 %v236, 80.0
    %v262 = vmul.f32 %v237, 80.0
    %v263 = vmul.f32 %v238, 80.0
    %v264 = vmul.f32 %v259, %v234
    %v265 = vmul.f32 %v260, %v235
    %v266 = vmul.f32 %v261, %v236
    %v267 = vmul.f32 %v262, %v237
    %v268 = vmul.f32 %v263, %v238
    %v269 = vsub.f32 %v250, %v264
    %v270 = vsub.f32 %v252, %v265
    %v271 = vsub.f32 %v254, %v266
    %v272 = vsub.f32 %v256, %v267
    %v273 = vsub.f32 %v258, %v268
    %v274 = vmul.f32 %v269, 0.020833334
    %v275 = vmul.f32 %v270, 0.020833334
    %v276 = vmul.f32 %v271, 0.020833334
    %v277 = vmul.f32 %v272, 0.020833334
    %v278 = vmul.f32 %v273, 0.020833334
    %v279 = vadd.f32 %v274, 1e-05
    %v280 = vadd.f32 %v275, 1e-05
    %v281 = vadd.f32 %v276, 1e-05
    %v282 = vadd.f32 %v277, 1e-05
    %v283 = vadd.f32 %v278, 1e-05
    %v284 = vrsqrt.pop %v279
    %v285 = vrsqrt.pop %v280
    %v286 = vrsqrt.pop %v281
    %v287 = vrsqrt.pop %v282
    %v288 = vrsqrt.pop %v283
    %v289 = vmul.f32 %v239, %v284
    %v290 = vmul.f32 %v240, %v285
    %v291 = vmul.f32 %v241, %v286
    %v292 = vmul.f32 %v242, %v287
    %v293 = vmul.f32 %v243, %v288
    %v294 = vld [vmem:[%s4] sm:$0x1]
    %v296 = vlaneseq
    %v297 = vshrl.u32 %v296, 7
    %v298 = vsub.s32 0, %v297
    %v299 = vrot.slane %v294, %v298
    %v301 = vmul.f32 %v289, %v299
    %v302 = vmul.f32 %v290, %v299
    %v303 = vmul.f32 %v291, %v299
    %v304 = vmul.f32 %v292, %v299
    %v305 = vmul.f32 %v293, %v299
    %v306 = vld [vmem:[%s5] sm:$0x1]
    %v308 = vlaneseq
    %v309 = vshrl.u32 %v308, 7
    %v310 = vsub.s32 0, %v309
    %v311 = vrot.slane %v306, %v310
    %v313 = vadd.f32 %v301, %v311
    %v314 = vadd.f32 %v302, %v311
    %v315 = vadd.f32 %v303, %v311
    %v316 = vadd.f32 %v304, %v311
    %v317 = vadd.f32 %v305, %v311
    %v318 = vpack.c.bf16 %v314, %v313
    %v319 = vpack.c.bf16 %v316, %v315
    %v320 = vpack.c.bf16 %v317, %v317
    %v324 = vunpack.c.l.b16 %v318
    %v325 = vunpack.c.h.b16 %v318
    %v326 = vunpack.c.l.b16 %v319
    %v327 = vunpack.c.h.b16 %v319
    %v328 = vunpack.c.l.b16 %v320
    %v329 = vpack.c.b16 %v324, %v324
    %v330 = vpack.c.b16 %v325, %v325
    %v331 = vpack.c.b16 %v326, %v326
    %v332 = vpack.c.b16 %v327, %v327
    %v333 = vpack.c.b16 %v328, %v328
    %339 = vst [vmem:[%s6] sm:$0xf] %v329
    %340 = vst [vmem:[%s6 + $0x4] sm:$0xf] %v330
    %341 = vst [vmem:[%s6 + $0x8] sm:$0xf] %v331
    %342 = vst [vmem:[%s6 + $0xc] sm:$0xf] %v332
    %343 = vst [vmem:[%s6 + $0x10] sm:$0xf] %v333
  $region33: #{vit_forward.15} parent=0 // pred_fallthru
    _
  // Predicated region
  $region34: #{vit_forward.15} parent=0 // pred_check
    _
  $region35: #{vit_forward.15} parent=0 // pred_check_branch
    %345 = sbr.rel (0) target = $region37
  $region36: #{vit_forward.15} parent=0 // pred_region
    _
  $region37: #{vit_forward.15} parent=0 // pred_fallthru
    _
  // Predicated region
  $region38: #{vit_forward.15} parent=0 // pred_check
    _
  $region39: #{vit_forward.15} parent=0 // pred_check_branch
    %347 = sbr.rel (0) target = $region41
  $region40: #{vit_forward.15} parent=0 // pred_region
    _
  $region41: #{vit_forward.15} parent=0 // pred_fallthru
    _

// kernel: vit_forward.16
$region0: #{vit_forward.16}
  #allocation0 [shape = 'u32[]', space=smem, size = 0x4, offset = 0x4, fixed_abs, tag = 'smem constant byte address 0x4 - core index']
  #allocation1 [shape = 'u32[144,128]{1,0:T(1,128)}', space=vmem, size = 0x12000, scoped, tag = 'internal scratch']
  #allocation2 [shape = 'f32[40,128]{1,0:T(8,128)}', space=vmem, size = 0x5000, scoped, tag = 'scratch operand']
  %s0 = inlined_call_operand.vmem [shape: bf16[40,128], index: 0, kind: input, shape index: {}]
  %s1 = inlined_call_operand.vmem [shape: bf16[128,128], index: 1, kind: input, shape index: {}]
  %s2 = inlined_call_operand.vmem [shape: f32[1,128], index: 2, kind: input, shape index: {}]
  %s3 = inlined_call_operand.vmem [shape: bf16[40,128], index: 3, kind: output, shape index: {}]
  %s4 = sld [smem:[#allocation0]]
  $region30: #{vit_forward.16} parent=0
    _
  %s6 = ssub.s32 1, %s4
  %s7 = scalar_select 0, %s6, %s4
  // Predicated region
  $region2: #{vit_forward.16} parent=0 // pred_check
    _
  $region3: #{vit_forward.16} parent=0 // pred_check_branch
    %9 = sbr.rel (0) target = $region5
  $region4: #{vit_forward.16} parent=0 // pred_region
    _
  $region5: #{vit_forward.16} parent=0 // pred_fallthru
    _
  // Predicated region
  $region6: #{vit_forward.16} parent=0 // pred_check
    _
  $region7: #{vit_forward.16} parent=0 // pred_check_branch
    %11 = sbr.rel (0) target = $region9
  $region8: #{vit_forward.16} parent=0 // pred_region
    _
  $region9: #{vit_forward.16} parent=0 // pred_fallthru
    _
  // Predicated region
  $region10: #{vit_forward.16} parent=0 // pred_check
    _
  $region11: #{vit_forward.16} parent=0 // pred_check_branch
    %13 = sbr.rel (0) target = $region13
  $region12: #{vit_forward.16} parent=0 // pred_region
    _
  $region13: #{vit_forward.16} parent=0 // pred_fallthru
    _
  %p15 = scmp.eq.s32.totalorder 0, 0
  // Predicated region
  $region14: #{vit_forward.16} parent=0 // pred_check
    %p16 = pneg %p15
  $region15: #{vit_forward.16} parent=0 // pred_check_branch
    %18 = sbr.rel (%p16) target = $region17
  $region16: #{vit_forward.16} parent=0 // pred_region
    %19 = vst [vmem:[#allocation2] sm:$0xff] 0.0
    %20 = vst [vmem:[#allocation2 + $0x8] sm:$0xff] 0.0
    %21 = vst [vmem:[#allocation2 + $0x10] sm:$0xff] 0.0
    %22 = vst [vmem:[#allocation2 + $0x18] sm:$0xff] 0.0
    %23 = vst [vmem:[#allocation2 + $0x20] sm:$0xff] 0.0
  $region17: #{vit_forward.16} parent=0 // pred_fallthru
    _
  %v24 = vld [vmem:[#allocation2] sm:$0xff]
  %v25 = vld [vmem:[#allocation2 + $0x8] sm:$0xff]
  %v26 = vld [vmem:[#allocation2 + $0x10] sm:$0xff]
  %v27 = vld [vmem:[#allocation2 + $0x18] sm:$0xff]
  %v28 = vld [vmem:[#allocation2 + $0x20] sm:$0xff]
  %v29 = vld [vmem:[%s0] sm:$0xf]
  %v30 = vld [vmem:[%s0 + $0x4] sm:$0xf]
  %v31 = vld [vmem:[%s0 + $0x8] sm:$0xf]
  %v32 = vld [vmem:[%s0 + $0xc] sm:$0xf]
  %v33 = vld [vmem:[%s0 + $0x10] sm:$0xf]
  %v34 = vld [vmem:[%s1] sm:$0xf]
  %v35 = vld [vmem:[%s1 + $0x4] sm:$0xf]
  %v36 = vld [vmem:[%s1 + $0x8] sm:$0xf]
  %v37 = vld [vmem:[%s1 + $0xc] sm:$0xf]
  %v38 = vld [vmem:[%s1 + $0x10] sm:$0xf]
  %v39 = vld [vmem:[%s1 + $0x14] sm:$0xf]
  %v40 = vld [vmem:[%s1 + $0x18] sm:$0xf]
  %v41 = vld [vmem:[%s1 + $0x1c] sm:$0xf]
  %v42 = vld [vmem:[%s1 + $0x20] sm:$0xf]
  %v43 = vld [vmem:[%s1 + $0x24] sm:$0xf]
  %v44 = vld [vmem:[%s1 + $0x28] sm:$0xf]
  %v45 = vld [vmem:[%s1 + $0x2c] sm:$0xf]
  %v46 = vld [vmem:[%s1 + $0x30] sm:$0xf]
  %v47 = vld [vmem:[%s1 + $0x34] sm:$0xf]
  %v48 = vld [vmem:[%s1 + $0x38] sm:$0xf]
  %v49 = vld [vmem:[%s1 + $0x3c] sm:$0xf]
  %v55 = vunpack.c.l.b16 %v29
  %v56 = vunpack.c.l.b16 %v30
  %v57 = vunpack.c.l.b16 %v31
  %v58 = vunpack.c.l.b16 %v32
  %v59 = vunpack.c.l.b16 %v33
  %v60 = vpack.c.b16 %v56, %v55
  %v61 = vpack.c.b16 %v58, %v57
  %v62 = vpack.c.b16 %v59, %v59
  %v82 = vunpack.c.l.b16 %v34
  %v83 = vunpack.c.l.b16 %v35
  %v84 = vunpack.c.l.b16 %v36
  %v85 = vunpack.c.l.b16 %v37
  %v86 = vunpack.c.l.b16 %v38
  %v87 = vunpack.c.l.b16 %v39
  %v88 = vunpack.c.l.b16 %v40
  %v89 = vunpack.c.l.b16 %v41
  %v90 = vunpack.c.l.b16 %v42
  %v91 = vunpack.c.l.b16 %v43
  %v92 = vunpack.c.l.b16 %v44
  %v93 = vunpack.c.l.b16 %v45
  %v94 = vunpack.c.l.b16 %v46
  %v95 = vunpack.c.l.b16 %v47
  %v96 = vunpack.c.l.b16 %v48
  %v97 = vunpack.c.l.b16 %v49
  %v98 = vpack.c.b16 %v83, %v82
  %v99 = vpack.c.b16 %v85, %v84
  %v100 = vpack.c.b16 %v87, %v86
  %v101 = vpack.c.b16 %v89, %v88
  %v102 = vpack.c.b16 %v91, %v90
  %v103 = vpack.c.b16 %v93, %v92
  %v104 = vpack.c.b16 %v95, %v94
  %v105 = vpack.c.b16 %v97, %v96
  %114 = vmatprep.subr.bf16.mxu0 0
  %115 = vmatpush1.bf16.msra.mxu0 %v98
  %116 = vmatprep.subr.bf16.mxu0 0
  %117 = vmatpush1.bf16.msra.mxu0 %v99
  %118 = vmatprep.subr.bf16.mxu0 0
  %119 = vmatpush1.bf16.msra.mxu0 %v100
  %120 = vmatprep.subr.bf16.mxu0 0
  %121 = vmatpush1.bf16.msra.mxu0 %v101
  %122 = vmatprep.subr.bf16.mxu0 0
  %123 = vmatpush1.bf16.msra.mxu0 %v102
  %124 = vmatprep.subr.bf16.mxu0 0
  %125 = vmatpush1.bf16.msra.mxu0 %v103
  %126 = vmatprep.subr.bf16.mxu0 0
  %127 = vmatpush1.bf16.msra.mxu0 %v104
  %128 = vmatprep.subr.bf16.mxu0 0
  %129 = vmatpush1.bf16.msra.mxu0 %v105
  %130 = vmatprep.subr.bf16.mxu0 0
  %131 = vmatpush1.bf16.msra.mxu0 0
  %132 = vmatprep.subr.bf16.mxu0 0
  %133 = vmatpush1.bf16.msra.mxu0 0
  %134 = vmatprep.subr.bf16.mxu0 0
  %135 = vmatpush1.bf16.msra.mxu0 0
  %136 = vmatprep.subr.bf16.mxu0 0
  %137 = vmatpush1.bf16.msra.mxu0 0
  %138 = vmatprep.subr.bf16.mxu0 0
  %139 = vmatpush1.bf16.msra.mxu0 0
  %140 = vmatprep.subr.bf16.mxu0 0
  %141 = vmatpush1.bf16.msra.mxu0 0
  %142 = vmatprep.subr.bf16.mxu0 0
  %143 = vmatpush1.bf16.msra.mxu0 0
  %144 = vmatprep.subr.bf16.mxu0 0
  %145 = vmatpush1.bf16.msra.mxu0 0
  %146 = vmatprep.mubr.bf16.mxu0 0
  %147 = vmatmul.mubr.bf16.gmra.mrb[0].mxu0 %v60
  %v148 = vpop.f32.mrb[0].mxu0
  %v149 = vadd.f32 0.0, %v148
  %v150 = vpop.f32.mrb[0].mxu0
  %v151 = vpop.f32.mrb[0].mxu0
  %v152 = vadd.f32 0.0, %v151
  %v153 = vpop.f32.mrb[0].mxu0
  %154 = vmatprep.mubr.bf16.mxu0 0
  %155 = vmatmul.mubr.bf16.gmra.mrb[0].mxu0 %v61
  %v156 = vpop.f32.mrb[0].mxu0
  %v157 = vadd.f32 0.0, %v156
  %v158 = vpop.f32.mrb[0].mxu0
  %v159 = vpop.f32.mrb[0].mxu0
  %v160 = vadd.f32 0.0, %v159
  %v161 = vpop.f32.mrb[0].mxu0
  %162 = vmatprep.mubr.bf16.mxu0 0
  %163 = vmatmul.mubr.bf16.gmra.mrb[0].mxu0 %v62
  %v164 = vpop.f32.mrb[0].mxu0
  %v165 = vadd.f32 0.0, %v164
  %v166 = vpop.f32.mrb[0].mxu0
  %v167 = vpop.f32.mrb[0].mxu0
  %v168 = vpop.f32.mrb[0].mxu0
  %169 = vdwg.mxu0
  %v170 = vadd.f32 %v24, %v149
  %v171 = vadd.f32 %v25, %v152
  %v172 = vadd.f32 %v26, %v157
  %v173 = vadd.f32 %v27, %v160
  %v174 = vadd.f32 %v28, %v165
  %175 = vst [vmem:[#allocation2] sm:$0xff] %v170
  %176 = vst [vmem:[#allocation2 + $0x8] sm:$0xff] %v171
  %177 = vst [vmem:[#allocation2 + $0x10] sm:$0xff] %v172
  %178 = vst [vmem:[#allocation2 + $0x18] sm:$0xff] %v173
  %179 = vst [vmem:[#allocation2 + $0x20] sm:$0xff] %v174
  // Predicated region
  $region18: #{vit_forward.16} parent=0 // pred_check
    %p180 = pneg %p15
  $region19: #{vit_forward.16} parent=0 // pred_check_branch
    %182 = sbr.rel (%p180) target = $region21
  $region20: #{vit_forward.16} parent=0 // pred_region
    %v183 = vld [vmem:[#allocation2] sm:$0xff]
    %v184 = vld [vmem:[#allocation2 + $0x8] sm:$0xff]
    %v185 = vld [vmem:[#allocation2 + $0x10] sm:$0xff]
    %v186 = vld [vmem:[#allocation2 + $0x18] sm:$0xff]
    %v187 = vld [vmem:[#allocation2 + $0x20] sm:$0xff]
    %v188 = vld [vmem:[%s2] sm:$0x1]
    %v190 = vlaneseq
    %v191 = vshrl.u32 %v190, 7
    %v192 = vsub.s32 0, %v191
    %v193 = vrot.slane %v188, %v192
    %v195 = vadd.f32 %v183, %v193
    %v196 = vadd.f32 %v184, %v193
    %v197 = vadd.f32 %v185, %v193
    %v198 = vadd.f32 %v186, %v193
    %v199 = vadd.f32 %v187, %v193
    %v200 = vmax.f32 %v195, 0.0
    %v201 = vmax.f32 %v196, 0.0
    %v202 = vmax.f32 %v197, 0.0
    %v203 = vmax.f32 %v198, 0.0
    %v204 = vmax.f32 %v199, 0.0
    %v205 = vpack.c.bf16 %v201, %v200
    %v206 = vpack.c.bf16 %v203, %v202
    %v207 = vpack.c.bf16 %v204, %v204
    %v211 = vunpack.c.l.b16 %v205
    %v212 = vunpack.c.h.b16 %v205
    %v213 = vunpack.c.l.b16 %v206
    %v214 = vunpack.c.h.b16 %v206
    %v215 = vunpack.c.l.b16 %v207
    %v216 = vpack.c.b16 %v211, %v211
    %v217 = vpack.c.b16 %v212, %v212
    %v218 = vpack.c.b16 %v213, %v213
    %v219 = vpack.c.b16 %v214, %v214
    %v220 = vpack.c.b16 %v215, %v215
    %226 = vst [vmem:[%s3] sm:$0xf] %v216
    %227 = vst [vmem:[%s3 + $0x4] sm:$0xf] %v217
    %228 = vst [vmem:[%s3 + $0x8] sm:$0xf] %v218
    %229 = vst [vmem:[%s3 + $0xc] sm:$0xf] %v219
    %230 = vst [vmem:[%s3 + $0x10] sm:$0xf] %v220
  $region21: #{vit_forward.16} parent=0 // pred_fallthru
    _
  // Predicated region
  $region22: #{vit_forward.16} parent=0 // pred_check
    _
  $region23: #{vit_forward.16} parent=0 // pred_check_branch
    %232 = sbr.rel (0) target = $region25
  $region24: #{vit_forward.16} parent=0 // pred_region
    _
  $region25: #{vit_forward.16} parent=0 // pred_fallthru
    _
  // Predicated region
  $region26: #{vit_forward.16} parent=0 // pred_check
    _
  $region27: #{vit_forward.16} parent=0 // pred_check_branch
    %234 = sbr.rel (0) target = $region29
  $region28: #{vit_forward.16} parent=0 // pred_region
    _
  $region29: #{vit_forward.16} parent=0 // pred_fallthru
    _

// kernel: vit_forward.23
$region0: #{vit_forward.23}
  #allocation0 [shape = 'u32[]', space=smem, size = 0x4, offset = 0x4, fixed_abs, tag = 'smem constant byte address 0x4 - core index']
  #allocation1 [shape = 'u32[144,128]{1,0:T(1,128)}', space=vmem, size = 0x12000, scoped, tag = 'internal scratch']
  #allocation2 [shape = 'f32[8,128]{1,0:T(8,128)}', space=vmem, size = 0x1000, scoped, tag = 'scratch operand']
  %s0 = inlined_call_operand.vmem [shape: bf16[8,128], index: 0, kind: input, shape index: {}]
  %s1 = inlined_call_operand.vmem [shape: bf16[128,128], index: 1, kind: input, shape index: {}]
  %s2 = inlined_call_operand.vmem [shape: f32[1,128], index: 2, kind: input, shape index: {}]
  %s3 = inlined_call_operand.vmem [shape: f32[8,128], index: 3, kind: output, shape index: {}]
  %s4 = sld [smem:[#allocation0]]
  $region30: #{vit_forward.23} parent=0
    _
  %s6 = ssub.s32 1, %s4
  %s7 = scalar_select 0, %s6, %s4
  // Predicated region
  $region2: #{vit_forward.23} parent=0 // pred_check
    _
  $region3: #{vit_forward.23} parent=0 // pred_check_branch
    %9 = sbr.rel (0) target = $region5
  $region4: #{vit_forward.23} parent=0 // pred_region
    _
  $region5: #{vit_forward.23} parent=0 // pred_fallthru
    _
  // Predicated region
  $region6: #{vit_forward.23} parent=0 // pred_check
    _
  $region7: #{vit_forward.23} parent=0 // pred_check_branch
    %11 = sbr.rel (0) target = $region9
  $region8: #{vit_forward.23} parent=0 // pred_region
    _
  $region9: #{vit_forward.23} parent=0 // pred_fallthru
    _
  // Predicated region
  $region10: #{vit_forward.23} parent=0 // pred_check
    _
  $region11: #{vit_forward.23} parent=0 // pred_check_branch
    %13 = sbr.rel (0) target = $region13
  $region12: #{vit_forward.23} parent=0 // pred_region
    _
  $region13: #{vit_forward.23} parent=0 // pred_fallthru
    _
  %p15 = scmp.eq.s32.totalorder 0, 0
  // Predicated region
  $region14: #{vit_forward.23} parent=0 // pred_check
    %p16 = pneg %p15
  $region15: #{vit_forward.23} parent=0 // pred_check_branch
    %18 = sbr.rel (%p16) target = $region17
  $region16: #{vit_forward.23} parent=0 // pred_region
    %19 = vst [vmem:[#allocation2] sm:$0xff] 0.0
  $region17: #{vit_forward.23} parent=0 // pred_fallthru
    _
  %v20 = vld [vmem:[#allocation2] sm:$0xff]
  %v21 = vld [vmem:[%s0] sm:$0xf]
  %v22 = vld [vmem:[%s1] sm:$0xf]
  %v23 = vld [vmem:[%s1 + $0x4] sm:$0xf]
  %v24 = vld [vmem:[%s1 + $0x8] sm:$0xf]
  %v25 = vld [vmem:[%s1 + $0xc] sm:$0xf]
  %v26 = vld [vmem:[%s1 + $0x10] sm:$0xf]
  %v27 = vld [vmem:[%s1 + $0x14] sm:$0xf]
  %v28 = vld [vmem:[%s1 + $0x18] sm:$0xf]
  %v29 = vld [vmem:[%s1 + $0x1c] sm:$0xf]
  %v30 = vld [vmem:[%s1 + $0x20] sm:$0xf]
  %v31 = vld [vmem:[%s1 + $0x24] sm:$0xf]
  %v32 = vld [vmem:[%s1 + $0x28] sm:$0xf]
  %v33 = vld [vmem:[%s1 + $0x2c] sm:$0xf]
  %v34 = vld [vmem:[%s1 + $0x30] sm:$0xf]
  %v35 = vld [vmem:[%s1 + $0x34] sm:$0xf]
  %v36 = vld [vmem:[%s1 + $0x38] sm:$0xf]
  %v37 = vld [vmem:[%s1 + $0x3c] sm:$0xf]
  %v54 = vunpack.c.l.b16 %v22
  %v55 = vunpack.c.l.b16 %v23
  %v56 = vunpack.c.l.b16 %v24
  %v57 = vunpack.c.l.b16 %v25
  %v58 = vunpack.c.l.b16 %v26
  %v59 = vunpack.c.l.b16 %v27
  %v60 = vunpack.c.l.b16 %v28
  %v61 = vunpack.c.l.b16 %v29
  %v62 = vunpack.c.l.b16 %v30
  %v63 = vunpack.c.l.b16 %v31
  %v64 = vunpack.c.l.b16 %v32
  %v65 = vunpack.c.l.b16 %v33
  %v66 = vunpack.c.l.b16 %v34
  %v67 = vunpack.c.l.b16 %v35
  %v68 = vunpack.c.l.b16 %v36
  %v69 = vunpack.c.l.b16 %v37
  %v70 = vpack.c.b16 %v55, %v54
  %v71 = vpack.c.b16 %v57, %v56
  %v72 = vpack.c.b16 %v59, %v58
  %v73 = vpack.c.b16 %v61, %v60
  %v74 = vpack.c.b16 %v63, %v62
  %v75 = vpack.c.b16 %v65, %v64
  %v76 = vpack.c.b16 %v67, %v66
  %v77 = vpack.c.b16 %v69, %v68
  %86 = vmatprep.subr.bf16.mxu0 0
  %87 = vmatpush1.bf16.msra.mxu0 %v70
  %88 = vmatprep.subr.bf16.mxu0 0
  %89 = vmatpush1.bf16.msra.mxu0 %v71
  %90 = vmatprep.subr.bf16.mxu0 0
  %91 = vmatpush1.bf16.msra.mxu0 %v72
  %92 = vmatprep.subr.bf16.mxu0 0
  %93 = vmatpush1.bf16.msra.mxu0 %v73
  %94 = vmatprep.subr.bf16.mxu0 0
  %95 = vmatpush1.bf16.msra.mxu0 %v74
  %96 = vmatprep.subr.bf16.mxu0 0
  %97 = vmatpush1.bf16.msra.mxu0 %v75
  %98 = vmatprep.subr.bf16.mxu0 0
  %99 = vmatpush1.bf16.msra.mxu0 %v76
  %100 = vmatprep.subr.bf16.mxu0 0
  %101 = vmatpush1.bf16.msra.mxu0 %v77
  %102 = vmatprep.subr.bf16.mxu0 0
  %103 = vmatpush1.bf16.msra.mxu0 0
  %104 = vmatprep.subr.bf16.mxu0 0
  %105 = vmatpush1.bf16.msra.mxu0 0
  %106 = vmatprep.subr.bf16.mxu0 0
  %107 = vmatpush1.bf16.msra.mxu0 0
  %108 = vmatprep.subr.bf16.mxu0 0
  %109 = vmatpush1.bf16.msra.mxu0 0
  %110 = vmatprep.subr.bf16.mxu0 0
  %111 = vmatpush1.bf16.msra.mxu0 0
  %112 = vmatprep.subr.bf16.mxu0 0
  %113 = vmatpush1.bf16.msra.mxu0 0
  %114 = vmatprep.subr.bf16.mxu0 0
  %115 = vmatpush1.bf16.msra.mxu0 0
  %116 = vmatprep.subr.bf16.mxu0 0
  %117 = vmatpush1.bf16.msra.mxu0 0
  %118 = vmatprep.mubr.bf16.mxu0 0
  %119 = vmatmul.mubr.bf16.gmra.mrb[0].mxu0 %v21
  %v120 = vpop.f32.mrb[0].mxu0
  %v121 = vadd.f32 0.0, %v120
  %v122 = vpop.f32.mrb[0].mxu0
  %v123 = vpop.f32.mrb[0].mxu0
  %v124 = vpop.f32.mrb[0].mxu0
  %125 = vdwg.mxu0
  %v126 = vadd.f32 %v20, %v121
  %127 = vst [vmem:[#allocation2] sm:$0xff] %v126
  // Predicated region
  $region18: #{vit_forward.23} parent=0 // pred_check
    %p128 = pneg %p15
  $region19: #{vit_forward.23} parent=0 // pred_check_branch
    %130 = sbr.rel (%p128) target = $region21
  $region20: #{vit_forward.23} parent=0 // pred_region
    %v131 = vld [vmem:[#allocation2] sm:$0xff]
    %v132 = vld [vmem:[%s2] sm:$0x1]
    %v134 = vlaneseq
    %v135 = vshrl.u32 %v134, 7
    %v136 = vsub.s32 0, %v135
    %v137 = vrot.slane %v132, %v136
    %v139 = vadd.f32 %v131, %v137
    %140 = vst [vmem:[%s3] sm:$0xff] %v139
  $region21: #{vit_forward.23} parent=0 // pred_fallthru
    _
  // Predicated region
  $region22: #{vit_forward.23} parent=0 // pred_check
    _
  $region23: #{vit_forward.23} parent=0 // pred_check_branch
    %142 = sbr.rel (0) target = $region25
  $region24: #{vit_forward.23} parent=0 // pred_region
    _
  $region25: #{vit_forward.23} parent=0 // pred_fallthru
    _
  // Predicated region
  $region26: #{vit_forward.23} parent=0 // pred_check
    _
  $region27: #{vit_forward.23} parent=0 // pred_check_branch
    %144 = sbr.rel (0) target = $region29
  $region28: #{vit_forward.23} parent=0 // pred_region
    _
  $region29: #{vit_forward.23} parent=0 // pred_fallthru
    _

// kernel: vit_forward.14
$region0: #{vit_forward.14}
  #allocation0 [shape = 'u32[]', space=smem, size = 0x4, offset = 0x4, fixed_abs, tag = 'smem constant byte address 0x4 - core index']
  #allocation1 [shape = 'u32[144,128]{1,0:T(1,128)}', space=vmem, size = 0x12000, scoped, tag = 'internal scratch']
  %s0 = inlined_call_operand.vmem [shape: bf16[32,2,144], index: 0, kind: input, shape index: {}]
  %s1 = inlined_call_operand.vmem [shape: bf16[32,2,48], index: 1, kind: output, shape index: {}]
  %s2 = sld [smem:[#allocation0]]
  $region37: #{vit_forward.14} parent=0
    _
  %s4 = ssub.s32 1, %s2
  %s5 = scalar_select 0, %s4, %s2
  loop: start=0, step=1, limit=4
  $region2: #{vit_forward.14} parent=0 // loop_pre_header
    _
  $region3: #{vit_forward.14} parent=0 // loop_header
    %s7 = sphi 0, %s11
    %p8 = scmp.ge.s32.totalorder %s7, 4
    %s17 = sphi 0, %s19
    %s20 = sphi 0, %s17
    %s21 = sphi 0, %s20
    %s37 = sphi 0, %s21
    %s43 = sphi 0, %s45
    %s46 = sphi 0, %s43
    %s47 = sphi 0, %s46
    %s63 = sphi 0, %s47
  $region4: #{vit_forward.14} parent=0 // loop_header_branch
    %10 = sbr.rel (%p8) target = $region8
  $region5: #{vit_forward.14} parent=0 // loop_body
    %s12 = ssub.s32 %s7, 1
    %s13 = ssub.s32 %s7, 2
    %s14 = sadd.s32 %s7, 1
    %s15 = ssub.s32 %s7, %s14
    %p16 = scmp.eq.s32.totalorder %s15, 0
    %s18 = sadd.s32 %s17, 1
    %s19 = scalar_select %p16, %s17, %s18
    %p22 = pneg %p16
    %p23 = scmp.eq.s32.totalorder %s7, 1
    %p24 = por %p22, %p23
    %p25 = scmp.ne.s32.totalorder %s17, %s20
    %p26 = scmp.eq.s32.totalorder %s7, 0
    %p27 = por %p25, %p26
    %p28 = scmp.ne.s32.totalorder %s17, %s20
    %p29 = scmp.eq.s32.totalorder %s12, 1
    %p30 = por %p28, %p29
    %p31 = scmp.ne.s32.totalorder %s20, %s21
    %p32 = scmp.eq.s32.totalorder %s12, 0
    %p33 = por %p31, %p32
    %p34 = scmp.ne.s32.totalorder %s20, %s21
    %p35 = scmp.eq.s32.totalorder %s13, 1
    %p36 = por %p34, %p35
    %p38 = scmp.ne.s32.totalorder %s21, %s37
    %p39 = scmp.eq.s32.totalorder %s13, 0
    %p40 = por %p38, %p39
    %s41 = ssub.s32 %s7, %s14
    %p42 = scmp.eq.s32.totalorder %s41, 0
    %s44 = sadd.s32 %s43, 1
    %s45 = scalar_select %p42, %s43, %s44
    %p48 = pneg %p42
    %p49 = scmp.eq.s32.totalorder %s7, 1
    %p50 = por %p48, %p49
    %p51 = scmp.ne.s32.totalorder %s43, %s46
    %p52 = scmp.eq.s32.totalorder %s7, 0
    %p53 = por %p51, %p52
    %p54 = scmp.ne.s32.totalorder %s43, %s46
    %p55 = scmp.eq.s32.totalorder %s12, 1
    %p56 = por %p54, %p55
    %p57 = scmp.ne.s32.totalorder %s46, %s47
    %p58 = scmp.eq.s32.totalorder %s12, 0
    %p59 = por %p57, %p58
    %p60 = scmp.ne.s32.totalorder %s46, %s47
    %p61 = scmp.eq.s32.totalorder %s13, 1
    %p62 = por %p60, %p61
    %p64 = scmp.ne.s32.totalorder %s47, %s63
    %p65 = scmp.eq.s32.totalorder %s13, 0
    %p66 = por %p64, %p65
    %p67 = scmp.le.s32.totalorder 1, %s7
    %p68 = scmp.lt.s32.totalorder %s7, 3
    %p69 = pnand %p67, %p68
    %p70 = pneg %p69
    // Predicated region
    $region9: #{vit_forward.14} parent=5 // pred_check
      _
    $region10: #{vit_forward.14} parent=5 // pred_check_branch
      %72 = sbr.rel (%p69) target = $region12
    $region11: #{vit_forward.14} parent=5 // pred_region
      %s73 = ssub.s32 %s7, 1
    $region12: #{vit_forward.14} parent=5 // pred_fallthru
      _
    %p74 = scmp.lt.s32.totalorder %s7, 2
    // Predicated region
    $region13: #{vit_forward.14} parent=5 // pred_check
      %p75 = pneg %p74
    $region14: #{vit_forward.14} parent=5 // pred_check_branch
      %77 = sbr.rel (%p75) target = $region16
    $region15: #{vit_forward.14} parent=5 // pred_region
      // Predicated region
      $region17: #{vit_forward.14} parent=15 // pred_check
        %p78 = pneg %p27
      $region18: #{vit_forward.14} parent=15 // pred_check_branch
        %80 = sbr.rel (%p78) target = $region20
      $region19: #{vit_forward.14} parent=15 // pred_region
        %s81 = smul.u32 16, %s7
        %p82 = scmp.lt.s32.totalorder %s81, 31
        %s83 = scalar_select %p82, %s81, 31
        %s84 = smul.addr %s83, 2
        %s85 = scalar_lea.vmem %s0, %s84
        %s86 = smul.u32 16, %s7
      $region20: #{vit_forward.14} parent=15 // pred_fallthru
        _
    $region16: #{vit_forward.14} parent=5 // pred_fallthru
      _
    %p87 = scmp.le.s32.totalorder 1, %s7
    %p88 = scmp.lt.s32.totalorder %s7, 3
    %p89 = pnand %p87, %p88
    %p90 = pneg %p89
    // Predicated region
    $region21: #{vit_forward.14} parent=5 // pred_check
      _
    $region22: #{vit_forward.14} parent=5 // pred_check_branch
      %92 = sbr.rel (%p89) target = $region24
    $region23: #{vit_forward.14} parent=5 // pred_region
      %s93 = ssub.s32 %s7, 1
      %s94 = smul.u32 16, %s12
      %p95 = scmp.lt.s32.totalorder %s94, 31
      %s96 = scalar_select %p95, %s94, 31
      %s97 = smul.addr %s96, 2
      %s98 = scalar_lea.vmem %s0, %s97
      %p99 = pneg %p33
      %p100 = pneg %p30
      %p101 = pneg %p59
      %p102 = pneg %p56
      %s103 = smul.u32 16, %s12
      %p104 = scmp.lt.s32.totalorder %s103, 31
      %s105 = scalar_select %p104, %s103, 31
      %s106 = scalar_lea.vmem %s1, %s105
      %s107 = smul.u32 16, %s12
      %p108 = scmp.lt.s32.totalorder %s107, 31
      %s109 = scalar_select %p108, %s107, 31
      %s110 = smul.addr %s109, 2
      %s111 = scalar_lea.vmem %s0, %s110
      %s112 = smul.u32 16, %s12
      %s113 = smul.u32 16, %s12
      %p114 = scmp.lt.s32.totalorder %s113, 31
      %s115 = scalar_select %p114, %s113, 31
      %s116 = scalar_lea.vmem %s1, %s115
      %s117 = smul.u32 16, %s12
      %v119 = vld [vmem:[%s111] sm:$0x3]
      %v120 = vld [vmem:[%s111 + $0x2] sm:$0x3]
      %v121 = vld [vmem:[%s111 + $0x4] sm:$0x3]
      %v122 = vld [vmem:[%s111 + $0x6] sm:$0x3]
      %v123 = vld [vmem:[%s111 + $0x8] sm:$0x3]
      %v124 = vld [vmem:[%s111 + $0xa] sm:$0x3]
      %v125 = vld [vmem:[%s111 + $0xc] sm:$0x3]
      %v126 = vld [vmem:[%s111 + $0xe] sm:$0x3]
      %v127 = vld [vmem:[%s111 + $0x10] sm:$0x3]
      %v128 = vld [vmem:[%s111 + $0x12] sm:$0x3]
      %v129 = vld [vmem:[%s111 + $0x14] sm:$0x3]
      %v130 = vld [vmem:[%s111 + $0x16] sm:$0x3]
      %v131 = vld [vmem:[%s111 + $0x18] sm:$0x3]
      %v132 = vld [vmem:[%s111 + $0x1a] sm:$0x3]
      %v133 = vld [vmem:[%s111 + $0x1c] sm:$0x3]
      %v134 = vld [vmem:[%s111 + $0x1e] sm:$0x3]
      %v137 = vunpack.c.l.s4 1966171168
      %v138 = vunpack.c.0.s8 %v137
      %v139 = vlaneseq
      %v140 = vshrl.u32 %v139, 7
      %v141 = vsub.s32 %v138, %v140
      %v142 = vrot.slane %v119, %v141
      %v144 = vunpack.c.l.s4 1966171168
      %v145 = vunpack.c.0.s8 %v144
      %v146 = vlaneseq
      %v147 = vshrl.u32 %v146, 7
      %v148 = vsub.s32 %v145, %v147
      %v149 = vrot.slane %v142, %v148
      %150 = vrot.lane.b32.xlu0 %v149, 80
      %v151 = vpop.permute.xlu0 %150
      %vm152 = vcmask 97280
      %v154 = vsel %vm152, %v119, 0
      %v157 = vsel %vm152, %v151, 0
      %159 = vmatprep.subr.bf16.mxu0 0
      %160 = vmatpush1.bf16.xpose.msra.mxu0 %v157
      %161 = vmatprep.subr.bf16.mxu0 0
      %162 = vmatpush1.bf16.xpose.msra.mxu0 0
      %163 = vmatprep.subr.bf16.mxu0 0
      %164 = vmatpush1.bf16.xpose.msra.mxu0 0
      %165 = vmatprep.subr.bf16.mxu0 0
      %166 = vmatpush1.bf16.xpose.msra.mxu0 0
      %167 = vmatprep.subr.bf16.mxu0 0
      %168 = vmatpush1.bf16.xpose.msra.mxu0 0
      %169 = vmatprep.subr.bf16.mxu0 0
      %170 = vmatpush1.bf16.xpose.msra.mxu0 0
      %171 = vmatprep.subr.bf16.mxu0 0
      %172 = vmatpush1.bf16.xpose.msra.mxu0 0
      %173 = vmatprep.subr.bf16.mxu0 0
      %174 = vmatpush1.bf16.xpose.msra.mxu0 0
      %175 = vmatprep.subr.bf16.mxu0 0
      %176 = vmatpush1.bf16.xpose.msra.mxu0 0
      %177 = vmatprep.subr.bf16.mxu0 0
      %178 = vmatpush1.bf16.xpose.msra.mxu0 0
      %179 = vmatprep.subr.bf16.mxu0 0
      %180 = vmatpush1.bf16.xpose.msra.mxu0 0
      %181 = vmatprep.subr.bf16.mxu0 0
      %182 = vmatpush1.bf16.xpose.msra.mxu0 0
      %183 = vmatprep.subr.bf16.mxu0 0
      %184 = vmatpush1.bf16.xpose.msra.mxu0 0
      %185 = vmatprep.subr.bf16.mxu0 0
      %186 = vmatpush1.bf16.xpose.msra.mxu0 0
      %187 = vmatprep.subr.bf16.mxu0 0
      %188 = vmatpush1.bf16.xpose.msra.mxu0 0
      %189 = vmatprep.subr.bf16.mxu0 0
      %190 = vmatpush1.bf16.xpose.msra.mxu0 0
      %191 = vmatprep.mubr.bf16.mxu0 0
      %192 = vmatmul.mubr.bf16.gmra.mrb[0].mxu0 %v154
      %v193 = vpop.f32.mrb[0].mxu0
      %v194 = vadd.f32 0.0, %v193
      %v195 = vpop.f32.mrb[0].mxu0
      %v196 = vpop.f32.mrb[0].mxu0
      %v197 = vpop.f32.mrb[0].mxu0
      %198 = vdwg.mxu0
      %v201 = vunpack.c.l.s4 1966171168
      %v202 = vunpack.c.0.s8 %v201
      %v203 = vlaneseq
      %v204 = vshrl.u32 %v203, 7
      %v205 = vsub.s32 %v202, %v204
      %v206 = vrot.slane %v120, %v205
      %v208 = vunpack.c.l.s4 1966171168
      %v209 = vunpack.c.0.s8 %v208
      %v210 = vlaneseq
      %v211 = vshrl.u32 %v210, 7
      %v212 = vsub.s32 %v209, %v211
      %v213 = vrot.slane %v206, %v212
      %214 = vrot.lane.b32.xlu0 %v213, 80
      %v215 = vpop.permute.xlu0 %214
      %v217 = vsel %vm152, %v120, 0
      %v220 = vsel %vm152, %v215, 0
      %222 = vmatprep.subr.bf16.mxu0 0
      %223 = vmatpush1.bf16.xpose.msra.mxu0 %v220
      %224 = vmatprep.subr.bf16.mxu0 0
      %225 = vmatpush1.bf16.xpose.msra.mxu0 0
      %226 = vmatprep.subr.bf16.mxu0 0
      %227 = vmatpush1.bf16.xpose.msra.mxu0 0
      %228 = vmatprep.subr.bf16.mxu0 0
      %229 = vmatpush1.bf16.xpose.msra.mxu0 0
      %230 = vmatprep.subr.bf16.mxu0 0
      %231 = vmatpush1.bf16.xpose.msra.mxu0 0
      %232 = vmatprep.subr.bf16.mxu0 0
      %233 = vmatpush1.bf16.xpose.msra.mxu0 0
      %234 = vmatprep.subr.bf16.mxu0 0
      %235 = vmatpush1.bf16.xpose.msra.mxu0 0
      %236 = vmatprep.subr.bf16.mxu0 0
      %237 = vmatpush1.bf16.xpose.msra.mxu0 0
      %238 = vmatprep.subr.bf16.mxu0 0
      %239 = vmatpush1.bf16.xpose.msra.mxu0 0
      %240 = vmatprep.subr.bf16.mxu0 0
      %241 = vmatpush1.bf16.xpose.msra.mxu0 0
      %242 = vmatprep.subr.bf16.mxu0 0
      %243 = vmatpush1.bf16.xpose.msra.mxu0 0
      %244 = vmatprep.subr.bf16.mxu0 0
      %245 = vmatpush1.bf16.xpose.msra.mxu0 0
      %246 = vmatprep.subr.bf16.mxu0 0
      %247 = vmatpush1.bf16.xpose.msra.mxu0 0
      %248 = vmatprep.subr.bf16.mxu0 0
      %249 = vmatpush1.bf16.xpose.msra.mxu0 0
      %250 = vmatprep.subr.bf16.mxu0 0
      %251 = vmatpush1.bf16.xpose.msra.mxu0 0
      %252 = vmatprep.subr.bf16.mxu0 0
      %253 = vmatpush1.bf16.xpose.msra.mxu0 0
      %254 = vmatprep.mubr.bf16.mxu0 0
      %255 = vmatmul.mubr.bf16.gmra.mrb[0].mxu0 %v217
      %v256 = vpop.f32.mrb[0].mxu0
      %v257 = vadd.f32 0.0, %v256
      %v258 = vpop.f32.mrb[0].mxu0
      %v259 = vpop.f32.mrb[0].mxu0
      %v260 = vpop.f32.mrb[0].mxu0
      %261 = vdwg.mxu0
      %v264 = vunpack.c.l.s4 1966171168
      %v265 = vunpack.c.0.s8 %v264
      %v266 = vlaneseq
      %v267 = vshrl.u32 %v266, 7
      %v268 = vsub.s32 %v265, %v267
      %v269 = vrot.slane %v121, %v268
      %v271 = vunpack.c.l.s4 1966171168
      %v272 = vunpack.c.0.s8 %v271
      %v273 = vlaneseq
      %v274 = vshrl.u32 %v273, 7
      %v275 = vsub.s32 %v272, %v274
      %v276 = vrot.slane %v269, %v275
      %277 = vrot.lane.b32.xlu0 %v276, 80
      %v278 = vpop.permute.xlu0 %277
      %v280 = vsel %vm152, %v121, 0
      %v283 = vsel %vm152, %v278, 0
      %285 = vmatprep.subr.bf16.mxu0 0
      %286 = vmatpush1.bf16.xpose.msra.mxu0 %v283
      %287 = vmatprep.subr.bf16.mxu0 0
      %288 = vmatpush1.bf16.xpose.msra.mxu0 0
      %289 = vmatprep.subr.bf16.mxu0 0
      %290 = vmatpush1.bf16.xpose.msra.mxu0 0
      %291 = vmatprep.subr.bf16.mxu0 0
      %292 = vmatpush1.bf16.xpose.msra.mxu0 0
      %293 = vmatprep.subr.bf16.mxu0 0
      %294 = vmatpush1.bf16.xpose.msra.mxu0 0
      %295 = vmatprep.subr.bf16.mxu0 0
      %296 = vmatpush1.bf16.xpose.msra.mxu0 0
      %297 = vmatprep.subr.bf16.mxu0 0
      %298 = vmatpush1.bf16.xpose.msra.mxu0 0
      %299 = vmatprep.subr.bf16.mxu0 0
      %300 = vmatpush1.bf16.xpose.msra.mxu0 0
      %301 = vmatprep.subr.bf16.mxu0 0
      %302 = vmatpush1.bf16.xpose.msra.mxu0 0
      %303 = vmatprep.subr.bf16.mxu0 0
      %304 = vmatpush1.bf16.xpose.msra.mxu0 0
      %305 = vmatprep.subr.bf16.mxu0 0
      %306 = vmatpush1.bf16.xpose.msra.mxu0 0
      %307 = vmatprep.subr.bf16.mxu0 0
      %308 = vmatpush1.bf16.xpose.msra.mxu0 0
      %309 = vmatprep.subr.bf16.mxu0 0
      %310 = vmatpush1.bf16.xpose.msra.mxu0 0
      %311 = vmatprep.subr.bf16.mxu0 0
      %312 = vmatpush1.bf16.xpose.msra.mxu0 0
      %313 = vmatprep.subr.bf16.mxu0 0
      %314 = vmatpush1.bf16.xpose.msra.mxu0 0
      %315 = vmatprep.subr.bf16.mxu0 0
      %316 = vmatpush1.bf16.xpose.msra.mxu0 0
      %317 = vmatprep.mubr.bf16.mxu0 0
      %318 = vmatmul.mubr.bf16.gmra.mrb[0].mxu0 %v280
      %v319 = vpop.f32.mrb[0].mxu0
      %v320 = vadd.f32 0.0, %v319
      %v321 = vpop.f32.mrb[0].mxu0
      %v322 = vpop.f32.mrb[0].mxu0
      %v323 = vpop.f32.mrb[0].mxu0
      %324 = vdwg.mxu0
      %v327 = vunpack.c.l.s4 1966171168
      %v328 = vunpack.c.0.s8 %v327
      %v329 = vlaneseq
      %v330 = vshrl.u32 %v329, 7
      %v331 = vsub.s32 %v328, %v330
      %v332 = vrot.slane %v122, %v331
      %v334 = vunpack.c.l.s4 1966171168
      %v335 = vunpack.c.0.s8 %v334
      %v336 = vlaneseq
      %v337 = vshrl.u32 %v336, 7
      %v338 = vsub.s32 %v335, %v337
      %v339 = vrot.slane %v332, %v338
      %340 = vrot.lane.b32.xlu0 %v339, 80
      %v341 = vpop.permute.xlu0 %340
      %v343 = vsel %vm152, %v122, 0
      %v346 = vsel %vm152, %v341, 0
      %348 = vmatprep.subr.bf16.mxu0 0
      %349 = vmatpush1.bf16.xpose.msra.mxu0 %v346
      %350 = vmatprep.subr.bf16.mxu0 0
      %351 = vmatpush1.bf16.xpose.msra.mxu0 0
      %352 = vmatprep.subr.bf16.mxu0 0
      %353 = vmatpush1.bf16.xpose.msra.mxu0 0
      %354 = vmatprep.subr.bf16.mxu0 0
      %355 = vmatpush1.bf16.xpose.msra.mxu0 0
      %356 = vmatprep.subr.bf16.mxu0 0
      %357 = vmatpush1.bf16.xpose.msra.mxu0 0
      %358 = vmatprep.subr.bf16.mxu0 0
      %359 = vmatpush1.bf16.xpose.msra.mxu0 0
      %360 = vmatprep.subr.bf16.mxu0 0
      %361 = vmatpush1.bf16.xpose.msra.mxu0 0
      %362 = vmatprep.subr.bf16.mxu0 0
      %363 = vmatpush1.bf16.xpose.msra.mxu0 0
      %364 = vmatprep.subr.bf16.mxu0 0
      %365 = vmatpush1.bf16.xpose.msra.mxu0 0
      %366 = vmatprep.subr.bf16.mxu0 0
      %367 = vmatpush1.bf16.xpose.msra.mxu0 0
      %368 = vmatprep.subr.bf16.mxu0 0
      %369 = vmatpush1.bf16.xpose.msra.mxu0 0
      %370 = vmatprep.subr.bf16.mxu0 0
      %371 = vmatpush1.bf16.xpose.msra.mxu0 0
      %372 = vmatprep.subr.bf16.mxu0 0
      %373 = vmatpush1.bf16.xpose.msra.mxu0 0
      %374 = vmatprep.subr.bf16.mxu0 0
      %375 = vmatpush1.bf16.xpose.msra.mxu0 0
      %376 = vmatprep.subr.bf16.mxu0 0
      %377 = vmatpush1.bf16.xpose.msra.mxu0 0
      %378 = vmatprep.subr.bf16.mxu0 0
      %379 = vmatpush1.bf16.xpose.msra.mxu0 0
      %380 = vmatprep.mubr.bf16.mxu0 0
      %381 = vmatmul.mubr.bf16.gmra.mrb[0].mxu0 %v343
      %v382 = vpop.f32.mrb[0].mxu0
      %v383 = vadd.f32 0.0, %v382
      %v384 = vpop.f32.mrb[0].mxu0
      %v385 = vpop.f32.mrb[0].mxu0
      %v386 = vpop.f32.mrb[0].mxu0
      %387 = vdwg.mxu0
      %v390 = vunpack.c.l.s4 1966171168
      %v391 = vunpack.c.0.s8 %v390
      %v392 = vlaneseq
      %v393 = vshrl.u32 %v392, 7
      %v394 = vsub.s32 %v391, %v393
      %v395 = vrot.slane %v123, %v394
      %v397 = vunpack.c.l.s4 1966171168
      %v398 = vunpack.c.0.s8 %v397
      %v399 = vlaneseq
      %v400 = vshrl.u32 %v399, 7
      %v401 = vsub.s32 %v398, %v400
      %v402 = vrot.slane %v395, %v401
      %403 = vrot.lane.b32.xlu0 %v402, 80
      %v404 = vpop.permute.xlu0 %403
      %v406 = vsel %vm152, %v123, 0
      %v409 = vsel %vm152, %v404, 0
      %411 = vmatprep.subr.bf16.mxu0 0
      %412 = vmatpush1.bf16.xpose.msra.mxu0 %v409
      %413 = vmatprep.subr.bf16.mxu0 0
      %414 = vmatpush1.bf16.xpose.msra.mxu0 0
      %415 = vmatprep.subr.bf16.mxu0 0
      %416 = vmatpush1.bf16.xpose.msra.mxu0 0
      %417 = vmatprep.subr.bf16.mxu0 0
      %418 = vmatpush1.bf16.xpose.msra.mxu0 0
      %419 = vmatprep.subr.bf16.mxu0 0
      %420 = vmatpush1.bf16.xpose.msra.mxu0 0
      %421 = vmatprep.subr.bf16.mxu0 0
      %422 = vmatpush1.bf16.xpose.msra.mxu0 0
      %423 = vmatprep.subr.bf16.mxu0 0
      %424 = vmatpush1.bf16.xpose.msra.mxu0 0
      %425 = vmatprep.subr.bf16.mxu0 0
      %426 = vmatpush1.bf16.xpose.msra.mxu0 0
      %427 = vmatprep.subr.bf16.mxu0 0
      %428 = vmatpush1.bf16.xpose.msra.mxu0 0
      %429 = vmatprep.subr.bf16.mxu0 0
      %430 = vmatpush1.bf16.xpose.msra.mxu0 0
      %431 = vmatprep.subr.bf16.mxu0 0
      %432 = vmatpush1.bf16.xpose.msra.mxu0 0
      %433 = vmatprep.subr.bf16.mxu0 0
      %434 = vmatpush1.bf16.xpose.msra.mxu0 0
      %435 = vmatprep.subr.bf16.mxu0 0
      %436 = vmatpush1.bf16.xpose.msra.mxu0 0
      %437 = vmatprep.subr.bf16.mxu0 0
      %438 = vmatpush1.bf16.xpose.msra.mxu0 0
      %439 = vmatprep.subr.bf16.mxu0 0
      %440 = vmatpush1.bf16.xpose.msra.mxu0 0
      %441 = vmatprep.subr.bf16.mxu0 0
      %442 = vmatpush1.bf16.xpose.msra.mxu0 0
      %443 = vmatprep.mubr.bf16.mxu0 0
      %444 = vmatmul.mubr.bf16.gmra.mrb[0].mxu0 %v406
      %v445 = vpop.f32.mrb[0].mxu0
      %v446 = vadd.f32 0.0, %v445
      %v447 = vpop.f32.mrb[0].mxu0
      %v448 = vpop.f32.mrb[0].mxu0
      %v449 = vpop.f32.mrb[0].mxu0
      %450 = vdwg.mxu0
      %v453 = vunpack.c.l.s4 1966171168
      %v454 = vunpack.c.0.s8 %v453
      %v455 = vlaneseq
      %v456 = vshrl.u32 %v455, 7
      %v457 = vsub.s32 %v454, %v456
      %v458 = vrot.slane %v124, %v457
      %v460 = vunpack.c.l.s4 1966171168
      %v461 = vunpack.c.0.s8 %v460
      %v462 = vlaneseq
      %v463 = vshrl.u32 %v462, 7
      %v464 = vsub.s32 %v461, %v463
      %v465 = vrot.slane %v458, %v464
      %466 = vrot.lane.b32.xlu0 %v465, 80
      %v467 = vpop.permute.xlu0 %466
      %v469 = vsel %vm152, %v124, 0
      %v472 = vsel %vm152, %v467, 0
      %474 = vmatprep.subr.bf16.mxu0 0
      %475 = vmatpush1.bf16.xpose.msra.mxu0 %v472
      %476 = vmatprep.subr.bf16.mxu0 0
      %477 = vmatpush1.bf16.xpose.msra.mxu0 0
      %478 = vmatprep.subr.bf16.mxu0 0
      %479 = vmatpush1.bf16.xpose.msra.mxu0 0
      %480 = vmatprep.subr.bf16.mxu0 0
      %481 = vmatpush1.bf16.xpose.msra.mxu0 0
      %482 = vmatprep.subr.bf16.mxu0 0
      %483 = vmatpush1.bf16.xpose.msra.mxu0 0
      %484 = vmatprep.subr.bf16.mxu0 0
      %485 = vmatpush1.bf16.xpose.msra.mxu0 0
      %486 = vmatprep.subr.bf16.mxu0 0
      %487 = vmatpush1.bf16.xpose.msra.mxu0 0
      %488 = vmatprep.subr.bf16.mxu0 0
      %489 = vmatpush1.bf16.xpose.msra.mxu0 0
      %490 = vmatprep.subr.bf16.mxu0 0
      %491 = vmatpush1.bf16.xpose.msra.mxu0 0
      %492 = vmatprep.subr.bf16.mxu0 0
      %493 = vmatpush1.bf16.xpose.msra.mxu0 0
      %494 = vmatprep.subr.bf16.mxu0 0
      %495 = vmatpush1.bf16.xpose.msra.mxu0 0
      %496 = vmatprep.subr.bf16.mxu0 0
      %497 = vmatpush1.bf16.xpose.msra.mxu0 0
      %498 = vmatprep.subr.bf16.mxu0 0
      %499 = vmatpush1.bf16.xpose.msra.mxu0 0
      %500 = vmatprep.subr.bf16.mxu0 0
      %501 = vmatpush1.bf16.xpose.msra.mxu0 0
      %502 = vmatprep.subr.bf16.mxu0 0
      %503 = vmatpush1.bf16.xpose.msra.mxu0 0
      %504 = vmatprep.subr.bf16.mxu0 0
      %505 = vmatpush1.bf16.xpose.msra.mxu0 0
      %506 = vmatprep.mubr.bf16.mxu0 0
      %507 = vmatmul.mubr.bf16.gmra.mrb[0].mxu0 %v469
      %v508 = vpop.f32.mrb[0].mxu0
      %v509 = vadd.f32 0.0, %v508
      %v510 = vpop.f32.mrb[0].mxu0
      %v511 = vpop.f32.mrb[0].mxu0
      %v512 = vpop.f32.mrb[0].mxu0
      %513 = vdwg.mxu0
      %v516 = vunpack.c.l.s4 1966171168
      %v517 = vunpack.c.0.s8 %v516
      %v518 = vlaneseq
      %v519 = vshrl.u32 %v518, 7
      %v520 = vsub.s32 %v517, %v519
      %v521 = vrot.slane %v125, %v520
      %v523 = vunpack.c.l.s4 1966171168
      %v524 = vunpack.c.0.s8 %v523
      %v525 = vlaneseq
      %v526 = vshrl.u32 %v525, 7
      %v527 = vsub.s32 %v524, %v526
      %v528 = vrot.slane %v521, %v527
      %529 = vrot.lane.b32.xlu0 %v528, 80
      %v530 = vpop.permute.xlu0 %529
      %v532 = vsel %vm152, %v125, 0
      %v535 = vsel %vm152, %v530, 0
      %537 = vmatprep.subr.bf16.mxu0 0
      %538 = vmatpush1.bf16.xpose.msra.mxu0 %v535
      %539 = vmatprep.subr.bf16.mxu0 0
      %540 = vmatpush1.bf16.xpose.msra.mxu0 0
      %541 = vmatprep.subr.bf16.mxu0 0
      %542 = vmatpush1.bf16.xpose.msra.mxu0 0
      %543 = vmatprep.subr.bf16.mxu0 0
      %544 = vmatpush1.bf16.xpose.msra.mxu0 0
      %545 = vmatprep.subr.bf16.mxu0 0
      %546 = vmatpush1.bf16.xpose.msra.mxu0 0
      %547 = vmatprep.subr.bf16.mxu0 0
      %548 = vmatpush1.bf16.xpose.msra.mxu0 0
      %549 = vmatprep.subr.bf16.mxu0 0
      %550 = vmatpush1.bf16.xpose.msra.mxu0 0
      %551 = vmatprep.subr.bf16.mxu0 0
      %552 = vmatpush1.bf16.xpose.msra.mxu0 0
      %553 = vmatprep.subr.bf16.mxu0 0
      %554 = vmatpush1.bf16.xpose.msra.mxu0 0
      %555 = vmatprep.subr.bf16.mxu0 0
      %556 = vmatpush1.bf16.xpose.msra.mxu0 0
      %557 = vmatprep.subr.bf16.mxu0 0
      %558 = vmatpush1.bf16.xpose.msra.mxu0 0
      %559 = vmatprep.subr.bf16.mxu0 0
      %560 = vmatpush1.bf16.xpose.msra.mxu0 0
      %561 = vmatprep.subr.bf16.mxu0 0
      %562 = vmatpush1.bf16.xpose.msra.mxu0 0
      %563 = vmatprep.subr.bf16.mxu0 0
      %564 = vmatpush1.bf16.xpose.msra.mxu0 0
      %565 = vmatprep.subr.bf16.mxu0 0
      %566 = vmatpush1.bf16.xpose.msra.mxu0 0
      %567 = vmatprep.subr.bf16.mxu0 0
      %568 = vmatpush1.bf16.xpose.msra.mxu0 0
      %569 = vmatprep.mubr.bf16.mxu0 0
      %570 = vmatmul.mubr.bf16.gmra.mrb[0].mxu0 %v532
      %v571 = vpop.f32.mrb[0].mxu0
      %v572 = vadd.f32 0.0, %v571
      %v573 = vpop.f32.mrb[0].mxu0
      %v574 = vpop.f32.mrb[0].mxu0
      %v575 = vpop.f32.mrb[0].mxu0
      %576 = vdwg.mxu0
      %v579 = vunpack.c.l.s4 1966171168
      %v580 = vunpack.c.0.s8 %v579
      %v581 = vlaneseq
      %v582 = vshrl.u32 %v581, 7
      %v583 = vsub.s32 %v580, %v582
      %v584 = vrot.slane %v126, %v583
      %v586 = vunpack.c.l.s4 1966171168
      %v587 = vunpack.c.0.s8 %v586
      %v588 = vlaneseq
      %v589 = vshrl.u32 %v588, 7
      %v590 = vsub.s32 %v587, %v589
      %v591 = vrot.slane %v584, %v590
      %592 = vrot.lane.b32.xlu0 %v591, 80
      %v593 = vpop.permute.xlu0 %592
      %v595 = vsel %vm152, %v126, 0
      %v598 = vsel %vm152, %v593, 0
      %600 = vmatprep.subr.bf16.mxu0 0
      %601 = vmatpush1.bf16.xpose.msra.mxu0 %v598
      %602 = vmatprep.subr.bf16.mxu0 0
      %603 = vmatpush1.bf16.xpose.msra.mxu0 0
      %604 = vmatprep.subr.bf16.mxu0 0
      %605 = vmatpush1.bf16.xpose.msra.mxu0 0
      %606 = vmatprep.subr.bf16.mxu0 0
      %607 = vmatpush1.bf16.xpose.msra.mxu0 0
      %608 = vmatprep.subr.bf16.mxu0 0
      %609 = vmatpush1.bf16.xpose.msra.mxu0 0
      %610 = vmatprep.subr.bf16.mxu0 0
      %611 = vmatpush1.bf16.xpose.msra.mxu0 0
      %612 = vmatprep.subr.bf16.mxu0 0
      %613 = vmatpush1.bf16.xpose.msra.mxu0 0
      %614 = vmatprep.subr.bf16.mxu0 0
      %615 = vmatpush1.bf16.xpose.msra.mxu0 0
      %616 = vmatprep.subr.bf16.mxu0 0
      %617 = vmatpush1.bf16.xpose.msra.mxu0 0
      %618 = vmatprep.subr.bf16.mxu0 0
      %619 = vmatpush1.bf16.xpose.msra.mxu0 0
      %620 = vmatprep.subr.bf16.mxu0 0
      %621 = vmatpush1.bf16.xpose.msra.mxu0 0
      %622 = vmatprep.subr.bf16.mxu0 0
      %623 = vmatpush1.bf16.xpose.msra.mxu0 0
      %624 = vmatprep.subr.bf16.mxu0 0
      %625 = vmatpush1.bf16.xpose.msra.mxu0 0
      %626 = vmatprep.subr.bf16.mxu0 0
      %627 = vmatpush1.bf16.xpose.msra.mxu0 0
      %628 = vmatprep.subr.bf16.mxu0 0
      %629 = vmatpush1.bf16.xpose.msra.mxu0 0
      %630 = vmatprep.subr.bf16.mxu0 0
      %631 = vmatpush1.bf16.xpose.msra.mxu0 0
      %632 = vmatprep.mubr.bf16.mxu0 0
      %633 = vmatmul.mubr.bf16.gmra.mrb[0].mxu0 %v595
      %v634 = vpop.f32.mrb[0].mxu0
      %v635 = vadd.f32 0.0, %v634
      %v636 = vpop.f32.mrb[0].mxu0
      %v637 = vpop.f32.mrb[0].mxu0
      %v638 = vpop.f32.mrb[0].mxu0
      %639 = vdwg.mxu0
      %v642 = vunpack.c.l.s4 1966171168
      %v643 = vunpack.c.0.s8 %v642
      %v644 = vlaneseq
      %v645 = vshrl.u32 %v644, 7
      %v646 = vsub.s32 %v643, %v645
      %v647 = vrot.slane %v127, %v646
      %v649 = vunpack.c.l.s4 1966171168
      %v650 = vunpack.c.0.s8 %v649
      %v651 = vlaneseq
      %v652 = vshrl.u32 %v651, 7
      %v653 = vsub.s32 %v650, %v652
      %v654 = vrot.slane %v647, %v653
      %655 = vrot.lane.b32.xlu0 %v654, 80
      %v656 = vpop.permute.xlu0 %655
      %v658 = vsel %vm152, %v127, 0
      %v661 = vsel %vm152, %v656, 0
      %663 = vmatprep.subr.bf16.mxu0 0
      %664 = vmatpush1.bf16.xpose.msra.mxu0 %v661
      %665 = vmatprep.subr.bf16.mxu0 0
      %666 = vmatpush1.bf16.xpose.msra.mxu0 0
      %667 = vmatprep.subr.bf16.mxu0 0
      %668 = vmatpush1.bf16.xpose.msra.mxu0 0
      %669 = vmatprep.subr.bf16.mxu0 0
      %670 = vmatpush1.bf16.xpose.msra.mxu0 0
      %671 = vmatprep.subr.bf16.mxu0 0
      %672 = vmatpush1.bf16.xpose.msra.mxu0 0
      %673 = vmatprep.subr.bf16.mxu0 0
      %674 = vmatpush1.bf16.xpose.msra.mxu0 0
      %675 = vmatprep.subr.bf16.mxu0 0
      %676 = vmatpush1.bf16.xpose.msra.mxu0 0
      %677 = vmatprep.subr.bf16.mxu0 0
      %678 = vmatpush1.bf16.xpose.msra.mxu0 0
      %679 = vmatprep.subr.bf16.mxu0 0
      %680 = vmatpush1.bf16.xpose.msra.mxu0 0
      %681 = vmatprep.subr.bf16.mxu0 0
      %682 = vmatpush1.bf16.xpose.msra.mxu0 0
      %683 = vmatprep.subr.bf16.mxu0 0
      %684 = vmatpush1.bf16.xpose.msra.mxu0 0
      %685 = vmatprep.subr.bf16.mxu0 0
      %686 = vmatpush1.bf16.xpose.msra.mxu0 0
      %687 = vmatprep.subr.bf16.mxu0 0
      %688 = vmatpush1.bf16.xpose.msra.mxu0 0
      %689 = vmatprep.subr.bf16.mxu0 0
      %690 = vmatpush1.bf16.xpose.msra.mxu0 0
      %691 = vmatprep.subr.bf16.mxu0 0
      %692 = vmatpush1.bf16.xpose.msra.mxu0 0
      %693 = vmatprep.subr.bf16.mxu0 0
      %694 = vmatpush1.bf16.xpose.msra.mxu0 0
      %695 = vmatprep.mubr.bf16.mxu0 0
      %696 = vmatmul.mubr.bf16.gmra.mrb[0].mxu0 %v658
      %v697 = vpop.f32.mrb[0].mxu0
      %v698 = vadd.f32 0.0, %v697
      %v699 = vpop.f32.mrb[0].mxu0
      %v700 = vpop.f32.mrb[0].mxu0
      %v701 = vpop.f32.mrb[0].mxu0
      %702 = vdwg.mxu0
      %v705 = vunpack.c.l.s4 1966171168
      %v706 = vunpack.c.0.s8 %v705
      %v707 = vlaneseq
      %v708 = vshrl.u32 %v707, 7
      %v709 = vsub.s32 %v706, %v708
      %v710 = vrot.slane %v128, %v709
      %v712 = vunpack.c.l.s4 1966171168
      %v713 = vunpack.c.0.s8 %v712
      %v714 = vlaneseq
      %v715 = vshrl.u32 %v714, 7
      %v716 = vsub.s32 %v713, %v715
      %v717 = vrot.slane %v710, %v716
      %718 = vrot.lane.b32.xlu0 %v717, 80
      %v719 = vpop.permute.xlu0 %718
      %v721 = vsel %vm152, %v128, 0
      %v724 = vsel %vm152, %v719, 0
      %726 = vmatprep.subr.bf16.mxu0 0
      %727 = vmatpush1.bf16.xpose.msra.mxu0 %v724
      %728 = vmatprep.subr.bf16.mxu0 0
      %729 = vmatpush1.bf16.xpose.msra.mxu0 0
      %730 = vmatprep.subr.bf16.mxu0 0
      %731 = vmatpush1.bf16.xpose.msra.mxu0 0
      %732 = vmatprep.subr.bf16.mxu0 0
      %733 = vmatpush1.bf16.xpose.msra.mxu0 0
      %734 = vmatprep.subr.bf16.mxu0 0
      %735 = vmatpush1.bf16.xpose.msra.mxu0 0
      %736 = vmatprep.subr.bf16.mxu0 0
      %737 = vmatpush1.bf16.xpose.msra.mxu0 0
      %738 = vmatprep.subr.bf16.mxu0 0
      %739 = vmatpush1.bf16.xpose.msra.mxu0 0
      %740 = vmatprep.subr.bf16.mxu0 0
      %741 = vmatpush1.bf16.xpose.msra.mxu0 0
      %742 = vmatprep.subr.bf16.mxu0 0
      %743 = vmatpush1.bf16.xpose.msra.mxu0 0
      %744 = vmatprep.subr.bf16.mxu0 0
      %745 = vmatpush1.bf16.xpose.msra.mxu0 0
      %746 = vmatprep.subr.bf16.mxu0 0
      %747 = vmatpush1.bf16.xpose.msra.mxu0 0
      %748 = vmatprep.subr.bf16.mxu0 0
      %749 = vmatpush1.bf16.xpose.msra.mxu0 0
      %750 = vmatprep.subr.bf16.mxu0 0
      %751 = vmatpush1.bf16.xpose.msra.mxu0 0
      %752 = vmatprep.subr.bf16.mxu0 0
      %753 = vmatpush1.bf16.xpose.msra.mxu0 0
      %754 = vmatprep.subr.bf16.mxu0 0
      %755 = vmatpush1.bf16.xpose.msra.mxu0 0
      %756 = vmatprep.subr.bf16.mxu0 0
      %757 = vmatpush1.bf16.xpose.msra.mxu0 0
      %758 = vmatprep.mubr.bf16.mxu0 0
      %759 = vmatmul.mubr.bf16.gmra.mrb[0].mxu0 %v721
      %v760 = vpop.f32.mrb[0].mxu0
      %v761 = vadd.f32 0.0, %v760
      %v762 = vpop.f32.mrb[0].mxu0
      %v763 = vpop.f32.mrb[0].mxu0
      %v764 = vpop.f32.mrb[0].mxu0
      %765 = vdwg.mxu0
      %v768 = vunpack.c.l.s4 1966171168
      %v769 = vunpack.c.0.s8 %v768
      %v770 = vlaneseq
      %v771 = vshrl.u32 %v770, 7
      %v772 = vsub.s32 %v769, %v771
      %v773 = vrot.slane %v129, %v772
      %v775 = vunpack.c.l.s4 1966171168
      %v776 = vunpack.c.0.s8 %v775
      %v777 = vlaneseq
      %v778 = vshrl.u32 %v777, 7
      %v779 = vsub.s32 %v776, %v778
      %v780 = vrot.slane %v773, %v779
      %781 = vrot.lane.b32.xlu0 %v780, 80
      %v782 = vpop.permute.xlu0 %781
      %v784 = vsel %vm152, %v129, 0
      %v787 = vsel %vm152, %v782, 0
      %789 = vmatprep.subr.bf16.mxu0 0
      %790 = vmatpush1.bf16.xpose.msra.mxu0 %v787
      %791 = vmatprep.subr.bf16.mxu0 0
      %792 = vmatpush1.bf16.xpose.msra.mxu0 0
      %793 = vmatprep.subr.bf16.mxu0 0
      %794 = vmatpush1.bf16.xpose.msra.mxu0 0
      %795 = vmatprep.subr.bf16.mxu0 0
      %796 = vmatpush1.bf16.xpose.msra.mxu0 0
      %797 = vmatprep.subr.bf16.mxu0 0
      %798 = vmatpush1.bf16.xpose.msra.mxu0 0
      %799 = vmatprep.subr.bf16.mxu0 0
      %800 = vmatpush1.bf16.xpose.msra.mxu0 0
      %801 = vmatprep.subr.bf16.mxu0 0
      %802 = vmatpush1.bf16.xpose.msra.mxu0 0
      %803 = vmatprep.subr.bf16.mxu0 0
      %804 = vmatpush1.bf16.xpose.msra.mxu0 0
      %805 = vmatprep.subr.bf16.mxu0 0
      %806 = vmatpush1.bf16.xpose.msra.mxu0 0
      %807 = vmatprep.subr.bf16.mxu0 0
      %808 = vmatpush1.bf16.xpose.msra.mxu0 0
      %809 = vmatprep.subr.bf16.mxu0 0
      %810 = vmatpush1.bf16.xpose.msra.mxu0 0
      %811 = vmatprep.subr.bf16.mxu0 0
      %812 = vmatpush1.bf16.xpose.msra.mxu0 0
      %813 = vmatprep.subr.bf16.mxu0 0
      %814 = vmatpush1.bf16.xpose.msra.mxu0 0
      %815 = vmatprep.subr.bf16.mxu0 0
      %816 = vmatpush1.bf16.xpose.msra.mxu0 0
      %817 = vmatprep.subr.bf16.mxu0 0
      %818 = vmatpush1.bf16.xpose.msra.mxu0 0
      %819 = vmatprep.subr.bf16.mxu0 0
      %820 = vmatpush1.bf16.xpose.msra.mxu0 0
      %821 = vmatprep.mubr.bf16.mxu0 0
      %822 = vmatmul.mubr.bf16.gmra.mrb[0].mxu0 %v784
      %v823 = vpop.f32.mrb[0].mxu0
      %v824 = vadd.f32 0.0, %v823
      %v825 = vpop.f32.mrb[0].mxu0
      %v826 = vpop.f32.mrb[0].mxu0
      %v827 = vpop.f32.mrb[0].mxu0
      %828 = vdwg.mxu0
      %v831 = vunpack.c.l.s4 1966171168
      %v832 = vunpack.c.0.s8 %v831
      %v833 = vlaneseq
      %v834 = vshrl.u32 %v833, 7
      %v835 = vsub.s32 %v832, %v834
      %v836 = vrot.slane %v130, %v835
      %v838 = vunpack.c.l.s4 1966171168
      %v839 = vunpack.c.0.s8 %v838
      %v840 = vlaneseq
      %v841 = vshrl.u32 %v840, 7
      %v842 = vsub.s32 %v839, %v841
      %v843 = vrot.slane %v836, %v842
      %844 = vrot.lane.b32.xlu0 %v843, 80
      %v845 = vpop.permute.xlu0 %844
      %v847 = vsel %vm152, %v130, 0
      %v850 = vsel %vm152, %v845, 0
      %852 = vmatprep.subr.bf16.mxu0 0
      %853 = vmatpush1.bf16.xpose.msra.mxu0 %v850
      %854 = vmatprep.subr.bf16.mxu0 0
      %855 = vmatpush1.bf16.xpose.msra.mxu0 0
      %856 = vmatprep.subr.bf16.mxu0 0
      %857 = vmatpush1.bf16.xpose.msra.mxu0 0
      %858 = vmatprep.subr.bf16.mxu0 0
      %859 = vmatpush1.bf16.xpose.msra.mxu0 0
      %860 = vmatprep.subr.bf16.mxu0 0
      %861 = vmatpush1.bf16.xpose.msra.mxu0 0
      %862 = vmatprep.subr.bf16.mxu0 0
      %863 = vmatpush1.bf16.xpose.msra.mxu0 0
      %864 = vmatprep.subr.bf16.mxu0 0
      %865 = vmatpush1.bf16.xpose.msra.mxu0 0
      %866 = vmatprep.subr.bf16.mxu0 0
      %867 = vmatpush1.bf16.xpose.msra.mxu0 0
      %868 = vmatprep.subr.bf16.mxu0 0
      %869 = vmatpush1.bf16.xpose.msra.mxu0 0
      %870 = vmatprep.subr.bf16.mxu0 0
      %871 = vmatpush1.bf16.xpose.msra.mxu0 0
      %872 = vmatprep.subr.bf16.mxu0 0
      %873 = vmatpush1.bf16.xpose.msra.mxu0 0
      %874 = vmatprep.subr.bf16.mxu0 0
      %875 = vmatpush1.bf16.xpose.msra.mxu0 0
      %876 = vmatprep.subr.bf16.mxu0 0
      %877 = vmatpush1.bf16.xpose.msra.mxu0 0
      %878 = vmatprep.subr.bf16.mxu0 0
      %879 = vmatpush1.bf16.xpose.msra.mxu0 0
      %880 = vmatprep.subr.bf16.mxu0 0
      %881 = vmatpush1.bf16.xpose.msra.mxu0 0
      %882 = vmatprep.subr.bf16.mxu0 0
      %883 = vmatpush1.bf16.xpose.msra.mxu0 0
      %884 = vmatprep.mubr.bf16.mxu0 0
      %885 = vmatmul.mubr.bf16.gmra.mrb[0].mxu0 %v847
      %v886 = vpop.f32.mrb[0].mxu0
      %v887 = vadd.f32 0.0, %v886
      %v888 = vpop.f32.mrb[0].mxu0
      %v889 = vpop.f32.mrb[0].mxu0
      %v890 = vpop.f32.mrb[0].mxu0
      %891 = vdwg.mxu0
      %v894 = vunpack.c.l.s4 1966171168
      %v895 = vunpack.c.0.s8 %v894
      %v896 = vlaneseq
      %v897 = vshrl.u32 %v896, 7
      %v898 = vsub.s32 %v895, %v897
      %v899 = vrot.slane %v131, %v898
      %v901 = vunpack.c.l.s4 1966171168
      %v902 = vunpack.c.0.s8 %v901
      %v903 = vlaneseq
      %v904 = vshrl.u32 %v903, 7
      %v905 = vsub.s32 %v902, %v904
      %v906 = vrot.slane %v899, %v905
      %907 = vrot.lane.b32.xlu0 %v906, 80
      %v908 = vpop.permute.xlu0 %907
      %v910 = vsel %vm152, %v131, 0
      %v913 = vsel %vm152, %v908, 0
      %915 = vmatprep.subr.bf16.mxu0 0
      %916 = vmatpush1.bf16.xpose.msra.mxu0 %v913
      %917 = vmatprep.subr.bf16.mxu0 0
      %918 = vmatpush1.bf16.xpose.msra.mxu0 0
      %919 = vmatprep.subr.bf16.mxu0 0
      %920 = vmatpush1.bf16.xpose.msra.mxu0 0
      %921 = vmatprep.subr.bf16.mxu0 0
      %922 = vmatpush1.bf16.xpose.msra.mxu0 0
      %923 = vmatprep.subr.bf16.mxu0 0
      %924 = vmatpush1.bf16.xpose.msra.mxu0 0
      %925 = vmatprep.subr.bf16.mxu0 0
      %926 = vmatpush1.bf16.xpose.msra.mxu0 0
      %927 = vmatprep.subr.bf16.mxu0 0
      %928 = vmatpush1.bf16.xpose.msra.mxu0 0
      %929 = vmatprep.subr.bf16.mxu0 0
      %930 = vmatpush1.bf16.xpose.msra.mxu0 0
      %931 = vmatprep.subr.bf16.mxu0 0
      %932 = vmatpush1.bf16.xpose.msra.mxu0 0
      %933 = vmatprep.subr.bf16.mxu0 0
      %934 = vmatpush1.bf16.xpose.msra.mxu0 0
      %935 = vmatprep.subr.bf16.mxu0 0
      %936 = vmatpush1.bf16.xpose.msra.mxu0 0
      %937 = vmatprep.subr.bf16.mxu0 0
      %938 = vmatpush1.bf16.xpose.msra.mxu0 0
      %939 = vmatprep.subr.bf16.mxu0 0
      %940 = vmatpush1.bf16.xpose.msra.mxu0 0
      %941 = vmatprep.subr.bf16.mxu0 0
      %942 = vmatpush1.bf16.xpose.msra.mxu0 0
      %943 = vmatprep.subr.bf16.mxu0 0
      %944 = vmatpush1.bf16.xpose.msra.mxu0 0
      %945 = vmatprep.subr.bf16.mxu0 0
      %946 = vmatpush1.bf16.xpose.msra.mxu0 0
      %947 = vmatprep.mubr.bf16.mxu0 0
      %948 = vmatmul.mubr.bf16.gmra.mrb[0].mxu0 %v910
      %v949 = vpop.f32.mrb[0].mxu0
      %v950 = vadd.f32 0.0, %v949
      %v951 = vpop.f32.mrb[0].mxu0
      %v952 = vpop.f32.mrb[0].mxu0
      %v953 = vpop.f32.mrb[0].mxu0
      %954 = vdwg.mxu0
      %v957 = vunpack.c.l.s4 1966171168
      %v958 = vunpack.c.0.s8 %v957
      %v959 = vlaneseq
      %v960 = vshrl.u32 %v959, 7
      %v961 = vsub.s32 %v958, %v960
      %v962 = vrot.slane %v132, %v961
      %v964 = vunpack.c.l.s4 1966171168
      %v965 = vunpack.c.0.s8 %v964
      %v966 = vlaneseq
      %v967 = vshrl.u32 %v966, 7
      %v968 = vsub.s32 %v965, %v967
      %v969 = vrot.slane %v962, %v968
      %970 = vrot.lane.b32.xlu0 %v969, 80
      %v971 = vpop.permute.xlu0 %970
      %v973 = vsel %vm152, %v132, 0
      %v976 = vsel %vm152, %v971, 0
      %978 = vmatprep.subr.bf16.mxu0 0
      %979 = vmatpush1.bf16.xpose.msra.mxu0 %v976
      %980 = vmatprep.subr.bf16.mxu0 0
      %981 = vmatpush1.bf16.xpose.msra.mxu0 0
      %982 = vmatprep.subr.bf16.mxu0 0
      %983 = vmatpush1.bf16.xpose.msra.mxu0 0
      %984 = vmatprep.subr.bf16.mxu0 0
      %985 = vmatpush1.bf16.xpose.msra.mxu0 0
      %986 = vmatprep.subr.bf16.mxu0 0
      %987 = vmatpush1.bf16.xpose.msra.mxu0 0
      %988 = vmatprep.subr.bf16.mxu0 0
      %989 = vmatpush1.bf16.xpose.msra.mxu0 0
      %990 = vmatprep.subr.bf16.mxu0 0
      %991 = vmatpush1.bf16.xpose.msra.mxu0 0
      %992 = vmatprep.subr.bf16.mxu0 0
      %993 = vmatpush1.bf16.xpose.msra.mxu0 0
      %994 = vmatprep.subr.bf16.mxu0 0
      %995 = vmatpush1.bf16.xpose.msra.mxu0 0
      %996 = vmatprep.subr.bf16.mxu0 0
      %997 = vmatpush1.bf16.xpose.msra.mxu0 0
      %998 = vmatprep.subr.bf16.mxu0 0
      %999 = vmatpush1.bf16.xpose.msra.mxu0 0
      %1000 = vmatprep.subr.bf16.mxu0 0
      %1001 = vmatpush1.bf16.xpose.msra.mxu0 0
      %1002 = vmatprep.subr.bf16.mxu0 0
      %1003 = vmatpush1.bf16.xpose.msra.mxu0 0
      %1004 = vmatprep.subr.bf16.mxu0 0
      %1005 = vmatpush1.bf16.xpose.msra.mxu0 0
      %1006 = vmatprep.subr.bf16.mxu0 0
      %1007 = vmatpush1.bf16.xpose.msra.mxu0 0
      %1008 = vmatprep.subr.bf16.mxu0 0
      %1009 = vmatpush1.bf16.xpose.msra.mxu0 0
      %1010 = vmatprep.mubr.bf16.mxu0 0
      %1011 = vmatmul.mubr.bf16.gmra.mrb[0].mxu0 %v973
      %v1012 = vpop.f32.mrb[0].mxu0
      %v1013 = vadd.f32 0.0, %v1012
      %v1014 = vpop.f32.mrb[0].mxu0
      %v1015 = vpop.f32.mrb[0].mxu0
      %v1016 = vpop.f32.mrb[0].mxu0
      %1017 = vdwg.mxu0
      %v1020 = vunpack.c.l.s4 1966171168
      %v1021 = vunpack.c.0.s8 %v1020
      %v1022 = vlaneseq
      %v1023 = vshrl.u32 %v1022, 7
      %v1024 = vsub.s32 %v1021, %v1023
      %v1025 = vrot.slane %v133, %v1024
      %v1027 = vunpack.c.l.s4 1966171168
      %v1028 = vunpack.c.0.s8 %v1027
      %v1029 = vlaneseq
      %v1030 = vshrl.u32 %v1029, 7
      %v1031 = vsub.s32 %v1028, %v1030
      %v1032 = vrot.slane %v1025, %v1031
      %1033 = vrot.lane.b32.xlu0 %v1032, 80
      %v1034 = vpop.permute.xlu0 %1033
      %v1036 = vsel %vm152, %v133, 0
      %v1039 = vsel %vm152, %v1034, 0
      %1041 = vmatprep.subr.bf16.mxu0 0
      %1042 = vmatpush1.bf16.xpose.msra.mxu0 %v1039
      %1043 = vmatprep.subr.bf16.mxu0 0
      %1044 = vmatpush1.bf16.xpose.msra.mxu0 0
      %1045 = vmatprep.subr.bf16.mxu0 0
      %1046 = vmatpush1.bf16.xpose.msra.mxu0 0
      %1047 = vmatprep.subr.bf16.mxu0 0
      %1048 = vmatpush1.bf16.xpose.msra.mxu0 0
      %1049 = vmatprep.subr.bf16.mxu0 0
      %1050 = vmatpush1.bf16.xpose.msra.mxu0 0
      %1051 = vmatprep.subr.bf16.mxu0 0
      %1052 = vmatpush1.bf16.xpose.msra.mxu0 0
      %1053 = vmatprep.subr.bf16.mxu0 0
      %1054 = vmatpush1.bf16.xpose.msra.mxu0 0
      %1055 = vmatprep.subr.bf16.mxu0 0
      %1056 = vmatpush1.bf16.xpose.msra.mxu0 0
      %1057 = vmatprep.subr.bf16.mxu0 0
      %1058 = vmatpush1.bf16.xpose.msra.mxu0 0
      %1059 = vmatprep.subr.bf16.mxu0 0
      %1060 = vmatpush1.bf16.xpose.msra.mxu0 0
      %1061 = vmatprep.subr.bf16.mxu0 0
      %1062 = vmatpush1.bf16.xpose.msra.mxu0 0
      %1063 = vmatprep.subr.bf16.mxu0 0
      %1064 = vmatpush1.bf16.xpose.msra.mxu0 0
      %1065 = vmatprep.subr.bf16.mxu0 0
      %1066 = vmatpush1.bf16.xpose.msra.mxu0 0
      %1067 = vmatprep.subr.bf16.mxu0 0
      %1068 = vmatpush1.bf16.xpose.msra.mxu0 0
      %1069 = vmatprep.subr.bf16.mxu0 0
      %1070 = vmatpush1.bf16.xpose.msra.mxu0 0
      %1071 = vmatprep.subr.bf16.mxu0 0
      %1072 = vmatpush1.bf16.xpose.msra.mxu0 0
      %1073 = vmatprep.mubr.bf16.mxu0 0
      %1074 = vmatmul.mubr.bf16.gmra.mrb[0].mxu0 %v1036
      %v1075 = vpop.f32.mrb[0].mxu0
      %v1076 = vadd.f32 0.0, %v1075
      %v1077 = vpop.f32.mrb[0].mxu0
      %v1078 = vpop.f32.mrb[0].mxu0
      %v1079 = vpop.f32.mrb[0].mxu0
      %1080 = vdwg.mxu0
      %v1083 = vunpack.c.l.s4 1966171168
      %v1084 = vunpack.c.0.s8 %v1083
      %v1085 = vlaneseq
      %v1086 = vshrl.u32 %v1085, 7
      %v1087 = vsub.s32 %v1084, %v1086
      %v1088 = vrot.slane %v134, %v1087
      %v1090 = vunpack.c.l.s4 1966171168
      %v1091 = vunpack.c.0.s8 %v1090
      %v1092 = vlaneseq
      %v1093 = vshrl.u32 %v1092, 7
      %v1094 = vsub.s32 %v1091, %v1093
      %v1095 = vrot.slane %v1088, %v1094
      %1096 = vrot.lane.b32.xlu0 %v1095, 80
      %v1097 = vpop.permute.xlu0 %1096
      %v1099 = vsel %vm152, %v134, 0
      %v1102 = vsel %vm152, %v1097, 0
      %1104 = vmatprep.subr.bf16.mxu0 0
      %1105 = vmatpush1.bf16.xpose.msra.mxu0 %v1102
      %1106 = vmatprep.subr.bf16.mxu0 0
      %1107 = vmatpush1.bf16.xpose.msra.mxu0 0
      %1108 = vmatprep.subr.bf16.mxu0 0
      %1109 = vmatpush1.bf16.xpose.msra.mxu0 0
      %1110 = vmatprep.subr.bf16.mxu0 0
      %1111 = vmatpush1.bf16.xpose.msra.mxu0 0
      %1112 = vmatprep.subr.bf16.mxu0 0
      %1113 = vmatpush1.bf16.xpose.msra.mxu0 0
      %1114 = vmatprep.subr.bf16.mxu0 0
      %1115 = vmatpush1.bf16.xpose.msra.mxu0 0
      %1116 = vmatprep.subr.bf16.mxu0 0
      %1117 = vmatpush1.bf16.xpose.msra.mxu0 0
      %1118 = vmatprep.subr.bf16.mxu0 0
      %1119 = vmatpush1.bf16.xpose.msra.mxu0 0
      %1120 = vmatprep.subr.bf16.mxu0 0
      %1121 = vmatpush1.bf16.xpose.msra.mxu0 0
      %1122 = vmatprep.subr.bf16.mxu0 0
      %1123 = vmatpush1.bf16.xpose.msra.mxu0 0
      %1124 = vmatprep.subr.bf16.mxu0 0
      %1125 = vmatpush1.bf16.xpose.msra.mxu0 0
      %1126 = vmatprep.subr.bf16.mxu0 0
      %1127 = vmatpush1.bf16.xpose.msra.mxu0 0
      %1128 = vmatprep.subr.bf16.mxu0 0
      %1129 = vmatpush1.bf16.xpose.msra.mxu0 0
      %1130 = vmatprep.subr.bf16.mxu0 0
      %1131 = vmatpush1.bf16.xpose.msra.mxu0 0
      %1132 = vmatprep.subr.bf16.mxu0 0
      %1133 = vmatpush1.bf16.xpose.msra.mxu0 0
      %1134 = vmatprep.subr.bf16.mxu0 0
      %1135 = vmatpush1.bf16.xpose.msra.mxu0 0
      %1136 = vmatprep.mubr.bf16.mxu0 0
      %1137 = vmatmul.mubr.bf16.gmra.mrb[0].mxu0 %v1099
      %v1138 = vpop.f32.mrb[0].mxu0
      %v1139 = vadd.f32 0.0, %v1138
      %v1140 = vpop.f32.mrb[0].mxu0
      %v1141 = vpop.f32.mrb[0].mxu0
      %v1142 = vpop.f32.mrb[0].mxu0
      %1143 = vdwg.mxu0
      %v1144 = vmul.f32 %v194, 0.28867513
      %v1145 = vmul.f32 %v257, 0.28867513
      %v1146 = vmul.f32 %v320, 0.28867513
      %v1147 = vmul.f32 %v383, 0.28867513
      %v1148 = vmul.f32 %v446, 0.28867513
      %v1149 = vmul.f32 %v509, 0.28867513
      %v1150 = vmul.f32 %v572, 0.28867513
      %v1151 = vmul.f32 %v635, 0.28867513
      %v1152 = vmul.f32 %v698, 0.28867513
      %v1153 = vmul.f32 %v761, 0.28867513
      %v1154 = vmul.f32 %v824, 0.28867513
      %v1155 = vmul.f32 %v887, 0.28867513
      %v1156 = vmul.f32 %v950, 0.28867513
      %v1157 = vmul.f32 %v1013, 0.28867513
      %v1158 = vmul.f32 %v1076, 0.28867513
      %v1159 = vmul.f32 %v1139, 0.28867513
      %vm1160 = vcmask 9216
      %v1161 = vsel %vm1160, %v1144, -inf
      %1162 = vmax.xlane.f32.xlu0 %v1161
      %v1163 = vpop.xlane.xlu0 %1162
      %v1164 = vsel %vm1160, %v1145, -inf
      %1165 = vmax.xlane.f32.xlu0 %v1164
      %v1166 = vpop.xlane.xlu0 %1165
      %v1167 = vsel %vm1160, %v1146, -inf
      %1168 = vmax.xlane.f32.xlu0 %v1167
      %v1169 = vpop.xlane.xlu0 %1168
      %v1170 = vsel %vm1160, %v1147, -inf
      %1171 = vmax.xlane.f32.xlu0 %v1170
      %v1172 = vpop.xlane.xlu0 %1171
      %v1173 = vsel %vm1160, %v1148, -inf
      %1174 = vmax.xlane.f32.xlu0 %v1173
      %v1175 = vpop.xlane.xlu0 %1174
      %v1176 = vsel %vm1160, %v1149, -inf
      %1177 = vmax.xlane.f32.xlu0 %v1176
      %v1178 = vpop.xlane.xlu0 %1177
      %v1179 = vsel %vm1160, %v1150, -inf
      %1180 = vmax.xlane.f32.xlu0 %v1179
      %v1181 = vpop.xlane.xlu0 %1180
      %v1182 = vsel %vm1160, %v1151, -inf
      %1183 = vmax.xlane.f32.xlu0 %v1182
      %v1184 = vpop.xlane.xlu0 %1183
      %v1185 = vsel %vm1160, %v1152, -inf
      %1186 = vmax.xlane.f32.xlu0 %v1185
      %v1187 = vpop.xlane.xlu0 %1186
      %v1188 = vsel %vm1160, %v1153, -inf
      %1189 = vmax.xlane.f32.xlu0 %v1188
      %v1190 = vpop.xlane.xlu0 %1189
      %v1191 = vsel %vm1160, %v1154, -inf
      %1192 = vmax.xlane.f32.xlu0 %v1191
      %v1193 = vpop.xlane.xlu0 %1192
      %v1194 = vsel %vm1160, %v1155, -inf
      %1195 = vmax.xlane.f32.xlu0 %v1194
      %v1196 = vpop.xlane.xlu0 %1195
      %v1197 = vsel %vm1160, %v1156, -inf
      %1198 = vmax.xlane.f32.xlu0 %v1197
      %v1199 = vpop.xlane.xlu0 %1198
      %v1200 = vsel %vm1160, %v1157, -inf
      %1201 = vmax.xlane.f32.xlu0 %v1200
      %v1202 = vpop.xlane.xlu0 %1201
      %v1203 = vsel %vm1160, %v1158, -inf
      %1204 = vmax.xlane.f32.xlu0 %v1203
      %v1205 = vpop.xlane.xlu0 %1204
      %v1206 = vsel %vm1160, %v1159, -inf
      %1207 = vmax.xlane.f32.xlu0 %v1206
      %v1208 = vpop.xlane.xlu0 %1207
      %v1209 = vsub.f32 %v1144, %v1163
      %v1210 = vsub.f32 %v1145, %v1166
      %v1211 = vsub.f32 %v1146, %v1169
      %v1212 = vsub.f32 %v1147, %v1172
      %v1213 = vsub.f32 %v1148, %v1175
      %v1214 = vsub.f32 %v1149, %v1178
      %v1215 = vsub.f32 %v1150, %v1181
      %v1216 = vsub.f32 %v1151, %v1184
      %v1217 = vsub.f32 %v1152, %v1187
      %v1218 = vsub.f32 %v1153, %v1190
      %v1219 = vsub.f32 %v1154, %v1193
      %v1220 = vsub.f32 %v1155, %v1196
      %v1221 = vsub.f32 %v1156, %v1199
      %v1222 = vsub.f32 %v1157, %v1202
      %v1223 = vsub.f32 %v1158, %v1205
      %v1224 = vsub.f32 %v1159, %v1208
      %v1225 = vmul.f32 %v1209, 1.442695
      %v1226 = vpow.pop %v1225
      %v1227 = vmul.f32 %v1210, 1.442695
      %v1228 = vpow.pop %v1227
      %v1229 = vmul.f32 %v1211, 1.442695
      %v1230 = vpow.pop %v1229
      %v1231 = vmul.f32 %v1212, 1.442695
      %v1232 = vpow.pop %v1231
      %v1233 = vmul.f32 %v1213, 1.442695
      %v1234 = vpow.pop %v1233
      %v1235 = vmul.f32 %v1214, 1.442695
      %v1236 = vpow.pop %v1235
      %v1237 = vmul.f32 %v1215, 1.442695
      %v1238 = vpow.pop %v1237
      %v1239 = vmul.f32 %v1216, 1.442695
      %v1240 = vpow.pop %v1239
      %v1241 = vmul.f32 %v1217, 1.442695
      %v1242 = vpow.pop %v1241
      %v1243 = vmul.f32 %v1218, 1.442695
      %v1244 = vpow.pop %v1243
      %v1245 = vmul.f32 %v1219, 1.442695
      %v1246 = vpow.pop %v1245
      %v1247 = vmul.f32 %v1220, 1.442695
      %v1248 = vpow.pop %v1247
      %v1249 = vmul.f32 %v1221, 1.442695
      %v1250 = vpow.pop %v1249
      %v1251 = vmul.f32 %v1222, 1.442695
      %v1252 = vpow.pop %v1251
      %v1253 = vmul.f32 %v1223, 1.442695
      %v1254 = vpow.pop %v1253
      %v1255 = vmul.f32 %v1224, 1.442695
      %v1256 = vpow.pop %v1255
      %v1257 = vsel %vm1160, %v1226, 0.0
      %1258 = vadd.xlane.f32.xlu0 %v1257
      %v1259 = vpop.xlane.xlu0 %1258
      %v1260 = vsel %vm1160, %v1228, 0.0
      %1261 = vadd.xlane.f32.xlu0 %v1260
      %v1262 = vpop.xlane.xlu0 %1261
      %v1263 = vsel %vm1160, %v1230, 0.0
      %1264 = vadd.xlane.f32.xlu0 %v1263
      %v1265 = vpop.xlane.xlu0 %1264
      %v1266 = vsel %vm1160, %v1232, 0.0
      %1267 = vadd.xlane.f32.xlu0 %v1266
      %v1268 = vpop.xlane.xlu0 %1267
      %v1269 = vsel %vm1160, %v1234, 0.0
      %1270 = vadd.xlane.f32.xlu0 %v1269
      %v1271 = vpop.xlane.xlu0 %1270
      %v1272 = vsel %vm1160, %v1236, 0.0
      %1273 = vadd.xlane.f32.xlu0 %v1272
      %v1274 = vpop.xlane.xlu0 %1273
      %v1275 = vsel %vm1160, %v1238, 0.0
      %1276 = vadd.xlane.f32.xlu0 %v1275
      %v1277 = vpop.xlane.xlu0 %1276
      %v1278 = vsel %vm1160, %v1240, 0.0
      %1279 = vadd.xlane.f32.xlu0 %v1278
      %v1280 = vpop.xlane.xlu0 %1279
      %v1281 = vsel %vm1160, %v1242, 0.0
      %1282 = vadd.xlane.f32.xlu0 %v1281
      %v1283 = vpop.xlane.xlu0 %1282
      %v1284 = vsel %vm1160, %v1244, 0.0
      %1285 = vadd.xlane.f32.xlu0 %v1284
      %v1286 = vpop.xlane.xlu0 %1285
      %v1287 = vsel %vm1160, %v1246, 0.0
      %1288 = vadd.xlane.f32.xlu0 %v1287
      %v1289 = vpop.xlane.xlu0 %1288
      %v1290 = vsel %vm1160, %v1248, 0.0
      %1291 = vadd.xlane.f32.xlu0 %v1290
      %v1292 = vpop.xlane.xlu0 %1291
      %v1293 = vsel %vm1160, %v1250, 0.0
      %1294 = vadd.xlane.f32.xlu0 %v1293
      %v1295 = vpop.xlane.xlu0 %1294
      %v1296 = vsel %vm1160, %v1252, 0.0
      %1297 = vadd.xlane.f32.xlu0 %v1296
      %v1298 = vpop.xlane.xlu0 %1297
      %v1299 = vsel %vm1160, %v1254, 0.0
      %1300 = vadd.xlane.f32.xlu0 %v1299
      %v1301 = vpop.xlane.xlu0 %1300
      %v1302 = vsel %vm1160, %v1256, 0.0
      %1303 = vadd.xlane.f32.xlu0 %v1302
      %v1304 = vpop.xlane.xlu0 %1303
      %v1305 = vrcp.pop %v1259
      %v1306 = vrcp.pop %v1262
      %v1307 = vrcp.pop %v1265
      %v1308 = vrcp.pop %v1268
      %v1309 = vrcp.pop %v1271
      %v1310 = vrcp.pop %v1274
      %v1311 = vrcp.pop %v1277
      %v1312 = vrcp.pop %v1280
      %v1313 = vrcp.pop %v1283
      %v1314 = vrcp.pop %v1286
      %v1315 = vrcp.pop %v1289
      %v1316 = vrcp.pop %v1292
      %v1317 = vrcp.pop %v1295
      %v1318 = vrcp.pop %v1298
      %v1319 = vrcp.pop %v1301
      %v1320 = vrcp.pop %v1304
      %v1321 = vmul.f32 %v1226, %v1305
      %v1322 = vmul.f32 %v1228, %v1306
      %v1323 = vmul.f32 %v1230, %v1307
      %v1324 = vmul.f32 %v1232, %v1308
      %v1325 = vmul.f32 %v1234, %v1309
      %v1326 = vmul.f32 %v1236, %v1310
      %v1327 = vmul.f32 %v1238, %v1311
      %v1328 = vmul.f32 %v1240, %v1312
      %v1329 = vmul.f32 %v1242, %v1313
      %v1330 = vmul.f32 %v1244, %v1314
      %v1331 = vmul.f32 %v1246, %v1315
      %v1332 = vmul.f32 %v1248, %v1316
      %v1333 = vmul.f32 %v1250, %v1317
      %v1334 = vmul.f32 %v1252, %v1318
      %v1335 = vmul.f32 %v1254, %v1319
      %v1336 = vmul.f32 %v1256, %v1320
      %v1337 = vpack.c.bf16 %v1321, %v1321
      %v1338 = vpack.c.bf16 %v1322, %v1322
      %v1339 = vpack.c.bf16 %v1323, %v1323
      %v1340 = vpack.c.bf16 %v1324, %v1324
      %v1341 = vpack.c.bf16 %v1325, %v1325
      %v1342 = vpack.c.bf16 %v1326, %v1326
      %v1343 = vpack.c.bf16 %v1327, %v1327
      %v1344 = vpack.c.bf16 %v1328, %v1328
      %v1345 = vpack.c.bf16 %v1329, %v1329
      %v1346 = vpack.c.bf16 %v1330, %v1330
      %v1347 = vpack.c.bf16 %v1331, %v1331
      %v1348 = vpack.c.bf16 %v1332, %v1332
      %v1349 = vpack.c.bf16 %v1333, %v1333
      %v1350 = vpack.c.bf16 %v1334, %v1334
      %v1351 = vpack.c.bf16 %v1335, %v1335
      %v1352 = vpack.c.bf16 %v1336, %v1336
      %1353 = vrot.lane.b32.xlu0 %v149, 32
      %v1354 = vpop.permute.xlu0 %1353
      %vm1355 = vcmask 15360
      %v1357 = vsel %vm1355, %v1337, 0
      %vm1359 = vcmask 1040384
      %v1361 = vsel %vm1359, %v1354, 0
      %1363 = vmatprep.subr.bf16.mxu0 0
      %1364 = vmatpush1.bf16.msra.mxu0 %v1361
      %1365 = vmatprep.subr.bf16.mxu0 0
      %1366 = vmatpush1.bf16.msra.mxu0 0
      %1367 = vmatprep.subr.bf16.mxu0 0
      %1368 = vmatpush1.bf16.msra.mxu0 0
      %1369 = vmatprep.subr.bf16.mxu0 0
      %1370 = vmatpush1.bf16.msra.mxu0 0
      %1371 = vmatprep.subr.bf16.mxu0 0
      %1372 = vmatpush1.bf16.msra.mxu0 0
      %1373 = vmatprep.subr.bf16.mxu0 0
      %1374 = vmatpush1.bf16.msra.mxu0 0
      %1375 = vmatprep.subr.bf16.mxu0 0
      %1376 = vmatpush1.bf16.msra.mxu0 0
      %1377 = vmatprep.subr.bf16.mxu0 0
      %1378 = vmatpush1.bf16.msra.mxu0 0
      %1379 = vmatprep.subr.bf16.mxu0 0
      %1380 = vmatpush1.bf16.msra.mxu0 0
      %1381 = vmatprep.subr.bf16.mxu0 0
      %1382 = vmatpush1.bf16.msra.mxu0 0
      %1383 = vmatprep.subr.bf16.mxu0 0
      %1384 = vmatpush1.bf16.msra.mxu0 0
      %1385 = vmatprep.subr.bf16.mxu0 0
      %1386 = vmatpush1.bf16.msra.mxu0 0
      %1387 = vmatprep.subr.bf16.mxu0 0
      %1388 = vmatpush1.bf16.msra.mxu0 0
      %1389 = vmatprep.subr.bf16.mxu0 0
      %1390 = vmatpush1.bf16.msra.mxu0 0
      %1391 = vmatprep.subr.bf16.mxu0 0
      %1392 = vmatpush1.bf16.msra.mxu0 0
      %1393 = vmatprep.subr.bf16.mxu0 0
      %1394 = vmatpush1.bf16.msra.mxu0 0
      %1395 = vmatprep.mubr.bf16.mxu0 0
      %1396 = vmatmul.mubr.bf16.gmra.mrb[0].mxu0 %v1357
      %v1397 = vpop.f32.mrb[0].mxu0
      %v1398 = vadd.f32 0.0, %v1397
      %v1399 = vpop.f32.mrb[0].mxu0
      %v1400 = vpop.f32.mrb[0].mxu0
      %v1401 = vpop.f32.mrb[0].mxu0
      %1402 = vdwg.mxu0
      %1403 = vrot.lane.b32.xlu0 %v213, 32
      %v1404 = vpop.permute.xlu0 %1403
      %v1406 = vsel %vm1355, %v1338, 0
      %v1409 = vsel %vm1359, %v1404, 0
      %1411 = vmatprep.subr.bf16.mxu0 0
      %1412 = vmatpush1.bf16.msra.mxu0 %v1409
      %1413 = vmatprep.subr.bf16.mxu0 0
      %1414 = vmatpush1.bf16.msra.mxu0 0
      %1415 = vmatprep.subr.bf16.mxu0 0
      %1416 = vmatpush1.bf16.msra.mxu0 0
      %1417 = vmatprep.subr.bf16.mxu0 0
      %1418 = vmatpush1.bf16.msra.mxu0 0
      %1419 = vmatprep.subr.bf16.mxu0 0
      %1420 = vmatpush1.bf16.msra.mxu0 0
      %1421 = vmatprep.subr.bf16.mxu0 0
      %1422 = vmatpush1.bf16.msra.mxu0 0
      %1423 = vmatprep.subr.bf16.mxu0 0
      %1424 = vmatpush1.bf16.msra.mxu0 0
      %1425 = vmatprep.subr.bf16.mxu0 0
      %1426 = vmatpush1.bf16.msra.mxu0 0
      %1427 = vmatprep.subr.bf16.mxu0 0
      %1428 = vmatpush1.bf16.msra.mxu0 0
      %1429 = vmatprep.subr.bf16.mxu0 0
      %1430 = vmatpush1.bf16.msra.mxu0 0
      %1431 = vmatprep.subr.bf16.mxu0 0
      %1432 = vmatpush1.bf16.msra.mxu0 0
      %1433 = vmatprep.subr.bf16.mxu0 0
      %1434 = vmatpush1.bf16.msra.mxu0 0
      %1435 = vmatprep.subr.bf16.mxu0 0
      %1436 = vmatpush1.bf16.msra.mxu0 0
      %1437 = vmatprep.subr.bf16.mxu0 0
      %1438 = vmatpush1.bf16.msra.mxu0 0
      %1439 = vmatprep.subr.bf16.mxu0 0
      %1440 = vmatpush1.bf16.msra.mxu0 0
      %1441 = vmatprep.subr.bf16.mxu0 0
      %1442 = vmatpush1.bf16.msra.mxu0 0
      %1443 = vmatprep.mubr.bf16.mxu0 0
      %1444 = vmatmul.mubr.bf16.gmra.mrb[0].mxu0 %v1406
      %v1445 = vpop.f32.mrb[0].mxu0
      %v1446 = vadd.f32 0.0, %v1445
      %v1447 = vpop.f32.mrb[0].mxu0
      %v1448 = vpop.f32.mrb[0].mxu0
      %v1449 = vpop.f32.mrb[0].mxu0
      %1450 = vdwg.mxu0
      %1451 = vrot.lane.b32.xlu0 %v276, 32
      %v1452 = vpop.permute.xlu0 %1451
      %v1454 = vsel %vm1355, %v1339, 0
      %v1457 = vsel %vm1359, %v1452, 0
      %1459 = vmatprep.subr.bf16.mxu0 0
      %1460 = vmatpush1.bf16.msra.mxu0 %v1457
      %1461 = vmatprep.subr.bf16.mxu0 0
      %1462 = vmatpush1.bf16.msra.mxu0 0
      %1463 = vmatprep.subr.bf16.mxu0 0
      %1464 = vmatpush1.bf16.msra.mxu0 0
      %1465 = vmatprep.subr.bf16.mxu0 0
      %1466 = vmatpush1.bf16.msra.mxu0 0
      %1467 = vmatprep.subr.bf16.mxu0 0
      %1468 = vmatpush1.bf16.msra.mxu0 0
      %1469 = vmatprep.subr.bf16.mxu0 0
      %1470 = vmatpush1.bf16.msra.mxu0 0
      %1471 = vmatprep.subr.bf16.mxu0 0
      %1472 = vmatpush1.bf16.msra.mxu0 0
      %1473 = vmatprep.subr.bf16.mxu0 0
      %1474 = vmatpush1.bf16.msra.mxu0 0
      %1475 = vmatprep.subr.bf16.mxu0 0
      %1476 = vmatpush1.bf16.msra.mxu0 0
      %1477 = vmatprep.subr.bf16.mxu0 0
      %1478 = vmatpush1.bf16.msra.mxu0 0
      %1479 = vmatprep.subr.bf16.mxu0 0
      %1480 = vmatpush1.bf16.msra.mxu0 0
      %1481 = vmatprep.subr.bf16.mxu0 0
      %1482 = vmatpush1.bf16.msra.mxu0 0
      %1483 = vmatprep.subr.bf16.mxu0 0
      %1484 = vmatpush1.bf16.msra.mxu0 0
      %1485 = vmatprep.subr.bf16.mxu0 0
      %1486 = vmatpush1.bf16.msra.mxu0 0
      %1487 = vmatprep.subr.bf16.mxu0 0
      %1488 = vmatpush1.bf16.msra.mxu0 0
      %1489 = vmatprep.subr.bf16.mxu0 0
      %1490 = vmatpush1.bf16.msra.mxu0 0
      %1491 = vmatprep.mubr.bf16.mxu0 0
      %1492 = vmatmul.mubr.bf16.gmra.mrb[0].mxu0 %v1454
      %v1493 = vpop.f32.mrb[0].mxu0
      %v1494 = vadd.f32 0.0, %v1493
      %v1495 = vpop.f32.mrb[0].mxu0
      %v1496 = vpop.f32.mrb[0].mxu0
      %v1497 = vpop.f32.mrb[0].mxu0
      %1498 = vdwg.mxu0
      %1499 = vrot.lane.b32.xlu0 %v339, 32
      %v1500 = vpop.permute.xlu0 %1499
      %v1502 = vsel %vm1355, %v1340, 0
      %v1505 = vsel %vm1359, %v1500, 0
      %1507 = vmatprep.subr.bf16.mxu0 0
      %1508 = vmatpush1.bf16.msra.mxu0 %v1505
      %1509 = vmatprep.subr.bf16.mxu0 0
      %1510 = vmatpush1.bf16.msra.mxu0 0
      %1511 = vmatprep.subr.bf16.mxu0 0
      %1512 = vmatpush1.bf16.msra.mxu0 0
      %1513 = vmatprep.subr.bf16.mxu0 0
      %1514 = vmatpush1.bf16.msra.mxu0 0
      %1515 = vmatprep.subr.bf16.mxu0 0
      %1516 = vmatpush1.bf16.msra.mxu0 0
      %1517 = vmatprep.subr.bf16.mxu0 0
      %1518 = vmatpush1.bf16.msra.mxu0 0
      %1519 = vmatprep.subr.bf16.mxu0 0
      %1520 = vmatpush1.bf16.msra.mxu0 0
      %1521 = vmatprep.subr.bf16.mxu0 0
      %1522 = vmatpush1.bf16.msra.mxu0 0
      %1523 = vmatprep.subr.bf16.mxu0 0
      %1524 = vmatpush1.bf16.msra.mxu0 0
      %1525 = vmatprep.subr.bf16.mxu0 0
      %1526 = vmatpush1.bf16.msra.mxu0 0
      %1527 = vmatprep.subr.bf16.mxu0 0
      %1528 = vmatpush1.bf16.msra.mxu0 0
      %1529 = vmatprep.subr.bf16.mxu0 0
      %1530 = vmatpush1.bf16.msra.mxu0 0
      %1531 = vmatprep.subr.bf16.mxu0 0
      %1532 = vmatpush1.bf16.msra.mxu0 0
      %1533 = vmatprep.subr.bf16.mxu0 0
      %1534 = vmatpush1.bf16.msra.mxu0 0
      %1535 = vmatprep.subr.bf16.mxu0 0
      %1536 = vmatpush1.bf16.msra.mxu0 0
      %1537 = vmatprep.subr.bf16.mxu0 0
      %1538 = vmatpush1.bf16.msra.mxu0 0
      %1539 = vmatprep.mubr.bf16.mxu0 0
      %1540 = vmatmul.mubr.bf16.gmra.mrb[0].mxu0 %v1502
      %v1541 = vpop.f32.mrb[0].mxu0
      %v1542 = vadd.f32 0.0, %v1541
      %v1543 = vpop.f32.mrb[0].mxu0
      %v1544 = vpop.f32.mrb[0].mxu0
      %v1545 = vpop.f32.mrb[0].mxu0
      %1546 = vdwg.mxu0
      %1547 = vrot.lane.b32.xlu0 %v402, 32
      %v1548 = vpop.permute.xlu0 %1547
      %v1550 = vsel %vm1355, %v1341, 0
      %v1553 = vsel %vm1359, %v1548, 0
      %1555 = vmatprep.subr.bf16.mxu0 0
      %1556 = vmatpush1.bf16.msra.mxu0 %v1553
      %1557 = vmatprep.subr.bf16.mxu0 0
      %1558 = vmatpush1.bf16.msra.mxu0 0
      %1559 = vmatprep.subr.bf16.mxu0 0
      %1560 = vmatpush1.bf16.msra.mxu0 0
      %1561 = vmatprep.subr.bf16.mxu0 0
      %1562 = vmatpush1.bf16.msra.mxu0 0
      %1563 = vmatprep.subr.bf16.mxu0 0
      %1564 = vmatpush1.bf16.msra.mxu0 0
      %1565 = vmatprep.subr.bf16.mxu0 0
      %1566 = vmatpush1.bf16.msra.mxu0 0
      %1567 = vmatprep.subr.bf16.mxu0 0
      %1568 = vmatpush1.bf16.msra.mxu0 0
      %1569 = vmatprep.subr.bf16.mxu0 0
      %1570 = vmatpush1.bf16.msra.mxu0 0
      %1571 = vmatprep.subr.bf16.mxu0 0
      %1572 = vmatpush1.bf16.msra.mxu0 0
      %1573 = vmatprep.subr.bf16.mxu0 0
      %1574 = vmatpush1.bf16.msra.mxu0 0
      %1575 = vmatprep.subr.bf16.mxu0 0
      %1576 = vmatpush1.bf16.msra.mxu0 0
      %1577 = vmatprep.subr.bf16.mxu0 0
      %1578 = vmatpush1.bf16.msra.mxu0 0
      %1579 = vmatprep.subr.bf16.mxu0 0
      %1580 = vmatpush1.bf16.msra.mxu0 0
      %1581 = vmatprep.subr.bf16.mxu0 0
      %1582 = vmatpush1.bf16.msra.mxu0 0
      %1583 = vmatprep.subr.bf16.mxu0 0
      %1584 = vmatpush1.bf16.msra.mxu0 0
      %1585 = vmatprep.subr.bf16.mxu0 0
      %1586 = vmatpush1.bf16.msra.mxu0 0
      %1587 = vmatprep.mubr.bf16.mxu0 0
      %1588 = vmatmul.mubr.bf16.gmra.mrb[0].mxu0 %v1550
      %v1589 = vpop.f32.mrb[0].mxu0
      %v1590 = vadd.f32 0.0, %v1589
      %v1591 = vpop.f32.mrb[0].mxu0
      %v1592 = vpop.f32.mrb[0].mxu0
      %v1593 = vpop.f32.mrb[0].mxu0
      %1594 = vdwg.mxu0
      %1595 = vrot.lane.b32.xlu0 %v465, 32
      %v1596 = vpop.permute.xlu0 %1595
      %v1598 = vsel %vm1355, %v1342, 0
      %v1601 = vsel %vm1359, %v1596, 0
      %1603 = vmatprep.subr.bf16.mxu0 0
      %1604 = vmatpush1.bf16.msra.mxu0 %v1601
      %1605 = vmatprep.subr.bf16.mxu0 0
      %1606 = vmatpush1.bf16.msra.mxu0 0
      %1607 = vmatprep.subr.bf16.mxu0 0
      %1608 = vmatpush1.bf16.msra.mxu0 0
      %1609 = vmatprep.subr.bf16.mxu0 0
      %1610 = vmatpush1.bf16.msra.mxu0 0
      %1611 = vmatprep.subr.bf16.mxu0 0
      %1612 = vmatpush1.bf16.msra.mxu0 0
      %1613 = vmatprep.subr.bf16.mxu0 0
      %1614 = vmatpush1.bf16.msra.mxu0 0
      %1615 = vmatprep.subr.bf16.mxu0 0
      %1616 = vmatpush1.bf16.msra.mxu0 0
      %1617 = vmatprep.subr.bf16.mxu0 0
      %1618 = vmatpush1.bf16.msra.mxu0 0
      %1619 = vmatprep.subr.bf16.mxu0 0
      %1620 = vmatpush1.bf16.msra.mxu0 0
      %1621 = vmatprep.subr.bf16.mxu0 0
      %1622 = vmatpush1.bf16.msra.mxu0 0
      %1623 = vmatprep.subr.bf16.mxu0 0
      %1624 = vmatpush1.bf16.msra.mxu0 0
      %1625 = vmatprep.subr.bf16.mxu0 0
      %1626 = vmatpush1.bf16.msra.mxu0 0
      %1627 = vmatprep.subr.bf16.mxu0 0
      %1628 = vmatpush1.bf16.msra.mxu0 0
      %1629 = vmatprep.subr.bf16.mxu0 0
      %1630 = vmatpush1.bf16.msra.mxu0 0
      %1631 = vmatprep.subr.bf16.mxu0 0
      %1632 = vmatpush1.bf16.msra.mxu0 0
      %1633 = vmatprep.subr.bf16.mxu0 0
      %1634 = vmatpush1.bf16.msra.mxu0 0
      %1635 = vmatprep.mubr.bf16.mxu0 0
      %1636 = vmatmul.mubr.bf16.gmra.mrb[0].mxu0 %v1598
      %v1637 = vpop.f32.mrb[0].mxu0
      %v1638 = vadd.f32 0.0, %v1637
      %v1639 = vpop.f32.mrb[0].mxu0
      %v1640 = vpop.f32.mrb[0].mxu0
      %v1641 = vpop.f32.mrb[0].mxu0
      %1642 = vdwg.mxu0
      %1643 = vrot.lane.b32.xlu0 %v528, 32
      %v1644 = vpop.permute.xlu0 %1643
      %v1646 = vsel %vm1355, %v1343, 0
      %v1649 = vsel %vm1359, %v1644, 0
      %1651 = vmatprep.subr.bf16.mxu0 0
      %1652 = vmatpush1.bf16.msra.mxu0 %v1649
      %1653 = vmatprep.subr.bf16.mxu0 0
      %1654 = vmatpush1.bf16.msra.mxu0 0
      %1655 = vmatprep.subr.bf16.mxu0 0
      %1656 = vmatpush1.bf16.msra.mxu0 0
      %1657 = vmatprep.subr.bf16.mxu0 0
      %1658 = vmatpush1.bf16.msra.mxu0 0
      %1659 = vmatprep.subr.bf16.mxu0 0
      %1660 = vmatpush1.bf16.msra.mxu0 0
      %1661 = vmatprep.subr.bf16.mxu0 0
      %1662 = vmatpush1.bf16.msra.mxu0 0
      %1663 = vmatprep.subr.bf16.mxu0 0
      %1664 = vmatpush1.bf16.msra.mxu0 0
      %1665 = vmatprep.subr.bf16.mxu0 0
      %1666 = vmatpush1.bf16.msra.mxu0 0
      %1667 = vmatprep.subr.bf16.mxu0 0
      %1668 = vmatpush1.bf16.msra.mxu0 0
      %1669 = vmatprep.subr.bf16.mxu0 0
      %1670 = vmatpush1.bf16.msra.mxu0 0
      %1671 = vmatprep.subr.bf16.mxu0 0
      %1672 = vmatpush1.bf16.msra.mxu0 0
      %1673 = vmatprep.subr.bf16.mxu0 0
      %1674 = vmatpush1.bf16.msra.mxu0 0
      %1675 = vmatprep.subr.bf16.mxu0 0
      %1676 = vmatpush1.bf16.msra.mxu0 0
      %1677 = vmatprep.subr.bf16.mxu0 0
      %1678 = vmatpush1.bf16.msra.mxu0 0
      %1679 = vmatprep.subr.bf16.mxu0 0
      %1680 = vmatpush1.bf16.msra.mxu0 0
      %1681 = vmatprep.subr.bf16.mxu0 0
      %1682 = vmatpush1.bf16.msra.mxu0 0
      %1683 = vmatprep.mubr.bf16.mxu0 0
      %1684 = vmatmul.mubr.bf16.gmra.mrb[0].mxu0 %v1646
      %v1685 = vpop.f32.mrb[0].mxu0
      %v1686 = vadd.f32 0.0, %v1685
      %v1687 = vpop.f32.mrb[0].mxu0
      %v1688 = vpop.f32.mrb[0].mxu0
      %v1689 = vpop.f32.mrb[0].mxu0
      %1690 = vdwg.mxu0
      %1691 = vrot.lane.b32.xlu0 %v591, 32
      %v1692 = vpop.permute.xlu0 %1691
      %v1694 = vsel %vm1355, %v1344, 0
      %v1697 = vsel %vm1359, %v1692, 0
      %1699 = vmatprep.subr.bf16.mxu0 0
      %1700 = vmatpush1.bf16.msra.mxu0 %v1697
      %1701 = vmatprep.subr.bf16.mxu0 0
      %1702 = vmatpush1.bf16.msra.mxu0 0
      %1703 = vmatprep.subr.bf16.mxu0 0
      %1704 = vmatpush1.bf16.msra.mxu0 0
      %1705 = vmatprep.subr.bf16.mxu0 0
      %1706 = vmatpush1.bf16.msra.mxu0 0
      %1707 = vmatprep.subr.bf16.mxu0 0
      %1708 = vmatpush1.bf16.msra.mxu0 0
      %1709 = vmatprep.subr.bf16.mxu0 0
      %1710 = vmatpush1.bf16.msra.mxu0 0
      %1711 = vmatprep.subr.bf16.mxu0 0
      %1712 = vmatpush1.bf16.msra.mxu0 0
      %1713 = vmatprep.subr.bf16.mxu0 0
      %1714 = vmatpush1.bf16.msra.mxu0 0
      %1715 = vmatprep.subr.bf16.mxu0 0
      %1716 = vmatpush1.bf16.msra.mxu0 0
      %1717 = vmatprep.subr.bf16.mxu0 0
      %1718 = vmatpush1.bf16.msra.mxu0 0
      %1719 = vmatprep.subr.bf16.mxu0 0
      %1720 = vmatpush1.bf16.msra.mxu0 0
      %1721 = vmatprep.subr.bf16.mxu0 0
      %1722 = vmatpush1.bf16.msra.mxu0 0
      %1723 = vmatprep.subr.bf16.mxu0 0
      %1724 = vmatpush1.bf16.msra.mxu0 0
      %1725 = vmatprep.subr.bf16.mxu0 0
      %1726 = vmatpush1.bf16.msra.mxu0 0
      %1727 = vmatprep.subr.bf16.mxu0 0
      %1728 = vmatpush1.bf16.msra.mxu0 0
      %1729 = vmatprep.subr.bf16.mxu0 0
      %1730 = vmatpush1.bf16.msra.mxu0 0
      %1731 = vmatprep.mubr.bf16.mxu0 0
      %1732 = vmatmul.mubr.bf16.gmra.mrb[0].mxu0 %v1694
      %v1733 = vpop.f32.mrb[0].mxu0
      %v1734 = vadd.f32 0.0, %v1733
      %v1735 = vpop.f32.mrb[0].mxu0
      %v1736 = vpop.f32.mrb[0].mxu0
      %v1737 = vpop.f32.mrb[0].mxu0
      %1738 = vdwg.mxu0
      %1739 = vrot.lane.b32.xlu0 %v654, 32
      %v1740 = vpop.permute.xlu0 %1739
      %v1742 = vsel %vm1355, %v1345, 0
      %v1745 = vsel %vm1359, %v1740, 0
      %1747 = vmatprep.subr.bf16.mxu0 0
      %1748 = vmatpush1.bf16.msra.mxu0 %v1745
      %1749 = vmatprep.subr.bf16.mxu0 0
      %1750 = vmatpush1.bf16.msra.mxu0 0
      %1751 = vmatprep.subr.bf16.mxu0 0
      %1752 = vmatpush1.bf16.msra.mxu0 0
      %1753 = vmatprep.subr.bf16.mxu0 0
      %1754 = vmatpush1.bf16.msra.mxu0 0
      %1755 = vmatprep.subr.bf16.mxu0 0
      %1756 = vmatpush1.bf16.msra.mxu0 0
      %1757 = vmatprep.subr.bf16.mxu0 0
      %1758 = vmatpush1.bf16.msra.mxu0 0
      %1759 = vmatprep.subr.bf16.mxu0 0
      %1760 = vmatpush1.bf16.msra.mxu0 0
      %1761 = vmatprep.subr.bf16.mxu0 0
      %1762 = vmatpush1.bf16.msra.mxu0 0
      %1763 = vmatprep.subr.bf16.mxu0 0
      %1764 = vmatpush1.bf16.msra.mxu0 0
      %1765 = vmatprep.subr.bf16.mxu0 0
      %1766 = vmatpush1.bf16.msra.mxu0 0
      %1767 = vmatprep.subr.bf16.mxu0 0
      %1768 = vmatpush1.bf16.msra.mxu0 0
      %1769 = vmatprep.subr.bf16.mxu0 0
      %1770 = vmatpush1.bf16.msra.mxu0 0
      %1771 = vmatprep.subr.bf16.mxu0 0
      %1772 = vmatpush1.bf16.msra.mxu0 0
      %1773 = vmatprep.subr.bf16.mxu0 0
      %1774 = vmatpush1.bf16.msra.mxu0 0
      %1775 = vmatprep.subr.bf16.mxu0 0
      %1776 = vmatpush1.bf16.msra.mxu0 0
      %1777 = vmatprep.subr.bf16.mxu0 0
      %1778 = vmatpush1.bf16.msra.mxu0 0
      %1779 = vmatprep.mubr.bf16.mxu0 0
      %1780 = vmatmul.mubr.bf16.gmra.mrb[0].mxu0 %v1742
      %v1781 = vpop.f32.mrb[0].mxu0
      %v1782 = vadd.f32 0.0, %v1781
      %v1783 = vpop.f32.mrb[0].mxu0
      %v1784 = vpop.f32.mrb[0].mxu0
      %v1785 = vpop.f32.mrb[0].mxu0
      %1786 = vdwg.mxu0
      %1787 = vrot.lane.b32.xlu0 %v717, 32
      %v1788 = vpop.permute.xlu0 %1787
      %v1790 = vsel %vm1355, %v1346, 0
      %v1793 = vsel %vm1359, %v1788, 0
      %1795 = vmatprep.subr.bf16.mxu0 0
      %1796 = vmatpush1.bf16.msra.mxu0 %v1793
      %1797 = vmatprep.subr.bf16.mxu0 0
      %1798 = vmatpush1.bf16.msra.mxu0 0
      %1799 = vmatprep.subr.bf16.mxu0 0
      %1800 = vmatpush1.bf16.msra.mxu0 0
      %1801 = vmatprep.subr.bf16.mxu0 0
      %1802 = vmatpush1.bf16.msra.mxu0 0
      %1803 = vmatprep.subr.bf16.mxu0 0
      %1804 = vmatpush1.bf16.msra.mxu0 0
      %1805 = vmatprep.subr.bf16.mxu0 0
      %1806 = vmatpush1.bf16.msra.mxu0 0
      %1807 = vmatprep.subr.bf16.mxu0 0
      %1808 = vmatpush1.bf16.msra.mxu0 0
      %1809 = vmatprep.subr.bf16.mxu0 0
      %1810 = vmatpush1.bf16.msra.mxu0 0
      %1811 = vmatprep.subr.bf16.mxu0 0
      %1812 = vmatpush1.bf16.msra.mxu0 0
      %1813 = vmatprep.subr.bf16.mxu0 0
      %1814 = vmatpush1.bf16.msra.mxu0 0
      %1815 = vmatprep.subr.bf16.mxu0 0
      %1816 = vmatpush1.bf16.msra.mxu0 0
      %1817 = vmatprep.subr.bf16.mxu0 0
      %1818 = vmatpush1.bf16.msra.mxu0 0
      %1819 = vmatprep.subr.bf16.mxu0 0
      %1820 = vmatpush1.bf16.msra.mxu0 0
      %1821 = vmatprep.subr.bf16.mxu0 0
      %1822 = vmatpush1.bf16.msra.mxu0 0
      %1823 = vmatprep.subr.bf16.mxu0 0
      %1824 = vmatpush1.bf16.msra.mxu0 0
      %1825 = vmatprep.subr.bf16.mxu0 0
      %1826 = vmatpush1.bf16.msra.mxu0 0
      %1827 = vmatprep.mubr.bf16.mxu0 0
      %1828 = vmatmul.mubr.bf16.gmra.mrb[0].mxu0 %v1790
      %v1829 = vpop.f32.mrb[0].mxu0
      %v1830 = vadd.f32 0.0, %v1829
      %v1831 = vpop.f32.mrb[0].mxu0
      %v1832 = vpop.f32.mrb[0].mxu0
      %v1833 = vpop.f32.mrb[0].mxu0
      %1834 = vdwg.mxu0
      %1835 = vrot.lane.b32.xlu0 %v780, 32
      %v1836 = vpop.permute.xlu0 %1835
      %v1838 = vsel %vm1355, %v1347, 0
      %v1841 = vsel %vm1359, %v1836, 0
      %1843 = vmatprep.subr.bf16.mxu0 0
      %1844 = vmatpush1.bf16.msra.mxu0 %v1841
      %1845 = vmatprep.subr.bf16.mxu0 0
      %1846 = vmatpush1.bf16.msra.mxu0 0
      %1847 = vmatprep.subr.bf16.mxu0 0
      %1848 = vmatpush1.bf16.msra.mxu0 0
      %1849 = vmatprep.subr.bf16.mxu0 0
      %1850 = vmatpush1.bf16.msra.mxu0 0
      %1851 = vmatprep.subr.bf16.mxu0 0
      %1852 = vmatpush1.bf16.msra.mxu0 0
      %1853 = vmatprep.subr.bf16.mxu0 0
      %1854 = vmatpush1.bf16.msra.mxu0 0
      %1855 = vmatprep.subr.bf16.mxu0 0
      %1856 = vmatpush1.bf16.msra.mxu0 0
      %1857 = vmatprep.subr.bf16.mxu0 0
      %1858 = vmatpush1.bf16.msra.mxu0 0
      %1859 = vmatprep.subr.bf16.mxu0 0
      %1860 = vmatpush1.bf16.msra.mxu0 0
      %1861 = vmatprep.subr.bf16.mxu0 0
      %1862 = vmatpush1.bf16.msra.mxu0 0
      %1863 = vmatprep.subr.bf16.mxu0 0
      %1864 = vmatpush1.bf16.msra.mxu0 0
      %1865 = vmatprep.subr.bf16.mxu0 0
      %1866 = vmatpush1.bf16.msra.mxu0 0
      %1867 = vmatprep.subr.bf16.mxu0 0
      %1868 = vmatpush1.bf16.msra.mxu0 0
      %1869 = vmatprep.subr.bf16.mxu0 0
      %1870 = vmatpush1.bf16.msra.mxu0 0
      %1871 = vmatprep.subr.bf16.mxu0 0
      %1872 = vmatpush1.bf16.msra.mxu0 0
      %1873 = vmatprep.subr.bf16.mxu0 0
      %1874 = vmatpush1.bf16.msra.mxu0 0
      %1875 = vmatprep.mubr.bf16.mxu0 0
      %1876 = vmatmul.mubr.bf16.gmra.mrb[0].mxu0 %v1838
      %v1877 = vpop.f32.mrb[0].mxu0
      %v1878 = vadd.f32 0.0, %v1877
      %v1879 = vpop.f32.mrb[0].mxu0
      %v1880 = vpop.f32.mrb[0].mxu0
      %v1881 = vpop.f32.mrb[0].mxu0
      %1882 = vdwg.mxu0
      %1883 = vrot.lane.b32.xlu0 %v843, 32
      %v1884 = vpop.permute.xlu0 %1883
      %v1886 = vsel %vm1355, %v1348, 0
      %v1889 = vsel %vm1359, %v1884, 0
      %1891 = vmatprep.subr.bf16.mxu0 0
      %1892 = vmatpush1.bf16.msra.mxu0 %v1889
      %1893 = vmatprep.subr.bf16.mxu0 0
      %1894 = vmatpush1.bf16.msra.mxu0 0
      %1895 = vmatprep.subr.bf16.mxu0 0
      %1896 = vmatpush1.bf16.msra.mxu0 0
      %1897 = vmatprep.subr.bf16.mxu0 0
      %1898 = vmatpush1.bf16.msra.mxu0 0
      %1899 = vmatprep.subr.bf16.mxu0 0
      %1900 = vmatpush1.bf16.msra.mxu0 0
      %1901 = vmatprep.subr.bf16.mxu0 0
      %1902 = vmatpush1.bf16.msra.mxu0 0
      %1903 = vmatprep.subr.bf16.mxu0 0
      %1904 = vmatpush1.bf16.msra.mxu0 0
      %1905 = vmatprep.subr.bf16.mxu0 0
      %1906 = vmatpush1.bf16.msra.mxu0 0
      %1907 = vmatprep.subr.bf16.mxu0 0
      %1908 = vmatpush1.bf16.msra.mxu0 0
      %1909 = vmatprep.subr.bf16.mxu0 0
      %1910 = vmatpush1.bf16.msra.mxu0 0
      %1911 = vmatprep.subr.bf16.mxu0 0
      %1912 = vmatpush1.bf16.msra.mxu0 0
      %1913 = vmatprep.subr.bf16.mxu0 0
      %1914 = vmatpush1.bf16.msra.mxu0 0
      %1915 = vmatprep.subr.bf16.mxu0 0
      %1916 = vmatpush1.bf16.msra.mxu0 0
      %1917 = vmatprep.subr.bf16.mxu0 0
      %1918 = vmatpush1.bf16.msra.mxu0 0
      %1919 = vmatprep.subr.bf16.mxu0 0
      %1920 = vmatpush1.bf16.msra.mxu0 0
      %1921 = vmatprep.subr.bf16.mxu0 0
      %1922 = vmatpush1.bf16.msra.mxu0 0
      %1923 = vmatprep.mubr.bf16.mxu0 0
      %1924 = vmatmul.mubr.bf16.gmra.mrb[0].mxu0 %v1886
      %v1925 = vpop.f32.mrb[0].mxu0
      %v1926 = vadd.f32 0.0, %v1925
      %v1927 = vpop.f32.mrb[0].mxu0
      %v1928 = vpop.f32.mrb[0].mxu0
      %v1929 = vpop.f32.mrb[0].mxu0
      %1930 = vdwg.mxu0
      %1931 = vrot.lane.b32.xlu0 %v906, 32
      %v1932 = vpop.permute.xlu0 %1931
      %v1934 = vsel %vm1355, %v1349, 0
      %v1937 = vsel %vm1359, %v1932, 0
      %1939 = vmatprep.subr.bf16.mxu0 0
      %1940 = vmatpush1.bf16.msra.mxu0 %v1937
      %1941 = vmatprep.subr.bf16.mxu0 0
      %1942 = vmatpush1.bf16.msra.mxu0 0
      %1943 = vmatprep.subr.bf16.mxu0 0
      %1944 = vmatpush1.bf16.msra.mxu0 0
      %1945 = vmatprep.subr.bf16.mxu0 0
      %1946 = vmatpush1.bf16.msra.mxu0 0
      %1947 = vmatprep.subr.bf16.mxu0 0
      %1948 = vmatpush1.bf16.msra.mxu0 0
      %1949 = vmatprep.subr.bf16.mxu0 0
      %1950 = vmatpush1.bf16.msra.mxu0 0
      %1951 = vmatprep.subr.bf16.mxu0 0
      %1952 = vmatpush1.bf16.msra.mxu0 0
      %1953 = vmatprep.subr.bf16.mxu0 0
      %1954 = vmatpush1.bf16.msra.mxu0 0
      %1955 = vmatprep.subr.bf16.mxu0 0
      %1956 = vmatpush1.bf16.msra.mxu0 0
      %1957 = vmatprep.subr.bf16.mxu0 0
      %1958 = vmatpush1.bf16.msra.mxu0 0
      %1959 = vmatprep.subr.bf16.mxu0 0
      %1960 = vmatpush1.bf16.msra.mxu0 0
      %1961 = vmatprep.subr.bf16.mxu0 0
      %1962 = vmatpush1.bf16.msra.mxu0 0
      %1963 = vmatprep.subr.bf16.mxu0 0
      %1964 = vmatpush1.bf16.msra.mxu0 0
      %1965 = vmatprep.subr.bf16.mxu0 0
      %1966 = vmatpush1.bf16.msra.mxu0 0
      %1967 = vmatprep.subr.bf16.mxu0 0
      %1968 = vmatpush1.bf16.msra.mxu0 0
      %1969 = vmatprep.subr.bf16.mxu0 0
      %1970 = vmatpush1.bf16.msra.mxu0 0
      %1971 = vmatprep.mubr.bf16.mxu0 0
      %1972 = vmatmul.mubr.bf16.gmra.mrb[0].mxu0 %v1934
      %v1973 = vpop.f32.mrb[0].mxu0
      %v1974 = vadd.f32 0.0, %v1973
      %v1975 = vpop.f32.mrb[0].mxu0
      %v1976 = vpop.f32.mrb[0].mxu0
      %v1977 = vpop.f32.mrb[0].mxu0
      %1978 = vdwg.mxu0
      %1979 = vrot.lane.b32.xlu0 %v969, 32
      %v1980 = vpop.permute.xlu0 %1979
      %v1982 = vsel %vm1355, %v1350, 0
      %v1985 = vsel %vm1359, %v1980, 0
      %1987 = vmatprep.subr.bf16.mxu0 0
      %1988 = vmatpush1.bf16.msra.mxu0 %v1985
      %1989 = vmatprep.subr.bf16.mxu0 0
      %1990 = vmatpush1.bf16.msra.mxu0 0
      %1991 = vmatprep.subr.bf16.mxu0 0
      %1992 = vmatpush1.bf16.msra.mxu0 0
      %1993 = vmatprep.subr.bf16.mxu0 0
      %1994 = vmatpush1.bf16.msra.mxu0 0
      %1995 = vmatprep.subr.bf16.mxu0 0
      %1996 = vmatpush1.bf16.msra.mxu0 0
      %1997 = vmatprep.subr.bf16.mxu0 0
      %1998 = vmatpush1.bf16.msra.mxu0 0
      %1999 = vmatprep.subr.bf16.mxu0 0
      %2000 = vmatpush1.bf16.msra.mxu0 0
      %2001 = vmatprep.subr.bf16.mxu0 0
      %2002 = vmatpush1.bf16.msra.mxu0 0
      %2003 = vmatprep.subr.bf16.mxu0 0
      %2004 = vmatpush1.bf16.msra.mxu0 0
      %2005 = vmatprep.subr.bf16.mxu0 0
      %2006 = vmatpush1.bf16.msra.mxu0 0
      %2007 = vmatprep.subr.bf16.mxu0 0
      %2008 = vmatpush1.bf16.msra.mxu0 0
      %2009 = vmatprep.subr.bf16.mxu0 0
      %2010 = vmatpush1.bf16.msra.mxu0 0
      %2011 = vmatprep.subr.bf16.mxu0 0
      %2012 = vmatpush1.bf16.msra.mxu0 0
      %2013 = vmatprep.subr.bf16.mxu0 0
      %2014 = vmatpush1.bf16.msra.mxu0 0
      %2015 = vmatprep.subr.bf16.mxu0 0
      %2016 = vmatpush1.bf16.msra.mxu0 0
      %2017 = vmatprep.subr.bf16.mxu0 0
      %2018 = vmatpush1.bf16.msra.mxu0 0
      %2019 = vmatprep.mubr.bf16.mxu0 0
      %2020 = vmatmul.mubr.bf16.gmra.mrb[0].mxu0 %v1982
      %v2021 = vpop.f32.mrb[0].mxu0
      %v2022 = vadd.f32 0.0, %v2021
      %v2023 = vpop.f32.mrb[0].mxu0
      %v2024 = vpop.f32.mrb[0].mxu0
      %v2025 = vpop.f32.mrb[0].mxu0
      %2026 = vdwg.mxu0
      %2027 = vrot.lane.b32.xlu0 %v1032, 32
      %v2028 = vpop.permute.xlu0 %2027
      %v2030 = vsel %vm1355, %v1351, 0
      %v2033 = vsel %vm1359, %v2028, 0
      %2035 = vmatprep.subr.bf16.mxu0 0
      %2036 = vmatpush1.bf16.msra.mxu0 %v2033
      %2037 = vmatprep.subr.bf16.mxu0 0
      %2038 = vmatpush1.bf16.msra.mxu0 0
      %2039 = vmatprep.subr.bf16.mxu0 0
      %2040 = vmatpush1.bf16.msra.mxu0 0
      %2041 = vmatprep.subr.bf16.mxu0 0
      %2042 = vmatpush1.bf16.msra.mxu0 0
      %2043 = vmatprep.subr.bf16.mxu0 0
      %2044 = vmatpush1.bf16.msra.mxu0 0
      %2045 = vmatprep.subr.bf16.mxu0 0
      %2046 = vmatpush1.bf16.msra.mxu0 0
      %2047 = vmatprep.subr.bf16.mxu0 0
      %2048 = vmatpush1.bf16.msra.mxu0 0
      %2049 = vmatprep.subr.bf16.mxu0 0
      %2050 = vmatpush1.bf16.msra.mxu0 0
      %2051 = vmatprep.subr.bf16.mxu0 0
      %2052 = vmatpush1.bf16.msra.mxu0 0
      %2053 = vmatprep.subr.bf16.mxu0 0
      %2054 = vmatpush1.bf16.msra.mxu0 0
      %2055 = vmatprep.subr.bf16.mxu0 0
      %2056 = vmatpush1.bf16.msra.mxu0 0
      %2057 = vmatprep.subr.bf16.mxu0 0
      %2058 = vmatpush1.bf16.msra.mxu0 0
      %2059 = vmatprep.subr.bf16.mxu0 0
      %2060 = vmatpush1.bf16.msra.mxu0 0
      %2061 = vmatprep.subr.bf16.mxu0 0
      %2062 = vmatpush1.bf16.msra.mxu0 0
      %2063 = vmatprep.subr.bf16.mxu0 0
      %2064 = vmatpush1.bf16.msra.mxu0 0
      %2065 = vmatprep.subr.bf16.mxu0 0
      %2066 = vmatpush1.bf16.msra.mxu0 0
      %2067 = vmatprep.mubr.bf16.mxu0 0
      %2068 = vmatmul.mubr.bf16.gmra.mrb[0].mxu0 %v2030
      %v2069 = vpop.f32.mrb[0].mxu0
      %v2070 = vadd.f32 0.0, %v2069
      %v2071 = vpop.f32.mrb[0].mxu0
      %v2072 = vpop.f32.mrb[0].mxu0
      %v2073 = vpop.f32.mrb[0].mxu0
      %2074 = vdwg.mxu0
      %2075 = vrot.lane.b32.xlu0 %v1095, 32
      %v2076 = vpop.permute.xlu0 %2075
      %v2078 = vsel %vm1355, %v1352, 0
      %v2081 = vsel %vm1359, %v2076, 0
      %2083 = vmatprep.subr.bf16.mxu0 0
      %2084 = vmatpush1.bf16.msra.mxu0 %v2081
      %2085 = vmatprep.subr.bf16.mxu0 0
      %2086 = vmatpush1.bf16.msra.mxu0 0
      %2087 = vmatprep.subr.bf16.mxu0 0
      %2088 = vmatpush1.bf16.msra.mxu0 0
      %2089 = vmatprep.subr.bf16.mxu0 0
      %2090 = vmatpush1.bf16.msra.mxu0 0
      %2091 = vmatprep.subr.bf16.mxu0 0
      %2092 = vmatpush1.bf16.msra.mxu0 0
      %2093 = vmatprep.subr.bf16.mxu0 0
      %2094 = vmatpush1.bf16.msra.mxu0 0
      %2095 = vmatprep.subr.bf16.mxu0 0
      %2096 = vmatpush1.bf16.msra.mxu0 0
      %2097 = vmatprep.subr.bf16.mxu0 0
      %2098 = vmatpush1.bf16.msra.mxu0 0
      %2099 = vmatprep.subr.bf16.mxu0 0
      %2100 = vmatpush1.bf16.msra.mxu0 0
      %2101 = vmatprep.subr.bf16.mxu0 0
      %2102 = vmatpush1.bf16.msra.mxu0 0
      %2103 = vmatprep.subr.bf16.mxu0 0
      %2104 = vmatpush1.bf16.msra.mxu0 0
      %2105 = vmatprep.subr.bf16.mxu0 0
      %2106 = vmatpush1.bf16.msra.mxu0 0
      %2107 = vmatprep.subr.bf16.mxu0 0
      %2108 = vmatpush1.bf16.msra.mxu0 0
      %2109 = vmatprep.subr.bf16.mxu0 0
      %2110 = vmatpush1.bf16.msra.mxu0 0
      %2111 = vmatprep.subr.bf16.mxu0 0
      %2112 = vmatpush1.bf16.msra.mxu0 0
      %2113 = vmatprep.subr.bf16.mxu0 0
      %2114 = vmatpush1.bf16.msra.mxu0 0
      %2115 = vmatprep.mubr.bf16.mxu0 0
      %2116 = vmatmul.mubr.bf16.gmra.mrb[0].mxu0 %v2078
      %v2117 = vpop.f32.mrb[0].mxu0
      %v2118 = vadd.f32 0.0, %v2117
      %v2119 = vpop.f32.mrb[0].mxu0
      %v2120 = vpop.f32.mrb[0].mxu0
      %v2121 = vpop.f32.mrb[0].mxu0
      %2122 = vdwg.mxu0
      %2123 = vrot.lane.b32.xlu0 %v149, 116
      %v2124 = vpop.permute.xlu0 %2123
      %2125 = vrot.lane.b32.xlu0 %v149, 68
      %v2126 = vpop.permute.xlu0 %2125
      %v2128 = vsel %vm152, %v2124, 0
      %v2131 = vsel %vm152, %v2126, 0
      %2133 = vmatprep.subr.bf16.mxu0 0
      %2134 = vmatpush1.bf16.xpose.msra.mxu0 %v2131
      %2135 = vmatprep.subr.bf16.mxu0 0
      %2136 = vmatpush1.bf16.xpose.msra.mxu0 0
      %2137 = vmatprep.subr.bf16.mxu0 0
      %2138 = vmatpush1.bf16.xpose.msra.mxu0 0
      %2139 = vmatprep.subr.bf16.mxu0 0
      %2140 = vmatpush1.bf16.xpose.msra.mxu0 0
      %2141 = vmatprep.subr.bf16.mxu0 0
      %2142 = vmatpush1.bf16.xpose.msra.mxu0 0
      %2143 = vmatprep.subr.bf16.mxu0 0
      %2144 = vmatpush1.bf16.xpose.msra.mxu0 0
      %2145 = vmatprep.subr.bf16.mxu0 0
      %2146 = vmatpush1.bf16.xpose.msra.mxu0 0
      %2147 = vmatprep.subr.bf16.mxu0 0
      %2148 = vmatpush1.bf16.xpose.msra.mxu0 0
      %2149 = vmatprep.subr.bf16.mxu0 0
      %2150 = vmatpush1.bf16.xpose.msra.mxu0 0
      %2151 = vmatprep.subr.bf16.mxu0 0
      %2152 = vmatpush1.bf16.xpose.msra.mxu0 0
      %2153 = vmatprep.subr.bf16.mxu0 0
      %2154 = vmatpush1.bf16.xpose.msra.mxu0 0
      %2155 = vmatprep.subr.bf16.mxu0 0
      %2156 = vmatpush1.bf16.xpose.msra.mxu0 0
      %2157 = vmatprep.subr.bf16.mxu0 0
      %2158 = vmatpush1.bf16.xpose.msra.mxu0 0
      %2159 = vmatprep.subr.bf16.mxu0 0
      %2160 = vmatpush1.bf16.xpose.msra.mxu0 0
      %2161 = vmatprep.subr.bf16.mxu0 0
      %2162 = vmatpush1.bf16.xpose.msra.mxu0 0
      %2163 = vmatprep.subr.bf16.mxu0 0
      %2164 = vmatpush1.bf16.xpose.msra.mxu0 0
      %2165 = vmatprep.mubr.bf16.mxu0 0
      %2166 = vmatmul.mubr.bf16.gmra.mrb[0].mxu0 %v2128
      %v2167 = vpop.f32.mrb[0].mxu0
      %v2168 = vadd.f32 0.0, %v2167
      %v2169 = vpop.f32.mrb[0].mxu0
      %v2170 = vpop.f32.mrb[0].mxu0
      %v2171 = vpop.f32.mrb[0].mxu0
      %2172 = vdwg.mxu0
      %2173 = vrot.lane.b32.xlu0 %v213, 116
      %v2174 = vpop.permute.xlu0 %2173
      %2175 = vrot.lane.b32.xlu0 %v213, 68
      %v2176 = vpop.permute.xlu0 %2175
      %v2178 = vsel %vm152, %v2174, 0
      %v2181 = vsel %vm152, %v2176, 0
      %2183 = vmatprep.subr.bf16.mxu0 0
      %2184 = vmatpush1.bf16.xpose.msra.mxu0 %v2181
      %2185 = vmatprep.subr.bf16.mxu0 0
      %2186 = vmatpush1.bf16.xpose.msra.mxu0 0
      %2187 = vmatprep.subr.bf16.mxu0 0
      %2188 = vmatpush1.bf16.xpose.msra.mxu0 0
      %2189 = vmatprep.subr.bf16.mxu0 0
      %2190 = vmatpush1.bf16.xpose.msra.mxu0 0
      %2191 = vmatprep.subr.bf16.mxu0 0
      %2192 = vmatpush1.bf16.xpose.msra.mxu0 0
      %2193 = vmatprep.subr.bf16.mxu0 0
      %2194 = vmatpush1.bf16.xpose.msra.mxu0 0
      %2195 = vmatprep.subr.bf16.mxu0 0
      %2196 = vmatpush1.bf16.xpose.msra.mxu0 0
      %2197 = vmatprep.subr.bf16.mxu0 0
      %2198 = vmatpush1.bf16.xpose.msra.mxu0 0
      %2199 = vmatprep.subr.bf16.mxu0 0
      %2200 = vmatpush1.bf16.xpose.msra.mxu0 0
      %2201 = vmatprep.subr.bf16.mxu0 0
      %2202 = vmatpush1.bf16.xpose.msra.mxu0 0
      %2203 = vmatprep.subr.bf16.mxu0 0
      %2204 = vmatpush1.bf16.xpose.msra.mxu0 0
      %2205 = vmatprep.subr.bf16.mxu0 0
      %2206 = vmatpush1.bf16.xpose.msra.mxu0 0
      %2207 = vmatprep.subr.bf16.mxu0 0
      %2208 = vmatpush1.bf16.xpose.msra.mxu0 0
      %2209 = vmatprep.subr.bf16.mxu0 0
      %2210 = vmatpush1.bf16.xpose.msra.mxu0 0
      %2211 = vmatprep.subr.bf16.mxu0 0
      %2212 = vmatpush1.bf16.xpose.msra.mxu0 0
      %2213 = vmatprep.subr.bf16.mxu0 0
      %2214 = vmatpush1.bf16.xpose.msra.mxu0 0
      %2215 = vmatprep.mubr.bf16.mxu0 0
      %2216 = vmatmul.mubr.bf16.gmra.mrb[0].mxu0 %v2178
      %v2217 = vpop.f32.mrb[0].mxu0
      %v2218 = vadd.f32 0.0, %v2217
      %v2219 = vpop.f32.mrb[0].mxu0
      %v2220 = vpop.f32.mrb[0].mxu0
      %v2221 = vpop.f32.mrb[0].mxu0
      %2222 = vdwg.mxu0
      %2223 = vrot.lane.b32.xlu0 %v276, 116
      %v2224 = vpop.permute.xlu0 %2223
      %2225 = vrot.lane.b32.xlu0 %v276, 68
      %v2226 = vpop.permute.xlu0 %2225
      %v2228 = vsel %vm152, %v2224, 0
      %v2231 = vsel %vm152, %v2226, 0
      %2233 = vmatprep.subr.bf16.mxu0 0
      %2234 = vmatpush1.bf16.xpose.msra.mxu0 %v2231
      %2235 = vmatprep.subr.bf16.mxu0 0
      %2236 = vmatpush1.bf16.xpose.msra.mxu0 0
      %2237 = vmatprep.subr.bf16.mxu0 0
      %2238 = vmatpush1.bf16.xpose.msra.mxu0 0
      %2239 = vmatprep.subr.bf16.mxu0 0
      %2240 = vmatpush1.bf16.xpose.msra.mxu0 0
      %2241 = vmatprep.subr.bf16.mxu0 0
      %2242 = vmatpush1.bf16.xpose.msra.mxu0 0
      %2243 = vmatprep.subr.bf16.mxu0 0
      %2244 = vmatpush1.bf16.xpose.msra.mxu0 0
      %2245 = vmatprep.subr.bf16.mxu0 0
      %2246 = vmatpush1.bf16.xpose.msra.mxu0 0
      %2247 = vmatprep.subr.bf16.mxu0 0
      %2248 = vmatpush1.bf16.xpose.msra.mxu0 0
      %2249 = vmatprep.subr.bf16.mxu0 0
      %2250 = vmatpush1.bf16.xpose.msra.mxu0 0
      %2251 = vmatprep.subr.bf16.mxu0 0
      %2252 = vmatpush1.bf16.xpose.msra.mxu0 0
      %2253 = vmatprep.subr.bf16.mxu0 0
      %2254 = vmatpush1.bf16.xpose.msra.mxu0 0
      %2255 = vmatprep.subr.bf16.mxu0 0
      %2256 = vmatpush1.bf16.xpose.msra.mxu0 0
      %2257 = vmatprep.subr.bf16.mxu0 0
      %2258 = vmatpush1.bf16.xpose.msra.mxu0 0
      %2259 = vmatprep.subr.bf16.mxu0 0
      %2260 = vmatpush1.bf16.xpose.msra.mxu0 0
      %2261 = vmatprep.subr.bf16.mxu0 0
      %2262 = vmatpush1.bf16.xpose.msra.mxu0 0
      %2263 = vmatprep.subr.bf16.mxu0 0
      %2264 = vmatpush1.bf16.xpose.msra.mxu0 0
      %2265 = vmatprep.mubr.bf16.mxu0 0
      %2266 = vmatmul.mubr.bf16.gmra.mrb[0].mxu0 %v2228
      %v2267 = vpop.f32.mrb[0].mxu0
      %v2268 = vadd.f32 0.0, %v2267
      %v2269 = vpop.f32.mrb[0].mxu0
      %v2270 = vpop.f32.mrb[0].mxu0
      %v2271 = vpop.f32.mrb[0].mxu0
      %2272 = vdwg.mxu0
      %2273 = vrot.lane.b32.xlu0 %v339, 116
      %v2274 = vpop.permute.xlu0 %2273
      %2275 = vrot.lane.b32.xlu0 %v339, 68
      %v2276 = vpop.permute.xlu0 %2275
      %v2278 = vsel %vm152, %v2274, 0
      %v2281 = vsel %vm152, %v2276, 0
      %2283 = vmatprep.subr.bf16.mxu0 0
      %2284 = vmatpush1.bf16.xpose.msra.mxu0 %v2281
      %2285 = vmatprep.subr.bf16.mxu0 0
      %2286 = vmatpush1.bf16.xpose.msra.mxu0 0
      %2287 = vmatprep.subr.bf16.mxu0 0
      %2288 = vmatpush1.bf16.xpose.msra.mxu0 0
      %2289 = vmatprep.subr.bf16.mxu0 0
      %2290 = vmatpush1.bf16.xpose.msra.mxu0 0
      %2291 = vmatprep.subr.bf16.mxu0 0
      %2292 = vmatpush1.bf16.xpose.msra.mxu0 0
      %2293 = vmatprep.subr.bf16.mxu0 0
      %2294 = vmatpush1.bf16.xpose.msra.mxu0 0
      %2295 = vmatprep.subr.bf16.mxu0 0
      %2296 = vmatpush1.bf16.xpose.msra.mxu0 0
      %2297 = vmatprep.subr.bf16.mxu0 0
      %2298 = vmatpush1.bf16.xpose.msra.mxu0 0
      %2299 = vmatprep.subr.bf16.mxu0 0
      %2300 = vmatpush1.bf16.xpose.msra.mxu0 0
      %2301 = vmatprep.subr.bf16.mxu0 0
      %2302 = vmatpush1.bf16.xpose.msra.mxu0 0
      %2303 = vmatprep.subr.bf16.mxu0 0
      %2304 = vmatpush1.bf16.xpose.msra.mxu0 0
      %2305 = vmatprep.subr.bf16.mxu0 0
      %2306 = vmatpush1.bf16.xpose.msra.mxu0 0
      %2307 = vmatprep.subr.bf16.mxu0 0
      %2308 = vmatpush1.bf16.xpose.msra.mxu0 0
      %2309 = vmatprep.subr.bf16.mxu0 0
      %2310 = vmatpush1.bf16.xpose.msra.mxu0 0
      %2311 = vmatprep.subr.bf16.mxu0 0
      %2312 = vmatpush1.bf16.xpose.msra.mxu0 0
      %2313 = vmatprep.subr.bf16.mxu0 0
      %2314 = vmatpush1.bf16.xpose.msra.mxu0 0
      %2315 = vmatprep.mubr.bf16.mxu0 0
      %2316 = vmatmul.mubr.bf16.gmra.mrb[0].mxu0 %v2278
      %v2317 = vpop.f32.mrb[0].mxu0
      %v2318 = vadd.f32 0.0, %v2317
      %v2319 = vpop.f32.mrb[0].mxu0
      %v2320 = vpop.f32.mrb[0].mxu0
      %v2321 = vpop.f32.mrb[0].mxu0
      %2322 = vdwg.mxu0
      %2323 = vrot.lane.b32.xlu0 %v402, 116
      %v2324 = vpop.permute.xlu0 %2323
      %2325 = vrot.lane.b32.xlu0 %v402, 68
      %v2326 = vpop.permute.xlu0 %2325
      %v2328 = vsel %vm152, %v2324, 0
      %v2331 = vsel %vm152, %v2326, 0
      %2333 = vmatprep.subr.bf16.mxu0 0
      %2334 = vmatpush1.bf16.xpose.msra.mxu0 %v2331
      %2335 = vmatprep.subr.bf16.mxu0 0
      %2336 = vmatpush1.bf16.xpose.msra.mxu0 0
      %2337 = vmatprep.subr.bf16.mxu0 0
      %2338 = vmatpush1.bf16.xpose.msra.mxu0 0
      %2339 = vmatprep.subr.bf16.mxu0 0
      %2340 = vmatpush1.bf16.xpose.msra.mxu0 0
      %2341 = vmatprep.subr.bf16.mxu0 0
      %2342 = vmatpush1.bf16.xpose.msra.mxu0 0
      %2343 = vmatprep.subr.bf16.mxu0 0
      %2344 = vmatpush1.bf16.xpose.msra.mxu0 0
      %2345 = vmatprep.subr.bf16.mxu0 0
      %2346 = vmatpush1.bf16.xpose.msra.mxu0 0
      %2347 = vmatprep.subr.bf16.mxu0 0
      %2348 = vmatpush1.bf16.xpose.msra.mxu0 0
      %2349 = vmatprep.subr.bf16.mxu0 0
      %2350 = vmatpush1.bf16.xpose.msra.mxu0 0
      %2351 = vmatprep.subr.bf16.mxu0 0
      %2352 = vmatpush1.bf16.xpose.msra.mxu0 0
      %2353 = vmatprep.subr.bf16.mxu0 0
      %2354 = vmatpush1.bf16.xpose.msra.mxu0 0
      %2355 = vmatprep.subr.bf16.mxu0 0
      %2356 = vmatpush1.bf16.xpose.msra.mxu0 0
      %2357 = vmatprep.subr.bf16.mxu0 0
      %2358 = vmatpush1.bf16.xpose.msra.mxu0 0
      %2359 = vmatprep.subr.bf16.mxu0 0
      %2360 = vmatpush1.bf16.xpose.msra.mxu0 0
      %2361 = vmatprep.subr.bf16.mxu0 0
      %2362 = vmatpush1.bf16.xpose.msra.mxu0 0
      %2363 = vmatprep.subr.bf16.mxu0 0
      %2364 = vmatpush1.bf16.xpose.msra.mxu0 0
      %2365 = vmatprep.mubr.bf16.mxu0 0
      %2366 = vmatmul.mubr.bf16.gmra.mrb[0].mxu0 %v2328
      %v2367 = vpop.f32.mrb[0].mxu0
      %v2368 = vadd.f32 0.0, %v2367
      %v2369 = vpop.f32.mrb[0].mxu0
      %v2370 = vpop.f32.mrb[0].mxu0
      %v2371 = vpop.f32.mrb[0].mxu0
      %2372 = vdwg.mxu0
      %2373 = vrot.lane.b32.xlu0 %v465, 116
      %v2374 = vpop.permute.xlu0 %2373
      %2375 = vrot.lane.b32.xlu0 %v465, 68
      %v2376 = vpop.permute.xlu0 %2375
      %v2378 = vsel %vm152, %v2374, 0
      %v2381 = vsel %vm152, %v2376, 0
      %2383 = vmatprep.subr.bf16.mxu0 0
      %2384 = vmatpush1.bf16.xpose.msra.mxu0 %v2381
      %2385 = vmatprep.subr.bf16.mxu0 0
      %2386 = vmatpush1.bf16.xpose.msra.mxu0 0
      %2387 = vmatprep.subr.bf16.mxu0 0
      %2388 = vmatpush1.bf16.xpose.msra.mxu0 0
      %2389 = vmatprep.subr.bf16.mxu0 0
      %2390 = vmatpush1.bf16.xpose.msra.mxu0 0
      %2391 = vmatprep.subr.bf16.mxu0 0
      %2392 = vmatpush1.bf16.xpose.msra.mxu0 0
      %2393 = vmatprep.subr.bf16.mxu0 0
      %2394 = vmatpush1.bf16.xpose.msra.mxu0 0
      %2395 = vmatprep.subr.bf16.mxu0 0
      %2396 = vmatpush1.bf16.xpose.msra.mxu0 0
      %2397 = vmatprep.subr.bf16.mxu0 0
      %2398 = vmatpush1.bf16.xpose.msra.mxu0 0
      %2399 = vmatprep.subr.bf16.mxu0 0
      %2400 = vmatpush1.bf16.xpose.msra.mxu0 0
      %2401 = vmatprep.subr.bf16.mxu0 0
      %2402 = vmatpush1.bf16.xpose.msra.mxu0 0
      %2403 = vmatprep.subr.bf16.mxu0 0
      %2404 = vmatpush1.bf16.xpose.msra.mxu0 0
      %2405 = vmatprep.subr.bf16.mxu0 0
      %2406 = vmatpush1.bf16.xpose.msra.mxu0 0
      %2407 = vmatprep.subr.bf16.mxu0 0
      %2408 = vmatpush1.bf16.xpose.msra.mxu0 0
      %2409 = vmatprep.subr.bf16.mxu0 0
      %2410 = vmatpush1.bf16.xpose.msra.mxu0 0
      %2411 = vmatprep.subr.bf16.mxu0 0
      %2412 = vmatpush1.bf16.xpose.msra.mxu0 0
      %2413 = vmatprep.subr.bf16.mxu0 0
      %2414 = vmatpush1.bf16.xpose.msra.mxu0 0
      %2415 = vmatprep.mubr.bf16.mxu0 0
      %2416 = vmatmul.mubr.bf16.gmra.mrb[0].mxu0 %v2378
      %v2417 = vpop.f32.mrb[0].mxu0
      %v2418 = vadd.f32 0.0, %v2417
      %v2419 = vpop.f32.mrb[0].mxu0
      %v2420 = vpop.f32.mrb[0].mxu0
      %v2421 = vpop.f32.mrb[0].mxu0
      %2422 = vdwg.mxu0
      %2423 = vrot.lane.b32.xlu0 %v528, 116
      %v2424 = vpop.permute.xlu0 %2423
      %2425 = vrot.lane.b32.xlu0 %v528, 68
      %v2426 = vpop.permute.xlu0 %2425
      %v2428 = vsel %vm152, %v2424, 0
      %v2431 = vsel %vm152, %v2426, 0
      %2433 = vmatprep.subr.bf16.mxu0 0
      %2434 = vmatpush1.bf16.xpose.msra.mxu0 %v2431
      %2435 = vmatprep.subr.bf16.mxu0 0
      %2436 = vmatpush1.bf16.xpose.msra.mxu0 0
      %2437 = vmatprep.subr.bf16.mxu0 0
      %2438 = vmatpush1.bf16.xpose.msra.mxu0 0
      %2439 = vmatprep.subr.bf16.mxu0 0
      %2440 = vmatpush1.bf16.xpose.msra.mxu0 0
      %2441 = vmatprep.subr.bf16.mxu0 0
      %2442 = vmatpush1.bf16.xpose.msra.mxu0 0
      %2443 = vmatprep.subr.bf16.mxu0 0
      %2444 = vmatpush1.bf16.xpose.msra.mxu0 0
      %2445 = vmatprep.subr.bf16.mxu0 0
      %2446 = vmatpush1.bf16.xpose.msra.mxu0 0
      %2447 = vmatprep.subr.bf16.mxu0 0
      %2448 = vmatpush1.bf16.xpose.msra.mxu0 0
      %2449 = vmatprep.subr.bf16.mxu0 0
      %2450 = vmatpush1.bf16.xpose.msra.mxu0 0
      %2451 = vmatprep.subr.bf16.mxu0 0
      %2452 = vmatpush1.bf16.xpose.msra.mxu0 0
      %2453 = vmatprep.subr.bf16.mxu0 0
      %2454 = vmatpush1.bf16.xpose.msra.mxu0 0
      %2455 = vmatprep.subr.bf16.mxu0 0
      %2456 = vmatpush1.bf16.xpose.msra.mxu0 0
      %2457 = vmatprep.subr.bf16.mxu0 0
      %2458 = vmatpush1.bf16.xpose.msra.mxu0 0
      %2459 = vmatprep.subr.bf16.mxu0 0
      %2460 = vmatpush1.bf16.xpose.msra.mxu0 0
      %2461 = vmatprep.subr.bf16.mxu0 0
      %2462 = vmatpush1.bf16.xpose.msra.mxu0 0
      %2463 = vmatprep.subr.bf16.mxu0 0
      %2464 = vmatpush1.bf16.xpose.msra.mxu0 0
      %2465 = vmatprep.mubr.bf16.mxu0 0
      %2466 = vmatmul.mubr.bf16.gmra.mrb[0].mxu0 %v2428
      %v2467 = vpop.f32.mrb[0].mxu0
      %v2468 = vadd.f32 0.0, %v2467
      %v2469 = vpop.f32.mrb[0].mxu0
      %v2470 = vpop.f32.mrb[0].mxu0
      %v2471 = vpop.f32.mrb[0].mxu0
      %2472 = vdwg.mxu0
      %2473 = vrot.lane.b32.xlu0 %v591, 116
      %v2474 = vpop.permute.xlu0 %2473
      %2475 = vrot.lane.b32.xlu0 %v591, 68
      %v2476 = vpop.permute.xlu0 %2475
      %v2478 = vsel %vm152, %v2474, 0
      %v2481 = vsel %vm152, %v2476, 0
      %2483 = vmatprep.subr.bf16.mxu0 0
      %2484 = vmatpush1.bf16.xpose.msra.mxu0 %v2481
      %2485 = vmatprep.subr.bf16.mxu0 0
      %2486 = vmatpush1.bf16.xpose.msra.mxu0 0
      %2487 = vmatprep.subr.bf16.mxu0 0
      %2488 = vmatpush1.bf16.xpose.msra.mxu0 0
      %2489 = vmatprep.subr.bf16.mxu0 0
      %2490 = vmatpush1.bf16.xpose.msra.mxu0 0
      %2491 = vmatprep.subr.bf16.mxu0 0
      %2492 = vmatpush1.bf16.xpose.msra.mxu0 0
      %2493 = vmatprep.subr.bf16.mxu0 0
      %2494 = vmatpush1.bf16.xpose.msra.mxu0 0
      %2495 = vmatprep.subr.bf16.mxu0 0
      %2496 = vmatpush1.bf16.xpose.msra.mxu0 0
      %2497 = vmatprep.subr.bf16.mxu0 0
      %2498 = vmatpush1.bf16.xpose.msra.mxu0 0
      %2499 = vmatprep.subr.bf16.mxu0 0
      %2500 = vmatpush1.bf16.xpose.msra.mxu0 0
      %2501 = vmatprep.subr.bf16.mxu0 0
      %2502 = vmatpush1.bf16.xpose.msra.mxu0 0
      %2503 = vmatprep.subr.bf16.mxu0 0
      %2504 = vmatpush1.bf16.xpose.msra.mxu0 0
      %2505 = vmatprep.subr.bf16.mxu0 0
      %2506 = vmatpush1.bf16.xpose.msra.mxu0 0
      %2507 = vmatprep.subr.bf16.mxu0 0
      %2508 = vmatpush1.bf16.xpose.msra.mxu0 0
      %2509 = vmatprep.subr.bf16.mxu0 0
      %2510 = vmatpush1.bf16.xpose.msra.mxu0 0
      %2511 = vmatprep.subr.bf16.mxu0 0
      %2512 = vmatpush1.bf16.xpose.msra.mxu0 0
      %2513 = vmatprep.subr.bf16.mxu0 0
      %2514 = vmatpush1.bf16.xpose.msra.mxu0 0
      %2515 = vmatprep.mubr.bf16.mxu0 0
      %2516 = vmatmul.mubr.bf16.gmra.mrb[0].mxu0 %v2478
      %v2517 = vpop.f32.mrb[0].mxu0
      %v2518 = vadd.f32 0.0, %v2517
      %v2519 = vpop.f32.mrb[0].mxu0
      %v2520 = vpop.f32.mrb[0].mxu0
      %v2521 = vpop.f32.mrb[0].mxu0
      %2522 = vdwg.mxu0
      %2523 = vrot.lane.b32.xlu0 %v654, 116
      %v2524 = vpop.permute.xlu0 %2523
      %2525 = vrot.lane.b32.xlu0 %v654, 68
      %v2526 = vpop.permute.xlu0 %2525
      %v2528 = vsel %vm152, %v2524, 0
      %v2531 = vsel %vm152, %v2526, 0
      %2533 = vmatprep.subr.bf16.mxu0 0
      %2534 = vmatpush1.bf16.xpose.msra.mxu0 %v2531
      %2535 = vmatprep.subr.bf16.mxu0 0
      %2536 = vmatpush1.bf16.xpose.msra.mxu0 0
      %2537 = vmatprep.subr.bf16.mxu0 0
      %2538 = vmatpush1.bf16.xpose.msra.mxu0 0
      %2539 = vmatprep.subr.bf16.mxu0 0
      %2540 = vmatpush1.bf16.xpose.msra.mxu0 0
      %2541 = vmatprep.subr.bf16.mxu0 0
      %2542 = vmatpush1.bf16.xpose.msra.mxu0 0
      %2543 = vmatprep.subr.bf16.mxu0 0
      %2544 = vmatpush1.bf16.xpose.msra.mxu0 0
      %2545 = vmatprep.subr.bf16.mxu0 0
      %2546 = vmatpush1.bf16.xpose.msra.mxu0 0
      %2547 = vmatprep.subr.bf16.mxu0 0
      %2548 = vmatpush1.bf16.xpose.msra.mxu0 0
      %2549 = vmatprep.subr.bf16.mxu0 0
      %2550 = vmatpush1.bf16.xpose.msra.mxu0 0
      %2551 = vmatprep.subr.bf16.mxu0 0
      %2552 = vmatpush1.bf16.xpose.msra.mxu0 0
      %2553 = vmatprep.subr.bf16.mxu0 0
      %2554 = vmatpush1.bf16.xpose.msra.mxu0 0
      %2555 = vmatprep.subr.bf16.mxu0 0
      %2556 = vmatpush1.bf16.xpose.msra.mxu0 0
      %2557 = vmatprep.subr.bf16.mxu0 0
      %2558 = vmatpush1.bf16.xpose.msra.mxu0 0
      %2559 = vmatprep.subr.bf16.mxu0 0
      %2560 = vmatpush1.bf16.xpose.msra.mxu0 0
      %2561 = vmatprep.subr.bf16.mxu0 0
      %2562 = vmatpush1.bf16.xpose.msra.mxu0 0
      %2563 = vmatprep.subr.bf16.mxu0 0
      %2564 = vmatpush1.bf16.xpose.msra.mxu0 0
      %2565 = vmatprep.mubr.bf16.mxu0 0
      %2566 = vmatmul.mubr.bf16.gmra.mrb[0].mxu0 %v2528
      %v2567 = vpop.f32.mrb[0].mxu0
      %v2568 = vadd.f32 0.0, %v2567
      %v2569 = vpop.f32.mrb[0].mxu0
      %v2570 = vpop.f32.mrb[0].mxu0
      %v2571 = vpop.f32.mrb[0].mxu0
      %2572 = vdwg.mxu0
      %2573 = vrot.lane.b32.xlu0 %v717, 116
      %v2574 = vpop.permute.xlu0 %2573
      %2575 = vrot.lane.b32.xlu0 %v717, 68
      %v2576 = vpop.permute.xlu0 %2575
      %v2578 = vsel %vm152, %v2574, 0
      %v2581 = vsel %vm152, %v2576, 0
      %2583 = vmatprep.subr.bf16.mxu0 0
      %2584 = vmatpush1.bf16.xpose.msra.mxu0 %v2581
      %2585 = vmatprep.subr.bf16.mxu0 0
      %2586 = vmatpush1.bf16.xpose.msra.mxu0 0
      %2587 = vmatprep.subr.bf16.mxu0 0
      %2588 = vmatpush1.bf16.xpose.msra.mxu0 0
      %2589 = vmatprep.subr.bf16.mxu0 0
      %2590 = vmatpush1.bf16.xpose.msra.mxu0 0
      %2591 = vmatprep.subr.bf16.mxu0 0
      %2592 = vmatpush1.bf16.xpose.msra.mxu0 0
      %2593 = vmatprep.subr.bf16.mxu0 0
      %2594 = vmatpush1.bf16.xpose.msra.mxu0 0
      %2595 = vmatprep.subr.bf16.mxu0 0
      %2596 = vmatpush1.bf16.xpose.msra.mxu0 0
      %2597 = vmatprep.subr.bf16.mxu0 0
      %2598 = vmatpush1.bf16.xpose.msra.mxu0 0
      %2599 = vmatprep.subr.bf16.mxu0 0
      %2600 = vmatpush1.bf16.xpose.msra.mxu0 0
      %2601 = vmatprep.subr.bf16.mxu0 0
      %2602 = vmatpush1.bf16.xpose.msra.mxu0 0
      %2603 = vmatprep.subr.bf16.mxu0 0
      %2604 = vmatpush1.bf16.xpose.msra.mxu0 0
      %2605 = vmatprep.subr.bf16.mxu0 0
      %2606 = vmatpush1.bf16.xpose.msra.mxu0 0
      %2607 = vmatprep.subr.bf16.mxu0 0
      %2608 = vmatpush1.bf16.xpose.msra.mxu0 0
      %2609 = vmatprep.subr.bf16.mxu0 0
      %2610 = vmatpush1.bf16.xpose.msra.mxu0 0
      %2611 = vmatprep.subr.bf16.mxu0 0
      %2612 = vmatpush1.bf16.xpose.msra.mxu0 0
      %2613 = vmatprep.subr.bf16.mxu0 0
      %2614 = vmatpush1.bf16.xpose.msra.mxu0 0
      %2615 = vmatprep.mubr.bf16.mxu0 0
      %2616 = vmatmul.mubr.bf16.gmra.mrb[0].mxu0 %v2578
      %v2617 = vpop.f32.mrb[0].mxu0
      %v2618 = vadd.f32 0.0, %v2617
      %v2619 = vpop.f32.mrb[0].mxu0
      %v2620 = vpop.f32.mrb[0].mxu0
      %v2621 = vpop.f32.mrb[0].mxu0
      %2622 = vdwg.mxu0
      %2623 = vrot.lane.b32.xlu0 %v780, 116
      %v2624 = vpop.permute.xlu0 %2623
      %2625 = vrot.lane.b32.xlu0 %v780, 68
      %v2626 = vpop.permute.xlu0 %2625
      %v2628 = vsel %vm152, %v2624, 0
      %v2631 = vsel %vm152, %v2626, 0
      %2633 = vmatprep.subr.bf16.mxu0 0
      %2634 = vmatpush1.bf16.xpose.msra.mxu0 %v2631
      %2635 = vmatprep.subr.bf16.mxu0 0
      %2636 = vmatpush1.bf16.xpose.msra.mxu0 0
      %2637 = vmatprep.subr.bf16.mxu0 0
      %2638 = vmatpush1.bf16.xpose.msra.mxu0 0
      %2639 = vmatprep.subr.bf16.mxu0 0
      %2640 = vmatpush1.bf16.xpose.msra.mxu0 0
      %2641 = vmatprep.subr.bf16.mxu0 0
      %2642 = vmatpush1.bf16.xpose.msra.mxu0 0
      %2643 = vmatprep.subr.bf16.mxu0 0
      %2644 = vmatpush1.bf16.xpose.msra.mxu0 0
      %2645 = vmatprep.subr.bf16.mxu0 0
      %2646 = vmatpush1.bf16.xpose.msra.mxu0 0
      %2647 = vmatprep.subr.bf16.mxu0 0
      %2648 = vmatpush1.bf16.xpose.msra.mxu0 0
      %2649 = vmatprep.subr.bf16.mxu0 0
      %2650 = vmatpush1.bf16.xpose.msra.mxu0 0
      %2651 = vmatprep.subr.bf16.mxu0 0
      %2652 = vmatpush1.bf16.xpose.msra.mxu0 0
      %2653 = vmatprep.subr.bf16.mxu0 0
      %2654 = vmatpush1.bf16.xpose.msra.mxu0 0
      %2655 = vmatprep.subr.bf16.mxu0 0
      %2656 = vmatpush1.bf16.xpose.msra.mxu0 0
      %2657 = vmatprep.subr.bf16.mxu0 0
      %2658 = vmatpush1.bf16.xpose.msra.mxu0 0
      %2659 = vmatprep.subr.bf16.mxu0 0
      %2660 = vmatpush1.bf16.xpose.msra.mxu0 0
      %2661 = vmatprep.subr.bf16.mxu0 0
      %2662 = vmatpush1.bf16.xpose.msra.mxu0 0
      %2663 = vmatprep.subr.bf16.mxu0 0
      %2664 = vmatpush1.bf16.xpose.msra.mxu0 0
      %2665 = vmatprep.mubr.bf16.mxu0 0
      %2666 = vmatmul.mubr.bf16.gmra.mrb[0].mxu0 %v2628
      %v2667 = vpop.f32.mrb[0].mxu0
      %v2668 = vadd.f32 0.0, %v2667
      %v2669 = vpop.f32.mrb[0].mxu0
      %v2670 = vpop.f32.mrb[0].mxu0
      %v2671 = vpop.f32.mrb[0].mxu0
      %2672 = vdwg.mxu0
      %2673 = vrot.lane.b32.xlu0 %v843, 116
      %v2674 = vpop.permute.xlu0 %2673
      %2675 = vrot.lane.b32.xlu0 %v843, 68
      %v2676 = vpop.permute.xlu0 %2675
      %v2678 = vsel %vm152, %v2674, 0
      %v2681 = vsel %vm152, %v2676, 0
      %2683 = vmatprep.subr.bf16.mxu0 0
      %2684 = vmatpush1.bf16.xpose.msra.mxu0 %v2681
      %2685 = vmatprep.subr.bf16.mxu0 0
      %2686 = vmatpush1.bf16.xpose.msra.mxu0 0
      %2687 = vmatprep.subr.bf16.mxu0 0
      %2688 = vmatpush1.bf16.xpose.msra.mxu0 0
      %2689 = vmatprep.subr.bf16.mxu0 0
      %2690 = vmatpush1.bf16.xpose.msra.mxu0 0
      %2691 = vmatprep.subr.bf16.mxu0 0
      %2692 = vmatpush1.bf16.xpose.msra.mxu0 0
      %2693 = vmatprep.subr.bf16.mxu0 0
      %2694 = vmatpush1.bf16.xpose.msra.mxu0 0
      %2695 = vmatprep.subr.bf16.mxu0 0
      %2696 = vmatpush1.bf16.xpose.msra.mxu0 0
      %2697 = vmatprep.subr.bf16.mxu0 0
      %2698 = vmatpush1.bf16.xpose.msra.mxu0 0
      %2699 = vmatprep.subr.bf16.mxu0 0
      %2700 = vmatpush1.bf16.xpose.msra.mxu0 0
      %2701 = vmatprep.subr.bf16.mxu0 0
      %2702 = vmatpush1.bf16.xpose.msra.mxu0 0
      %2703 = vmatprep.subr.bf16.mxu0 0
      %2704 = vmatpush1.bf16.xpose.msra.mxu0 0
      %2705 = vmatprep.subr.bf16.mxu0 0
      %2706 = vmatpush1.bf16.xpose.msra.mxu0 0
      %2707 = vmatprep.subr.bf16.mxu0 0
      %2708 = vmatpush1.bf16.xpose.msra.mxu0 0
      %2709 = vmatprep.subr.bf16.mxu0 0
      %2710 = vmatpush1.bf16.xpose.msra.mxu0 0
      %2711 = vmatprep.subr.bf16.mxu0 0
      %2712 = vmatpush1.bf16.xpose.msra.mxu0 0
      %2713 = vmatprep.subr.bf16.mxu0 0
      %2714 = vmatpush1.bf16.xpose.msra.mxu0 0
      %2715 = vmatprep.mubr.bf16.mxu0 0
      %2716 = vmatmul.mubr.bf16.gmra.mrb[0].mxu0 %v2678
      %v2717 = vpop.f32.mrb[0].mxu0
      %v2718 = vadd.f32 0.0, %v2717
      %v2719 = vpop.f32.mrb[0].mxu0
      %v2720 = vpop.f32.mrb[0].mxu0
      %v2721 = vpop.f32.mrb[0].mxu0
      %2722 = vdwg.mxu0
      %2723 = vrot.lane.b32.xlu0 %v906, 116
      %v2724 = vpop.permute.xlu0 %2723
      %2725 = vrot.lane.b32.xlu0 %v906, 68
      %v2726 = vpop.permute.xlu0 %2725
      %v2728 = vsel %vm152, %v2724, 0
      %v2731 = vsel %vm152, %v2726, 0
      %2733 = vmatprep.subr.bf16.mxu0 0
      %2734 = vmatpush1.bf16.xpose.msra.mxu0 %v2731
      %2735 = vmatprep.subr.bf16.mxu0 0
      %2736 = vmatpush1.bf16.xpose.msra.mxu0 0
      %2737 = vmatprep.subr.bf16.mxu0 0
      %2738 = vmatpush1.bf16.xpose.msra.mxu0 0
      %2739 = vmatprep.subr.bf16.mxu0 0
      %2740 = vmatpush1.bf16.xpose.msra.mxu0 0
      %2741 = vmatprep.subr.bf16.mxu0 0
      %2742 = vmatpush1.bf16.xpose.msra.mxu0 0
      %2743 = vmatprep.subr.bf16.mxu0 0
      %2744 = vmatpush1.bf16.xpose.msra.mxu0 0
      %2745 = vmatprep.subr.bf16.mxu0 0
      %2746 = vmatpush1.bf16.xpose.msra.mxu0 0
      %2747 = vmatprep.subr.bf16.mxu0 0
      %2748 = vmatpush1.bf16.xpose.msra.mxu0 0
      %2749 = vmatprep.subr.bf16.mxu0 0
      %2750 = vmatpush1.bf16.xpose.msra.mxu0 0
      %2751 = vmatprep.subr.bf16.mxu0 0
      %2752 = vmatpush1.bf16.xpose.msra.mxu0 0
      %2753 = vmatprep.subr.bf16.mxu0 0
      %2754 = vmatpush1.bf16.xpose.msra.mxu0 0
      %2755 = vmatprep.subr.bf16.mxu0 0
      %2756 = vmatpush1.bf16.xpose.msra.mxu0 0
      %2757 = vmatprep.subr.bf16.mxu0 0
      %2758 = vmatpush1.bf16.xpose.msra.mxu0 0
      %2759 = vmatprep.subr.bf16.mxu0 0
      %2760 = vmatpush1.bf16.xpose.msra.mxu0 0
      %2761 = vmatprep.subr.bf16.mxu0 0
      %2762 = vmatpush1.bf16.xpose.msra.mxu0 0
      %2763 = vmatprep.subr.bf16.mxu0 0
      %2764 = vmatpush1.bf16.xpose.msra.mxu0 0
      %2765 = vmatprep.mubr.bf16.mxu0 0
      %2766 = vmatmul.mubr.bf16.gmra.mrb[0].mxu0 %v2728
      %v2767 = vpop.f32.mrb[0].mxu0
      %v2768 = vadd.f32 0.0, %v2767
      %v2769 = vpop.f32.mrb[0].mxu0
      %v2770 = vpop.f32.mrb[0].mxu0
      %v2771 = vpop.f32.mrb[0].mxu0
      %2772 = vdwg.mxu0
      %2773 = vrot.lane.b32.xlu0 %v969, 116
      %v2774 = vpop.permute.xlu0 %2773
      %2775 = vrot.lane.b32.xlu0 %v969, 68
      %v2776 = vpop.permute.xlu0 %2775
      %v2778 = vsel %vm152, %v2774, 0
      %v2781 = vsel %vm152, %v2776, 0
      %2783 = vmatprep.subr.bf16.mxu0 0
      %2784 = vmatpush1.bf16.xpose.msra.mxu0 %v2781
      %2785 = vmatprep.subr.bf16.mxu0 0
      %2786 = vmatpush1.bf16.xpose.msra.mxu0 0
      %2787 = vmatprep.subr.bf16.mxu0 0
      %2788 = vmatpush1.bf16.xpose.msra.mxu0 0
      %2789 = vmatprep.subr.bf16.mxu0 0
      %2790 = vmatpush1.bf16.xpose.msra.mxu0 0
      %2791 = vmatprep.subr.bf16.mxu0 0
      %2792 = vmatpush1.bf16.xpose.msra.mxu0 0
      %2793 = vmatprep.subr.bf16.mxu0 0
      %2794 = vmatpush1.bf16.xpose.msra.mxu0 0
      %2795 = vmatprep.subr.bf16.mxu0 0
      %2796 = vmatpush1.bf16.xpose.msra.mxu0 0
      %2797 = vmatprep.subr.bf16.mxu0 0
      %2798 = vmatpush1.bf16.xpose.msra.mxu0 0
      %2799 = vmatprep.subr.bf16.mxu0 0
      %2800 = vmatpush1.bf16.xpose.msra.mxu0 0
      %2801 = vmatprep.subr.bf16.mxu0 0
      %2802 = vmatpush1.bf16.xpose.msra.mxu0 0
      %2803 = vmatprep.subr.bf16.mxu0 0
      %2804 = vmatpush1.bf16.xpose.msra.mxu0 0
      %2805 = vmatprep.subr.bf16.mxu0 0
      %2806 = vmatpush1.bf16.xpose.msra.mxu0 0
      %2807 = vmatprep.subr.bf16.mxu0 0
      %2808 = vmatpush1.bf16.xpose.msra.mxu0 0
      %2809 = vmatprep.subr.bf16.mxu0 0
      %2810 = vmatpush1.bf16.xpose.msra.mxu0 0
      %2811 = vmatprep.subr.bf16.mxu0 0
      %2812 = vmatpush1.bf16.xpose.msra.mxu0 0
      %2813 = vmatprep.subr.bf16.mxu0 0
      %2814 = vmatpush1.bf16.xpose.msra.mxu0 0
      %2815 = vmatprep.mubr.bf16.mxu0 0
      %2816 = vmatmul.mubr.bf16.gmra.mrb[0].mxu0 %v2778
      %v2817 = vpop.f32.mrb[0].mxu0
      %v2818 = vadd.f32 0.0, %v2817
      %v2819 = vpop.f32.mrb[0].mxu0
      %v2820 = vpop.f32.mrb[0].mxu0
      %v2821 = vpop.f32.mrb[0].mxu0
      %2822 = vdwg.mxu0
      %2823 = vrot.lane.b32.xlu0 %v1032, 116
      %v2824 = vpop.permute.xlu0 %2823
      %2825 = vrot.lane.b32.xlu0 %v1032, 68
      %v2826 = vpop.permute.xlu0 %2825
      %v2828 = vsel %vm152, %v2824, 0
      %v2831 = vsel %vm152, %v2826, 0
      %2833 = vmatprep.subr.bf16.mxu0 0
      %2834 = vmatpush1.bf16.xpose.msra.mxu0 %v2831
      %2835 = vmatprep.subr.bf16.mxu0 0
      %2836 = vmatpush1.bf16.xpose.msra.mxu0 0
      %2837 = vmatprep.subr.bf16.mxu0 0
      %2838 = vmatpush1.bf16.xpose.msra.mxu0 0
      %2839 = vmatprep.subr.bf16.mxu0 0
      %2840 = vmatpush1.bf16.xpose.msra.mxu0 0
      %2841 = vmatprep.subr.bf16.mxu0 0
      %2842 = vmatpush1.bf16.xpose.msra.mxu0 0
      %2843 = vmatprep.subr.bf16.mxu0 0
      %2844 = vmatpush1.bf16.xpose.msra.mxu0 0
      %2845 = vmatprep.subr.bf16.mxu0 0
      %2846 = vmatpush1.bf16.xpose.msra.mxu0 0
      %2847 = vmatprep.subr.bf16.mxu0 0
      %2848 = vmatpush1.bf16.xpose.msra.mxu0 0
      %2849 = vmatprep.subr.bf16.mxu0 0
      %2850 = vmatpush1.bf16.xpose.msra.mxu0 0
      %2851 = vmatprep.subr.bf16.mxu0 0
      %2852 = vmatpush1.bf16.xpose.msra.mxu0 0
      %2853 = vmatprep.subr.bf16.mxu0 0
      %2854 = vmatpush1.bf16.xpose.msra.mxu0 0
      %2855 = vmatprep.subr.bf16.mxu0 0
      %2856 = vmatpush1.bf16.xpose.msra.mxu0 0
      %2857 = vmatprep.subr.bf16.mxu0 0
      %2858 = vmatpush1.bf16.xpose.msra.mxu0 0
      %2859 = vmatprep.subr.bf16.mxu0 0
      %2860 = vmatpush1.bf16.xpose.msra.mxu0 0
      %2861 = vmatprep.subr.bf16.mxu0 0
      %2862 = vmatpush1.bf16.xpose.msra.mxu0 0
      %2863 = vmatprep.subr.bf16.mxu0 0
      %2864 = vmatpush1.bf16.xpose.msra.mxu0 0
      %2865 = vmatprep.mubr.bf16.mxu0 0
      %2866 = vmatmul.mubr.bf16.gmra.mrb[0].mxu0 %v2828
      %v2867 = vpop.f32.mrb[0].mxu0
      %v2868 = vadd.f32 0.0, %v2867
      %v2869 = vpop.f32.mrb[0].mxu0
      %v2870 = vpop.f32.mrb[0].mxu0
      %v2871 = vpop.f32.mrb[0].mxu0
      %2872 = vdwg.mxu0
      %2873 = vrot.lane.b32.xlu0 %v1095, 116
      %v2874 = vpop.permute.xlu0 %2873
      %2875 = vrot.lane.b32.xlu0 %v1095, 68
      %v2876 = vpop.permute.xlu0 %2875
      %v2878 = vsel %vm152, %v2874, 0
      %v2881 = vsel %vm152, %v2876, 0
      %2883 = vmatprep.subr.bf16.mxu0 0
      %2884 = vmatpush1.bf16.xpose.msra.mxu0 %v2881
      %2885 = vmatprep.subr.bf16.mxu0 0
      %2886 = vmatpush1.bf16.xpose.msra.mxu0 0
      %2887 = vmatprep.subr.bf16.mxu0 0
      %2888 = vmatpush1.bf16.xpose.msra.mxu0 0
      %2889 = vmatprep.subr.bf16.mxu0 0
      %2890 = vmatpush1.bf16.xpose.msra.mxu0 0
      %2891 = vmatprep.subr.bf16.mxu0 0
      %2892 = vmatpush1.bf16.xpose.msra.mxu0 0
      %2893 = vmatprep.subr.bf16.mxu0 0
      %2894 = vmatpush1.bf16.xpose.msra.mxu0 0
      %2895 = vmatprep.subr.bf16.mxu0 0
      %2896 = vmatpush1.bf16.xpose.msra.mxu0 0
      %2897 = vmatprep.subr.bf16.mxu0 0
      %2898 = vmatpush1.bf16.xpose.msra.mxu0 0
      %2899 = vmatprep.subr.bf16.mxu0 0
      %2900 = vmatpush1.bf16.xpose.msra.mxu0 0
      %2901 = vmatprep.subr.bf16.mxu0 0
      %2902 = vmatpush1.bf16.xpose.msra.mxu0 0
      %2903 = vmatprep.subr.bf16.mxu0 0
      %2904 = vmatpush1.bf16.xpose.msra.mxu0 0
      %2905 = vmatprep.subr.bf16.mxu0 0
      %2906 = vmatpush1.bf16.xpose.msra.mxu0 0
      %2907 = vmatprep.subr.bf16.mxu0 0
      %2908 = vmatpush1.bf16.xpose.msra.mxu0 0
      %2909 = vmatprep.subr.bf16.mxu0 0
      %2910 = vmatpush1.bf16.xpose.msra.mxu0 0
      %2911 = vmatprep.subr.bf16.mxu0 0
      %2912 = vmatpush1.bf16.xpose.msra.mxu0 0
      %2913 = vmatprep.subr.bf16.mxu0 0
      %2914 = vmatpush1.bf16.xpose.msra.mxu0 0
      %2915 = vmatprep.mubr.bf16.mxu0 0
      %2916 = vmatmul.mubr.bf16.gmra.mrb[0].mxu0 %v2878
      %v2917 = vpop.f32.mrb[0].mxu0
      %v2918 = vadd.f32 0.0, %v2917
      %v2919 = vpop.f32.mrb[0].mxu0
      %v2920 = vpop.f32.mrb[0].mxu0
      %v2921 = vpop.f32.mrb[0].mxu0
      %2922 = vdwg.mxu0
      %v2923 = vmul.f32 %v2168, 0.28867513
      %v2924 = vmul.f32 %v2218, 0.28867513
      %v2925 = vmul.f32 %v2268, 0.28867513
      %v2926 = vmul.f32 %v2318, 0.28867513
      %v2927 = vmul.f32 %v2368, 0.28867513
      %v2928 = vmul.f32 %v2418, 0.28867513
      %v2929 = vmul.f32 %v2468, 0.28867513
      %v2930 = vmul.f32 %v2518, 0.28867513
      %v2931 = vmul.f32 %v2568, 0.28867513
      %v2932 = vmul.f32 %v2618, 0.28867513
      %v2933 = vmul.f32 %v2668, 0.28867513
      %v2934 = vmul.f32 %v2718, 0.28867513
      %v2935 = vmul.f32 %v2768, 0.28867513
      %v2936 = vmul.f32 %v2818, 0.28867513
      %v2937 = vmul.f32 %v2868, 0.28867513
      %v2938 = vmul.f32 %v2918, 0.28867513
      %v2939 = vsel %vm1160, %v2923, -inf
      %2940 = vmax.xlane.f32.xlu0 %v2939
      %v2941 = vpop.xlane.xlu0 %2940
      %v2942 = vsel %vm1160, %v2924, -inf
      %2943 = vmax.xlane.f32.xlu0 %v2942
      %v2944 = vpop.xlane.xlu0 %2943
      %v2945 = vsel %vm1160, %v2925, -inf
      %2946 = vmax.xlane.f32.xlu0 %v2945
      %v2947 = vpop.xlane.xlu0 %2946
      %v2948 = vsel %vm1160, %v2926, -inf
      %2949 = vmax.xlane.f32.xlu0 %v2948
      %v2950 = vpop.xlane.xlu0 %2949
      %v2951 = vsel %vm1160, %v2927, -inf
      %2952 = vmax.xlane.f32.xlu0 %v2951
      %v2953 = vpop.xlane.xlu0 %2952
      %v2954 = vsel %vm1160, %v2928, -inf
      %2955 = vmax.xlane.f32.xlu0 %v2954
      %v2956 = vpop.xlane.xlu0 %2955
      %v2957 = vsel %vm1160, %v2929, -inf
      %2958 = vmax.xlane.f32.xlu0 %v2957
      %v2959 = vpop.xlane.xlu0 %2958
      %v2960 = vsel %vm1160, %v2930, -inf
      %2961 = vmax.xlane.f32.xlu0 %v2960
      %v2962 = vpop.xlane.xlu0 %2961
      %v2963 = vsel %vm1160, %v2931, -inf
      %2964 = vmax.xlane.f32.xlu0 %v2963
      %v2965 = vpop.xlane.xlu0 %2964
      %v2966 = vsel %vm1160, %v2932, -inf
      %2967 = vmax.xlane.f32.xlu0 %v2966
      %v2968 = vpop.xlane.xlu0 %2967
      %v2969 = vsel %vm1160, %v2933, -inf
      %2970 = vmax.xlane.f32.xlu0 %v2969
      %v2971 = vpop.xlane.xlu0 %2970
      %v2972 = vsel %vm1160, %v2934, -inf
      %2973 = vmax.xlane.f32.xlu0 %v2972
      %v2974 = vpop.xlane.xlu0 %2973
      %v2975 = vsel %vm1160, %v2935, -inf
      %2976 = vmax.xlane.f32.xlu0 %v2975
      %v2977 = vpop.xlane.xlu0 %2976
      %v2978 = vsel %vm1160, %v2936, -inf
      %2979 = vmax.xlane.f32.xlu0 %v2978
      %v2980 = vpop.xlane.xlu0 %2979
      %v2981 = vsel %vm1160, %v2937, -inf
      %2982 = vmax.xlane.f32.xlu0 %v2981
      %v2983 = vpop.xlane.xlu0 %2982
      %v2984 = vsel %vm1160, %v2938, -inf
      %2985 = vmax.xlane.f32.xlu0 %v2984
      %v2986 = vpop.xlane.xlu0 %2985
      %v2987 = vsub.f32 %v2923, %v2941
      %v2988 = vsub.f32 %v2924, %v2944
      %v2989 = vsub.f32 %v2925, %v2947
      %v2990 = vsub.f32 %v2926, %v2950
      %v2991 = vsub.f32 %v2927, %v2953
      %v2992 = vsub.f32 %v2928, %v2956
      %v2993 = vsub.f32 %v2929, %v2959
      %v2994 = vsub.f32 %v2930, %v2962
      %v2995 = vsub.f32 %v2931, %v2965
      %v2996 = vsub.f32 %v2932, %v2968
      %v2997 = vsub.f32 %v2933, %v2971
      %v2998 = vsub.f32 %v2934, %v2974
      %v2999 = vsub.f32 %v2935, %v2977
      %v3000 = vsub.f32 %v2936, %v2980
      %v3001 = vsub.f32 %v2937, %v2983
      %v3002 = vsub.f32 %v2938, %v2986
      %v3003 = vmul.f32 %v2987, 1.442695
      %v3004 = vpow.pop %v3003
      %v3005 = vmul.f32 %v2988, 1.442695
      %v3006 = vpow.pop %v3005
      %v3007 = vmul.f32 %v2989, 1.442695
      %v3008 = vpow.pop %v3007
      %v3009 = vmul.f32 %v2990, 1.442695
      %v3010 = vpow.pop %v3009
      %v3011 = vmul.f32 %v2991, 1.442695
      %v3012 = vpow.pop %v3011
      %v3013 = vmul.f32 %v2992, 1.442695
      %v3014 = vpow.pop %v3013
      %v3015 = vmul.f32 %v2993, 1.442695
      %v3016 = vpow.pop %v3015
      %v3017 = vmul.f32 %v2994, 1.442695
      %v3018 = vpow.pop %v3017
      %v3019 = vmul.f32 %v2995, 1.442695
      %v3020 = vpow.pop %v3019
      %v3021 = vmul.f32 %v2996, 1.442695
      %v3022 = vpow.pop %v3021
      %v3023 = vmul.f32 %v2997, 1.442695
      %v3024 = vpow.pop %v3023
      %v3025 = vmul.f32 %v2998, 1.442695
      %v3026 = vpow.pop %v3025
      %v3027 = vmul.f32 %v2999, 1.442695
      %v3028 = vpow.pop %v3027
      %v3029 = vmul.f32 %v3000, 1.442695
      %v3030 = vpow.pop %v3029
      %v3031 = vmul.f32 %v3001, 1.442695
      %v3032 = vpow.pop %v3031
      %v3033 = vmul.f32 %v3002, 1.442695
      %v3034 = vpow.pop %v3033
      %v3035 = vsel %vm1160, %v3004, 0.0
      %3036 = vadd.xlane.f32.xlu0 %v3035
      %v3037 = vpop.xlane.xlu0 %3036
      %v3038 = vsel %vm1160, %v3006, 0.0
      %3039 = vadd.xlane.f32.xlu0 %v3038
      %v3040 = vpop.xlane.xlu0 %3039
      %v3041 = vsel %vm1160, %v3008, 0.0
      %3042 = vadd.xlane.f32.xlu0 %v3041
      %v3043 = vpop.xlane.xlu0 %3042
      %v3044 = vsel %vm1160, %v3010, 0.0
      %3045 = vadd.xlane.f32.xlu0 %v3044
      %v3046 = vpop.xlane.xlu0 %3045
      %v3047 = vsel %vm1160, %v3012, 0.0
      %3048 = vadd.xlane.f32.xlu0 %v3047
      %v3049 = vpop.xlane.xlu0 %3048
      %v3050 = vsel %vm1160, %v3014, 0.0
      %3051 = vadd.xlane.f32.xlu0 %v3050
      %v3052 = vpop.xlane.xlu0 %3051
      %v3053 = vsel %vm1160, %v3016, 0.0
      %3054 = vadd.xlane.f32.xlu0 %v3053
      %v3055 = vpop.xlane.xlu0 %3054
      %v3056 = vsel %vm1160, %v3018, 0.0
      %3057 = vadd.xlane.f32.xlu0 %v3056
      %v3058 = vpop.xlane.xlu0 %3057
      %v3059 = vsel %vm1160, %v3020, 0.0
      %3060 = vadd.xlane.f32.xlu0 %v3059
      %v3061 = vpop.xlane.xlu0 %3060
      %v3062 = vsel %vm1160, %v3022, 0.0
      %3063 = vadd.xlane.f32.xlu0 %v3062
      %v3064 = vpop.xlane.xlu0 %3063
      %v3065 = vsel %vm1160, %v3024, 0.0
      %3066 = vadd.xlane.f32.xlu0 %v3065
      %v3067 = vpop.xlane.xlu0 %3066
      %v3068 = vsel %vm1160, %v3026, 0.0
      %3069 = vadd.xlane.f32.xlu0 %v3068
      %v3070 = vpop.xlane.xlu0 %3069
      %v3071 = vsel %vm1160, %v3028, 0.0
      %3072 = vadd.xlane.f32.xlu0 %v3071
      %v3073 = vpop.xlane.xlu0 %3072
      %v3074 = vsel %vm1160, %v3030, 0.0
      %3075 = vadd.xlane.f32.xlu0 %v3074
      %v3076 = vpop.xlane.xlu0 %3075
      %v3077 = vsel %vm1160, %v3032, 0.0
      %3078 = vadd.xlane.f32.xlu0 %v3077
      %v3079 = vpop.xlane.xlu0 %3078
      %v3080 = vsel %vm1160, %v3034, 0.0
      %3081 = vadd.xlane.f32.xlu0 %v3080
      %v3082 = vpop.xlane.xlu0 %3081
      %v3083 = vrcp.pop %v3037
      %v3084 = vrcp.pop %v3040
      %v3085 = vrcp.pop %v3043
      %v3086 = vrcp.pop %v3046
      %v3087 = vrcp.pop %v3049
      %v3088 = vrcp.pop %v3052
      %v3089 = vrcp.pop %v3055
      %v3090 = vrcp.pop %v3058
      %v3091 = vrcp.pop %v3061
      %v3092 = vrcp.pop %v3064
      %v3093 = vrcp.pop %v3067
      %v3094 = vrcp.pop %v3070
      %v3095 = vrcp.pop %v3073
      %v3096 = vrcp.pop %v3076
      %v3097 = vrcp.pop %v3079
      %v3098 = vrcp.pop %v3082
      %v3099 = vmul.f32 %v3004, %v3083
      %v3100 = vmul.f32 %v3006, %v3084
      %v3101 = vmul.f32 %v3008, %v3085
      %v3102 = vmul.f32 %v3010, %v3086
      %v3103 = vmul.f32 %v3012, %v3087
      %v3104 = vmul.f32 %v3014, %v3088
      %v3105 = vmul.f32 %v3016, %v3089
      %v3106 = vmul.f32 %v3018, %v3090
      %v3107 = vmul.f32 %v3020, %v3091
      %v3108 = vmul.f32 %v3022, %v3092
      %v3109 = vmul.f32 %v3024, %v3093
      %v3110 = vmul.f32 %v3026, %v3094
      %v3111 = vmul.f32 %v3028, %v3095
      %v3112 = vmul.f32 %v3030, %v3096
      %v3113 = vmul.f32 %v3032, %v3097
      %v3114 = vmul.f32 %v3034, %v3098
      %v3115 = vpack.c.bf16 %v3099, %v3099
      %v3116 = vpack.c.bf16 %v3100, %v3100
      %v3117 = vpack.c.bf16 %v3101, %v3101
      %v3118 = vpack.c.bf16 %v3102, %v3102
      %v3119 = vpack.c.bf16 %v3103, %v3103
      %v3120 = vpack.c.bf16 %v3104, %v3104
      %v3121 = vpack.c.bf16 %v3105, %v3105
      %v3122 = vpack.c.bf16 %v3106, %v3106
      %v3123 = vpack.c.bf16 %v3107, %v3107
      %v3124 = vpack.c.bf16 %v3108, %v3108
      %v3125 = vpack.c.bf16 %v3109, %v3109
      %v3126 = vpack.c.bf16 %v3110, %v3110
      %v3127 = vpack.c.bf16 %v3111, %v3111
      %v3128 = vpack.c.bf16 %v3112, %v3112
      %v3129 = vpack.c.bf16 %v3113, %v3113
      %v3130 = vpack.c.bf16 %v3114, %v3114
      %3131 = vrot.lane.b32.xlu0 %v149, 20
      %v3132 = vpop.permute.xlu0 %3131
      %v3134 = vsel %vm1355, %v3115, 0
      %v3137 = vsel %vm1359, %v3132, 0
      %3139 = vmatprep.subr.bf16.mxu0 0
      %3140 = vmatpush1.bf16.msra.mxu0 %v3137
      %3141 = vmatprep.subr.bf16.mxu0 0
      %3142 = vmatpush1.bf16.msra.mxu0 0
      %3143 = vmatprep.subr.bf16.mxu0 0
      %3144 = vmatpush1.bf16.msra.mxu0 0
      %3145 = vmatprep.subr.bf16.mxu0 0
      %3146 = vmatpush1.bf16.msra.mxu0 0
      %3147 = vmatprep.subr.bf16.mxu0 0
      %3148 = vmatpush1.bf16.msra.mxu0 0
      %3149 = vmatprep.subr.bf16.mxu0 0
      %3150 = vmatpush1.bf16.msra.mxu0 0
      %3151 = vmatprep.subr.bf16.mxu0 0
      %3152 = vmatpush1.bf16.msra.mxu0 0
      %3153 = vmatprep.subr.bf16.mxu0 0
      %3154 = vmatpush1.bf16.msra.mxu0 0
      %3155 = vmatprep.subr.bf16.mxu0 0
      %3156 = vmatpush1.bf16.msra.mxu0 0
      %3157 = vmatprep.subr.bf16.mxu0 0
      %3158 = vmatpush1.bf16.msra.mxu0 0
      %3159 = vmatprep.subr.bf16.mxu0 0
      %3160 = vmatpush1.bf16.msra.mxu0 0
      %3161 = vmatprep.subr.bf16.mxu0 0
      %3162 = vmatpush1.bf16.msra.mxu0 0
      %3163 = vmatprep.subr.bf16.mxu0 0
      %3164 = vmatpush1.bf16.msra.mxu0 0
      %3165 = vmatprep.subr.bf16.mxu0 0
      %3166 = vmatpush1.bf16.msra.mxu0 0
      %3167 = vmatprep.subr.bf16.mxu0 0
      %3168 = vmatpush1.bf16.msra.mxu0 0
      %3169 = vmatprep.subr.bf16.mxu0 0
      %3170 = vmatpush1.bf16.msra.mxu0 0
      %3171 = vmatprep.mubr.bf16.mxu0 0
      %3172 = vmatmul.mubr.bf16.gmra.mrb[0].mxu0 %v3134
      %v3173 = vpop.f32.mrb[0].mxu0
      %v3174 = vadd.f32 0.0, %v3173
      %v3175 = vpop.f32.mrb[0].mxu0
      %v3176 = vpop.f32.mrb[0].mxu0
      %v3177 = vpop.f32.mrb[0].mxu0
      %3178 = vdwg.mxu0
      %3179 = vrot.lane.b32.xlu0 %v213, 20
      %v3180 = vpop.permute.xlu0 %3179
      %v3182 = vsel %vm1355, %v3116, 0
      %v3185 = vsel %vm1359, %v3180, 0
      %3187 = vmatprep.subr.bf16.mxu0 0
      %3188 = vmatpush1.bf16.msra.mxu0 %v3185
      %3189 = vmatprep.subr.bf16.mxu0 0
      %3190 = vmatpush1.bf16.msra.mxu0 0
      %3191 = vmatprep.subr.bf16.mxu0 0
      %3192 = vmatpush1.bf16.msra.mxu0 0
      %3193 = vmatprep.subr.bf16.mxu0 0
      %3194 = vmatpush1.bf16.msra.mxu0 0
      %3195 = vmatprep.subr.bf16.mxu0 0
      %3196 = vmatpush1.bf16.msra.mxu0 0
      %3197 = vmatprep.subr.bf16.mxu0 0
      %3198 = vmatpush1.bf16.msra.mxu0 0
      %3199 = vmatprep.subr.bf16.mxu0 0
      %3200 = vmatpush1.bf16.msra.mxu0 0
      %3201 = vmatprep.subr.bf16.mxu0 0
      %3202 = vmatpush1.bf16.msra.mxu0 0
      %3203 = vmatprep.subr.bf16.mxu0 0
      %3204 = vmatpush1.bf16.msra.mxu0 0
      %3205 = vmatprep.subr.bf16.mxu0 0
      %3206 = vmatpush1.bf16.msra.mxu0 0
      %3207 = vmatprep.subr.bf16.mxu0 0
      %3208 = vmatpush1.bf16.msra.mxu0 0
      %3209 = vmatprep.subr.bf16.mxu0 0
      %3210 = vmatpush1.bf16.msra.mxu0 0
      %3211 = vmatprep.subr.bf16.mxu0 0
      %3212 = vmatpush1.bf16.msra.mxu0 0
      %3213 = vmatprep.subr.bf16.mxu0 0
      %3214 = vmatpush1.bf16.msra.mxu0 0
      %3215 = vmatprep.subr.bf16.mxu0 0
      %3216 = vmatpush1.bf16.msra.mxu0 0
      %3217 = vmatprep.subr.bf16.mxu0 0
      %3218 = vmatpush1.bf16.msra.mxu0 0
      %3219 = vmatprep.mubr.bf16.mxu0 0
      %3220 = vmatmul.mubr.bf16.gmra.mrb[0].mxu0 %v3182
      %v3221 = vpop.f32.mrb[0].mxu0
      %v3222 = vadd.f32 0.0, %v3221
      %v3223 = vpop.f32.mrb[0].mxu0
      %v3224 = vpop.f32.mrb[0].mxu0
      %v3225 = vpop.f32.mrb[0].mxu0
      %3226 = vdwg.mxu0
      %3227 = vrot.lane.b32.xlu0 %v276, 20
      %v3228 = vpop.permute.xlu0 %3227
      %v3230 = vsel %vm1355, %v3117, 0
      %v3233 = vsel %vm1359, %v3228, 0
      %3235 = vmatprep.subr.bf16.mxu0 0
      %3236 = vmatpush1.bf16.msra.mxu0 %v3233
      %3237 = vmatprep.subr.bf16.mxu0 0
      %3238 = vmatpush1.bf16.msra.mxu0 0
      %3239 = vmatprep.subr.bf16.mxu0 0
      %3240 = vmatpush1.bf16.msra.mxu0 0
      %3241 = vmatprep.subr.bf16.mxu0 0
      %3242 = vmatpush1.bf16.msra.mxu0 0
      %3243 = vmatprep.subr.bf16.mxu0 0
      %3244 = vmatpush1.bf16.msra.mxu0 0
      %3245 = vmatprep.subr.bf16.mxu0 0
      %3246 = vmatpush1.bf16.msra.mxu0 0
      %3247 = vmatprep.subr.bf16.mxu0 0
      %3248 = vmatpush1.bf16.msra.mxu0 0
      %3249 = vmatprep.subr.bf16.mxu0 0
      %3250 = vmatpush1.bf16.msra.mxu0 0
      %3251 = vmatprep.subr.bf16.mxu0 0
      %3252 = vmatpush1.bf16.msra.mxu0 0
      %3253 = vmatprep.subr.bf16.mxu0 0
      %3254 = vmatpush1.bf16.msra.mxu0 0
      %3255 = vmatprep.subr.bf16.mxu0 0
      %3256 = vmatpush1.bf16.msra.mxu0 0
      %3257 = vmatprep.subr.bf16.mxu0 0
      %3258 = vmatpush1.bf16.msra.mxu0 0
      %3259 = vmatprep.subr.bf16.mxu0 0
      %3260 = vmatpush1.bf16.msra.mxu0 0
      %3261 = vmatprep.subr.bf16.mxu0 0
      %3262 = vmatpush1.bf16.msra.mxu0 0
      %3263 = vmatprep.subr.bf16.mxu0 0
      %3264 = vmatpush1.bf16.msra.mxu0 0
      %3265 = vmatprep.subr.bf16.mxu0 0
      %3266 = vmatpush1.bf16.msra.mxu0 0
      %3267 = vmatprep.mubr.bf16.mxu0 0
      %3268 = vmatmul.mubr.bf16.gmra.mrb[0].mxu0 %v3230
      %v3269 = vpop.f32.mrb[0].mxu0
      %v3270 = vadd.f32 0.0, %v3269
      %v3271 = vpop.f32.mrb[0].mxu0
      %v3272 = vpop.f32.mrb[0].mxu0
      %v3273 = vpop.f32.mrb[0].mxu0
      %3274 = vdwg.mxu0
      %3275 = vrot.lane.b32.xlu0 %v339, 20
      %v3276 = vpop.permute.xlu0 %3275
      %v3278 = vsel %vm1355, %v3118, 0
      %v3281 = vsel %vm1359, %v3276, 0
      %3283 = vmatprep.subr.bf16.mxu0 0
      %3284 = vmatpush1.bf16.msra.mxu0 %v3281
      %3285 = vmatprep.subr.bf16.mxu0 0
      %3286 = vmatpush1.bf16.msra.mxu0 0
      %3287 = vmatprep.subr.bf16.mxu0 0
      %3288 = vmatpush1.bf16.msra.mxu0 0
      %3289 = vmatprep.subr.bf16.mxu0 0
      %3290 = vmatpush1.bf16.msra.mxu0 0
      %3291 = vmatprep.subr.bf16.mxu0 0
      %3292 = vmatpush1.bf16.msra.mxu0 0
      %3293 = vmatprep.subr.bf16.mxu0 0
      %3294 = vmatpush1.bf16.msra.mxu0 0
      %3295 = vmatprep.subr.bf16.mxu0 0
      %3296 = vmatpush1.bf16.msra.mxu0 0
      %3297 = vmatprep.subr.bf16.mxu0 0
      %3298 = vmatpush1.bf16.msra.mxu0 0
      %3299 = vmatprep.subr.bf16.mxu0 0
      %3300 = vmatpush1.bf16.msra.mxu0 0
      %3301 = vmatprep.subr.bf16.mxu0 0
      %3302 = vmatpush1.bf16.msra.mxu0 0
      %3303 = vmatprep.subr.bf16.mxu0 0
      %3304 = vmatpush1.bf16.msra.mxu0 0
      %3305 = vmatprep.subr.bf16.mxu0 0
      %3306 = vmatpush1.bf16.msra.mxu0 0
      %3307 = vmatprep.subr.bf16.mxu0 0
      %3308 = vmatpush1.bf16.msra.mxu0 0
      %3309 = vmatprep.subr.bf16.mxu0 0
      %3310 = vmatpush1.bf16.msra.mxu0 0
      %3311 = vmatprep.subr.bf16.mxu0 0
      %3312 = vmatpush1.bf16.msra.mxu0 0
      %3313 = vmatprep.subr.bf16.mxu0 0
      %3314 = vmatpush1.bf16.msra.mxu0 0
      %3315 = vmatprep.mubr.bf16.mxu0 0
      %3316 = vmatmul.mubr.bf16.gmra.mrb[0].mxu0 %v3278
      %v3317 = vpop.f32.mrb[0].mxu0
      %v3318 = vadd.f32 0.0, %v3317
      %v3319 = vpop.f32.mrb[0].mxu0
      %v3320 = vpop.f32.mrb[0].mxu0
      %v3321 = vpop.f32.mrb[0].mxu0
      %3322 = vdwg.mxu0
      %3323 = vrot.lane.b32.xlu0 %v402, 20
      %v3324 = vpop.permute.xlu0 %3323
      %v3326 = vsel %vm1355, %v3119, 0
      %v3329 = vsel %vm1359, %v3324, 0
      %3331 = vmatprep.subr.bf16.mxu0 0
      %3332 = vmatpush1.bf16.msra.mxu0 %v3329
      %3333 = vmatprep.subr.bf16.mxu0 0
      %3334 = vmatpush1.bf16.msra.mxu0 0
      %3335 = vmatprep.subr.bf16.mxu0 0
      %3336 = vmatpush1.bf16.msra.mxu0 0
      %3337 = vmatprep.subr.bf16.mxu0 0
      %3338 = vmatpush1.bf16.msra.mxu0 0
      %3339 = vmatprep.subr.bf16.mxu0 0
      %3340 = vmatpush1.bf16.msra.mxu0 0
      %3341 = vmatprep.subr.bf16.mxu0 0
      %3342 = vmatpush1.bf16.msra.mxu0 0
      %3343 = vmatprep.subr.bf16.mxu0 0
      %3344 = vmatpush1.bf16.msra.mxu0 0
      %3345 = vmatprep.subr.bf16.mxu0 0
      %3346 = vmatpush1.bf16.msra.mxu0 0
      %3347 = vmatprep.subr.bf16.mxu0 0
      %3348 = vmatpush1.bf16.msra.mxu0 0
      %3349 = vmatprep.subr.bf16.mxu0 0
      %3350 = vmatpush1.bf16.msra.mxu0 0
      %3351 = vmatprep.subr.bf16.mxu0 0
      %3352 = vmatpush1.bf16.msra.mxu0 0
      %3353 = vmatprep.subr.bf16.mxu0 0
      %3354 = vmatpush1.bf16.msra.mxu0 0
      %3355 = vmatprep.subr.bf16.mxu0 0
      %3356 = vmatpush1.bf16.msra.mxu0 0
      %3357 = vmatprep.subr.bf16.mxu0 0
      %3358 = vmatpush1.bf16.msra.mxu0 0
      %3359 = vmatprep.subr.bf16.mxu0 0
      %3360 = vmatpush1.bf16.msra.mxu0 0
      %3361 = vmatprep.subr.bf16.mxu0 0
      %3362 = vmatpush1.bf16.msra.mxu0 0
      %3363 = vmatprep.mubr.bf16.mxu0 0
      %3364 = vmatmul.mubr.bf16.gmra.mrb[0].mxu0 %v3326
      %v3365 = vpop.f32.mrb[0].mxu0
      %v3366 = vadd.f32 0.0, %v3365
      %v3367 = vpop.f32.mrb[0].mxu0
      %v3368 = vpop.f32.mrb[0].mxu0
      %v3369 = vpop.f32.mrb[0].mxu0
      %3370 = vdwg.mxu0
      %3371 = vrot.lane.b32.xlu0 %v465, 20
      %v3372 = vpop.permute.xlu0 %3371
      %v3374 = vsel %vm1355, %v3120, 0
      %v3377 = vsel %vm1359, %v3372, 0
      %3379 = vmatprep.subr.bf16.mxu0 0
      %3380 = vmatpush1.bf16.msra.mxu0 %v3377
      %3381 = vmatprep.subr.bf16.mxu0 0
      %3382 = vmatpush1.bf16.msra.mxu0 0
      %3383 = vmatprep.subr.bf16.mxu0 0
      %3384 = vmatpush1.bf16.msra.mxu0 0
      %3385 = vmatprep.subr.bf16.mxu0 0
      %3386 = vmatpush1.bf16.msra.mxu0 0
      %3387 = vmatprep.subr.bf16.mxu0 0
      %3388 = vmatpush1.bf16.msra.mxu0 0
      %3389 = vmatprep.subr.bf16.mxu0 0
      %3390 = vmatpush1.bf16.msra.mxu0 0
      %3391 = vmatprep.subr.bf16.mxu0 0
      %3392 = vmatpush1.bf16.msra.mxu0 0
      %3393 = vmatprep.subr.bf16.mxu0 0
      %3394 = vmatpush1.bf16.msra.mxu0 0
      %3395 = vmatprep.subr.bf16.mxu0 0
      %3396 = vmatpush1.bf16.msra.mxu0 0
      %3397 = vmatprep.subr.bf16.mxu0 0
      %3398 = vmatpush1.bf16.msra.mxu0 0
      %3399 = vmatprep.subr.bf16.mxu0 0
      %3400 = vmatpush1.bf16.msra.mxu0 0
      %3401 = vmatprep.subr.bf16.mxu0 0
      %3402 = vmatpush1.bf16.msra.mxu0 0
      %3403 = vmatprep.subr.bf16.mxu0 0
      %3404 = vmatpush1.bf16.msra.mxu0 0
      %3405 = vmatprep.subr.bf16.mxu0 0
      %3406 = vmatpush1.bf16.msra.mxu0 0
      %3407 = vmatprep.subr.bf16.mxu0 0
      %3408 = vmatpush1.bf16.msra.mxu0 0
      %3409 = vmatprep.subr.bf16.mxu0 0
      %3410 = vmatpush1.bf16.msra.mxu0 0
      %3411 = vmatprep.mubr.bf16.mxu0 0
      %3412 = vmatmul.mubr.bf16.gmra.mrb[0].mxu0 %v3374
      %v3413 = vpop.f32.mrb[0].mxu0
      %v3414 = vadd.f32 0.0, %v3413
      %v3415 = vpop.f32.mrb[0].mxu0
      %v3416 = vpop.f32.mrb[0].mxu0
      %v3417 = vpop.f32.mrb[0].mxu0
      %3418 = vdwg.mxu0
      %3419 = vrot.lane.b32.xlu0 %v528, 20
      %v3420 = vpop.permute.xlu0 %3419
      %v3422 = vsel %vm1355, %v3121, 0
      %v3425 = vsel %vm1359, %v3420, 0
      %3427 = vmatprep.subr.bf16.mxu0 0
      %3428 = vmatpush1.bf16.msra.mxu0 %v3425
      %3429 = vmatprep.subr.bf16.mxu0 0
      %3430 = vmatpush1.bf16.msra.mxu0 0
      %3431 = vmatprep.subr.bf16.mxu0 0
      %3432 = vmatpush1.bf16.msra.mxu0 0
      %3433 = vmatprep.subr.bf16.mxu0 0
      %3434 = vmatpush1.bf16.msra.mxu0 0
      %3435 = vmatprep.subr.bf16.mxu0 0
      %3436 = vmatpush1.bf16.msra.mxu0 0
      %3437 = vmatprep.subr.bf16.mxu0 0
      %3438 = vmatpush1.bf16.msra.mxu0 0
      %3439 = vmatprep.subr.bf16.mxu0 0
      %3440 = vmatpush1.bf16.msra.mxu0 0
      %3441 = vmatprep.subr.bf16.mxu0 0
      %3442 = vmatpush1.bf16.msra.mxu0 0
      %3443 = vmatprep.subr.bf16.mxu0 0
      %3444 = vmatpush1.bf16.msra.mxu0 0
      %3445 = vmatprep.subr.bf16.mxu0 0
      %3446 = vmatpush1.bf16.msra.mxu0 0
      %3447 = vmatprep.subr.bf16.mxu0 0
      %3448 = vmatpush1.bf16.msra.mxu0 0
      %3449 = vmatprep.subr.bf16.mxu0 0
      %3450 = vmatpush1.bf16.msra.mxu0 0
      %3451 = vmatprep.subr.bf16.mxu0 0
      %3452 = vmatpush1.bf16.msra.mxu0 0
      %3453 = vmatprep.subr.bf16.mxu0 0
      %3454 = vmatpush1.bf16.msra.mxu0 0
      %3455 = vmatprep.subr.bf16.mxu0 0
      %3456 = vmatpush1.bf16.msra.mxu0 0
      %3457 = vmatprep.subr.bf16.mxu0 0
      %3458 = vmatpush1.bf16.msra.mxu0 0
      %3459 = vmatprep.mubr.bf16.mxu0 0
      %3460 = vmatmul.mubr.bf16.gmra.mrb[0].mxu0 %v3422
      %v3461 = vpop.f32.mrb[0].mxu0
      %v3462 = vadd.f32 0.0, %v3461
      %v3463 = vpop.f32.mrb[0].mxu0
      %v3464 = vpop.f32.mrb[0].mxu0
      %v3465 = vpop.f32.mrb[0].mxu0
      %3466 = vdwg.mxu0
      %3467 = vrot.lane.b32.xlu0 %v591, 20
      %v3468 = vpop.permute.xlu0 %3467
      %v3470 = vsel %vm1355, %v3122, 0
      %v3473 = vsel %vm1359, %v3468, 0
      %3475 = vmatprep.subr.bf16.mxu0 0
      %3476 = vmatpush1.bf16.msra.mxu0 %v3473
      %3477 = vmatprep.subr.bf16.mxu0 0
      %3478 = vmatpush1.bf16.msra.mxu0 0
      %3479 = vmatprep.subr.bf16.mxu0 0
      %3480 = vmatpush1.bf16.msra.mxu0 0
      %3481 = vmatprep.subr.bf16.mxu0 0
      %3482 = vmatpush1.bf16.msra.mxu0 0
      %3483 = vmatprep.subr.bf16.mxu0 0
      %3484 = vmatpush1.bf16.msra.mxu0 0
      %3485 = vmatprep.subr.bf16.mxu0 0
      %3486 = vmatpush1.bf16.msra.mxu0 0
      %3487 = vmatprep.subr.bf16.mxu0 0
      %3488 = vmatpush1.bf16.msra.mxu0 0
      %3489 = vmatprep.subr.bf16.mxu0 0
      %3490 = vmatpush1.bf16.msra.mxu0 0
      %3491 = vmatprep.subr.bf16.mxu0 0
      %3492 = vmatpush1.bf16.msra.mxu0 0
      %3493 = vmatprep.subr.bf16.mxu0 0
      %3494 = vmatpush1.bf16.msra.mxu0 0
      %3495 = vmatprep.subr.bf16.mxu0 0
      %3496 = vmatpush1.bf16.msra.mxu0 0
      %3497 = vmatprep.subr.bf16.mxu0 0
      %3498 = vmatpush1.bf16.msra.mxu0 0
      %3499 = vmatprep.subr.bf16.mxu0 0
      %3500 = vmatpush1.bf16.msra.mxu0 0
      %3501 = vmatprep.subr.bf16.mxu0 0
      %3502 = vmatpush1.bf16.msra.mxu0 0
      %3503 = vmatprep.subr.bf16.mxu0 0
      %3504 = vmatpush1.bf16.msra.mxu0 0
      %3505 = vmatprep.subr.bf16.mxu0 0
      %3506 = vmatpush1.bf16.msra.mxu0 0
      %3507 = vmatprep.mubr.bf16.mxu0 0
      %3508 = vmatmul.mubr.bf16.gmra.mrb[0].mxu0 %v3470
      %v3509 = vpop.f32.mrb[0].mxu0
      %v3510 = vadd.f32 0.0, %v3509
      %v3511 = vpop.f32.mrb[0].mxu0
      %v3512 = vpop.f32.mrb[0].mxu0
      %v3513 = vpop.f32.mrb[0].mxu0
      %3514 = vdwg.mxu0
      %3515 = vrot.lane.b32.xlu0 %v654, 20
      %v3516 = vpop.permute.xlu0 %3515
      %v3518 = vsel %vm1355, %v3123, 0
      %v3521 = vsel %vm1359, %v3516, 0
      %3523 = vmatprep.subr.bf16.mxu0 0
      %3524 = vmatpush1.bf16.msra.mxu0 %v3521
      %3525 = vmatprep.subr.bf16.mxu0 0
      %3526 = vmatpush1.bf16.msra.mxu0 0
      %3527 = vmatprep.subr.bf16.mxu0 0
      %3528 = vmatpush1.bf16.msra.mxu0 0
      %3529 = vmatprep.subr.bf16.mxu0 0
      %3530 = vmatpush1.bf16.msra.mxu0 0
      %3531 = vmatprep.subr.bf16.mxu0 0
      %3532 = vmatpush1.bf16.msra.mxu0 0
      %3533 = vmatprep.subr.bf16.mxu0 0
      %3534 = vmatpush1.bf16.msra.mxu0 0
      %3535 = vmatprep.subr.bf16.mxu0 0
      %3536 = vmatpush1.bf16.msra.mxu0 0
      %3537 = vmatprep.subr.bf16.mxu0 0
      %3538 = vmatpush1.bf16.msra.mxu0 0
      %3539 = vmatprep.subr.bf16.mxu0 0
      %3540 = vmatpush1.bf16.msra.mxu0 0
      %3541 = vmatprep.subr.bf16.mxu0 0
      %3542 = vmatpush1.bf16.msra.mxu0 0
      %3543 = vmatprep.subr.bf16.mxu0 0
      %3544 = vmatpush1.bf16.msra.mxu0 0
      %3545 = vmatprep.subr.bf16.mxu0 0
      %3546 = vmatpush1.bf16.msra.mxu0 0
      %3547 = vmatprep.subr.bf16.mxu0 0
      %3548 = vmatpush1.bf16.msra.mxu0 0
      %3549 = vmatprep.subr.bf16.mxu0 0
      %3550 = vmatpush1.bf16.msra.mxu0 0
      %3551 = vmatprep.subr.bf16.mxu0 0
      %3552 = vmatpush1.bf16.msra.mxu0 0
      %3553 = vmatprep.subr.bf16.mxu0 0
      %3554 = vmatpush1.bf16.msra.mxu0 0
      %3555 = vmatprep.mubr.bf16.mxu0 0
      %3556 = vmatmul.mubr.bf16.gmra.mrb[0].mxu0 %v3518
      %v3557 = vpop.f32.mrb[0].mxu0
      %v3558 = vadd.f32 0.0, %v3557
      %v3559 = vpop.f32.mrb[0].mxu0
      %v3560 = vpop.f32.mrb[0].mxu0
      %v3561 = vpop.f32.mrb[0].mxu0
      %3562 = vdwg.mxu0
      %3563 = vrot.lane.b32.xlu0 %v717, 20
      %v3564 = vpop.permute.xlu0 %3563
      %v3566 = vsel %vm1355, %v3124, 0
      %v3569 = vsel %vm1359, %v3564, 0
      %3571 = vmatprep.subr.bf16.mxu0 0
      %3572 = vmatpush1.bf16.msra.mxu0 %v3569
      %3573 = vmatprep.subr.bf16.mxu0 0
      %3574 = vmatpush1.bf16.msra.mxu0 0
      %3575 = vmatprep.subr.bf16.mxu0 0
      %3576 = vmatpush1.bf16.msra.mxu0 0
      %3577 = vmatprep.subr.bf16.mxu0 0
      %3578 = vmatpush1.bf16.msra.mxu0 0
      %3579 = vmatprep.subr.bf16.mxu0 0
      %3580 = vmatpush1.bf16.msra.mxu0 0
      %3581 = vmatprep.subr.bf16.mxu0 0
      %3582 = vmatpush1.bf16.msra.mxu0 0
      %3583 = vmatprep.subr.bf16.mxu0 0
      %3584 = vmatpush1.bf16.msra.mxu0 0
      %3585 = vmatprep.subr.bf16.mxu0 0
      %3586 = vmatpush1.bf16.msra.mxu0 0
      %3587 = vmatprep.subr.bf16.mxu0 0
      %3588 = vmatpush1.bf16.msra.mxu0 0
      %3589 = vmatprep.subr.bf16.mxu0 0
      %3590 = vmatpush1.bf16.msra.mxu0 0
      %3591 = vmatprep.subr.bf16.mxu0 0
      %3592 = vmatpush1.bf16.msra.mxu0 0
      %3593 = vmatprep.subr.bf16.mxu0 0
      %3594 = vmatpush1.bf16.msra.mxu0 0
      %3595 = vmatprep.subr.bf16.mxu0 0
      %3596 = vmatpush1.bf16.msra.mxu0 0
      %3597 = vmatprep.subr.bf16.mxu0 0
      %3598 = vmatpush1.bf16.msra.mxu0 0
      %3599 = vmatprep.subr.bf16.mxu0 0
      %3600 = vmatpush1.bf16.msra.mxu0 0
      %3601 = vmatprep.subr.bf16.mxu0 0
      %3602 = vmatpush1.bf16.msra.mxu0 0
      %3603 = vmatprep.mubr.bf16.mxu0 0
      %3604 = vmatmul.mubr.bf16.gmra.mrb[0].mxu0 %v3566
      %v3605 = vpop.f32.mrb[0].mxu0
      %v3606 = vadd.f32 0.0, %v3605
      %v3607 = vpop.f32.mrb[0].mxu0
      %v3608 = vpop.f32.mrb[0].mxu0
      %v3609 = vpop.f32.mrb[0].mxu0
      %3610 = vdwg.mxu0
      %3611 = vrot.lane.b32.xlu0 %v780, 20
      %v3612 = vpop.permute.xlu0 %3611
      %v3614 = vsel %vm1355, %v3125, 0
      %v3617 = vsel %vm1359, %v3612, 0
      %3619 = vmatprep.subr.bf16.mxu0 0
      %3620 = vmatpush1.bf16.msra.mxu0 %v3617
      %3621 = vmatprep.subr.bf16.mxu0 0
      %3622 = vmatpush1.bf16.msra.mxu0 0
      %3623 = vmatprep.subr.bf16.mxu0 0
      %3624 = vmatpush1.bf16.msra.mxu0 0
      %3625 = vmatprep.subr.bf16.mxu0 0
      %3626 = vmatpush1.bf16.msra.mxu0 0
      %3627 = vmatprep.subr.bf16.mxu0 0
      %3628 = vmatpush1.bf16.msra.mxu0 0
      %3629 = vmatprep.subr.bf16.mxu0 0
      %3630 = vmatpush1.bf16.msra.mxu0 0
      %3631 = vmatprep.subr.bf16.mxu0 0
      %3632 = vmatpush1.bf16.msra.mxu0 0
      %3633 = vmatprep.subr.bf16.mxu0 0
      %3634 = vmatpush1.bf16.msra.mxu0 0
      %3635 = vmatprep.subr.bf16.mxu0 0
      %3636 = vmatpush1.bf16.msra.mxu0 0
      %3637 = vmatprep.subr.bf16.mxu0 0
      %3638 = vmatpush1.bf16.msra.mxu0 0
      %3639 = vmatprep.subr.bf16.mxu0 0
      %3640 = vmatpush1.bf16.msra.mxu0 0
      %3641 = vmatprep.subr.bf16.mxu0 0
      %3642 = vmatpush1.bf16.msra.mxu0 0
      %3643 = vmatprep.subr.bf16.mxu0 0
      %3644 = vmatpush1.bf16.msra.mxu0 0
      %3645 = vmatprep.subr.bf16.mxu0 0
      %3646 = vmatpush1.bf16.msra.mxu0 0
      %3647 = vmatprep.subr.bf16.mxu0 0
      %3648 = vmatpush1.bf16.msra.mxu0 0
      %3649 = vmatprep.subr.bf16.mxu0 0
      %3650 = vmatpush1.bf16.msra.mxu0 0
      %3651 = vmatprep.mubr.bf16.mxu0 0
      %3652 = vmatmul.mubr.bf16.gmra.mrb[0].mxu0 %v3614
      %v3653 = vpop.f32.mrb[0].mxu0
      %v3654 = vadd.f32 0.0, %v3653
      %v3655 = vpop.f32.mrb[0].mxu0
      %v3656 = vpop.f32.mrb[0].mxu0
      %v3657 = vpop.f32.mrb[0].mxu0
      %3658 = vdwg.mxu0
      %3659 = vrot.lane.b32.xlu0 %v843, 20
      %v3660 = vpop.permute.xlu0 %3659
      %v3662 = vsel %vm1355, %v3126, 0
      %v3665 = vsel %vm1359, %v3660, 0
      %3667 = vmatprep.subr.bf16.mxu0 0
      %3668 = vmatpush1.bf16.msra.mxu0 %v3665
      %3669 = vmatprep.subr.bf16.mxu0 0
      %3670 = vmatpush1.bf16.msra.mxu0 0
      %3671 = vmatprep.subr.bf16.mxu0 0
      %3672 = vmatpush1.bf16.msra.mxu0 0
      %3673 = vmatprep.subr.bf16.mxu0 0
      %3674 = vmatpush1.bf16.msra.mxu0 0
      %3675 = vmatprep.subr.bf16.mxu0 0
      %3676 = vmatpush1.bf16.msra.mxu0 0
      %3677 = vmatprep.subr.bf16.mxu0 0
      %3678 = vmatpush1.bf16.msra.mxu0 0
      %3679 = vmatprep.subr.bf16.mxu0 0
      %3680 = vmatpush1.bf16.msra.mxu0 0
      %3681 = vmatprep.subr.bf16.mxu0 0
      %3682 = vmatpush1.bf16.msra.mxu0 0
      %3683 = vmatprep.subr.bf16.mxu0 0
      %3684 = vmatpush1.bf16.msra.mxu0 0
      %3685 = vmatprep.subr.bf16.mxu0 0
      %3686 = vmatpush1.bf16.msra.mxu0 0
      %3687 = vmatprep.subr.bf16.mxu0 0
      %3688 = vmatpush1.bf16.msra.mxu0 0
      %3689 = vmatprep.subr.bf16.mxu0 0
      %3690 = vmatpush1.bf16.msra.mxu0 0
      %3691 = vmatprep.subr.bf16.mxu0 0
      %3692 = vmatpush1.bf16.msra.mxu0 0
      %3693 = vmatprep.subr.bf16.mxu0 0
      %3694 = vmatpush1.bf16.msra.mxu0 0
      %3695 = vmatprep.subr.bf16.mxu0 0
      %3696 = vmatpush1.bf16.msra.mxu0 0
      %3697 = vmatprep.subr.bf16.mxu0 0
      %3698 = vmatpush1.bf16.msra.mxu0 0
      %3699 = vmatprep.mubr.bf16.mxu0 0
      %3700 = vmatmul.mubr.bf16.gmra.mrb[0].mxu0 %v3662
      %v3701 = vpop.f32.mrb[0].mxu0
      %v3702 = vadd.f32 0.0, %v3701
      %v3703 = vpop.f32.mrb[0].mxu0
      %v3704 = vpop.f32.mrb[0].mxu0
      %v3705 = vpop.f32.mrb[0].mxu0
      %3706 = vdwg.mxu0
      %3707 = vrot.lane.b32.xlu0 %v906, 20
      %v3708 = vpop.permute.xlu0 %3707
      %v3710 = vsel %vm1355, %v3127, 0
      %v3713 = vsel %vm1359, %v3708, 0
      %3715 = vmatprep.subr.bf16.mxu0 0
      %3716 = vmatpush1.bf16.msra.mxu0 %v3713
      %3717 = vmatprep.subr.bf16.mxu0 0
      %3718 = vmatpush1.bf16.msra.mxu0 0
      %3719 = vmatprep.subr.bf16.mxu0 0
      %3720 = vmatpush1.bf16.msra.mxu0 0
      %3721 = vmatprep.subr.bf16.mxu0 0
      %3722 = vmatpush1.bf16.msra.mxu0 0
      %3723 = vmatprep.subr.bf16.mxu0 0
      %3724 = vmatpush1.bf16.msra.mxu0 0
      %3725 = vmatprep.subr.bf16.mxu0 0
      %3726 = vmatpush1.bf16.msra.mxu0 0
      %3727 = vmatprep.subr.bf16.mxu0 0
      %3728 = vmatpush1.bf16.msra.mxu0 0
      %3729 = vmatprep.subr.bf16.mxu0 0
      %3730 = vmatpush1.bf16.msra.mxu0 0
      %3731 = vmatprep.subr.bf16.mxu0 0
      %3732 = vmatpush1.bf16.msra.mxu0 0
      %3733 = vmatprep.subr.bf16.mxu0 0
      %3734 = vmatpush1.bf16.msra.mxu0 0
      %3735 = vmatprep.subr.bf16.mxu0 0
      %3736 = vmatpush1.bf16.msra.mxu0 0
      %3737 = vmatprep.subr.bf16.mxu0 0
      %3738 = vmatpush1.bf16.msra.mxu0 0
      %3739 = vmatprep.subr.bf16.mxu0 0
      %3740 = vmatpush1.bf16.msra.mxu0 0
      %3741 = vmatprep.subr.bf16.mxu0 0
      %3742 = vmatpush1.bf16.msra.mxu0 0
      %3743 = vmatprep.subr.bf16.mxu0 0
      %3744 = vmatpush1.bf16.msra.mxu0 0
      %3745 = vmatprep.subr.bf16.mxu0 0
      %3746 = vmatpush1.bf16.msra.mxu0 0
      %3747 = vmatprep.mubr.bf16.mxu0 0
      %3748 = vmatmul.mubr.bf16.gmra.mrb[0].mxu0 %v3710
      %v3749 = vpop.f32.mrb[0].mxu0
      %v3750 = vadd.f32 0.0, %v3749
      %v3751 = vpop.f32.mrb[0].mxu0
      %v3752 = vpop.f32.mrb[0].mxu0
      %v3753 = vpop.f32.mrb[0].mxu0
      %3754 = vdwg.mxu0
      %3755 = vrot.lane.b32.xlu0 %v969, 20
      %v3756 = vpop.permute.xlu0 %3755
      %v3758 = vsel %vm1355, %v3128, 0
      %v3761 = vsel %vm1359, %v3756, 0
      %3763 = vmatprep.subr.bf16.mxu0 0
      %3764 = vmatpush1.bf16.msra.mxu0 %v3761
      %3765 = vmatprep.subr.bf16.mxu0 0
      %3766 = vmatpush1.bf16.msra.mxu0 0
      %3767 = vmatprep.subr.bf16.mxu0 0
      %3768 = vmatpush1.bf16.msra.mxu0 0
      %3769 = vmatprep.subr.bf16.mxu0 0
      %3770 = vmatpush1.bf16.msra.mxu0 0
      %3771 = vmatprep.subr.bf16.mxu0 0
      %3772 = vmatpush1.bf16.msra.mxu0 0
      %3773 = vmatprep.subr.bf16.mxu0 0
      %3774 = vmatpush1.bf16.msra.mxu0 0
      %3775 = vmatprep.subr.bf16.mxu0 0
      %3776 = vmatpush1.bf16.msra.mxu0 0
      %3777 = vmatprep.subr.bf16.mxu0 0
      %3778 = vmatpush1.bf16.msra.mxu0 0
      %3779 = vmatprep.subr.bf16.mxu0 0
      %3780 = vmatpush1.bf16.msra.mxu0 0
      %3781 = vmatprep.subr.bf16.mxu0 0
      %3782 = vmatpush1.bf16.msra.mxu0 0
      %3783 = vmatprep.subr.bf16.mxu0 0
      %3784 = vmatpush1.bf16.msra.mxu0 0
      %3785 = vmatprep.subr.bf16.mxu0 0
      %3786 = vmatpush1.bf16.msra.mxu0 0
      %3787 = vmatprep.subr.bf16.mxu0 0
      %3788 = vmatpush1.bf16.msra.mxu0 0
      %3789 = vmatprep.subr.bf16.mxu0 0
      %3790 = vmatpush1.bf16.msra.mxu0 0
      %3791 = vmatprep.subr.bf16.mxu0 0
      %3792 = vmatpush1.bf16.msra.mxu0 0
      %3793 = vmatprep.subr.bf16.mxu0 0
      %3794 = vmatpush1.bf16.msra.mxu0 0
      %3795 = vmatprep.mubr.bf16.mxu0 0
      %3796 = vmatmul.mubr.bf16.gmra.mrb[0].mxu0 %v3758
      %v3797 = vpop.f32.mrb[0].mxu0
      %v3798 = vadd.f32 0.0, %v3797
      %v3799 = vpop.f32.mrb[0].mxu0
      %v3800 = vpop.f32.mrb[0].mxu0
      %v3801 = vpop.f32.mrb[0].mxu0
      %3802 = vdwg.mxu0
      %3803 = vrot.lane.b32.xlu0 %v1032, 20
      %v3804 = vpop.permute.xlu0 %3803
      %v3806 = vsel %vm1355, %v3129, 0
      %v3809 = vsel %vm1359, %v3804, 0
      %3811 = vmatprep.subr.bf16.mxu0 0
      %3812 = vmatpush1.bf16.msra.mxu0 %v3809
      %3813 = vmatprep.subr.bf16.mxu0 0
      %3814 = vmatpush1.bf16.msra.mxu0 0
      %3815 = vmatprep.subr.bf16.mxu0 0
      %3816 = vmatpush1.bf16.msra.mxu0 0
      %3817 = vmatprep.subr.bf16.mxu0 0
      %3818 = vmatpush1.bf16.msra.mxu0 0
      %3819 = vmatprep.subr.bf16.mxu0 0
      %3820 = vmatpush1.bf16.msra.mxu0 0
      %3821 = vmatprep.subr.bf16.mxu0 0
      %3822 = vmatpush1.bf16.msra.mxu0 0
      %3823 = vmatprep.subr.bf16.mxu0 0
      %3824 = vmatpush1.bf16.msra.mxu0 0
      %3825 = vmatprep.subr.bf16.mxu0 0
      %3826 = vmatpush1.bf16.msra.mxu0 0
      %3827 = vmatprep.subr.bf16.mxu0 0
      %3828 = vmatpush1.bf16.msra.mxu0 0
      %3829 = vmatprep.subr.bf16.mxu0 0
      %3830 = vmatpush1.bf16.msra.mxu0 0
      %3831 = vmatprep.subr.bf16.mxu0 0
      %3832 = vmatpush1.bf16.msra.mxu0 0
      %3833 = vmatprep.subr.bf16.mxu0 0
      %3834 = vmatpush1.bf16.msra.mxu0 0
      %3835 = vmatprep.subr.bf16.mxu0 0
      %3836 = vmatpush1.bf16.msra.mxu0 0
      %3837 = vmatprep.subr.bf16.mxu0 0
      %3838 = vmatpush1.bf16.msra.mxu0 0
      %3839 = vmatprep.subr.bf16.mxu0 0
      %3840 = vmatpush1.bf16.msra.mxu0 0
      %3841 = vmatprep.subr.bf16.mxu0 0
      %3842 = vmatpush1.bf16.msra.mxu0 0
      %3843 = vmatprep.mubr.bf16.mxu0 0
      %3844 = vmatmul.mubr.bf16.gmra.mrb[0].mxu0 %v3806
      %v3845 = vpop.f32.mrb[0].mxu0
      %v3846 = vadd.f32 0.0, %v3845
      %v3847 = vpop.f32.mrb[0].mxu0
      %v3848 = vpop.f32.mrb[0].mxu0
      %v3849 = vpop.f32.mrb[0].mxu0
      %3850 = vdwg.mxu0
      %3851 = vrot.lane.b32.xlu0 %v1095, 20
      %v3852 = vpop.permute.xlu0 %3851
      %v3854 = vsel %vm1355, %v3130, 0
      %v3857 = vsel %vm1359, %v3852, 0
      %3859 = vmatprep.subr.bf16.mxu0 0
      %3860 = vmatpush1.bf16.msra.mxu0 %v3857
      %3861 = vmatprep.subr.bf16.mxu0 0
      %3862 = vmatpush1.bf16.msra.mxu0 0
      %3863 = vmatprep.subr.bf16.mxu0 0
      %3864 = vmatpush1.bf16.msra.mxu0 0
      %3865 = vmatprep.subr.bf16.mxu0 0
      %3866 = vmatpush1.bf16.msra.mxu0 0
      %3867 = vmatprep.subr.bf16.mxu0 0
      %3868 = vmatpush1.bf16.msra.mxu0 0
      %3869 = vmatprep.subr.bf16.mxu0 0
      %3870 = vmatpush1.bf16.msra.mxu0 0
      %3871 = vmatprep.subr.bf16.mxu0 0
      %3872 = vmatpush1.bf16.msra.mxu0 0
      %3873 = vmatprep.subr.bf16.mxu0 0
      %3874 = vmatpush1.bf16.msra.mxu0 0
      %3875 = vmatprep.subr.bf16.mxu0 0
      %3876 = vmatpush1.bf16.msra.mxu0 0
      %3877 = vmatprep.subr.bf16.mxu0 0
      %3878 = vmatpush1.bf16.msra.mxu0 0
      %3879 = vmatprep.subr.bf16.mxu0 0
      %3880 = vmatpush1.bf16.msra.mxu0 0
      %3881 = vmatprep.subr.bf16.mxu0 0
      %3882 = vmatpush1.bf16.msra.mxu0 0
      %3883 = vmatprep.subr.bf16.mxu0 0
      %3884 = vmatpush1.bf16.msra.mxu0 0
      %3885 = vmatprep.subr.bf16.mxu0 0
      %3886 = vmatpush1.bf16.msra.mxu0 0
      %3887 = vmatprep.subr.bf16.mxu0 0
      %3888 = vmatpush1.bf16.msra.mxu0 0
      %3889 = vmatprep.subr.bf16.mxu0 0
      %3890 = vmatpush1.bf16.msra.mxu0 0
      %3891 = vmatprep.mubr.bf16.mxu0 0
      %3892 = vmatmul.mubr.bf16.gmra.mrb[0].mxu0 %v3854
      %v3893 = vpop.f32.mrb[0].mxu0
      %v3894 = vadd.f32 0.0, %v3893
      %v3895 = vpop.f32.mrb[0].mxu0
      %v3896 = vpop.f32.mrb[0].mxu0
      %v3897 = vpop.f32.mrb[0].mxu0
      %3898 = vdwg.mxu0
      %3899 = vrot.lane.b32.xlu0 %v149, 104
      %v3900 = vpop.permute.xlu0 %3899
      %3901 = vrot.lane.b32.xlu0 %v149, 56
      %v3902 = vpop.permute.xlu0 %3901
      %v3904 = vsel %vm152, %v3900, 0
      %v3907 = vsel %vm152, %v3902, 0
      %3909 = vmatprep.subr.bf16.mxu0 0
      %3910 = vmatpush1.bf16.xpose.msra.mxu0 %v3907
      %3911 = vmatprep.subr.bf16.mxu0 0
      %3912 = vmatpush1.bf16.xpose.msra.mxu0 0
      %3913 = vmatprep.subr.bf16.mxu0 0
      %3914 = vmatpush1.bf16.xpose.msra.mxu0 0
      %3915 = vmatprep.subr.bf16.mxu0 0
      %3916 = vmatpush1.bf16.xpose.msra.mxu0 0
      %3917 = vmatprep.subr.bf16.mxu0 0
      %3918 = vmatpush1.bf16.xpose.msra.mxu0 0
      %3919 = vmatprep.subr.bf16.mxu0 0
      %3920 = vmatpush1.bf16.xpose.msra.mxu0 0
      %3921 = vmatprep.subr.bf16.mxu0 0
      %3922 = vmatpush1.bf16.xpose.msra.mxu0 0
      %3923 = vmatprep.subr.bf16.mxu0 0
      %3924 = vmatpush1.bf16.xpose.msra.mxu0 0
      %3925 = vmatprep.subr.bf16.mxu0 0
      %3926 = vmatpush1.bf16.xpose.msra.mxu0 0
      %3927 = vmatprep.subr.bf16.mxu0 0
      %3928 = vmatpush1.bf16.xpose.msra.mxu0 0
      %3929 = vmatprep.subr.bf16.mxu0 0
      %3930 = vmatpush1.bf16.xpose.msra.mxu0 0
      %3931 = vmatprep.subr.bf16.mxu0 0
      %3932 = vmatpush1.bf16.xpose.msra.mxu0 0
      %3933 = vmatprep.subr.bf16.mxu0 0
      %3934 = vmatpush1.bf16.xpose.msra.mxu0 0
      %3935 = vmatprep.subr.bf16.mxu0 0
      %3936 = vmatpush1.bf16.xpose.msra.mxu0 0
      %3937 = vmatprep.subr.bf16.mxu0 0
      %3938 = vmatpush1.bf16.xpose.msra.mxu0 0
      %3939 = vmatprep.subr.bf16.mxu0 0
      %3940 = vmatpush1.bf16.xpose.msra.mxu0 0
      %3941 = vmatprep.mubr.bf16.mxu0 0
      %3942 = vmatmul.mubr.bf16.gmra.mrb[0].mxu0 %v3904
      %v3943 = vpop.f32.mrb[0].mxu0
      %v3944 = vadd.f32 0.0, %v3943
      %v3945 = vpop.f32.mrb[0].mxu0
      %v3946 = vpop.f32.mrb[0].mxu0
      %v3947 = vpop.f32.mrb[0].mxu0
      %3948 = vdwg.mxu0
      %3949 = vrot.lane.b32.xlu0 %v213, 104
      %v3950 = vpop.permute.xlu0 %3949
      %3951 = vrot.lane.b32.xlu0 %v213, 56
      %v3952 = vpop.permute.xlu0 %3951
      %v3954 = vsel %vm152, %v3950, 0
      %v3957 = vsel %vm152, %v3952, 0
      %3959 = vmatprep.subr.bf16.mxu0 0
      %3960 = vmatpush1.bf16.xpose.msra.mxu0 %v3957
      %3961 = vmatprep.subr.bf16.mxu0 0
      %3962 = vmatpush1.bf16.xpose.msra.mxu0 0
      %3963 = vmatprep.subr.bf16.mxu0 0
      %3964 = vmatpush1.bf16.xpose.msra.mxu0 0
      %3965 = vmatprep.subr.bf16.mxu0 0
      %3966 = vmatpush1.bf16.xpose.msra.mxu0 0
      %3967 = vmatprep.subr.bf16.mxu0 0
      %3968 = vmatpush1.bf16.xpose.msra.mxu0 0
      %3969 = vmatprep.subr.bf16.mxu0 0
      %3970 = vmatpush1.bf16.xpose.msra.mxu0 0
      %3971 = vmatprep.subr.bf16.mxu0 0
      %3972 = vmatpush1.bf16.xpose.msra.mxu0 0
      %3973 = vmatprep.subr.bf16.mxu0 0
      %3974 = vmatpush1.bf16.xpose.msra.mxu0 0
      %3975 = vmatprep.subr.bf16.mxu0 0
      %3976 = vmatpush1.bf16.xpose.msra.mxu0 0
      %3977 = vmatprep.subr.bf16.mxu0 0
      %3978 = vmatpush1.bf16.xpose.msra.mxu0 0
      %3979 = vmatprep.subr.bf16.mxu0 0
      %3980 = vmatpush1.bf16.xpose.msra.mxu0 0
      %3981 = vmatprep.subr.bf16.mxu0 0
      %3982 = vmatpush1.bf16.xpose.msra.mxu0 0
      %3983 = vmatprep.subr.bf16.mxu0 0
      %3984 = vmatpush1.bf16.xpose.msra.mxu0 0
      %3985 = vmatprep.subr.bf16.mxu0 0
      %3986 = vmatpush1.bf16.xpose.msra.mxu0 0
      %3987 = vmatprep.subr.bf16.mxu0 0
      %3988 = vmatpush1.bf16.xpose.msra.mxu0 0
      %3989 = vmatprep.subr.bf16.mxu0 0
      %3990 = vmatpush1.bf16.xpose.msra.mxu0 0
      %3991 = vmatprep.mubr.bf16.mxu0 0
      %3992 = vmatmul.mubr.bf16.gmra.mrb[0].mxu0 %v3954
      %v3993 = vpop.f32.mrb[0].mxu0
      %v3994 = vadd.f32 0.0, %v3993
      %v3995 = vpop.f32.mrb[0].mxu0
      %v3996 = vpop.f32.mrb[0].mxu0
      %v3997 = vpop.f32.mrb[0].mxu0
      %3998 = vdwg.mxu0
      %3999 = vrot.lane.b32.xlu0 %v276, 104
      %v4000 = vpop.permute.xlu0 %3999
      %4001 = vrot.lane.b32.xlu0 %v276, 56
      %v4002 = vpop.permute.xlu0 %4001
      %v4004 = vsel %vm152, %v4000, 0
      %v4007 = vsel %vm152, %v4002, 0
      %4009 = vmatprep.subr.bf16.mxu0 0
      %4010 = vmatpush1.bf16.xpose.msra.mxu0 %v4007
      %4011 = vmatprep.subr.bf16.mxu0 0
      %4012 = vmatpush1.bf16.xpose.msra.mxu0 0
      %4013 = vmatprep.subr.bf16.mxu0 0
      %4014 = vmatpush1.bf16.xpose.msra.mxu0 0
      %4015 = vmatprep.subr.bf16.mxu0 0
      %4016 = vmatpush1.bf16.xpose.msra.mxu0 0
      %4017 = vmatprep.subr.bf16.mxu0 0
      %4018 = vmatpush1.bf16.xpose.msra.mxu0 0
      %4019 = vmatprep.subr.bf16.mxu0 0
      %4020 = vmatpush1.bf16.xpose.msra.mxu0 0
      %4021 = vmatprep.subr.bf16.mxu0 0
      %4022 = vmatpush1.bf16.xpose.msra.mxu0 0
      %4023 = vmatprep.subr.bf16.mxu0 0
      %4024 = vmatpush1.bf16.xpose.msra.mxu0 0
      %4025 = vmatprep.subr.bf16.mxu0 0
      %4026 = vmatpush1.bf16.xpose.msra.mxu0 0
      %4027 = vmatprep.subr.bf16.mxu0 0
      %4028 = vmatpush1.bf16.xpose.msra.mxu0 0
      %4029 = vmatprep.subr.bf16.mxu0 0
      %4030 = vmatpush1.bf16.xpose.msra.mxu0 0
      %4031 = vmatprep.subr.bf16.mxu0 0
      %4032 = vmatpush1.bf16.xpose.msra.mxu0 0
      %4033 = vmatprep.subr.bf16.mxu0 0
      %4034 = vmatpush1.bf16.xpose.msra.mxu0 0
      %4035 = vmatprep.subr.bf16.mxu0 0
      %4036 = vmatpush1.bf16.xpose.msra.mxu0 0
      %4037 = vmatprep.subr.bf16.mxu0 0
      %4038 = vmatpush1.bf16.xpose.msra.mxu0 0
      %4039 = vmatprep.subr.bf16.mxu0 0
      %4040 = vmatpush1.bf16.xpose.msra.mxu0 0
      %4041 = vmatprep.mubr.bf16.mxu0 0
      %4042 = vmatmul.mubr.bf16.gmra.mrb[0].mxu0 %v4004
      %v4043 = vpop.f32.mrb[0].mxu0
      %v4044 = vadd.f32 0.0, %v4043
      %v4045 = vpop.f32.mrb[0].mxu0
      %v4046 = vpop.f32.mrb[0].mxu0
      %v4047 = vpop.f32.mrb[0].mxu0
      %4048 = vdwg.mxu0
      %4049 = vrot.lane.b32.xlu0 %v339, 104
      %v4050 = vpop.permute.xlu0 %4049
      %4051 = vrot.lane.b32.xlu0 %v339, 56
      %v4052 = vpop.permute.xlu0 %4051
      %v4054 = vsel %vm152, %v4050, 0
      %v4057 = vsel %vm152, %v4052, 0
      %4059 = vmatprep.subr.bf16.mxu0 0
      %4060 = vmatpush1.bf16.xpose.msra.mxu0 %v4057
      %4061 = vmatprep.subr.bf16.mxu0 0
      %4062 = vmatpush1.bf16.xpose.msra.mxu0 0
      %4063 = vmatprep.subr.bf16.mxu0 0
      %4064 = vmatpush1.bf16.xpose.msra.mxu0 0
      %4065 = vmatprep.subr.bf16.mxu0 0
      %4066 = vmatpush1.bf16.xpose.msra.mxu0 0
      %4067 = vmatprep.subr.bf16.mxu0 0
      %4068 = vmatpush1.bf16.xpose.msra.mxu0 0
      %4069 = vmatprep.subr.bf16.mxu0 0
      %4070 = vmatpush1.bf16.xpose.msra.mxu0 0
      %4071 = vmatprep.subr.bf16.mxu0 0
      %4072 = vmatpush1.bf16.xpose.msra.mxu0 0
      %4073 = vmatprep.subr.bf16.mxu0 0
      %4074 = vmatpush1.bf16.xpose.msra.mxu0 0
      %4075 = vmatprep.subr.bf16.mxu0 0
      %4076 = vmatpush1.bf16.xpose.msra.mxu0 0
      %4077 = vmatprep.subr.bf16.mxu0 0
      %4078 = vmatpush1.bf16.xpose.msra.mxu0 0
      %4079 = vmatprep.subr.bf16.mxu0 0
      %4080 = vmatpush1.bf16.xpose.msra.mxu0 0
      %4081 = vmatprep.subr.bf16.mxu0 0
      %4082 = vmatpush1.bf16.xpose.msra.mxu0 0
      %4083 = vmatprep.subr.bf16.mxu0 0
      %4084 = vmatpush1.bf16.xpose.msra.mxu0 0
      %4085 = vmatprep.subr.bf16.mxu0 0
      %4086 = vmatpush1.bf16.xpose.msra.mxu0 0
      %4087 = vmatprep.subr.bf16.mxu0 0
      %4088 = vmatpush1.bf16.xpose.msra.mxu0 0
      %4089 = vmatprep.subr.bf16.mxu0 0
      %4090 = vmatpush1.bf16.xpose.msra.mxu0 0
      %4091 = vmatprep.mubr.bf16.mxu0 0
      %4092 = vmatmul.mubr.bf16.gmra.mrb[0].mxu0 %v4054
      %v4093 = vpop.f32.mrb[0].mxu0
      %v4094 = vadd.f32 0.0, %v4093
      %v4095 = vpop.f32.mrb[0].mxu0
      %v4096 = vpop.f32.mrb[0].mxu0
      %v4097 = vpop.f32.mrb[0].mxu0
      %4098 = vdwg.mxu0
      %4099 = vrot.lane.b32.xlu0 %v402, 104
      %v4100 = vpop.permute.xlu0 %4099
      %4101 = vrot.lane.b32.xlu0 %v402, 56
      %v4102 = vpop.permute.xlu0 %4101
      %v4104 = vsel %vm152, %v4100, 0
      %v4107 = vsel %vm152, %v4102, 0
      %4109 = vmatprep.subr.bf16.mxu0 0
      %4110 = vmatpush1.bf16.xpose.msra.mxu0 %v4107
      %4111 = vmatprep.subr.bf16.mxu0 0
      %4112 = vmatpush1.bf16.xpose.msra.mxu0 0
      %4113 = vmatprep.subr.bf16.mxu0 0
      %4114 = vmatpush1.bf16.xpose.msra.mxu0 0
      %4115 = vmatprep.subr.bf16.mxu0 0
      %4116 = vmatpush1.bf16.xpose.msra.mxu0 0
      %4117 = vmatprep.subr.bf16.mxu0 0
      %4118 = vmatpush1.bf16.xpose.msra.mxu0 0
      %4119 = vmatprep.subr.bf16.mxu0 0
      %4120 = vmatpush1.bf16.xpose.msra.mxu0 0
      %4121 = vmatprep.subr.bf16.mxu0 0
      %4122 = vmatpush1.bf16.xpose.msra.mxu0 0
      %4123 = vmatprep.subr.bf16.mxu0 0
      %4124 = vmatpush1.bf16.xpose.msra.mxu0 0
      %4125 = vmatprep.subr.bf16.mxu0 0
      %4126 = vmatpush1.bf16.xpose.msra.mxu0 0
      %4127 = vmatprep.subr.bf16.mxu0 0
      %4128 = vmatpush1.bf16.xpose.msra.mxu0 0
      %4129 = vmatprep.subr.bf16.mxu0 0
      %4130 = vmatpush1.bf16.xpose.msra.mxu0 0
      %4131 = vmatprep.subr.bf16.mxu0 0
      %4132 = vmatpush1.bf16.xpose.msra.mxu0 0
      %4133 = vmatprep.subr.bf16.mxu0 0
      %4134 = vmatpush1.bf16.xpose.msra.mxu0 0
      %4135 = vmatprep.subr.bf16.mxu0 0
      %4136 = vmatpush1.bf16.xpose.msra.mxu0 0
      %4137 = vmatprep.subr.bf16.mxu0 0
      %4138 = vmatpush1.bf16.xpose.msra.mxu0 0
      %4139 = vmatprep.subr.bf16.mxu0 0
      %4140 = vmatpush1.bf16.xpose.msra.mxu0 0
      %4141 = vmatprep.mubr.bf16.mxu0 0
      %4142 = vmatmul.mubr.bf16.gmra.mrb[0].mxu0 %v4104
      %v4143 = vpop.f32.mrb[0].mxu0
      %v4144 = vadd.f32 0.0, %v4143
      %v4145 = vpop.f32.mrb[0].mxu0
      %v4146 = vpop.f32.mrb[0].mxu0
      %v4147 = vpop.f32.mrb[0].mxu0
      %4148 = vdwg.mxu0
      %4149 = vrot.lane.b32.xlu0 %v465, 104
      %v4150 = vpop.permute.xlu0 %4149
      %4151 = vrot.lane.b32.xlu0 %v465, 56
      %v4152 = vpop.permute.xlu0 %4151
      %v4154 = vsel %vm152, %v4150, 0
      %v4157 = vsel %vm152, %v4152, 0
      %4159 = vmatprep.subr.bf16.mxu0 0
      %4160 = vmatpush1.bf16.xpose.msra.mxu0 %v4157
      %4161 = vmatprep.subr.bf16.mxu0 0
      %4162 = vmatpush1.bf16.xpose.msra.mxu0 0
      %4163 = vmatprep.subr.bf16.mxu0 0
      %4164 = vmatpush1.bf16.xpose.msra.mxu0 0
      %4165 = vmatprep.subr.bf16.mxu0 0
      %4166 = vmatpush1.bf16.xpose.msra.mxu0 0
      %4167 = vmatprep.subr.bf16.mxu0 0
      %4168 = vmatpush1.bf16.xpose.msra.mxu0 0
      %4169 = vmatprep.subr.bf16.mxu0 0
      %4170 = vmatpush1.bf16.xpose.msra.mxu0 0
      %4171 = vmatprep.subr.bf16.mxu0 0
      %4172 = vmatpush1.bf16.xpose.msra.mxu0 0
      %4173 = vmatprep.subr.bf16.mxu0 0
      %4174 = vmatpush1.bf16.xpose.msra.mxu0 0
      %4175 = vmatprep.subr.bf16.mxu0 0
      %4176 = vmatpush1.bf16.xpose.msra.mxu0 0
      %4177 = vmatprep.subr.bf16.mxu0 0
      %4178 = vmatpush1.bf16.xpose.msra.mxu0 0
      %4179 = vmatprep.subr.bf16.mxu0 0
      %4180 = vmatpush1.bf16.xpose.msra.mxu0 0
      %4181 = vmatprep.subr.bf16.mxu0 0
      %4182 = vmatpush1.bf16.xpose.msra.mxu0 0
      %4183 = vmatprep.subr.bf16.mxu0 0
      %4184 = vmatpush1.bf16.xpose.msra.mxu0 0
      %4185 = vmatprep.subr.bf16.mxu0 0
      %4186 = vmatpush1.bf16.xpose.msra.mxu0 0
      %4187 = vmatprep.subr.bf16.mxu0 0
      %4188 = vmatpush1.bf16.xpose.msra.mxu0 0
      %4189 = vmatprep.subr.bf16.mxu0 0
      %4190 = vmatpush1.bf16.xpose.msra.mxu0 0
      %4191 = vmatprep.mubr.bf16.mxu0 0
      %4192 = vmatmul.mubr.bf16.gmra.mrb[0].mxu0 %v4154
      %v4193 = vpop.f32.mrb[0].mxu0
      %v4194 = vadd.f32 0.0, %v4193
      %v4195 = vpop.f32.mrb[0].mxu0
      %v4196 = vpop.f32.mrb[0].mxu0
      %v4197 = vpop.f32.mrb[0].mxu0
      %4198 = vdwg.mxu0
      %4199 = vrot.lane.b32.xlu0 %v528, 104
      %v4200 = vpop.permute.xlu0 %4199
      %4201 = vrot.lane.b32.xlu0 %v528, 56
      %v4202 = vpop.permute.xlu0 %4201
      %v4204 = vsel %vm152, %v4200, 0
      %v4207 = vsel %vm152, %v4202, 0
      %4209 = vmatprep.subr.bf16.mxu0 0
      %4210 = vmatpush1.bf16.xpose.msra.mxu0 %v4207
      %4211 = vmatprep.subr.bf16.mxu0 0
      %4212 = vmatpush1.bf16.xpose.msra.mxu0 0
      %4213 = vmatprep.subr.bf16.mxu0 0
      %4214 = vmatpush1.bf16.xpose.msra.mxu0 0
      %4215 = vmatprep.subr.bf16.mxu0 0
      %4216 = vmatpush1.bf16.xpose.msra.mxu0 0
      %4217 = vmatprep.subr.bf16.mxu0 0
      %4218 = vmatpush1.bf16.xpose.msra.mxu0 0
      %4219 = vmatprep.subr.bf16.mxu0 0
      %4220 = vmatpush1.bf16.xpose.msra.mxu0 0
      %4221 = vmatprep.subr.bf16.mxu0 0
      %4222 = vmatpush1.bf16.xpose.msra.mxu0 0
      %4223 = vmatprep.subr.bf16.mxu0 0
      %4224 = vmatpush1.bf16.xpose.msra.mxu0 0
      %4225 = vmatprep.subr.bf16.mxu0 0
      %4226 = vmatpush1.bf16.xpose.msra.mxu0 0
      %4227 = vmatprep.subr.bf16.mxu0 0
      %4228 = vmatpush1.bf16.xpose.msra.mxu0 0
      %4229 = vmatprep.subr.bf16.mxu0 0
      %4230 = vmatpush1.bf16.xpose.msra.mxu0 0
      %4231 = vmatprep.subr.bf16.mxu0 0
      %4232 = vmatpush1.bf16.xpose.msra.mxu0 0
      %4233 = vmatprep.subr.bf16.mxu0 0
      %4234 = vmatpush1.bf16.xpose.msra.mxu0 0
      %4235 = vmatprep.subr.bf16.mxu0 0
      %4236 = vmatpush1.bf16.xpose.msra.mxu0 0
      %4237 = vmatprep.subr.bf16.mxu0 0
      %4238 = vmatpush1.bf16.xpose.msra.mxu0 0
      %4239 = vmatprep.subr.bf16.mxu0 0
      %4240 = vmatpush1.bf16.xpose.msra.mxu0 0
      %4241 = vmatprep.mubr.bf16.mxu0 0
      %4242 = vmatmul.mubr.bf16.gmra.mrb[0].mxu0 %v4204
      %v4243 = vpop.f32.mrb[0].mxu0
      %v4244 = vadd.f32 0.0, %v4243
      %v4245 = vpop.f32.mrb[0].mxu0
      %v4246 = vpop.f32.mrb[0].mxu0
      %v4247 = vpop.f32.mrb[0].mxu0
      %4248 = vdwg.mxu0
      %4249 = vrot.lane.b32.xlu0 %v591, 104
      %v4250 = vpop.permute.xlu0 %4249
      %4251 = vrot.lane.b32.xlu0 %v591, 56
      %v4252 = vpop.permute.xlu0 %4251
      %v4254 = vsel %vm152, %v4250, 0
      %v4257 = vsel %vm152, %v4252, 0
      %4259 = vmatprep.subr.bf16.mxu0 0
      %4260 = vmatpush1.bf16.xpose.msra.mxu0 %v4257
      %4261 = vmatprep.subr.bf16.mxu0 0
      %4262 = vmatpush1.bf16.xpose.msra.mxu0 0
      %4263 = vmatprep.subr.bf16.mxu0 0
      %4264 = vmatpush1.bf16.xpose.msra.mxu0 0
      %4265 = vmatprep.subr.bf16.mxu0 0
      %4266 = vmatpush1.bf16.xpose.msra.mxu0 0
      %4267 = vmatprep.subr.bf16.mxu0 0
      %4268 = vmatpush1.bf16.xpose.msra.mxu0 0
      %4269 = vmatprep.subr.bf16.mxu0 0
      %4270 = vmatpush1.bf16.xpose.msra.mxu0 0
      %4271 = vmatprep.subr.bf16.mxu0 0
      %4272 = vmatpush1.bf16.xpose.msra.mxu0 0
      %4273 = vmatprep.subr.bf16.mxu0 0
      %4274 = vmatpush1.bf16.xpose.msra.mxu0 0
      %4275 = vmatprep.subr.bf16.mxu0 0
      %4276 = vmatpush1.bf16.xpose.msra.mxu0 0
      %4277 = vmatprep.subr.bf16.mxu0 0
      %4278 = vmatpush1.bf16.xpose.msra.mxu0 0
      %4279 = vmatprep.subr.bf16.mxu0 0
      %4280 = vmatpush1.bf16.xpose.msra.mxu0 0
      %4281 = vmatprep.subr.bf16.mxu0 0
      %4282 = vmatpush1.bf16.xpose.msra.mxu0 0
      %4283 = vmatprep.subr.bf16.mxu0 0
      %4284 = vmatpush1.bf16.xpose.msra.mxu0 0
      %4285 = vmatprep.subr.bf16.mxu0 0
      %4286 = vmatpush1.bf16.xpose.msra.mxu0 0
      %4287 = vmatprep.subr.bf16.mxu0 0
      %4288 = vmatpush1.bf16.xpose.msra.mxu0 0
      %4289 = vmatprep.subr.bf16.mxu0 0
      %4290 = vmatpush1.bf16.xpose.msra.mxu0 0
      %4291 = vmatprep.mubr.bf16.mxu0 0
      %4292 = vmatmul.mubr.bf16.gmra.mrb[0].mxu0 %v4254
      %v4293 = vpop.f32.mrb[0].mxu0
      %v4294 = vadd.f32 0.0, %v4293
      %v4295 = vpop.f32.mrb[0].mxu0
      %v4296 = vpop.f32.mrb[0].mxu0
      %v4297 = vpop.f32.mrb[0].mxu0
      %4298 = vdwg.mxu0
      %4299 = vrot.lane.b32.xlu0 %v654, 104
      %v4300 = vpop.permute.xlu0 %4299
      %4301 = vrot.lane.b32.xlu0 %v654, 56
      %v4302 = vpop.permute.xlu0 %4301
      %v4304 = vsel %vm152, %v4300, 0
      %v4307 = vsel %vm152, %v4302, 0
      %4309 = vmatprep.subr.bf16.mxu0 0
      %4310 = vmatpush1.bf16.xpose.msra.mxu0 %v4307
      %4311 = vmatprep.subr.bf16.mxu0 0
      %4312 = vmatpush1.bf16.xpose.msra.mxu0 0
      %4313 = vmatprep.subr.bf16.mxu0 0
      %4314 = vmatpush1.bf16.xpose.msra.mxu0 0
      %4315 = vmatprep.subr.bf16.mxu0 0
      %4316 = vmatpush1.bf16.xpose.msra.mxu0 0
      %4317 = vmatprep.subr.bf16.mxu0 0
      %4318 = vmatpush1.bf16.xpose.msra.mxu0 0
      %4319 = vmatprep.subr.bf16.mxu0 0
      %4320 = vmatpush1.bf16.xpose.msra.mxu0 0
      %4321 = vmatprep.subr.bf16.mxu0 0
      %4322 = vmatpush1.bf16.xpose.msra.mxu0 0
      %4323 = vmatprep.subr.bf16.mxu0 0
      %4324 = vmatpush1.bf16.xpose.msra.mxu0 0
      %4325 = vmatprep.subr.bf16.mxu0 0
      %4326 = vmatpush1.bf16.xpose.msra.mxu0 0
      %4327 = vmatprep.subr.bf16.mxu0 0
      %4328 = vmatpush1.bf16.xpose.msra.mxu0 0
      %4329 = vmatprep.subr.bf16.mxu0 0
      %4330 = vmatpush1.bf16.xpose.msra.mxu0 0
      %4331 = vmatprep.subr.bf16.mxu0 0
      %4332 = vmatpush1.bf16.xpose.msra.mxu0 0
      %4333 = vmatprep.subr.bf16.mxu0 0
      %4334 = vmatpush1.bf16.xpose.msra.mxu0 0
      %4335 = vmatprep.subr.bf16.mxu0 0
      %4336 = vmatpush1.bf16.xpose.msra.mxu0 0
      %4337 = vmatprep.subr.bf16.mxu0 0
      %4338 = vmatpush1.bf16.xpose.msra.mxu0 0
      %4339 = vmatprep.subr.bf16.mxu0 0
      %4340 = vmatpush1.bf16.xpose.msra.mxu0 0
      %4341 = vmatprep.mubr.bf16.mxu0 0
      %4342 = vmatmul.mubr.bf16.gmra.mrb[0].mxu0 %v4304
      %v4343 = vpop.f32.mrb[0].mxu0
      %v4344 = vadd.f32 0.0, %v4343
      %v4345 = vpop.f32.mrb[0].mxu0
      %v4346 = vpop.f32.mrb[0].mxu0
      %v4347 = vpop.f32.mrb[0].mxu0
      %4348 = vdwg.mxu0
      %4349 = vrot.lane.b32.xlu0 %v717, 104
      %v4350 = vpop.permute.xlu0 %4349
      %4351 = vrot.lane.b32.xlu0 %v717, 56
      %v4352 = vpop.permute.xlu0 %4351
      %v4354 = vsel %vm152, %v4350, 0
      %v4357 = vsel %vm152, %v4352, 0
      %4359 = vmatprep.subr.bf16.mxu0 0
      %4360 = vmatpush1.bf16.xpose.msra.mxu0 %v4357
      %4361 = vmatprep.subr.bf16.mxu0 0
      %4362 = vmatpush1.bf16.xpose.msra.mxu0 0
      %4363 = vmatprep.subr.bf16.mxu0 0
      %4364 = vmatpush1.bf16.xpose.msra.mxu0 0
      %4365 = vmatprep.subr.bf16.mxu0 0
      %4366 = vmatpush1.bf16.xpose.msra.mxu0 0
      %4367 = vmatprep.subr.bf16.mxu0 0
      %4368 = vmatpush1.bf16.xpose.msra.mxu0 0
      %4369 = vmatprep.subr.bf16.mxu0 0
      %4370 = vmatpush1.bf16.xpose.msra.mxu0 0
      %4371 = vmatprep.subr.bf16.mxu0 0
      %4372 = vmatpush1.bf16.xpose.msra.mxu0 0
      %4373 = vmatprep.subr.bf16.mxu0 0
      %4374 = vmatpush1.bf16.xpose.msra.mxu0 0
      %4375 = vmatprep.subr.bf16.mxu0 0
      %4376 = vmatpush1.bf16.xpose.msra.mxu0 0
      %4377 = vmatprep.subr.bf16.mxu0 0
      %4378 = vmatpush1.bf16.xpose.msra.mxu0 0
      %4379 = vmatprep.subr.bf16.mxu0 0
      %4380 = vmatpush1.bf16.xpose.msra.mxu0 0
      %4381 = vmatprep.subr.bf16.mxu0 0
      %4382 = vmatpush1.bf16.xpose.msra.mxu0 0
      %4383 = vmatprep.subr.bf16.mxu0 0
      %4384 = vmatpush1.bf16.xpose.msra.mxu0 0
      %4385 = vmatprep.subr.bf16.mxu0 0
      %4386 = vmatpush1.bf16.xpose.msra.mxu0 0
      %4387 = vmatprep.subr.bf16.mxu0 0
      %4388 = vmatpush1.bf16.xpose.msra.mxu0 0
      %4389 = vmatprep.subr.bf16.mxu0 0
      %4390 = vmatpush1.bf16.xpose.msra.mxu0 0
      %4391 = vmatprep.mubr.bf16.mxu0 0
      %4392 = vmatmul.mubr.bf16.gmra.mrb[0].mxu0 %v4354
      %v4393 = vpop.f32.mrb[0].mxu0
      %v4394 = vadd.f32 0.0, %v4393
      %v4395 = vpop.f32.mrb[0].mxu0
      %v4396 = vpop.f32.mrb[0].mxu0
      %v4397 = vpop.f32.mrb[0].mxu0
      %4398 = vdwg.mxu0
      %4399 = vrot.lane.b32.xlu0 %v780, 104
      %v4400 = vpop.permute.xlu0 %4399
      %4401 = vrot.lane.b32.xlu0 %v780, 56
      %v4402 = vpop.permute.xlu0 %4401
      %v4404 = vsel %vm152, %v4400, 0
      %v4407 = vsel %vm152, %v4402, 0
      %4409 = vmatprep.subr.bf16.mxu0 0
      %4410 = vmatpush1.bf16.xpose.msra.mxu0 %v4407
      %4411 = vmatprep.subr.bf16.mxu0 0
      %4412 = vmatpush1.bf16.xpose.msra.mxu0 0
      %4413 = vmatprep.subr.bf16.mxu0 0
      %4414 = vmatpush1.bf16.xpose.msra.mxu0 0
      %4415 = vmatprep.subr.bf16.mxu0 0
      %4416 = vmatpush1.bf16.xpose.msra.mxu0 0
      %4417 = vmatprep.subr.bf16.mxu0 0
      %4418 = vmatpush1.bf16.xpose.msra.mxu0 0
      %4419 = vmatprep.subr.bf16.mxu0 0
      %4420 = vmatpush1.bf16.xpose.msra.mxu0 0
      %4421 = vmatprep.subr.bf16.mxu0 0
      %4422 = vmatpush1.bf16.xpose.msra.mxu0 0
      %4423 = vmatprep.subr.bf16.mxu0 0
      %4424 = vmatpush1.bf16.xpose.msra.mxu0 0
      %4425 = vmatprep.subr.bf16.mxu0 0
      %4426 = vmatpush1.bf16.xpose.msra.mxu0 0
      %4427 = vmatprep.subr.bf16.mxu0 0
      %4428 = vmatpush1.bf16.xpose.msra.mxu0 0
      %4429 = vmatprep.subr.bf16.mxu0 0
      %4430 = vmatpush1.bf16.xpose.msra.mxu0 0
      %4431 = vmatprep.subr.bf16.mxu0 0
      %4432 = vmatpush1.bf16.xpose.msra.mxu0 0
      %4433 = vmatprep.subr.bf16.mxu0 0
      %4434 = vmatpush1.bf16.xpose.msra.mxu0 0
      %4435 = vmatprep.subr.bf16.mxu0 0
      %4436 = vmatpush1.bf16.xpose.msra.mxu0 0
      %4437 = vmatprep.subr.bf16.mxu0 0
      %4438 = vmatpush1.bf16.xpose.msra.mxu0 0
      %4439 = vmatprep.subr.bf16.mxu0 0
      %4440 = vmatpush1.bf16.xpose.msra.mxu0 0
      %4441 = vmatprep.mubr.bf16.mxu0 0
      %4442 = vmatmul.mubr.bf16.gmra.mrb[0].mxu0 %v4404
      %v4443 = vpop.f32.mrb[0].mxu0
      %v4444 = vadd.f32 0.0, %v4443
      %v4445 = vpop.f32.mrb[0].mxu0
      %v4446 = vpop.f32.mrb[0].mxu0
      %v4447 = vpop.f32.mrb[0].mxu0
      %4448 = vdwg.mxu0
      %4449 = vrot.lane.b32.xlu0 %v843, 104
      %v4450 = vpop.permute.xlu0 %4449
      %4451 = vrot.lane.b32.xlu0 %v843, 56
      %v4452 = vpop.permute.xlu0 %4451
      %v4454 = vsel %vm152, %v4450, 0
      %v4457 = vsel %vm152, %v4452, 0
      %4459 = vmatprep.subr.bf16.mxu0 0
      %4460 = vmatpush1.bf16.xpose.msra.mxu0 %v4457
      %4461 = vmatprep.subr.bf16.mxu0 0
      %4462 = vmatpush1.bf16.xpose.msra.mxu0 0
      %4463 = vmatprep.subr.bf16.mxu0 0
      %4464 = vmatpush1.bf16.xpose.msra.mxu0 0
      %4465 = vmatprep.subr.bf16.mxu0 0
      %4466 = vmatpush1.bf16.xpose.msra.mxu0 0
      %4467 = vmatprep.subr.bf16.mxu0 0
      %4468 = vmatpush1.bf16.xpose.msra.mxu0 0
      %4469 = vmatprep.subr.bf16.mxu0 0
      %4470 = vmatpush1.bf16.xpose.msra.mxu0 0
      %4471 = vmatprep.subr.bf16.mxu0 0
      %4472 = vmatpush1.bf16.xpose.msra.mxu0 0
      %4473 = vmatprep.subr.bf16.mxu0 0
      %4474 = vmatpush1.bf16.xpose.msra.mxu0 0
      %4475 = vmatprep.subr.bf16.mxu0 0
      %4476 = vmatpush1.bf16.xpose.msra.mxu0 0
      %4477 = vmatprep.subr.bf16.mxu0 0
      %4478 = vmatpush1.bf16.xpose.msra.mxu0 0
      %4479 = vmatprep.subr.bf16.mxu0 0
      %4480 = vmatpush1.bf16.xpose.msra.mxu0 0
      %4481 = vmatprep.subr.bf16.mxu0 0
      %4482 = vmatpush1.bf16.xpose.msra.mxu0 0
      %4483 = vmatprep.subr.bf16.mxu0 0
      %4484 = vmatpush1.bf16.xpose.msra.mxu0 0
      %4485 = vmatprep.subr.bf16.mxu0 0
      %4486 = vmatpush1.bf16.xpose.msra.mxu0 0
      %4487 = vmatprep.subr.bf16.mxu0 0
      %4488 = vmatpush1.bf16.xpose.msra.mxu0 0
      %4489 = vmatprep.subr.bf16.mxu0 0
      %4490 = vmatpush1.bf16.xpose.msra.mxu0 0
      %4491 = vmatprep.mubr.bf16.mxu0 0
      %4492 = vmatmul.mubr.bf16.gmra.mrb[0].mxu0 %v4454
      %v4493 = vpop.f32.mrb[0].mxu0
      %v4494 = vadd.f32 0.0, %v4493
      %v4495 = vpop.f32.mrb[0].mxu0
      %v4496 = vpop.f32.mrb[0].mxu0
      %v4497 = vpop.f32.mrb[0].mxu0
      %4498 = vdwg.mxu0
      %4499 = vrot.lane.b32.xlu0 %v906, 104
      %v4500 = vpop.permute.xlu0 %4499
      %4501 = vrot.lane.b32.xlu0 %v906, 56
      %v4502 = vpop.permute.xlu0 %4501
      %v4504 = vsel %vm152, %v4500, 0
      %v4507 = vsel %vm152, %v4502, 0
      %4509 = vmatprep.subr.bf16.mxu0 0
      %4510 = vmatpush1.bf16.xpose.msra.mxu0 %v4507
      %4511 = vmatprep.subr.bf16.mxu0 0
      %4512 = vmatpush1.bf16.xpose.msra.mxu0 0
      %4513 = vmatprep.subr.bf16.mxu0 0
      %4514 = vmatpush1.bf16.xpose.msra.mxu0 0
      %4515 = vmatprep.subr.bf16.mxu0 0
      %4516 = vmatpush1.bf16.xpose.msra.mxu0 0
      %4517 = vmatprep.subr.bf16.mxu0 0
      %4518 = vmatpush1.bf16.xpose.msra.mxu0 0
      %4519 = vmatprep.subr.bf16.mxu0 0
      %4520 = vmatpush1.bf16.xpose.msra.mxu0 0
      %4521 = vmatprep.subr.bf16.mxu0 0
      %4522 = vmatpush1.bf16.xpose.msra.mxu0 0
      %4523 = vmatprep.subr.bf16.mxu0 0
      %4524 = vmatpush1.bf16.xpose.msra.mxu0 0
      %4525 = vmatprep.subr.bf16.mxu0 0
      %4526 = vmatpush1.bf16.xpose.msra.mxu0 0
      %4527 = vmatprep.subr.bf16.mxu0 0
      %4528 = vmatpush1.bf16.xpose.msra.mxu0 0
      %4529 = vmatprep.subr.bf16.mxu0 0
      %4530 = vmatpush1.bf16.xpose.msra.mxu0 0
      %4531 = vmatprep.subr.bf16.mxu0 0
      %4532 = vmatpush1.bf16.xpose.msra.mxu0 0
      %4533 = vmatprep.subr.bf16.mxu0 0
      %4534 = vmatpush1.bf16.xpose.msra.mxu0 0
      %4535 = vmatprep.subr.bf16.mxu0 0
      %4536 = vmatpush1.bf16.xpose.msra.mxu0 0
      %4537 = vmatprep.subr.bf16.mxu0 0
      %4538 = vmatpush1.bf16.xpose.msra.mxu0 0
      %4539 = vmatprep.subr.bf16.mxu0 0
      %4540 = vmatpush1.bf16.xpose.msra.mxu0 0
      %4541 = vmatprep.mubr.bf16.mxu0 0
      %4542 = vmatmul.mubr.bf16.gmra.mrb[0].mxu0 %v4504
      %v4543 = vpop.f32.mrb[0].mxu0
      %v4544 = vadd.f32 0.0, %v4543
      %v4545 = vpop.f32.mrb[0].mxu0
      %v4546 = vpop.f32.mrb[0].mxu0
      %v4547 = vpop.f32.mrb[0].mxu0
      %4548 = vdwg.mxu0
      %4549 = vrot.lane.b32.xlu0 %v969, 104
      %v4550 = vpop.permute.xlu0 %4549
      %4551 = vrot.lane.b32.xlu0 %v969, 56
      %v4552 = vpop.permute.xlu0 %4551
      %v4554 = vsel %vm152, %v4550, 0
      %v4557 = vsel %vm152, %v4552, 0
      %4559 = vmatprep.subr.bf16.mxu0 0
      %4560 = vmatpush1.bf16.xpose.msra.mxu0 %v4557
      %4561 = vmatprep.subr.bf16.mxu0 0
      %4562 = vmatpush1.bf16.xpose.msra.mxu0 0
      %4563 = vmatprep.subr.bf16.mxu0 0
      %4564 = vmatpush1.bf16.xpose.msra.mxu0 0
      %4565 = vmatprep.subr.bf16.mxu0 0
      %4566 = vmatpush1.bf16.xpose.msra.mxu0 0
      %4567 = vmatprep.subr.bf16.mxu0 0
      %4568 = vmatpush1.bf16.xpose.msra.mxu0 0
      %4569 = vmatprep.subr.bf16.mxu0 0
      %4570 = vmatpush1.bf16.xpose.msra.mxu0 0
      %4571 = vmatprep.subr.bf16.mxu0 0
      %4572 = vmatpush1.bf16.xpose.msra.mxu0 0
      %4573 = vmatprep.subr.bf16.mxu0 0
      %4574 = vmatpush1.bf16.xpose.msra.mxu0 0
      %4575 = vmatprep.subr.bf16.mxu0 0
      %4576 = vmatpush1.bf16.xpose.msra.mxu0 0
      %4577 = vmatprep.subr.bf16.mxu0 0
      %4578 = vmatpush1.bf16.xpose.msra.mxu0 0
      %4579 = vmatprep.subr.bf16.mxu0 0
      %4580 = vmatpush1.bf16.xpose.msra.mxu0 0
      %4581 = vmatprep.subr.bf16.mxu0 0
      %4582 = vmatpush1.bf16.xpose.msra.mxu0 0
      %4583 = vmatprep.subr.bf16.mxu0 0
      %4584 = vmatpush1.bf16.xpose.msra.mxu0 0
      %4585 = vmatprep.subr.bf16.mxu0 0
      %4586 = vmatpush1.bf16.xpose.msra.mxu0 0
      %4587 = vmatprep.subr.bf16.mxu0 0
      %4588 = vmatpush1.bf16.xpose.msra.mxu0 0
      %4589 = vmatprep.subr.bf16.mxu0 0
      %4590 = vmatpush1.bf16.xpose.msra.mxu0 0
      %4591 = vmatprep.mubr.bf16.mxu0 0
      %4592 = vmatmul.mubr.bf16.gmra.mrb[0].mxu0 %v4554
      %v4593 = vpop.f32.mrb[0].mxu0
      %v4594 = vadd.f32 0.0, %v4593
      %v4595 = vpop.f32.mrb[0].mxu0
      %v4596 = vpop.f32.mrb[0].mxu0
      %v4597 = vpop.f32.mrb[0].mxu0
      %4598 = vdwg.mxu0
      %4599 = vrot.lane.b32.xlu0 %v1032, 104
      %v4600 = vpop.permute.xlu0 %4599
      %4601 = vrot.lane.b32.xlu0 %v1032, 56
      %v4602 = vpop.permute.xlu0 %4601
      %v4604 = vsel %vm152, %v4600, 0
      %v4607 = vsel %vm152, %v4602, 0
      %4609 = vmatprep.subr.bf16.mxu0 0
      %4610 = vmatpush1.bf16.xpose.msra.mxu0 %v4607
      %4611 = vmatprep.subr.bf16.mxu0 0
      %4612 = vmatpush1.bf16.xpose.msra.mxu0 0
      %4613 = vmatprep.subr.bf16.mxu0 0
      %4614 = vmatpush1.bf16.xpose.msra.mxu0 0
      %4615 = vmatprep.subr.bf16.mxu0 0
      %4616 = vmatpush1.bf16.xpose.msra.mxu0 0
      %4617 = vmatprep.subr.bf16.mxu0 0
      %4618 = vmatpush1.bf16.xpose.msra.mxu0 0
      %4619 = vmatprep.subr.bf16.mxu0 0
      %4620 = vmatpush1.bf16.xpose.msra.mxu0 0
      %4621 = vmatprep.subr.bf16.mxu0 0
      %4622 = vmatpush1.bf16.xpose.msra.mxu0 0
      %4623 = vmatprep.subr.bf16.mxu0 0
      %4624 = vmatpush1.bf16.xpose.msra.mxu0 0
      %4625 = vmatprep.subr.bf16.mxu0 0
      %4626 = vmatpush1.bf16.xpose.msra.mxu0 0
      %4627 = vmatprep.subr.bf16.mxu0 0
      %4628 = vmatpush1.bf16.xpose.msra.mxu0 0
      %4629 = vmatprep.subr.bf16.mxu0 0
      %4630 = vmatpush1.bf16.xpose.msra.mxu0 0
      %4631 = vmatprep.subr.bf16.mxu0 0
      %4632 = vmatpush1.bf16.xpose.msra.mxu0 0
      %4633 = vmatprep.subr.bf16.mxu0 0
      %4634 = vmatpush1.bf16.xpose.msra.mxu0 0
      %4635 = vmatprep.subr.bf16.mxu0 0
      %4636 = vmatpush1.bf16.xpose.msra.mxu0 0
      %4637 = vmatprep.subr.bf16.mxu0 0
      %4638 = vmatpush1.bf16.xpose.msra.mxu0 0
      %4639 = vmatprep.subr.bf16.mxu0 0
      %4640 = vmatpush1.bf16.xpose.msra.mxu0 0
      %4641 = vmatprep.mubr.bf16.mxu0 0
      %4642 = vmatmul.mubr.bf16.gmra.mrb[0].mxu0 %v4604
      %v4643 = vpop.f32.mrb[0].mxu0
      %v4644 = vadd.f32 0.0, %v4643
      %v4645 = vpop.f32.mrb[0].mxu0
      %v4646 = vpop.f32.mrb[0].mxu0
      %v4647 = vpop.f32.mrb[0].mxu0
      %4648 = vdwg.mxu0
      %4649 = vrot.lane.b32.xlu0 %v1095, 104
      %v4650 = vpop.permute.xlu0 %4649
      %4651 = vrot.lane.b32.xlu0 %v1095, 56
      %v4652 = vpop.permute.xlu0 %4651
      %v4654 = vsel %vm152, %v4650, 0
      %v4657 = vsel %vm152, %v4652, 0
      %4659 = vmatprep.subr.bf16.mxu0 0
      %4660 = vmatpush1.bf16.xpose.msra.mxu0 %v4657
      %4661 = vmatprep.subr.bf16.mxu0 0
      %4662 = vmatpush1.bf16.xpose.msra.mxu0 0
      %4663 = vmatprep.subr.bf16.mxu0 0
      %4664 = vmatpush1.bf16.xpose.msra.mxu0 0
      %4665 = vmatprep.subr.bf16.mxu0 0
      %4666 = vmatpush1.bf16.xpose.msra.mxu0 0
      %4667 = vmatprep.subr.bf16.mxu0 0
      %4668 = vmatpush1.bf16.xpose.msra.mxu0 0
      %4669 = vmatprep.subr.bf16.mxu0 0
      %4670 = vmatpush1.bf16.xpose.msra.mxu0 0
      %4671 = vmatprep.subr.bf16.mxu0 0
      %4672 = vmatpush1.bf16.xpose.msra.mxu0 0
      %4673 = vmatprep.subr.bf16.mxu0 0
      %4674 = vmatpush1.bf16.xpose.msra.mxu0 0
      %4675 = vmatprep.subr.bf16.mxu0 0
      %4676 = vmatpush1.bf16.xpose.msra.mxu0 0
      %4677 = vmatprep.subr.bf16.mxu0 0
      %4678 = vmatpush1.bf16.xpose.msra.mxu0 0
      %4679 = vmatprep.subr.bf16.mxu0 0
      %4680 = vmatpush1.bf16.xpose.msra.mxu0 0
      %4681 = vmatprep.subr.bf16.mxu0 0
      %4682 = vmatpush1.bf16.xpose.msra.mxu0 0
      %4683 = vmatprep.subr.bf16.mxu0 0
      %4684 = vmatpush1.bf16.xpose.msra.mxu0 0
      %4685 = vmatprep.subr.bf16.mxu0 0
      %4686 = vmatpush1.bf16.xpose.msra.mxu0 0
      %4687 = vmatprep.subr.bf16.mxu0 0
      %4688 = vmatpush1.bf16.xpose.msra.mxu0 0
      %4689 = vmatprep.subr.bf16.mxu0 0
      %4690 = vmatpush1.bf16.xpose.msra.mxu0 0
      %4691 = vmatprep.mubr.bf16.mxu0 0
      %4692 = vmatmul.mubr.bf16.gmra.mrb[0].mxu0 %v4654
      %v4693 = vpop.f32.mrb[0].mxu0
      %v4694 = vadd.f32 0.0, %v4693
      %v4695 = vpop.f32.mrb[0].mxu0
      %v4696 = vpop.f32.mrb[0].mxu0
      %v4697 = vpop.f32.mrb[0].mxu0
      %4698 = vdwg.mxu0
      %v4699 = vmul.f32 %v3944, 0.28867513
      %v4700 = vmul.f32 %v3994, 0.28867513
      %v4701 = vmul.f32 %v4044, 0.28867513
      %v4702 = vmul.f32 %v4094, 0.28867513
      %v4703 = vmul.f32 %v4144, 0.28867513
      %v4704 = vmul.f32 %v4194, 0.28867513
      %v4705 = vmul.f32 %v4244, 0.28867513
      %v4706 = vmul.f32 %v4294, 0.28867513
      %v4707 = vmul.f32 %v4344, 0.28867513
      %v4708 = vmul.f32 %v4394, 0.28867513
      %v4709 = vmul.f32 %v4444, 0.28867513
      %v4710 = vmul.f32 %v4494, 0.28867513
      %v4711 = vmul.f32 %v4544, 0.28867513
      %v4712 = vmul.f32 %v4594, 0.28867513
      %v4713 = vmul.f32 %v4644, 0.28867513
      %v4714 = vmul.f32 %v4694, 0.28867513
      %v4715 = vsel %vm1160, %v4699, -inf
      %4716 = vmax.xlane.f32.xlu0 %v4715
      %v4717 = vpop.xlane.xlu0 %4716
      %v4718 = vsel %vm1160, %v4700, -inf
      %4719 = vmax.xlane.f32.xlu0 %v4718
      %v4720 = vpop.xlane.xlu0 %4719
      %v4721 = vsel %vm1160, %v4701, -inf
      %4722 = vmax.xlane.f32.xlu0 %v4721
      %v4723 = vpop.xlane.xlu0 %4722
      %v4724 = vsel %vm1160, %v4702, -inf
      %4725 = vmax.xlane.f32.xlu0 %v4724
      %v4726 = vpop.xlane.xlu0 %4725
      %v4727 = vsel %vm1160, %v4703, -inf
      %4728 = vmax.xlane.f32.xlu0 %v4727
      %v4729 = vpop.xlane.xlu0 %4728
      %v4730 = vsel %vm1160, %v4704, -inf
      %4731 = vmax.xlane.f32.xlu0 %v4730
      %v4732 = vpop.xlane.xlu0 %4731
      %v4733 = vsel %vm1160, %v4705, -inf
      %4734 = vmax.xlane.f32.xlu0 %v4733
      %v4735 = vpop.xlane.xlu0 %4734
      %v4736 = vsel %vm1160, %v4706, -inf
      %4737 = vmax.xlane.f32.xlu0 %v4736
      %v4738 = vpop.xlane.xlu0 %4737
      %v4739 = vsel %vm1160, %v4707, -inf
      %4740 = vmax.xlane.f32.xlu0 %v4739
      %v4741 = vpop.xlane.xlu0 %4740
      %v4742 = vsel %vm1160, %v4708, -inf
      %4743 = vmax.xlane.f32.xlu0 %v4742
      %v4744 = vpop.xlane.xlu0 %4743
      %v4745 = vsel %vm1160, %v4709, -inf
      %4746 = vmax.xlane.f32.xlu0 %v4745
      %v4747 = vpop.xlane.xlu0 %4746
      %v4748 = vsel %vm1160, %v4710, -inf
      %4749 = vmax.xlane.f32.xlu0 %v4748
      %v4750 = vpop.xlane.xlu0 %4749
      %v4751 = vsel %vm1160, %v4711, -inf
      %4752 = vmax.xlane.f32.xlu0 %v4751
      %v4753 = vpop.xlane.xlu0 %4752
      %v4754 = vsel %vm1160, %v4712, -inf
      %4755 = vmax.xlane.f32.xlu0 %v4754
      %v4756 = vpop.xlane.xlu0 %4755
      %v4757 = vsel %vm1160, %v4713, -inf
      %4758 = vmax.xlane.f32.xlu0 %v4757
      %v4759 = vpop.xlane.xlu0 %4758
      %v4760 = vsel %vm1160, %v4714, -inf
      %4761 = vmax.xlane.f32.xlu0 %v4760
      %v4762 = vpop.xlane.xlu0 %4761
      %v4763 = vsub.f32 %v4699, %v4717
      %v4764 = vsub.f32 %v4700, %v4720
      %v4765 = vsub.f32 %v4701, %v4723
      %v4766 = vsub.f32 %v4702, %v4726
      %v4767 = vsub.f32 %v4703, %v4729
      %v4768 = vsub.f32 %v4704, %v4732
      %v4769 = vsub.f32 %v4705, %v4735
      %v4770 = vsub.f32 %v4706, %v4738
      %v4771 = vsub.f32 %v4707, %v4741
      %v4772 = vsub.f32 %v4708, %v4744
      %v4773 = vsub.f32 %v4709, %v4747
      %v4774 = vsub.f32 %v4710, %v4750
      %v4775 = vsub.f32 %v4711, %v4753
      %v4776 = vsub.f32 %v4712, %v4756
      %v4777 = vsub.f32 %v4713, %v4759
      %v4778 = vsub.f32 %v4714, %v4762
      %v4779 = vmul.f32 %v4763, 1.442695
      %v4780 = vpow.pop %v4779
      %v4781 = vmul.f32 %v4764, 1.442695
      %v4782 = vpow.pop %v4781
      %v4783 = vmul.f32 %v4765, 1.442695
      %v4784 = vpow.pop %v4783
      %v4785 = vmul.f32 %v4766, 1.442695
      %v4786 = vpow.pop %v4785
      %v4787 = vmul.f32 %v4767, 1.442695
      %v4788 = vpow.pop %v4787
      %v4789 = vmul.f32 %v4768, 1.442695
      %v4790 = vpow.pop %v4789
      %v4791 = vmul.f32 %v4769, 1.442695
      %v4792 = vpow.pop %v4791
      %v4793 = vmul.f32 %v4770, 1.442695
      %v4794 = vpow.pop %v4793
      %v4795 = vmul.f32 %v4771, 1.442695
      %v4796 = vpow.pop %v4795
      %v4797 = vmul.f32 %v4772, 1.442695
      %v4798 = vpow.pop %v4797
      %v4799 = vmul.f32 %v4773, 1.442695
      %v4800 = vpow.pop %v4799
      %v4801 = vmul.f32 %v4774, 1.442695
      %v4802 = vpow.pop %v4801
      %v4803 = vmul.f32 %v4775, 1.442695
      %v4804 = vpow.pop %v4803
      %v4805 = vmul.f32 %v4776, 1.442695
      %v4806 = vpow.pop %v4805
      %v4807 = vmul.f32 %v4777, 1.442695
      %v4808 = vpow.pop %v4807
      %v4809 = vmul.f32 %v4778, 1.442695
      %v4810 = vpow.pop %v4809
      %v4811 = vsel %vm1160, %v4780, 0.0
      %4812 = vadd.xlane.f32.xlu0 %v4811
      %v4813 = vpop.xlane.xlu0 %4812
      %v4814 = vsel %vm1160, %v4782, 0.0
      %4815 = vadd.xlane.f32.xlu0 %v4814
      %v4816 = vpop.xlane.xlu0 %4815
      %v4817 = vsel %vm1160, %v4784, 0.0
      %4818 = vadd.xlane.f32.xlu0 %v4817
      %v4819 = vpop.xlane.xlu0 %4818
      %v4820 = vsel %vm1160, %v4786, 0.0
      %4821 = vadd.xlane.f32.xlu0 %v4820
      %v4822 = vpop.xlane.xlu0 %4821
      %v4823 = vsel %vm1160, %v4788, 0.0
      %4824 = vadd.xlane.f32.xlu0 %v4823
      %v4825 = vpop.xlane.xlu0 %4824
      %v4826 = vsel %vm1160, %v4790, 0.0
      %4827 = vadd.xlane.f32.xlu0 %v4826
      %v4828 = vpop.xlane.xlu0 %4827
      %v4829 = vsel %vm1160, %v4792, 0.0
      %4830 = vadd.xlane.f32.xlu0 %v4829
      %v4831 = vpop.xlane.xlu0 %4830
      %v4832 = vsel %vm1160, %v4794, 0.0
      %4833 = vadd.xlane.f32.xlu0 %v4832
      %v4834 = vpop.xlane.xlu0 %4833
      %v4835 = vsel %vm1160, %v4796, 0.0
      %4836 = vadd.xlane.f32.xlu0 %v4835
      %v4837 = vpop.xlane.xlu0 %4836
      %v4838 = vsel %vm1160, %v4798, 0.0
      %4839 = vadd.xlane.f32.xlu0 %v4838
      %v4840 = vpop.xlane.xlu0 %4839
      %v4841 = vsel %vm1160, %v4800, 0.0
      %4842 = vadd.xlane.f32.xlu0 %v4841
      %v4843 = vpop.xlane.xlu0 %4842
      %v4844 = vsel %vm1160, %v4802, 0.0
      %4845 = vadd.xlane.f32.xlu0 %v4844
      %v4846 = vpop.xlane.xlu0 %4845
      %v4847 = vsel %vm1160, %v4804, 0.0
      %4848 = vadd.xlane.f32.xlu0 %v4847
      %v4849 = vpop.xlane.xlu0 %4848
      %v4850 = vsel %vm1160, %v4806, 0.0
      %4851 = vadd.xlane.f32.xlu0 %v4850
      %v4852 = vpop.xlane.xlu0 %4851
      %v4853 = vsel %vm1160, %v4808, 0.0
      %4854 = vadd.xlane.f32.xlu0 %v4853
      %v4855 = vpop.xlane.xlu0 %4854
      %v4856 = vsel %vm1160, %v4810, 0.0
      %4857 = vadd.xlane.f32.xlu0 %v4856
      %v4858 = vpop.xlane.xlu0 %4857
      %v4859 = vrcp.pop %v4813
      %v4860 = vrcp.pop %v4816
      %v4861 = vrcp.pop %v4819
      %v4862 = vrcp.pop %v4822
      %v4863 = vrcp.pop %v4825
      %v4864 = vrcp.pop %v4828
      %v4865 = vrcp.pop %v4831
      %v4866 = vrcp.pop %v4834
      %v4867 = vrcp.pop %v4837
      %v4868 = vrcp.pop %v4840
      %v4869 = vrcp.pop %v4843
      %v4870 = vrcp.pop %v4846
      %v4871 = vrcp.pop %v4849
      %v4872 = vrcp.pop %v4852
      %v4873 = vrcp.pop %v4855
      %v4874 = vrcp.pop %v4858
      %v4875 = vmul.f32 %v4780, %v4859
      %v4876 = vmul.f32 %v4782, %v4860
      %v4877 = vmul.f32 %v4784, %v4861
      %v4878 = vmul.f32 %v4786, %v4862
      %v4879 = vmul.f32 %v4788, %v4863
      %v4880 = vmul.f32 %v4790, %v4864
      %v4881 = vmul.f32 %v4792, %v4865
      %v4882 = vmul.f32 %v4794, %v4866
      %v4883 = vmul.f32 %v4796, %v4867
      %v4884 = vmul.f32 %v4798, %v4868
      %v4885 = vmul.f32 %v4800, %v4869
      %v4886 = vmul.f32 %v4802, %v4870
      %v4887 = vmul.f32 %v4804, %v4871
      %v4888 = vmul.f32 %v4806, %v4872
      %v4889 = vmul.f32 %v4808, %v4873
      %v4890 = vmul.f32 %v4810, %v4874
      %v4891 = vpack.c.bf16 %v4875, %v4875
      %v4892 = vpack.c.bf16 %v4876, %v4876
      %v4893 = vpack.c.bf16 %v4877, %v4877
      %v4894 = vpack.c.bf16 %v4878, %v4878
      %v4895 = vpack.c.bf16 %v4879, %v4879
      %v4896 = vpack.c.bf16 %v4880, %v4880
      %v4897 = vpack.c.bf16 %v4881, %v4881
      %v4898 = vpack.c.bf16 %v4882, %v4882
      %v4899 = vpack.c.bf16 %v4883, %v4883
      %v4900 = vpack.c.bf16 %v4884, %v4884
      %v4901 = vpack.c.bf16 %v4885, %v4885
      %v4902 = vpack.c.bf16 %v4886, %v4886
      %v4903 = vpack.c.bf16 %v4887, %v4887
      %v4904 = vpack.c.bf16 %v4888, %v4888
      %v4905 = vpack.c.bf16 %v4889, %v4889
      %v4906 = vpack.c.bf16 %v4890, %v4890
      %v4907 = vcombine.high %v142, %v142
      %v4909 = vunpack.c.l.s4 1966171168
      %v4910 = vunpack.c.0.s8 %v4909
      %v4911 = vlaneseq
      %v4912 = vshrl.u32 %v4911, 7
      %v4913 = vsub.s32 %v4910, %v4912
      %v4914 = vrot.slane %v4907, %v4913
      %4915 = vrot.lane.b32.xlu0 %v149, 8
      %v4916 = vpop.permute.xlu0 %4915
      %4917 = vrot.lane.b32.xlu0 %v4914, 8
      %v4918 = vpop.permute.xlu0 %4917
      %vm4919 = vcmask 64512
      %v4920 = vsel %vm4919, %v4916, %v4918
      %v4922 = vsel %vm1355, %v4891, 0
      %v4925 = vsel %vm1359, %v4920, 0
      %4927 = vmatprep.subr.bf16.mxu0 0
      %4928 = vmatpush1.bf16.msra.mxu0 %v4925
      %4929 = vmatprep.subr.bf16.mxu0 0
      %4930 = vmatpush1.bf16.msra.mxu0 0
      %4931 = vmatprep.subr.bf16.mxu0 0
      %4932 = vmatpush1.bf16.msra.mxu0 0
      %4933 = vmatprep.subr.bf16.mxu0 0
      %4934 = vmatpush1.bf16.msra.mxu0 0
      %4935 = vmatprep.subr.bf16.mxu0 0
      %4936 = vmatpush1.bf16.msra.mxu0 0
      %4937 = vmatprep.subr.bf16.mxu0 0
      %4938 = vmatpush1.bf16.msra.mxu0 0
      %4939 = vmatprep.subr.bf16.mxu0 0
      %4940 = vmatpush1.bf16.msra.mxu0 0
      %4941 = vmatprep.subr.bf16.mxu0 0
      %4942 = vmatpush1.bf16.msra.mxu0 0
      %4943 = vmatprep.subr.bf16.mxu0 0
      %4944 = vmatpush1.bf16.msra.mxu0 0
      %4945 = vmatprep.subr.bf16.mxu0 0
      %4946 = vmatpush1.bf16.msra.mxu0 0
      %4947 = vmatprep.subr.bf16.mxu0 0
      %4948 = vmatpush1.bf16.msra.mxu0 0
      %4949 = vmatprep.subr.bf16.mxu0 0
      %4950 = vmatpush1.bf16.msra.mxu0 0
      %4951 = vmatprep.subr.bf16.mxu0 0
      %4952 = vmatpush1.bf16.msra.mxu0 0
      %4953 = vmatprep.subr.bf16.mxu0 0
      %4954 = vmatpush1.bf16.msra.mxu0 0
      %4955 = vmatprep.subr.bf16.mxu0 0
      %4956 = vmatpush1.bf16.msra.mxu0 0
      %4957 = vmatprep.subr.bf16.mxu0 0
      %4958 = vmatpush1.bf16.msra.mxu0 0
      %4959 = vmatprep.mubr.bf16.mxu0 0
      %4960 = vmatmul.mubr.bf16.gmra.mrb[0].mxu0 %v4922
      %v4961 = vpop.f32.mrb[0].mxu0
      %v4962 = vadd.f32 0.0, %v4961
      %v4963 = vpop.f32.mrb[0].mxu0
      %v4964 = vpop.f32.mrb[0].mxu0
      %v4965 = vpop.f32.mrb[0].mxu0
      %4966 = vdwg.mxu0
      %v4967 = vcombine.high %v206, %v206
      %v4969 = vunpack.c.l.s4 1966171168
      %v4970 = vunpack.c.0.s8 %v4969
      %v4971 = vlaneseq
      %v4972 = vshrl.u32 %v4971, 7
      %v4973 = vsub.s32 %v4970, %v4972
      %v4974 = vrot.slane %v4967, %v4973
      %4975 = vrot.lane.b32.xlu0 %v213, 8
      %v4976 = vpop.permute.xlu0 %4975
      %4977 = vrot.lane.b32.xlu0 %v4974, 8
      %v4978 = vpop.permute.xlu0 %4977
      %v4979 = vsel %vm4919, %v4976, %v4978
      %v4981 = vsel %vm1355, %v4892, 0
      %v4984 = vsel %vm1359, %v4979, 0
      %4986 = vmatprep.subr.bf16.mxu0 0
      %4987 = vmatpush1.bf16.msra.mxu0 %v4984
      %4988 = vmatprep.subr.bf16.mxu0 0
      %4989 = vmatpush1.bf16.msra.mxu0 0
      %4990 = vmatprep.subr.bf16.mxu0 0
      %4991 = vmatpush1.bf16.msra.mxu0 0
      %4992 = vmatprep.subr.bf16.mxu0 0
      %4993 = vmatpush1.bf16.msra.mxu0 0
      %4994 = vmatprep.subr.bf16.mxu0 0
      %4995 = vmatpush1.bf16.msra.mxu0 0
      %4996 = vmatprep.subr.bf16.mxu0 0
      %4997 = vmatpush1.bf16.msra.mxu0 0
      %4998 = vmatprep.subr.bf16.mxu0 0
      %4999 = vmatpush1.bf16.msra.mxu0 0
      %5000 = vmatprep.subr.bf16.mxu0 0
      %5001 = vmatpush1.bf16.msra.mxu0 0
      %5002 = vmatprep.subr.bf16.mxu0 0
      %5003 = vmatpush1.bf16.msra.mxu0 0
      %5004 = vmatprep.subr.bf16.mxu0 0
      %5005 = vmatpush1.bf16.msra.mxu0 0
      %5006 = vmatprep.subr.bf16.mxu0 0
      %5007 = vmatpush1.bf16.msra.mxu0 0
      %5008 = vmatprep.subr.bf16.mxu0 0
      %5009 = vmatpush1.bf16.msra.mxu0 0
      %5010 = vmatprep.subr.bf16.mxu0 0
      %5011 = vmatpush1.bf16.msra.mxu0 0
      %5012 = vmatprep.subr.bf16.mxu0 0
      %5013 = vmatpush1.bf16.msra.mxu0 0
      %5014 = vmatprep.subr.bf16.mxu0 0
      %5015 = vmatpush1.bf16.msra.mxu0 0
      %5016 = vmatprep.subr.bf16.mxu0 0
      %5017 = vmatpush1.bf16.msra.mxu0 0
      %5018 = vmatprep.mubr.bf16.mxu0 0
      %5019 = vmatmul.mubr.bf16.gmra.mrb[0].mxu0 %v4981
      %v5020 = vpop.f32.mrb[0].mxu0
      %v5021 = vadd.f32 0.0, %v5020
      %v5022 = vpop.f32.mrb[0].mxu0
      %v5023 = vpop.f32.mrb[0].mxu0
      %v5024 = vpop.f32.mrb[0].mxu0
      %5025 = vdwg.mxu0
      %v5026 = vcombine.high %v269, %v269
      %v5028 = vunpack.c.l.s4 1966171168
      %v5029 = vunpack.c.0.s8 %v5028
      %v5030 = vlaneseq
      %v5031 = vshrl.u32 %v5030, 7
      %v5032 = vsub.s32 %v5029, %v5031
      %v5033 = vrot.slane %v5026, %v5032
      %5034 = vrot.lane.b32.xlu0 %v276, 8
      %v5035 = vpop.permute.xlu0 %5034
      %5036 = vrot.lane.b32.xlu0 %v5033, 8
      %v5037 = vpop.permute.xlu0 %5036
      %v5038 = vsel %vm4919, %v5035, %v5037
      %v5040 = vsel %vm1355, %v4893, 0
      %v5043 = vsel %vm1359, %v5038, 0
      %5045 = vmatprep.subr.bf16.mxu0 0
      %5046 = vmatpush1.bf16.msra.mxu0 %v5043
      %5047 = vmatprep.subr.bf16.mxu0 0
      %5048 = vmatpush1.bf16.msra.mxu0 0
      %5049 = vmatprep.subr.bf16.mxu0 0
      %5050 = vmatpush1.bf16.msra.mxu0 0
      %5051 = vmatprep.subr.bf16.mxu0 0
      %5052 = vmatpush1.bf16.msra.mxu0 0
      %5053 = vmatprep.subr.bf16.mxu0 0
      %5054 = vmatpush1.bf16.msra.mxu0 0
      %5055 = vmatprep.subr.bf16.mxu0 0
      %5056 = vmatpush1.bf16.msra.mxu0 0
      %5057 = vmatprep.subr.bf16.mxu0 0
      %5058 = vmatpush1.bf16.msra.mxu0 0
      %5059 = vmatprep.subr.bf16.mxu0 0
      %5060 = vmatpush1.bf16.msra.mxu0 0
      %5061 = vmatprep.subr.bf16.mxu0 0
      %5062 = vmatpush1.bf16.msra.mxu0 0
      %5063 = vmatprep.subr.bf16.mxu0 0
      %5064 = vmatpush1.bf16.msra.mxu0 0
      %5065 = vmatprep.subr.bf16.mxu0 0
      %5066 = vmatpush1.bf16.msra.mxu0 0
      %5067 = vmatprep.subr.bf16.mxu0 0
      %5068 = vmatpush1.bf16.msra.mxu0 0
      %5069 = vmatprep.subr.bf16.mxu0 0
      %5070 = vmatpush1.bf16.msra.mxu0 0
      %5071 = vmatprep.subr.bf16.mxu0 0
      %5072 = vmatpush1.bf16.msra.mxu0 0
      %5073 = vmatprep.subr.bf16.mxu0 0
      %5074 = vmatpush1.bf16.msra.mxu0 0
      %5075 = vmatprep.subr.bf16.mxu0 0
      %5076 = vmatpush1.bf16.msra.mxu0 0
      %5077 = vmatprep.mubr.bf16.mxu0 0
      %5078 = vmatmul.mubr.bf16.gmra.mrb[0].mxu0 %v5040
      %v5079 = vpop.f32.mrb[0].mxu0
      %v5080 = vadd.f32 0.0, %v5079
      %v5081 = vpop.f32.mrb[0].mxu0
      %v5082 = vpop.f32.mrb[0].mxu0
      %v5083 = vpop.f32.mrb[0].mxu0
      %5084 = vdwg.mxu0
      %v5085 = vcombine.high %v332, %v332
      %v5087 = vunpack.c.l.s4 1966171168
      %v5088 = vunpack.c.0.s8 %v5087
      %v5089 = vlaneseq
      %v5090 = vshrl.u32 %v5089, 7
      %v5091 = vsub.s32 %v5088, %v5090
      %v5092 = vrot.slane %v5085, %v5091
      %5093 = vrot.lane.b32.xlu0 %v339, 8
      %v5094 = vpop.permute.xlu0 %5093
      %5095 = vrot.lane.b32.xlu0 %v5092, 8
      %v5096 = vpop.permute.xlu0 %5095
      %v5097 = vsel %vm4919, %v5094, %v5096
      %v5099 = vsel %vm1355, %v4894, 0
      %v5102 = vsel %vm1359, %v5097, 0
      %5104 = vmatprep.subr.bf16.mxu0 0
      %5105 = vmatpush1.bf16.msra.mxu0 %v5102
      %5106 = vmatprep.subr.bf16.mxu0 0
      %5107 = vmatpush1.bf16.msra.mxu0 0
      %5108 = vmatprep.subr.bf16.mxu0 0
      %5109 = vmatpush1.bf16.msra.mxu0 0
      %5110 = vmatprep.subr.bf16.mxu0 0
      %5111 = vmatpush1.bf16.msra.mxu0 0
      %5112 = vmatprep.subr.bf16.mxu0 0
      %5113 = vmatpush1.bf16.msra.mxu0 0
      %5114 = vmatprep.subr.bf16.mxu0 0
      %5115 = vmatpush1.bf16.msra.mxu0 0
      %5116 = vmatprep.subr.bf16.mxu0 0
      %5117 = vmatpush1.bf16.msra.mxu0 0
      %5118 = vmatprep.subr.bf16.mxu0 0
      %5119 = vmatpush1.bf16.msra.mxu0 0
      %5120 = vmatprep.subr.bf16.mxu0 0
      %5121 = vmatpush1.bf16.msra.mxu0 0
      %5122 = vmatprep.subr.bf16.mxu0 0
      %5123 = vmatpush1.bf16.msra.mxu0 0
      %5124 = vmatprep.subr.bf16.mxu0 0
      %5125 = vmatpush1.bf16.msra.mxu0 0
      %5126 = vmatprep.subr.bf16.mxu0 0
      %5127 = vmatpush1.bf16.msra.mxu0 0
      %5128 = vmatprep.subr.bf16.mxu0 0
      %5129 = vmatpush1.bf16.msra.mxu0 0
      %5130 = vmatprep.subr.bf16.mxu0 0
      %5131 = vmatpush1.bf16.msra.mxu0 0
      %5132 = vmatprep.subr.bf16.mxu0 0
      %5133 = vmatpush1.bf16.msra.mxu0 0
      %5134 = vmatprep.subr.bf16.mxu0 0
      %5135 = vmatpush1.bf16.msra.mxu0 0
      %5136 = vmatprep.mubr.bf16.mxu0 0
      %5137 = vmatmul.mubr.bf16.gmra.mrb[0].mxu0 %v5099
      %v5138 = vpop.f32.mrb[0].mxu0
      %v5139 = vadd.f32 0.0, %v5138
      %v5140 = vpop.f32.mrb[0].mxu0
      %v5141 = vpop.f32.mrb[0].mxu0
      %v5142 = vpop.f32.mrb[0].mxu0
      %5143 = vdwg.mxu0
      %v5144 = vcombine.high %v395, %v395
      %v5146 = vunpack.c.l.s4 1966171168
      %v5147 = vunpack.c.0.s8 %v5146
      %v5148 = vlaneseq
      %v5149 = vshrl.u32 %v5148, 7
      %v5150 = vsub.s32 %v5147, %v5149
      %v5151 = vrot.slane %v5144, %v5150
      %5152 = vrot.lane.b32.xlu0 %v402, 8
      %v5153 = vpop.permute.xlu0 %5152
      %5154 = vrot.lane.b32.xlu0 %v5151, 8
      %v5155 = vpop.permute.xlu0 %5154
      %v5156 = vsel %vm4919, %v5153, %v5155
      %v5158 = vsel %vm1355, %v4895, 0
      %v5161 = vsel %vm1359, %v5156, 0
      %5163 = vmatprep.subr.bf16.mxu0 0
      %5164 = vmatpush1.bf16.msra.mxu0 %v5161
      %5165 = vmatprep.subr.bf16.mxu0 0
      %5166 = vmatpush1.bf16.msra.mxu0 0
      %5167 = vmatprep.subr.bf16.mxu0 0
      %5168 = vmatpush1.bf16.msra.mxu0 0
      %5169 = vmatprep.subr.bf16.mxu0 0
      %5170 = vmatpush1.bf16.msra.mxu0 0
      %5171 = vmatprep.subr.bf16.mxu0 0
      %5172 = vmatpush1.bf16.msra.mxu0 0
      %5173 = vmatprep.subr.bf16.mxu0 0
      %5174 = vmatpush1.bf16.msra.mxu0 0
      %5175 = vmatprep.subr.bf16.mxu0 0
      %5176 = vmatpush1.bf16.msra.mxu0 0
      %5177 = vmatprep.subr.bf16.mxu0 0
      %5178 = vmatpush1.bf16.msra.mxu0 0
      %5179 = vmatprep.subr.bf16.mxu0 0
      %5180 = vmatpush1.bf16.msra.mxu0 0
      %5181 = vmatprep.subr.bf16.mxu0 0
      %5182 = vmatpush1.bf16.msra.mxu0 0
      %5183 = vmatprep.subr.bf16.mxu0 0
      %5184 = vmatpush1.bf16.msra.mxu0 0
      %5185 = vmatprep.subr.bf16.mxu0 0
      %5186 = vmatpush1.bf16.msra.mxu0 0
      %5187 = vmatprep.subr.bf16.mxu0 0
      %5188 = vmatpush1.bf16.msra.mxu0 0
      %5189 = vmatprep.subr.bf16.mxu0 0
      %5190 = vmatpush1.bf16.msra.mxu0 0
      %5191 = vmatprep.subr.bf16.mxu0 0
      %5192 = vmatpush1.bf16.msra.mxu0 0
      %5193 = vmatprep.subr.bf16.mxu0 0
      %5194 = vmatpush1.bf16.msra.mxu0 0
      %5195 = vmatprep.mubr.bf16.mxu0 0
      %5196 = vmatmul.mubr.bf16.gmra.mrb[0].mxu0 %v5158
      %v5197 = vpop.f32.mrb[0].mxu0
      %v5198 = vadd.f32 0.0, %v5197
      %v5199 = vpop.f32.mrb[0].mxu0
      %v5200 = vpop.f32.mrb[0].mxu0
      %v5201 = vpop.f32.mrb[0].mxu0
      %5202 = vdwg.mxu0
      %v5203 = vcombine.high %v458, %v458
      %v5205 = vunpack.c.l.s4 1966171168
      %v5206 = vunpack.c.0.s8 %v5205
      %v5207 = vlaneseq
      %v5208 = vshrl.u32 %v5207, 7
      %v5209 = vsub.s32 %v5206, %v5208
      %v5210 = vrot.slane %v5203, %v5209
      %5211 = vrot.lane.b32.xlu0 %v465, 8
      %v5212 = vpop.permute.xlu0 %5211
      %5213 = vrot.lane.b32.xlu0 %v5210, 8
      %v5214 = vpop.permute.xlu0 %5213
      %v5215 = vsel %vm4919, %v5212, %v5214
      %v5217 = vsel %vm1355, %v4896, 0
      %v5220 = vsel %vm1359, %v5215, 0
      %5222 = vmatprep.subr.bf16.mxu0 0
      %5223 = vmatpush1.bf16.msra.mxu0 %v5220
      %5224 = vmatprep.subr.bf16.mxu0 0
      %5225 = vmatpush1.bf16.msra.mxu0 0
      %5226 = vmatprep.subr.bf16.mxu0 0
      %5227 = vmatpush1.bf16.msra.mxu0 0
      %5228 = vmatprep.subr.bf16.mxu0 0
      %5229 = vmatpush1.bf16.msra.mxu0 0
      %5230 = vmatprep.subr.bf16.mxu0 0
      %5231 = vmatpush1.bf16.msra.mxu0 0
      %5232 = vmatprep.subr.bf16.mxu0 0
      %5233 = vmatpush1.bf16.msra.mxu0 0
      %5234 = vmatprep.subr.bf16.mxu0 0
      %5235 = vmatpush1.bf16.msra.mxu0 0
      %5236 = vmatprep.subr.bf16.mxu0 0
      %5237 = vmatpush1.bf16.msra.mxu0 0
      %5238 = vmatprep.subr.bf16.mxu0 0
      %5239 = vmatpush1.bf16.msra.mxu0 0
      %5240 = vmatprep.subr.bf16.mxu0 0
      %5241 = vmatpush1.bf16.msra.mxu0 0
      %5242 = vmatprep.subr.bf16.mxu0 0
      %5243 = vmatpush1.bf16.msra.mxu0 0
      %5244 = vmatprep.subr.bf16.mxu0 0
      %5245 = vmatpush1.bf16.msra.mxu0 0
      %5246 = vmatprep.subr.bf16.mxu0 0
      %5247 = vmatpush1.bf16.msra.mxu0 0
      %5248 = vmatprep.subr.bf16.mxu0 0
      %5249 = vmatpush1.bf16.msra.mxu0 0
      %5250 = vmatprep.subr.bf16.mxu0 0
      %5251 = vmatpush1.bf16.msra.mxu0 0
      %5252 = vmatprep.subr.bf16.mxu0 0
      %5253 = vmatpush1.bf16.msra.mxu0 0
      %5254 = vmatprep.mubr.bf16.mxu0 0
      %5255 = vmatmul.mubr.bf16.gmra.mrb[0].mxu0 %v5217
      %v5256 = vpop.f32.mrb[0].mxu0
      %v5257 = vadd.f32 0.0, %v5256
      %v5258 = vpop.f32.mrb[0].mxu0
      %v5259 = vpop.f32.mrb[0].mxu0
      %v5260 = vpop.f32.mrb[0].mxu0
      %5261 = vdwg.mxu0
      %v5262 = vcombine.high %v521, %v521
      %v5264 = vunpack.c.l.s4 1966171168
      %v5265 = vunpack.c.0.s8 %v5264
      %v5266 = vlaneseq
      %v5267 = vshrl.u32 %v5266, 7
      %v5268 = vsub.s32 %v5265, %v5267
      %v5269 = vrot.slane %v5262, %v5268
      %5270 = vrot.lane.b32.xlu0 %v528, 8
      %v5271 = vpop.permute.xlu0 %5270
      %5272 = vrot.lane.b32.xlu0 %v5269, 8
      %v5273 = vpop.permute.xlu0 %5272
      %v5274 = vsel %vm4919, %v5271, %v5273
      %v5276 = vsel %vm1355, %v4897, 0
      %v5279 = vsel %vm1359, %v5274, 0
      %5281 = vmatprep.subr.bf16.mxu0 0
      %5282 = vmatpush1.bf16.msra.mxu0 %v5279
      %5283 = vmatprep.subr.bf16.mxu0 0
      %5284 = vmatpush1.bf16.msra.mxu0 0
      %5285 = vmatprep.subr.bf16.mxu0 0
      %5286 = vmatpush1.bf16.msra.mxu0 0
      %5287 = vmatprep.subr.bf16.mxu0 0
      %5288 = vmatpush1.bf16.msra.mxu0 0
      %5289 = vmatprep.subr.bf16.mxu0 0
      %5290 = vmatpush1.bf16.msra.mxu0 0
      %5291 = vmatprep.subr.bf16.mxu0 0
      %5292 = vmatpush1.bf16.msra.mxu0 0
      %5293 = vmatprep.subr.bf16.mxu0 0
      %5294 = vmatpush1.bf16.msra.mxu0 0
      %5295 = vmatprep.subr.bf16.mxu0 0
      %5296 = vmatpush1.bf16.msra.mxu0 0
      %5297 = vmatprep.subr.bf16.mxu0 0
      %5298 = vmatpush1.bf16.msra.mxu0 0
      %5299 = vmatprep.subr.bf16.mxu0 0
      %5300 = vmatpush1.bf16.msra.mxu0 0
      %5301 = vmatprep.subr.bf16.mxu0 0
      %5302 = vmatpush1.bf16.msra.mxu0 0
      %5303 = vmatprep.subr.bf16.mxu0 0
      %5304 = vmatpush1.bf16.msra.mxu0 0
      %5305 = vmatprep.subr.bf16.mxu0 0
      %5306 = vmatpush1.bf16.msra.mxu0 0
      %5307 = vmatprep.subr.bf16.mxu0 0
      %5308 = vmatpush1.bf16.msra.mxu0 0
      %5309 = vmatprep.subr.bf16.mxu0 0
      %5310 = vmatpush1.bf16.msra.mxu0 0
      %5311 = vmatprep.subr.bf16.mxu0 0
      %5312 = vmatpush1.bf16.msra.mxu0 0
      %5313 = vmatprep.mubr.bf16.mxu0 0
      %5314 = vmatmul.mubr.bf16.gmra.mrb[0].mxu0 %v5276
      %v5315 = vpop.f32.mrb[0].mxu0
      %v5316 = vadd.f32 0.0, %v5315
      %v5317 = vpop.f32.mrb[0].mxu0
      %v5318 = vpop.f32.mrb[0].mxu0
      %v5319 = vpop.f32.mrb[0].mxu0
      %5320 = vdwg.mxu0
      %v5321 = vcombine.high %v584, %v584
      %v5323 = vunpack.c.l.s4 1966171168
      %v5324 = vunpack.c.0.s8 %v5323
      %v5325 = vlaneseq
      %v5326 = vshrl.u32 %v5325, 7
      %v5327 = vsub.s32 %v5324, %v5326
      %v5328 = vrot.slane %v5321, %v5327
      %5329 = vrot.lane.b32.xlu0 %v591, 8
      %v5330 = vpop.permute.xlu0 %5329
      %5331 = vrot.lane.b32.xlu0 %v5328, 8
      %v5332 = vpop.permute.xlu0 %5331
      %v5333 = vsel %vm4919, %v5330, %v5332
      %v5335 = vsel %vm1355, %v4898, 0
      %v5338 = vsel %vm1359, %v5333, 0
      %5340 = vmatprep.subr.bf16.mxu0 0
      %5341 = vmatpush1.bf16.msra.mxu0 %v5338
      %5342 = vmatprep.subr.bf16.mxu0 0
      %5343 = vmatpush1.bf16.msra.mxu0 0
      %5344 = vmatprep.subr.bf16.mxu0 0
      %5345 = vmatpush1.bf16.msra.mxu0 0
      %5346 = vmatprep.subr.bf16.mxu0 0
      %5347 = vmatpush1.bf16.msra.mxu0 0
      %5348 = vmatprep.subr.bf16.mxu0 0
      %5349 = vmatpush1.bf16.msra.mxu0 0
      %5350 = vmatprep.subr.bf16.mxu0 0
      %5351 = vmatpush1.bf16.msra.mxu0 0
      %5352 = vmatprep.subr.bf16.mxu0 0
      %5353 = vmatpush1.bf16.msra.mxu0 0
      %5354 = vmatprep.subr.bf16.mxu0 0
      %5355 = vmatpush1.bf16.msra.mxu0 0
      %5356 = vmatprep.subr.bf16.mxu0 0
      %5357 = vmatpush1.bf16.msra.mxu0 0
      %5358 = vmatprep.subr.bf16.mxu0 0
      %5359 = vmatpush1.bf16.msra.mxu0 0
      %5360 = vmatprep.subr.bf16.mxu0 0
      %5361 = vmatpush1.bf16.msra.mxu0 0
      %5362 = vmatprep.subr.bf16.mxu0 0
      %5363 = vmatpush1.bf16.msra.mxu0 0
      %5364 = vmatprep.subr.bf16.mxu0 0
      %5365 = vmatpush1.bf16.msra.mxu0 0
      %5366 = vmatprep.subr.bf16.mxu0 0
      %5367 = vmatpush1.bf16.msra.mxu0 0
      %5368 = vmatprep.subr.bf16.mxu0 0
      %5369 = vmatpush1.bf16.msra.mxu0 0
      %5370 = vmatprep.subr.bf16.mxu0 0
      %5371 = vmatpush1.bf16.msra.mxu0 0
      %5372 = vmatprep.mubr.bf16.mxu0 0
      %5373 = vmatmul.mubr.bf16.gmra.mrb[0].mxu0 %v5335
      %v5374 = vpop.f32.mrb[0].mxu0
      %v5375 = vadd.f32 0.0, %v5374
      %v5376 = vpop.f32.mrb[0].mxu0
      %v5377 = vpop.f32.mrb[0].mxu0
      %v5378 = vpop.f32.mrb[0].mxu0
      %5379 = vdwg.mxu0
      %v5380 = vcombine.high %v647, %v647
      %v5382 = vunpack.c.l.s4 1966171168
      %v5383 = vunpack.c.0.s8 %v5382
      %v5384 = vlaneseq
      %v5385 = vshrl.u32 %v5384, 7
      %v5386 = vsub.s32 %v5383, %v5385
      %v5387 = vrot.slane %v5380, %v5386
      %5388 = vrot.lane.b32.xlu0 %v654, 8
      %v5389 = vpop.permute.xlu0 %5388
      %5390 = vrot.lane.b32.xlu0 %v5387, 8
      %v5391 = vpop.permute.xlu0 %5390
      %v5392 = vsel %vm4919, %v5389, %v5391
      %v5394 = vsel %vm1355, %v4899, 0
      %v5397 = vsel %vm1359, %v5392, 0
      %5399 = vmatprep.subr.bf16.mxu0 0
      %5400 = vmatpush1.bf16.msra.mxu0 %v5397
      %5401 = vmatprep.subr.bf16.mxu0 0
      %5402 = vmatpush1.bf16.msra.mxu0 0
      %5403 = vmatprep.subr.bf16.mxu0 0
      %5404 = vmatpush1.bf16.msra.mxu0 0
      %5405 = vmatprep.subr.bf16.mxu0 0
      %5406 = vmatpush1.bf16.msra.mxu0 0
      %5407 = vmatprep.subr.bf16.mxu0 0
      %5408 = vmatpush1.bf16.msra.mxu0 0
      %5409 = vmatprep.subr.bf16.mxu0 0
      %5410 = vmatpush1.bf16.msra.mxu0 0
      %5411 = vmatprep.subr.bf16.mxu0 0
      %5412 = vmatpush1.bf16.msra.mxu0 0
      %5413 = vmatprep.subr.bf16.mxu0 0
      %5414 = vmatpush1.bf16.msra.mxu0 0
      %5415 = vmatprep.subr.bf16.mxu0 0
      %5416 = vmatpush1.bf16.msra.mxu0 0
      %5417 = vmatprep.subr.bf16.mxu0 0
      %5418 = vmatpush1.bf16.msra.mxu0 0
      %5419 = vmatprep.subr.bf16.mxu0 0
      %5420 = vmatpush1.bf16.msra.mxu0 0
      %5421 = vmatprep.subr.bf16.mxu0 0
      %5422 = vmatpush1.bf16.msra.mxu0 0
      %5423 = vmatprep.subr.bf16.mxu0 0
      %5424 = vmatpush1.bf16.msra.mxu0 0
      %5425 = vmatprep.subr.bf16.mxu0 0
      %5426 = vmatpush1.bf16.msra.mxu0 0
      %5427 = vmatprep.subr.bf16.mxu0 0
      %5428 = vmatpush1.bf16.msra.mxu0 0
      %5429 = vmatprep.subr.bf16.mxu0 0
      %5430 = vmatpush1.bf16.msra.mxu0 0
      %5431 = vmatprep.mubr.bf16.mxu0 0
      %5432 = vmatmul.mubr.bf16.gmra.mrb[0].mxu0 %v5394
      %v5433 = vpop.f32.mrb[0].mxu0
      %v5434 = vadd.f32 0.0, %v5433
      %v5435 = vpop.f32.mrb[0].mxu0
      %v5436 = vpop.f32.mrb[0].mxu0
      %v5437 = vpop.f32.mrb[0].mxu0
      %5438 = vdwg.mxu0
      %v5439 = vcombine.high %v710, %v710
      %v5441 = vunpack.c.l.s4 1966171168
      %v5442 = vunpack.c.0.s8 %v5441
      %v5443 = vlaneseq
      %v5444 = vshrl.u32 %v5443, 7
      %v5445 = vsub.s32 %v5442, %v5444
      %v5446 = vrot.slane %v5439, %v5445
      %5447 = vrot.lane.b32.xlu0 %v717, 8
      %v5448 = vpop.permute.xlu0 %5447
      %5449 = vrot.lane.b32.xlu0 %v5446, 8
      %v5450 = vpop.permute.xlu0 %5449
      %v5451 = vsel %vm4919, %v5448, %v5450
      %v5453 = vsel %vm1355, %v4900, 0
      %v5456 = vsel %vm1359, %v5451, 0
      %5458 = vmatprep.subr.bf16.mxu0 0
      %5459 = vmatpush1.bf16.msra.mxu0 %v5456
      %5460 = vmatprep.subr.bf16.mxu0 0
      %5461 = vmatpush1.bf16.msra.mxu0 0
      %5462 = vmatprep.subr.bf16.mxu0 0
      %5463 = vmatpush1.bf16.msra.mxu0 0
      %5464 = vmatprep.subr.bf16.mxu0 0
      %5465 = vmatpush1.bf16.msra.mxu0 0
      %5466 = vmatprep.subr.bf16.mxu0 0
      %5467 = vmatpush1.bf16.msra.mxu0 0
      %5468 = vmatprep.subr.bf16.mxu0 0
      %5469 = vmatpush1.bf16.msra.mxu0 0
      %5470 = vmatprep.subr.bf16.mxu0 0
      %5471 = vmatpush1.bf16.msra.mxu0 0
      %5472 = vmatprep.subr.bf16.mxu0 0
      %5473 = vmatpush1.bf16.msra.mxu0 0
      %5474 = vmatprep.subr.bf16.mxu0 0
      %5475 = vmatpush1.bf16.msra.mxu0 0
      %5476 = vmatprep.subr.bf16.mxu0 0
      %5477 = vmatpush1.bf16.msra.mxu0 0
      %5478 = vmatprep.subr.bf16.mxu0 0
      %5479 = vmatpush1.bf16.msra.mxu0 0
      %5480 = vmatprep.subr.bf16.mxu0 0
      %5481 = vmatpush1.bf16.msra.mxu0 0
      %5482 = vmatprep.subr.bf16.mxu0 0
      %5483 = vmatpush1.bf16.msra.mxu0 0
      %5484 = vmatprep.subr.bf16.mxu0 0
      %5485 = vmatpush1.bf16.msra.mxu0 0
      %5486 = vmatprep.subr.bf16.mxu0 0
      %5487 = vmatpush1.bf16.msra.mxu0 0
      %5488 = vmatprep.subr.bf16.mxu0 0
      %5489 = vmatpush1.bf16.msra.mxu0 0
      %5490 = vmatprep.mubr.bf16.mxu0 0
      %5491 = vmatmul.mubr.bf16.gmra.mrb[0].mxu0 %v5453
      %v5492 = vpop.f32.mrb[0].mxu0
      %v5493 = vadd.f32 0.0, %v5492
      %v5494 = vpop.f32.mrb[0].mxu0
      %v5495 = vpop.f32.mrb[0].mxu0
      %v5496 = vpop.f32.mrb[0].mxu0
      %5497 = vdwg.mxu0
      %v5498 = vcombine.high %v773, %v773
      %v5500 = vunpack.c.l.s4 1966171168
      %v5501 = vunpack.c.0.s8 %v5500
      %v5502 = vlaneseq
      %v5503 = vshrl.u32 %v5502, 7
      %v5504 = vsub.s32 %v5501, %v5503
      %v5505 = vrot.slane %v5498, %v5504
      %5506 = vrot.lane.b32.xlu0 %v780, 8
      %v5507 = vpop.permute.xlu0 %5506
      %5508 = vrot.lane.b32.xlu0 %v5505, 8
      %v5509 = vpop.permute.xlu0 %5508
      %v5510 = vsel %vm4919, %v5507, %v5509
      %v5512 = vsel %vm1355, %v4901, 0
      %v5515 = vsel %vm1359, %v5510, 0
      %5517 = vmatprep.subr.bf16.mxu0 0
      %5518 = vmatpush1.bf16.msra.mxu0 %v5515
      %5519 = vmatprep.subr.bf16.mxu0 0
      %5520 = vmatpush1.bf16.msra.mxu0 0
      %5521 = vmatprep.subr.bf16.mxu0 0
      %5522 = vmatpush1.bf16.msra.mxu0 0
      %5523 = vmatprep.subr.bf16.mxu0 0
      %5524 = vmatpush1.bf16.msra.mxu0 0
      %5525 = vmatprep.subr.bf16.mxu0 0
      %5526 = vmatpush1.bf16.msra.mxu0 0
      %5527 = vmatprep.subr.bf16.mxu0 0
      %5528 = vmatpush1.bf16.msra.mxu0 0
      %5529 = vmatprep.subr.bf16.mxu0 0
      %5530 = vmatpush1.bf16.msra.mxu0 0
      %5531 = vmatprep.subr.bf16.mxu0 0
      %5532 = vmatpush1.bf16.msra.mxu0 0
      %5533 = vmatprep.subr.bf16.mxu0 0
      %5534 = vmatpush1.bf16.msra.mxu0 0
      %5535 = vmatprep.subr.bf16.mxu0 0
      %5536 = vmatpush1.bf16.msra.mxu0 0
      %5537 = vmatprep.subr.bf16.mxu0 0
      %5538 = vmatpush1.bf16.msra.mxu0 0
      %5539 = vmatprep.subr.bf16.mxu0 0
      %5540 = vmatpush1.bf16.msra.mxu0 0
      %5541 = vmatprep.subr.bf16.mxu0 0
      %5542 = vmatpush1.bf16.msra.mxu0 0
      %5543 = vmatprep.subr.bf16.mxu0 0
      %5544 = vmatpush1.bf16.msra.mxu0 0
      %5545 = vmatprep.subr.bf16.mxu0 0
      %5546 = vmatpush1.bf16.msra.mxu0 0
      %5547 = vmatprep.subr.bf16.mxu0 0
      %5548 = vmatpush1.bf16.msra.mxu0 0
      %5549 = vmatprep.mubr.bf16.mxu0 0
      %5550 = vmatmul.mubr.bf16.gmra.mrb[0].mxu0 %v5512
      %v5551 = vpop.f32.mrb[0].mxu0
      %v5552 = vadd.f32 0.0, %v5551
      %v5553 = vpop.f32.mrb[0].mxu0
      %v5554 = vpop.f32.mrb[0].mxu0
      %v5555 = vpop.f32.mrb[0].mxu0
      %5556 = vdwg.mxu0
      %v5557 = vcombine.high %v836, %v836
      %v5559 = vunpack.c.l.s4 1966171168
      %v5560 = vunpack.c.0.s8 %v5559
      %v5561 = vlaneseq
      %v5562 = vshrl.u32 %v5561, 7
      %v5563 = vsub.s32 %v5560, %v5562
      %v5564 = vrot.slane %v5557, %v5563
      %5565 = vrot.lane.b32.xlu0 %v843, 8
      %v5566 = vpop.permute.xlu0 %5565
      %5567 = vrot.lane.b32.xlu0 %v5564, 8
      %v5568 = vpop.permute.xlu0 %5567
      %v5569 = vsel %vm4919, %v5566, %v5568
      %v5571 = vsel %vm1355, %v4902, 0
      %v5574 = vsel %vm1359, %v5569, 0
      %5576 = vmatprep.subr.bf16.mxu0 0
      %5577 = vmatpush1.bf16.msra.mxu0 %v5574
      %5578 = vmatprep.subr.bf16.mxu0 0
      %5579 = vmatpush1.bf16.msra.mxu0 0
      %5580 = vmatprep.subr.bf16.mxu0 0
      %5581 = vmatpush1.bf16.msra.mxu0 0
      %5582 = vmatprep.subr.bf16.mxu0 0
      %5583 = vmatpush1.bf16.msra.mxu0 0
      %5584 = vmatprep.subr.bf16.mxu0 0
      %5585 = vmatpush1.bf16.msra.mxu0 0
      %5586 = vmatprep.subr.bf16.mxu0 0
      %5587 = vmatpush1.bf16.msra.mxu0 0
      %5588 = vmatprep.subr.bf16.mxu0 0
      %5589 = vmatpush1.bf16.msra.mxu0 0
      %5590 = vmatprep.subr.bf16.mxu0 0
      %5591 = vmatpush1.bf16.msra.mxu0 0
      %5592 = vmatprep.subr.bf16.mxu0 0
      %5593 = vmatpush1.bf16.msra.mxu0 0
      %5594 = vmatprep.subr.bf16.mxu0 0
      %5595 = vmatpush1.bf16.msra.mxu0 0
      %5596 = vmatprep.subr.bf16.mxu0 0
      %5597 = vmatpush1.bf16.msra.mxu0 0
      %5598 = vmatprep.subr.bf16.mxu0 0
      %5599 = vmatpush1.bf16.msra.mxu0 0
      %5600 = vmatprep.subr.bf16.mxu0 0
      %5601 = vmatpush1.bf16.msra.mxu0 0
      %5602 = vmatprep.subr.bf16.mxu0 0
      %5603 = vmatpush1.bf16.msra.mxu0 0
      %5604 = vmatprep.subr.bf16.mxu0 0
      %5605 = vmatpush1.bf16.msra.mxu0 0
      %5606 = vmatprep.subr.bf16.mxu0 0
      %5607 = vmatpush1.bf16.msra.mxu0 0
      %5608 = vmatprep.mubr.bf16.mxu0 0
      %5609 = vmatmul.mubr.bf16.gmra.mrb[0].mxu0 %v5571
      %v5610 = vpop.f32.mrb[0].mxu0
      %v5611 = vadd.f32 0.0, %v5610
      %v5612 = vpop.f32.mrb[0].mxu0
      %v5613 = vpop.f32.mrb[0].mxu0
      %v5614 = vpop.f32.mrb[0].mxu0
      %5615 = vdwg.mxu0
      %v5616 = vcombine.high %v899, %v899
      %v5618 = vunpack.c.l.s4 1966171168
      %v5619 = vunpack.c.0.s8 %v5618
      %v5620 = vlaneseq
      %v5621 = vshrl.u32 %v5620, 7
      %v5622 = vsub.s32 %v5619, %v5621
      %v5623 = vrot.slane %v5616, %v5622
      %5624 = vrot.lane.b32.xlu0 %v906, 8
      %v5625 = vpop.permute.xlu0 %5624
      %5626 = vrot.lane.b32.xlu0 %v5623, 8
      %v5627 = vpop.permute.xlu0 %5626
      %v5628 = vsel %vm4919, %v5625, %v5627
      %v5630 = vsel %vm1355, %v4903, 0
      %v5633 = vsel %vm1359, %v5628, 0
      %5635 = vmatprep.subr.bf16.mxu0 0
      %5636 = vmatpush1.bf16.msra.mxu0 %v5633
      %5637 = vmatprep.subr.bf16.mxu0 0
      %5638 = vmatpush1.bf16.msra.mxu0 0
      %5639 = vmatprep.subr.bf16.mxu0 0
      %5640 = vmatpush1.bf16.msra.mxu0 0
      %5641 = vmatprep.subr.bf16.mxu0 0
      %5642 = vmatpush1.bf16.msra.mxu0 0
      %5643 = vmatprep.subr.bf16.mxu0 0
      %5644 = vmatpush1.bf16.msra.mxu0 0
      %5645 = vmatprep.subr.bf16.mxu0 0
      %5646 = vmatpush1.bf16.msra.mxu0 0
      %5647 = vmatprep.subr.bf16.mxu0 0
      %5648 = vmatpush1.bf16.msra.mxu0 0
      %5649 = vmatprep.subr.bf16.mxu0 0
      %5650 = vmatpush1.bf16.msra.mxu0 0
      %5651 = vmatprep.subr.bf16.mxu0 0
      %5652 = vmatpush1.bf16.msra.mxu0 0
      %5653 = vmatprep.subr.bf16.mxu0 0
      %5654 = vmatpush1.bf16.msra.mxu0 0
      %5655 = vmatprep.subr.bf16.mxu0 0
      %5656 = vmatpush1.bf16.msra.mxu0 0
      %5657 = vmatprep.subr.bf16.mxu0 0
      %5658 = vmatpush1.bf16.msra.mxu0 0
      %5659 = vmatprep.subr.bf16.mxu0 0
      %5660 = vmatpush1.bf16.msra.mxu0 0
      %5661 = vmatprep.subr.bf16.mxu0 0
      %5662 = vmatpush1.bf16.msra.mxu0 0
      %5663 = vmatprep.subr.bf16.mxu0 0
      %5664 = vmatpush1.bf16.msra.mxu0 0
      %5665 = vmatprep.subr.bf16.mxu0 0
      %5666 = vmatpush1.bf16.msra.mxu0 0
      %5667 = vmatprep.mubr.bf16.mxu0 0
      %5668 = vmatmul.mubr.bf16.gmra.mrb[0].mxu0 %v5630
      %v5669 = vpop.f32.mrb[0].mxu0
      %v5670 = vadd.f32 0.0, %v5669
      %v5671 = vpop.f32.mrb[0].mxu0
      %v5672 = vpop.f32.mrb[0].mxu0
      %v5673 = vpop.f32.mrb[0].mxu0
      %5674 = vdwg.mxu0
      %v5675 = vcombine.high %v962, %v962
      %v5677 = vunpack.c.l.s4 1966171168
      %v5678 = vunpack.c.0.s8 %v5677
      %v5679 = vlaneseq
      %v5680 = vshrl.u32 %v5679, 7
      %v5681 = vsub.s32 %v5678, %v5680
      %v5682 = vrot.slane %v5675, %v5681
      %5683 = vrot.lane.b32.xlu0 %v969, 8
      %v5684 = vpop.permute.xlu0 %5683
      %5685 = vrot.lane.b32.xlu0 %v5682, 8
      %v5686 = vpop.permute.xlu0 %5685
      %v5687 = vsel %vm4919, %v5684, %v5686
      %v5689 = vsel %vm1355, %v4904, 0
      %v5692 = vsel %vm1359, %v5687, 0
      %5694 = vmatprep.subr.bf16.mxu0 0
      %5695 = vmatpush1.bf16.msra.mxu0 %v5692
      %5696 = vmatprep.subr.bf16.mxu0 0
      %5697 = vmatpush1.bf16.msra.mxu0 0
      %5698 = vmatprep.subr.bf16.mxu0 0
      %5699 = vmatpush1.bf16.msra.mxu0 0
      %5700 = vmatprep.subr.bf16.mxu0 0
      %5701 = vmatpush1.bf16.msra.mxu0 0
      %5702 = vmatprep.subr.bf16.mxu0 0
      %5703 = vmatpush1.bf16.msra.mxu0 0
      %5704 = vmatprep.subr.bf16.mxu0 0
      %5705 = vmatpush1.bf16.msra.mxu0 0
      %5706 = vmatprep.subr.bf16.mxu0 0
      %5707 = vmatpush1.bf16.msra.mxu0 0
      %5708 = vmatprep.subr.bf16.mxu0 0
      %5709 = vmatpush1.bf16.msra.mxu0 0
      %5710 = vmatprep.subr.bf16.mxu0 0
      %5711 = vmatpush1.bf16.msra.mxu0 0
      %5712 = vmatprep.subr.bf16.mxu0 0
      %5713 = vmatpush1.bf16.msra.mxu0 0
      %5714 = vmatprep.subr.bf16.mxu0 0
      %5715 = vmatpush1.bf16.msra.mxu0 0
      %5716 = vmatprep.subr.bf16.mxu0 0
      %5717 = vmatpush1.bf16.msra.mxu0 0
      %5718 = vmatprep.subr.bf16.mxu0 0
      %5719 = vmatpush1.bf16.msra.mxu0 0
      %5720 = vmatprep.subr.bf16.mxu0 0
      %5721 = vmatpush1.bf16.msra.mxu0 0
      %5722 = vmatprep.subr.bf16.mxu0 0
      %5723 = vmatpush1.bf16.msra.mxu0 0
      %5724 = vmatprep.subr.bf16.mxu0 0
      %5725 = vmatpush1.bf16.msra.mxu0 0
      %5726 = vmatprep.mubr.bf16.mxu0 0
      %5727 = vmatmul.mubr.bf16.gmra.mrb[0].mxu0 %v5689
      %v5728 = vpop.f32.mrb[0].mxu0
      %v5729 = vadd.f32 0.0, %v5728
      %v5730 = vpop.f32.mrb[0].mxu0
      %v5731 = vpop.f32.mrb[0].mxu0
      %v5732 = vpop.f32.mrb[0].mxu0
      %5733 = vdwg.mxu0
      %v5734 = vcombine.high %v1025, %v1025
      %v5736 = vunpack.c.l.s4 1966171168
      %v5737 = vunpack.c.0.s8 %v5736
      %v5738 = vlaneseq
      %v5739 = vshrl.u32 %v5738, 7
      %v5740 = vsub.s32 %v5737, %v5739
      %v5741 = vrot.slane %v5734, %v5740
      %5742 = vrot.lane.b32.xlu0 %v1032, 8
      %v5743 = vpop.permute.xlu0 %5742
      %5744 = vrot.lane.b32.xlu0 %v5741, 8
      %v5745 = vpop.permute.xlu0 %5744
      %v5746 = vsel %vm4919, %v5743, %v5745
      %v5748 = vsel %vm1355, %v4905, 0
      %v5751 = vsel %vm1359, %v5746, 0
      %5753 = vmatprep.subr.bf16.mxu0 0
      %5754 = vmatpush1.bf16.msra.mxu0 %v5751
      %5755 = vmatprep.subr.bf16.mxu0 0
      %5756 = vmatpush1.bf16.msra.mxu0 0
      %5757 = vmatprep.subr.bf16.mxu0 0
      %5758 = vmatpush1.bf16.msra.mxu0 0
      %5759 = vmatprep.subr.bf16.mxu0 0
      %5760 = vmatpush1.bf16.msra.mxu0 0
      %5761 = vmatprep.subr.bf16.mxu0 0
      %5762 = vmatpush1.bf16.msra.mxu0 0
      %5763 = vmatprep.subr.bf16.mxu0 0
      %5764 = vmatpush1.bf16.msra.mxu0 0
      %5765 = vmatprep.subr.bf16.mxu0 0
      %5766 = vmatpush1.bf16.msra.mxu0 0
      %5767 = vmatprep.subr.bf16.mxu0 0
      %5768 = vmatpush1.bf16.msra.mxu0 0
      %5769 = vmatprep.subr.bf16.mxu0 0
      %5770 = vmatpush1.bf16.msra.mxu0 0
      %5771 = vmatprep.subr.bf16.mxu0 0
      %5772 = vmatpush1.bf16.msra.mxu0 0
      %5773 = vmatprep.subr.bf16.mxu0 0
      %5774 = vmatpush1.bf16.msra.mxu0 0
      %5775 = vmatprep.subr.bf16.mxu0 0
      %5776 = vmatpush1.bf16.msra.mxu0 0
      %5777 = vmatprep.subr.bf16.mxu0 0
      %5778 = vmatpush1.bf16.msra.mxu0 0
      %5779 = vmatprep.subr.bf16.mxu0 0
      %5780 = vmatpush1.bf16.msra.mxu0 0
      %5781 = vmatprep.subr.bf16.mxu0 0
      %5782 = vmatpush1.bf16.msra.mxu0 0
      %5783 = vmatprep.subr.bf16.mxu0 0
      %5784 = vmatpush1.bf16.msra.mxu0 0
      %5785 = vmatprep.mubr.bf16.mxu0 0
      %5786 = vmatmul.mubr.bf16.gmra.mrb[0].mxu0 %v5748
      %v5787 = vpop.f32.mrb[0].mxu0
      %v5788 = vadd.f32 0.0, %v5787
      %v5789 = vpop.f32.mrb[0].mxu0
      %v5790 = vpop.f32.mrb[0].mxu0
      %v5791 = vpop.f32.mrb[0].mxu0
      %5792 = vdwg.mxu0
      %v5793 = vcombine.high %v1088, %v1088
      %v5795 = vunpack.c.l.s4 1966171168
      %v5796 = vunpack.c.0.s8 %v5795
      %v5797 = vlaneseq
      %v5798 = vshrl.u32 %v5797, 7
      %v5799 = vsub.s32 %v5796, %v5798
      %v5800 = vrot.slane %v5793, %v5799
      %5801 = vrot.lane.b32.xlu0 %v1095, 8
      %v5802 = vpop.permute.xlu0 %5801
      %5803 = vrot.lane.b32.xlu0 %v5800, 8
      %v5804 = vpop.permute.xlu0 %5803
      %v5805 = vsel %vm4919, %v5802, %v5804
      %v5807 = vsel %vm1355, %v4906, 0
      %v5810 = vsel %vm1359, %v5805, 0
      %5812 = vmatprep.subr.bf16.mxu0 0
      %5813 = vmatpush1.bf16.msra.mxu0 %v5810
      %5814 = vmatprep.subr.bf16.mxu0 0
      %5815 = vmatpush1.bf16.msra.mxu0 0
      %5816 = vmatprep.subr.bf16.mxu0 0
      %5817 = vmatpush1.bf16.msra.mxu0 0
      %5818 = vmatprep.subr.bf16.mxu0 0
      %5819 = vmatpush1.bf16.msra.mxu0 0
      %5820 = vmatprep.subr.bf16.mxu0 0
      %5821 = vmatpush1.bf16.msra.mxu0 0
      %5822 = vmatprep.subr.bf16.mxu0 0
      %5823 = vmatpush1.bf16.msra.mxu0 0
      %5824 = vmatprep.subr.bf16.mxu0 0
      %5825 = vmatpush1.bf16.msra.mxu0 0
      %5826 = vmatprep.subr.bf16.mxu0 0
      %5827 = vmatpush1.bf16.msra.mxu0 0
      %5828 = vmatprep.subr.bf16.mxu0 0
      %5829 = vmatpush1.bf16.msra.mxu0 0
      %5830 = vmatprep.subr.bf16.mxu0 0
      %5831 = vmatpush1.bf16.msra.mxu0 0
      %5832 = vmatprep.subr.bf16.mxu0 0
      %5833 = vmatpush1.bf16.msra.mxu0 0
      %5834 = vmatprep.subr.bf16.mxu0 0
      %5835 = vmatpush1.bf16.msra.mxu0 0
      %5836 = vmatprep.subr.bf16.mxu0 0
      %5837 = vmatpush1.bf16.msra.mxu0 0
      %5838 = vmatprep.subr.bf16.mxu0 0
      %5839 = vmatpush1.bf16.msra.mxu0 0
      %5840 = vmatprep.subr.bf16.mxu0 0
      %5841 = vmatpush1.bf16.msra.mxu0 0
      %5842 = vmatprep.subr.bf16.mxu0 0
      %5843 = vmatpush1.bf16.msra.mxu0 0
      %5844 = vmatprep.mubr.bf16.mxu0 0
      %5845 = vmatmul.mubr.bf16.gmra.mrb[0].mxu0 %v5807
      %v5846 = vpop.f32.mrb[0].mxu0
      %v5847 = vadd.f32 0.0, %v5846
      %v5848 = vpop.f32.mrb[0].mxu0
      %v5849 = vpop.f32.mrb[0].mxu0
      %v5850 = vpop.f32.mrb[0].mxu0
      %5851 = vdwg.mxu0
      %5852 = vrot.lane.b32.xlu0 %v149, 92
      %v5853 = vpop.permute.xlu0 %5852
      %5854 = vrot.lane.b32.xlu0 %v149, 44
      %v5855 = vpop.permute.xlu0 %5854
      %v5857 = vsel %vm152, %v5853, 0
      %v5860 = vsel %vm152, %v5855, 0
      %5862 = vmatprep.subr.bf16.mxu0 0
      %5863 = vmatpush1.bf16.xpose.msra.mxu0 %v5860
      %5864 = vmatprep.subr.bf16.mxu0 0
      %5865 = vmatpush1.bf16.xpose.msra.mxu0 0
      %5866 = vmatprep.subr.bf16.mxu0 0
      %5867 = vmatpush1.bf16.xpose.msra.mxu0 0
      %5868 = vmatprep.subr.bf16.mxu0 0
      %5869 = vmatpush1.bf16.xpose.msra.mxu0 0
      %5870 = vmatprep.subr.bf16.mxu0 0
      %5871 = vmatpush1.bf16.xpose.msra.mxu0 0
      %5872 = vmatprep.subr.bf16.mxu0 0
      %5873 = vmatpush1.bf16.xpose.msra.mxu0 0
      %5874 = vmatprep.subr.bf16.mxu0 0
      %5875 = vmatpush1.bf16.xpose.msra.mxu0 0
      %5876 = vmatprep.subr.bf16.mxu0 0
      %5877 = vmatpush1.bf16.xpose.msra.mxu0 0
      %5878 = vmatprep.subr.bf16.mxu0 0
      %5879 = vmatpush1.bf16.xpose.msra.mxu0 0
      %5880 = vmatprep.subr.bf16.mxu0 0
      %5881 = vmatpush1.bf16.xpose.msra.mxu0 0
      %5882 = vmatprep.subr.bf16.mxu0 0
      %5883 = vmatpush1.bf16.xpose.msra.mxu0 0
      %5884 = vmatprep.subr.bf16.mxu0 0
      %5885 = vmatpush1.bf16.xpose.msra.mxu0 0
      %5886 = vmatprep.subr.bf16.mxu0 0
      %5887 = vmatpush1.bf16.xpose.msra.mxu0 0
      %5888 = vmatprep.subr.bf16.mxu0 0
      %5889 = vmatpush1.bf16.xpose.msra.mxu0 0
      %5890 = vmatprep.subr.bf16.mxu0 0
      %5891 = vmatpush1.bf16.xpose.msra.mxu0 0
      %5892 = vmatprep.subr.bf16.mxu0 0
      %5893 = vmatpush1.bf16.xpose.msra.mxu0 0
      %5894 = vmatprep.mubr.bf16.mxu0 0
      %5895 = vmatmul.mubr.bf16.gmra.mrb[0].mxu0 %v5857
      %v5896 = vpop.f32.mrb[0].mxu0
      %v5897 = vadd.f32 0.0, %v5896
      %v5898 = vpop.f32.mrb[0].mxu0
      %v5899 = vpop.f32.mrb[0].mxu0
      %v5900 = vpop.f32.mrb[0].mxu0
      %5901 = vdwg.mxu0
      %5902 = vrot.lane.b32.xlu0 %v213, 92
      %v5903 = vpop.permute.xlu0 %5902
      %5904 = vrot.lane.b32.xlu0 %v213, 44
      %v5905 = vpop.permute.xlu0 %5904
      %v5907 = vsel %vm152, %v5903, 0
      %v5910 = vsel %vm152, %v5905, 0
      %5912 = vmatprep.subr.bf16.mxu0 0
      %5913 = vmatpush1.bf16.xpose.msra.mxu0 %v5910
      %5914 = vmatprep.subr.bf16.mxu0 0
      %5915 = vmatpush1.bf16.xpose.msra.mxu0 0
      %5916 = vmatprep.subr.bf16.mxu0 0
      %5917 = vmatpush1.bf16.xpose.msra.mxu0 0
      %5918 = vmatprep.subr.bf16.mxu0 0
      %5919 = vmatpush1.bf16.xpose.msra.mxu0 0
      %5920 = vmatprep.subr.bf16.mxu0 0
      %5921 = vmatpush1.bf16.xpose.msra.mxu0 0
      %5922 = vmatprep.subr.bf16.mxu0 0
      %5923 = vmatpush1.bf16.xpose.msra.mxu0 0
      %5924 = vmatprep.subr.bf16.mxu0 0
      %5925 = vmatpush1.bf16.xpose.msra.mxu0 0
      %5926 = vmatprep.subr.bf16.mxu0 0
      %5927 = vmatpush1.bf16.xpose.msra.mxu0 0
      %5928 = vmatprep.subr.bf16.mxu0 0
      %5929 = vmatpush1.bf16.xpose.msra.mxu0 0
      %5930 = vmatprep.subr.bf16.mxu0 0
      %5931 = vmatpush1.bf16.xpose.msra.mxu0 0
      %5932 = vmatprep.subr.bf16.mxu0 0
      %5933 = vmatpush1.bf16.xpose.msra.mxu0 0
      %5934 = vmatprep.subr.bf16.mxu0 0
      %5935 = vmatpush1.bf16.xpose.msra.mxu0 0
      %5936 = vmatprep.subr.bf16.mxu0 0
      %5937 = vmatpush1.bf16.xpose.msra.mxu0 0
      %5938 = vmatprep.subr.bf16.mxu0 0
      %5939 = vmatpush1.bf16.xpose.msra.mxu0 0
      %5940 = vmatprep.subr.bf16.mxu0 0
      %5941 = vmatpush1.bf16.xpose.msra.mxu0 0
      %5942 = vmatprep.subr.bf16.mxu0 0
      %5943 = vmatpush1.bf16.xpose.msra.mxu0 0
      %5944 = vmatprep.mubr.bf16.mxu0 0
      %5945 = vmatmul.mubr.bf16.gmra.mrb[0].mxu0 %v5907
      %v5946 = vpop.f32.mrb[0].mxu0
      %v5947 = vadd.f32 0.0, %v5946
      %v5948 = vpop.f32.mrb[0].mxu0
      %v5949 = vpop.f32.mrb[0].mxu0
      %v5950 = vpop.f32.mrb[0].mxu0
      %5951 = vdwg.mxu0
      %5952 = vrot.lane.b32.xlu0 %v276, 92
      %v5953 = vpop.permute.xlu0 %5952
      %5954 = vrot.lane.b32.xlu0 %v276, 44
      %v5955 = vpop.permute.xlu0 %5954
      %v5957 = vsel %vm152, %v5953, 0
      %v5960 = vsel %vm152, %v5955, 0
      %5962 = vmatprep.subr.bf16.mxu0 0
      %5963 = vmatpush1.bf16.xpose.msra.mxu0 %v5960
      %5964 = vmatprep.subr.bf16.mxu0 0
      %5965 = vmatpush1.bf16.xpose.msra.mxu0 0
      %5966 = vmatprep.subr.bf16.mxu0 0
      %5967 = vmatpush1.bf16.xpose.msra.mxu0 0
      %5968 = vmatprep.subr.bf16.mxu0 0
      %5969 = vmatpush1.bf16.xpose.msra.mxu0 0
      %5970 = vmatprep.subr.bf16.mxu0 0
      %5971 = vmatpush1.bf16.xpose.msra.mxu0 0
      %5972 = vmatprep.subr.bf16.mxu0 0
      %5973 = vmatpush1.bf16.xpose.msra.mxu0 0
      %5974 = vmatprep.subr.bf16.mxu0 0
      %5975 = vmatpush1.bf16.xpose.msra.mxu0 0
      %5976 = vmatprep.subr.bf16.mxu0 0
      %5977 = vmatpush1.bf16.xpose.msra.mxu0 0
      %5978 = vmatprep.subr.bf16.mxu0 0
      %5979 = vmatpush1.bf16.xpose.msra.mxu0 0
      %5980 = vmatprep.subr.bf16.mxu0 0
      %5981 = vmatpush1.bf16.xpose.msra.mxu0 0
      %5982 = vmatprep.subr.bf16.mxu0 0
      %5983 = vmatpush1.bf16.xpose.msra.mxu0 0
      %5984 = vmatprep.subr.bf16.mxu0 0
      %5985 = vmatpush1.bf16.xpose.msra.mxu0 0
      %5986 = vmatprep.subr.bf16.mxu0 0
      %5987 = vmatpush1.bf16.xpose.msra.mxu0 0
      %5988 = vmatprep.subr.bf16.mxu0 0
      %5989 = vmatpush1.bf16.xpose.msra.mxu0 0
      %5990 = vmatprep.subr.bf16.mxu0 0
      %5991 = vmatpush1.bf16.xpose.msra.mxu0 0
      %5992 = vmatprep.subr.bf16.mxu0 0
      %5993 = vmatpush1.bf16.xpose.msra.mxu0 0
      %5994 = vmatprep.mubr.bf16.mxu0 0
      %5995 = vmatmul.mubr.bf16.gmra.mrb[0].mxu0 %v5957
      %v5996 = vpop.f32.mrb[0].mxu0
      %v5997 = vadd.f32 0.0, %v5996
      %v5998 = vpop.f32.mrb[0].mxu0
      %v5999 = vpop.f32.mrb[0].mxu0
      %v6000 = vpop.f32.mrb[0].mxu0
      %6001 = vdwg.mxu0
      %6002 = vrot.lane.b32.xlu0 %v339, 92
      %v6003 = vpop.permute.xlu0 %6002
      %6004 = vrot.lane.b32.xlu0 %v339, 44
      %v6005 = vpop.permute.xlu0 %6004
      %v6007 = vsel %vm152, %v6003, 0
      %v6010 = vsel %vm152, %v6005, 0
      %6012 = vmatprep.subr.bf16.mxu0 0
      %6013 = vmatpush1.bf16.xpose.msra.mxu0 %v6010
      %6014 = vmatprep.subr.bf16.mxu0 0
      %6015 = vmatpush1.bf16.xpose.msra.mxu0 0
      %6016 = vmatprep.subr.bf16.mxu0 0
      %6017 = vmatpush1.bf16.xpose.msra.mxu0 0
      %6018 = vmatprep.subr.bf16.mxu0 0
      %6019 = vmatpush1.bf16.xpose.msra.mxu0 0
      %6020 = vmatprep.subr.bf16.mxu0 0
      %6021 = vmatpush1.bf16.xpose.msra.mxu0 0
      %6022 = vmatprep.subr.bf16.mxu0 0
      %6023 = vmatpush1.bf16.xpose.msra.mxu0 0
      %6024 = vmatprep.subr.bf16.mxu0 0
      %6025 = vmatpush1.bf16.xpose.msra.mxu0 0
      %6026 = vmatprep.subr.bf16.mxu0 0
      %6027 = vmatpush1.bf16.xpose.msra.mxu0 0
      %6028 = vmatprep.subr.bf16.mxu0 0
      %6029 = vmatpush1.bf16.xpose.msra.mxu0 0
      %6030 = vmatprep.subr.bf16.mxu0 0
      %6031 = vmatpush1.bf16.xpose.msra.mxu0 0
      %6032 = vmatprep.subr.bf16.mxu0 0
      %6033 = vmatpush1.bf16.xpose.msra.mxu0 0
      %6034 = vmatprep.subr.bf16.mxu0 0
      %6035 = vmatpush1.bf16.xpose.msra.mxu0 0
      %6036 = vmatprep.subr.bf16.mxu0 0
      %6037 = vmatpush1.bf16.xpose.msra.mxu0 0
      %6038 = vmatprep.subr.bf16.mxu0 0
      %6039 = vmatpush1.bf16.xpose.msra.mxu0 0
      %6040 = vmatprep.subr.bf16.mxu0 0
      %6041 = vmatpush1.bf16.xpose.msra.mxu0 0
      %6042 = vmatprep.subr.bf16.mxu0 0
      %6043 = vmatpush1.bf16.xpose.msra.mxu0 0
      %6044 = vmatprep.mubr.bf16.mxu0 0
      %6045 = vmatmul.mubr.bf16.gmra.mrb[0].mxu0 %v6007
      %v6046 = vpop.f32.mrb[0].mxu0
      %v6047 = vadd.f32 0.0, %v6046
      %v6048 = vpop.f32.mrb[0].mxu0
      %v6049 = vpop.f32.mrb[0].mxu0
      %v6050 = vpop.f32.mrb[0].mxu0
      %6051 = vdwg.mxu0
      %6052 = vrot.lane.b32.xlu0 %v402, 92
      %v6053 = vpop.permute.xlu0 %6052
      %6054 = vrot.lane.b32.xlu0 %v402, 44
      %v6055 = vpop.permute.xlu0 %6054
      %v6057 = vsel %vm152, %v6053, 0
      %v6060 = vsel %vm152, %v6055, 0
      %6062 = vmatprep.subr.bf16.mxu0 0
      %6063 = vmatpush1.bf16.xpose.msra.mxu0 %v6060
      %6064 = vmatprep.subr.bf16.mxu0 0
      %6065 = vmatpush1.bf16.xpose.msra.mxu0 0
      %6066 = vmatprep.subr.bf16.mxu0 0
      %6067 = vmatpush1.bf16.xpose.msra.mxu0 0
      %6068 = vmatprep.subr.bf16.mxu0 0
      %6069 = vmatpush1.bf16.xpose.msra.mxu0 0
      %6070 = vmatprep.subr.bf16.mxu0 0
      %6071 = vmatpush1.bf16.xpose.msra.mxu0 0
      %6072 = vmatprep.subr.bf16.mxu0 0
      %6073 = vmatpush1.bf16.xpose.msra.mxu0 0
      %6074 = vmatprep.subr.bf16.mxu0 0
      %6075 = vmatpush1.bf16.xpose.msra.mxu0 0
      %6076 = vmatprep.subr.bf16.mxu0 0
      %6077 = vmatpush1.bf16.xpose.msra.mxu0 0
      %6078 = vmatprep.subr.bf16.mxu0 0
      %6079 = vmatpush1.bf16.xpose.msra.mxu0 0
      %6080 = vmatprep.subr.bf16.mxu0 0
      %6081 = vmatpush1.bf16.xpose.msra.mxu0 0
      %6082 = vmatprep.subr.bf16.mxu0 0
      %6083 = vmatpush1.bf16.xpose.msra.mxu0 0
      %6084 = vmatprep.subr.bf16.mxu0 0
      %6085 = vmatpush1.bf16.xpose.msra.mxu0 0
      %6086 = vmatprep.subr.bf16.mxu0 0
      %6087 = vmatpush1.bf16.xpose.msra.mxu0 0
      %6088 = vmatprep.subr.bf16.mxu0 0
      %6089 = vmatpush1.bf16.xpose.msra.mxu0 0
      %6090 = vmatprep.subr.bf16.mxu0 0
      %6091 = vmatpush1.bf16.xpose.msra.mxu0 0
      %6092 = vmatprep.subr.bf16.mxu0 0
      %6093 = vmatpush1.bf16.xpose.msra.mxu0 0
      %6094 = vmatprep.mubr.bf16.mxu0 0
      %6095 = vmatmul.mubr.bf16.gmra.mrb[0].mxu0 %v6057
      %v6096 = vpop.f32.mrb[0].mxu0
      %v6097 = vadd.f32 0.0, %v6096
      %v6098 = vpop.f32.mrb[0].mxu0
      %v6099 = vpop.f32.mrb[0].mxu0
      %v6100 = vpop.f32.mrb[0].mxu0
      %6101 = vdwg.mxu0
      %6102 = vrot.lane.b32.xlu0 %v465, 92
      %v6103 = vpop.permute.xlu0 %6102
      %6104 = vrot.lane.b32.xlu0 %v465, 44
      %v6105 = vpop.permute.xlu0 %6104
      %v6107 = vsel %vm152, %v6103, 0
      %v6110 = vsel %vm152, %v6105, 0
      %6112 = vmatprep.subr.bf16.mxu0 0
      %6113 = vmatpush1.bf16.xpose.msra.mxu0 %v6110
      %6114 = vmatprep.subr.bf16.mxu0 0
      %6115 = vmatpush1.bf16.xpose.msra.mxu0 0
      %6116 = vmatprep.subr.bf16.mxu0 0
      %6117 = vmatpush1.bf16.xpose.msra.mxu0 0
      %6118 = vmatprep.subr.bf16.mxu0 0
      %6119 = vmatpush1.bf16.xpose.msra.mxu0 0
      %6120 = vmatprep.subr.bf16.mxu0 0
      %6121 = vmatpush1.bf16.xpose.msra.mxu0 0
      %6122 = vmatprep.subr.bf16.mxu0 0
      %6123 = vmatpush1.bf16.xpose.msra.mxu0 0
      %6124 = vmatprep.subr.bf16.mxu0 0
      %6125 = vmatpush1.bf16.xpose.msra.mxu0 0
      %6126 = vmatprep.subr.bf16.mxu0 0
      %6127 = vmatpush1.bf16.xpose.msra.mxu0 0
      %6128 = vmatprep.subr.bf16.mxu0 0
      %6129 = vmatpush1.bf16.xpose.msra.mxu0 0
      %6130 = vmatprep.subr.bf16.mxu0 0
      %6131 = vmatpush1.bf16.xpose.msra.mxu0 0
      %6132 = vmatprep.subr.bf16.mxu0 0
      %6133 = vmatpush1.bf16.xpose.msra.mxu0 0
      %6134 = vmatprep.subr.bf16.mxu0 0
      %6135 = vmatpush1.bf16.xpose.msra.mxu0 0
      %6136 = vmatprep.subr.bf16.mxu0 0
      %6137 = vmatpush1.bf16.xpose.msra.mxu0 0
      %6138 = vmatprep.subr.bf16.mxu0 0
      %6139 = vmatpush1.bf16.xpose.msra.mxu0 0
      %6140 = vmatprep.subr.bf16.mxu0 0
      %6141 = vmatpush1.bf16.xpose.msra.mxu0 0
      %6142 = vmatprep.subr.bf16.mxu0 0
      %6143 = vmatpush1.bf16.xpose.msra.mxu0 0
      %6144 = vmatprep.mubr.bf16.mxu0 0
      %6145 = vmatmul.mubr.bf16.gmra.mrb[0].mxu0 %v6107
      %v6146 = vpop.f32.mrb[0].mxu0
      %v6147 = vadd.f32 0.0, %v6146
      %v6148 = vpop.f32.mrb[0].mxu0
      %v6149 = vpop.f32.mrb[0].mxu0
      %v6150 = vpop.f32.mrb[0].mxu0
      %6151 = vdwg.mxu0
      %6152 = vrot.lane.b32.xlu0 %v528, 92
      %v6153 = vpop.permute.xlu0 %6152
      %6154 = vrot.lane.b32.xlu0 %v528, 44
      %v6155 = vpop.permute.xlu0 %6154
      %v6157 = vsel %vm152, %v6153, 0
      %v6160 = vsel %vm152, %v6155, 0
      %6162 = vmatprep.subr.bf16.mxu0 0
      %6163 = vmatpush1.bf16.xpose.msra.mxu0 %v6160
      %6164 = vmatprep.subr.bf16.mxu0 0
      %6165 = vmatpush1.bf16.xpose.msra.mxu0 0
      %6166 = vmatprep.subr.bf16.mxu0 0
      %6167 = vmatpush1.bf16.xpose.msra.mxu0 0
      %6168 = vmatprep.subr.bf16.mxu0 0
      %6169 = vmatpush1.bf16.xpose.msra.mxu0 0
      %6170 = vmatprep.subr.bf16.mxu0 0
      %6171 = vmatpush1.bf16.xpose.msra.mxu0 0
      %6172 = vmatprep.subr.bf16.mxu0 0
      %6173 = vmatpush1.bf16.xpose.msra.mxu0 0
      %6174 = vmatprep.subr.bf16.mxu0 0
      %6175 = vmatpush1.bf16.xpose.msra.mxu0 0
      %6176 = vmatprep.subr.bf16.mxu0 0
      %6177 = vmatpush1.bf16.xpose.msra.mxu0 0
      %6178 = vmatprep.subr.bf16.mxu0 0
      %6179 = vmatpush1.bf16.xpose.msra.mxu0 0
      %6180 = vmatprep.subr.bf16.mxu0 0
      %6181 = vmatpush1.bf16.xpose.msra.mxu0 0
      %6182 = vmatprep.subr.bf16.mxu0 0
      %6183 = vmatpush1.bf16.xpose.msra.mxu0 0
      %6184 = vmatprep.subr.bf16.mxu0 0
      %6185 = vmatpush1.bf16.xpose.msra.mxu0 0
      %6186 = vmatprep.subr.bf16.mxu0 0
      %6187 = vmatpush1.bf16.xpose.msra.mxu0 0
      %6188 = vmatprep.subr.bf16.mxu0 0
      %6189 = vmatpush1.bf16.xpose.msra.mxu0 0
      %6190 = vmatprep.subr.bf16.mxu0 0
      %6191 = vmatpush1.bf16.xpose.msra.mxu0 0
      %6192 = vmatprep.subr.bf16.mxu0 0
      %6193 = vmatpush1.bf16.xpose.msra.mxu0 0
      %6194 = vmatprep.mubr.bf16.mxu0 0
      %6195 = vmatmul.mubr.bf16.gmra.mrb[0].mxu0 %v6157
      %v6196 = vpop.f32.mrb[0].mxu0
      %v6197 = vadd.f32 0.0, %v6196
      %v6198 = vpop.f32.mrb[0].mxu0
      %v6199 = vpop.f32.mrb[0].mxu0
      %v6200 = vpop.f32.mrb[0].mxu0
      %6201 = vdwg.mxu0
      %6202 = vrot.lane.b32.xlu0 %v591, 92
      %v6203 = vpop.permute.xlu0 %6202
      %6204 = vrot.lane.b32.xlu0 %v591, 44
      %v6205 = vpop.permute.xlu0 %6204
      %v6207 = vsel %vm152, %v6203, 0
      %v6210 = vsel %vm152, %v6205, 0
      %6212 = vmatprep.subr.bf16.mxu0 0
      %6213 = vmatpush1.bf16.xpose.msra.mxu0 %v6210
      %6214 = vmatprep.subr.bf16.mxu0 0
      %6215 = vmatpush1.bf16.xpose.msra.mxu0 0
      %6216 = vmatprep.subr.bf16.mxu0 0
      %6217 = vmatpush1.bf16.xpose.msra.mxu0 0
      %6218 = vmatprep.subr.bf16.mxu0 0
      %6219 = vmatpush1.bf16.xpose.msra.mxu0 0
      %6220 = vmatprep.subr.bf16.mxu0 0
      %6221 = vmatpush1.bf16.xpose.msra.mxu0 0
      %6222 = vmatprep.subr.bf16.mxu0 0
      %6223 = vmatpush1.bf16.xpose.msra.mxu0 0
      %6224 = vmatprep.subr.bf16.mxu0 0
      %6225 = vmatpush1.bf16.xpose.msra.mxu0 0
      %6226 = vmatprep.subr.bf16.mxu0 0
      %6227 = vmatpush1.bf16.xpose.msra.mxu0 0
      %6228 = vmatprep.subr.bf16.mxu0 0
      %6229 = vmatpush1.bf16.xpose.msra.mxu0 0
      %6230 = vmatprep.subr.bf16.mxu0 0
      %6231 = vmatpush1.bf16.xpose.msra.mxu0 0
      %6232 = vmatprep.subr.bf16.mxu0 0
      %6233 = vmatpush1.bf16.xpose.msra.mxu0 0
      %6234 = vmatprep.subr.bf16.mxu0 0
      %6235 = vmatpush1.bf16.xpose.msra.mxu0 0
      %6236 = vmatprep.subr.bf16.mxu0 0
      %6237 = vmatpush1.bf16.xpose.msra.mxu0 0
      %6238 = vmatprep.subr.bf16.mxu0 0
      %6239 = vmatpush1.bf16.xpose.msra.mxu0 0
      %6240 = vmatprep.subr.bf16.mxu0 0
      %6241 = vmatpush1.bf16.xpose.msra.mxu0 0
      %6242 = vmatprep.subr.bf16.mxu0 0
      %6243 = vmatpush1.bf16.xpose.msra.mxu0 0
      %6244 = vmatprep.mubr.bf16.mxu0 0
      %6245 = vmatmul.mubr.bf16.gmra.mrb[0].mxu0 %v6207
      %v6246 = vpop.f32.mrb[0].mxu0
      %v6247 = vadd.f32 0.0, %v6246
      %v6248 = vpop.f32.mrb[0].mxu0
      %v6249 = vpop.f32.mrb[0].mxu0
      %v6250 = vpop.f32.mrb[0].mxu0
      %6251 = vdwg.mxu0
      %6252 = vrot.lane.b32.xlu0 %v654, 92
      %v6253 = vpop.permute.xlu0 %6252
      %6254 = vrot.lane.b32.xlu0 %v654, 44
      %v6255 = vpop.permute.xlu0 %6254
      %v6257 = vsel %vm152, %v6253, 0
      %v6260 = vsel %vm152, %v6255, 0
      %6262 = vmatprep.subr.bf16.mxu0 0
      %6263 = vmatpush1.bf16.xpose.msra.mxu0 %v6260
      %6264 = vmatprep.subr.bf16.mxu0 0
      %6265 = vmatpush1.bf16.xpose.msra.mxu0 0
      %6266 = vmatprep.subr.bf16.mxu0 0
      %6267 = vmatpush1.bf16.xpose.msra.mxu0 0
      %6268 = vmatprep.subr.bf16.mxu0 0
      %6269 = vmatpush1.bf16.xpose.msra.mxu0 0
      %6270 = vmatprep.subr.bf16.mxu0 0
      %6271 = vmatpush1.bf16.xpose.msra.mxu0 0
      %6272 = vmatprep.subr.bf16.mxu0 0
      %6273 = vmatpush1.bf16.xpose.msra.mxu0 0
      %6274 = vmatprep.subr.bf16.mxu0 0
      %6275 = vmatpush1.bf16.xpose.msra.mxu0 0
      %6276 = vmatprep.subr.bf16.mxu0 0
      %6277 = vmatpush1.bf16.xpose.msra.mxu0 0
      %6278 = vmatprep.subr.bf16.mxu0 0
      %6279 = vmatpush1.bf16.xpose.msra.mxu0 0
      %6280 = vmatprep.subr.bf16.mxu0 0
      %6281 = vmatpush1.bf16.xpose.msra.mxu0 0
      %6282 = vmatprep.subr.bf16.mxu0 0
      %6283 = vmatpush1.bf16.xpose.msra.mxu0 0
      %6284 = vmatprep.subr.bf16.mxu0 0
      %6285 = vmatpush1.bf16.xpose.msra.mxu0 0
      %6286 = vmatprep.subr.bf16.mxu0 0
      %6287 = vmatpush1.bf16.xpose.msra.mxu0 0
      %6288 = vmatprep.subr.bf16.mxu0 0
      %6289 = vmatpush1.bf16.xpose.msra.mxu0 0
      %6290 = vmatprep.subr.bf16.mxu0 0
      %6291 = vmatpush1.bf16.xpose.msra.mxu0 0
      %6292 = vmatprep.subr.bf16.mxu0 0
      %6293 = vmatpush1.bf16.xpose.msra.mxu0 0
      %6294 = vmatprep.mubr.bf16.mxu0 0
      %6295 = vmatmul.mubr.bf16.gmra.mrb[0].mxu0 %v6257
      %v6296 = vpop.f32.mrb[0].mxu0
      %v6297 = vadd.f32 0.0, %v6296
      %v6298 = vpop.f32.mrb[0].mxu0
      %v6299 = vpop.f32.mrb[0].mxu0
      %v6300 = vpop.f32.mrb[0].mxu0
      %6301 = vdwg.mxu0
      %6302 = vrot.lane.b32.xlu0 %v717, 92
      %v6303 = vpop.permute.xlu0 %6302
      %6304 = vrot.lane.b32.xlu0 %v717, 44
      %v6305 = vpop.permute.xlu0 %6304
      %v6307 = vsel %vm152, %v6303, 0
      %v6310 = vsel %vm152, %v6305, 0
      %6312 = vmatprep.subr.bf16.mxu0 0
      %6313 = vmatpush1.bf16.xpose.msra.mxu0 %v6310
      %6314 = vmatprep.subr.bf16.mxu0 0
      %6315 = vmatpush1.bf16.xpose.msra.mxu0 0
      %6316 = vmatprep.subr.bf16.mxu0 0
      %6317 = vmatpush1.bf16.xpose.msra.mxu0 0
      %6318 = vmatprep.subr.bf16.mxu0 0
      %6319 = vmatpush1.bf16.xpose.msra.mxu0 0
      %6320 = vmatprep.subr.bf16.mxu0 0
      %6321 = vmatpush1.bf16.xpose.msra.mxu0 0
      %6322 = vmatprep.subr.bf16.mxu0 0
      %6323 = vmatpush1.bf16.xpose.msra.mxu0 0
      %6324 = vmatprep.subr.bf16.mxu0 0
      %6325 = vmatpush1.bf16.xpose.msra.mxu0 0
      %6326 = vmatprep.subr.bf16.mxu0 0
      %6327 = vmatpush1.bf16.xpose.msra.mxu0 0
      %6328 = vmatprep.subr.bf16.mxu0 0
      %6329 = vmatpush1.bf16.xpose.msra.mxu0 0
      %6330 = vmatprep.subr.bf16.mxu0 0
      %6331 = vmatpush1.bf16.xpose.msra.mxu0 0
      %6332 = vmatprep.subr.bf16.mxu0 0
      %6333 = vmatpush1.bf16.xpose.msra.mxu0 0
      %6334 = vmatprep.subr.bf16.mxu0 0
      %6335 = vmatpush1.bf16.xpose.msra.mxu0 0
      %6336 = vmatprep.subr.bf16.mxu0 0
      %6337 = vmatpush1.bf16.xpose.msra.mxu0 0
      %6338 = vmatprep.subr.bf16.mxu0 0
      %6339 = vmatpush1.bf16.xpose.msra.mxu0 0
      %6340 = vmatprep.subr.bf16.mxu0 0
      %6341 = vmatpush1.bf16.xpose.msra.mxu0 0
      %6342 = vmatprep.subr.bf16.mxu0 0
      %6343 = vmatpush1.bf16.xpose.msra.mxu0 0
      %6344 = vmatprep.mubr.bf16.mxu0 0
      %6345 = vmatmul.mubr.bf16.gmra.mrb[0].mxu0 %v6307
      %v6346 = vpop.f32.mrb[0].mxu0
      %v6347 = vadd.f32 0.0, %v6346
      %v6348 = vpop.f32.mrb[0].mxu0
      %v6349 = vpop.f32.mrb[0].mxu0
      %v6350 = vpop.f32.mrb[0].mxu0
      %6351 = vdwg.mxu0
      %6352 = vrot.lane.b32.xlu0 %v780, 92
      %v6353 = vpop.permute.xlu0 %6352
      %6354 = vrot.lane.b32.xlu0 %v780, 44
      %v6355 = vpop.permute.xlu0 %6354
      %v6357 = vsel %vm152, %v6353, 0
      %v6360 = vsel %vm152, %v6355, 0
      %6362 = vmatprep.subr.bf16.mxu0 0
      %6363 = vmatpush1.bf16.xpose.msra.mxu0 %v6360
      %6364 = vmatprep.subr.bf16.mxu0 0
      %6365 = vmatpush1.bf16.xpose.msra.mxu0 0
      %6366 = vmatprep.subr.bf16.mxu0 0
      %6367 = vmatpush1.bf16.xpose.msra.mxu0 0
      %6368 = vmatprep.subr.bf16.mxu0 0
      %6369 = vmatpush1.bf16.xpose.msra.mxu0 0
      %6370 = vmatprep.subr.bf16.mxu0 0
      %6371 = vmatpush1.bf16.xpose.msra.mxu0 0
      %6372 = vmatprep.subr.bf16.mxu0 0
      %6373 = vmatpush1.bf16.xpose.msra.mxu0 0
      %6374 = vmatprep.subr.bf16.mxu0 0
      %6375 = vmatpush1.bf16.xpose.msra.mxu0 0
      %6376 = vmatprep.subr.bf16.mxu0 0
      %6377 = vmatpush1.bf16.xpose.msra.mxu0 0
      %6378 = vmatprep.subr.bf16.mxu0 0
      %6379 = vmatpush1.bf16.xpose.msra.mxu0 0
      %6380 = vmatprep.subr.bf16.mxu0 0
      %6381 = vmatpush1.bf16.xpose.msra.mxu0 0
      %6382 = vmatprep.subr.bf16.mxu0 0
      %6383 = vmatpush1.bf16.xpose.msra.mxu0 0
      %6384 = vmatprep.subr.bf16.mxu0 0
      %6385 = vmatpush1.bf16.xpose.msra.mxu0 0
      %6386 = vmatprep.subr.bf16.mxu0 0
      %6387 = vmatpush1.bf16.xpose.msra.mxu0 0
      %6388 = vmatprep.subr.bf16.mxu0 0
      %6389 = vmatpush1.bf16.xpose.msra.mxu0 0
      %6390 = vmatprep.subr.bf16.mxu0 0
      %6391 = vmatpush1.bf16.xpose.msra.mxu0 0
      %6392 = vmatprep.subr.bf16.mxu0 0
      %6393 = vmatpush1.bf16.xpose.msra.mxu0 0
      %6394 = vmatprep.mubr.bf16.mxu0 0
      %6395 = vmatmul.mubr.bf16.gmra.mrb[0].mxu0 %v6357
      %v6396 = vpop.f32.mrb[0].mxu0
      %v6397 = vadd.f32 0.0, %v6396
      %v6398 = vpop.f32.mrb[0].mxu0
      %v6399 = vpop.f32.mrb[0].mxu0
      %v6400 = vpop.f32.mrb[0].mxu0
      %6401 = vdwg.mxu0
      %6402 = vrot.lane.b32.xlu0 %v843, 92
      %v6403 = vpop.permute.xlu0 %6402
      %6404 = vrot.lane.b32.xlu0 %v843, 44
      %v6405 = vpop.permute.xlu0 %6404
      %v6407 = vsel %vm152, %v6403, 0
      %v6410 = vsel %vm152, %v6405, 0
      %6412 = vmatprep.subr.bf16.mxu0 0
      %6413 = vmatpush1.bf16.xpose.msra.mxu0 %v6410
      %6414 = vmatprep.subr.bf16.mxu0 0
      %6415 = vmatpush1.bf16.xpose.msra.mxu0 0
      %6416 = vmatprep.subr.bf16.mxu0 0
      %6417 = vmatpush1.bf16.xpose.msra.mxu0 0
      %6418 = vmatprep.subr.bf16.mxu0 0
      %6419 = vmatpush1.bf16.xpose.msra.mxu0 0
      %6420 = vmatprep.subr.bf16.mxu0 0
      %6421 = vmatpush1.bf16.xpose.msra.mxu0 0
      %6422 = vmatprep.subr.bf16.mxu0 0
      %6423 = vmatpush1.bf16.xpose.msra.mxu0 0
      %6424 = vmatprep.subr.bf16.mxu0 0
      %6425 = vmatpush1.bf16.xpose.msra.mxu0 0
      %6426 = vmatprep.subr.bf16.mxu0 0
      %6427 = vmatpush1.bf16.xpose.msra.mxu0 0
      %6428 = vmatprep.subr.bf16.mxu0 0
      %6429 = vmatpush1.bf16.xpose.msra.mxu0 0
      %6430 = vmatprep.subr.bf16.mxu0 0
      %6431 = vmatpush1.bf16.xpose.msra.mxu0 0
      %6432 = vmatprep.subr.bf16.mxu0 0
      %6433 = vmatpush1.bf16.xpose.msra.mxu0 0
      %6434 = vmatprep.subr.bf16.mxu0 0
      %6435 = vmatpush1.bf16.xpose.msra.mxu0 0
      %6436 = vmatprep.subr.bf16.mxu0 0
      %6437 = vmatpush1.bf16.xpose.msra.mxu0 0
      %6438 = vmatprep.subr.bf16.mxu0 0
      %6439 = vmatpush1.bf16.xpose.msra.mxu0 0
      %6440 = vmatprep.subr.bf16.mxu0 0
      %6441 = vmatpush1.bf16.xpose.msra.mxu0 0
      %6442 = vmatprep.subr.bf16.mxu0 0
      %6443 = vmatpush1.bf16.xpose.msra.mxu0 0
      %6444 = vmatprep.mubr.bf16.mxu0 0
      %6445 = vmatmul.mubr.bf16.gmra.mrb[0].mxu0 %v6407
      %v6446 = vpop.f32.mrb[0].mxu0
      %v6447 = vadd.f32 0.0, %v6446
      %v6448 = vpop.f32.mrb[0].mxu0
      %v6449 = vpop.f32.mrb[0].mxu0
      %v6450 = vpop.f32.mrb[0].mxu0
      %6451 = vdwg.mxu0
      %6452 = vrot.lane.b32.xlu0 %v906, 92
      %v6453 = vpop.permute.xlu0 %6452
      %6454 = vrot.lane.b32.xlu0 %v906, 44
      %v6455 = vpop.permute.xlu0 %6454
      %v6457 = vsel %vm152, %v6453, 0
      %v6460 = vsel %vm152, %v6455, 0
      %6462 = vmatprep.subr.bf16.mxu0 0
      %6463 = vmatpush1.bf16.xpose.msra.mxu0 %v6460
      %6464 = vmatprep.subr.bf16.mxu0 0
      %6465 = vmatpush1.bf16.xpose.msra.mxu0 0
      %6466 = vmatprep.subr.bf16.mxu0 0
      %6467 = vmatpush1.bf16.xpose.msra.mxu0 0
      %6468 = vmatprep.subr.bf16.mxu0 0
      %6469 = vmatpush1.bf16.xpose.msra.mxu0 0
      %6470 = vmatprep.subr.bf16.mxu0 0
      %6471 = vmatpush1.bf16.xpose.msra.mxu0 0
      %6472 = vmatprep.subr.bf16.mxu0 0
      %6473 = vmatpush1.bf16.xpose.msra.mxu0 0
      %6474 = vmatprep.subr.bf16.mxu0 0
      %6475 = vmatpush1.bf16.xpose.msra.mxu0 0
      %6476 = vmatprep.subr.bf16.mxu0 0
      %6477 = vmatpush1.bf16.xpose.msra.mxu0 0
      %6478 = vmatprep.subr.bf16.mxu0 0
      %6479 = vmatpush1.bf16.xpose.msra.mxu0 0
      %6480 = vmatprep.subr.bf16.mxu0 0
      %6481 = vmatpush1.bf16.xpose.msra.mxu0 0
      %6482 = vmatprep.subr.bf16.mxu0 0
      %6483 = vmatpush1.bf16.xpose.msra.mxu0 0
      %6484 = vmatprep.subr.bf16.mxu0 0
      %6485 = vmatpush1.bf16.xpose.msra.mxu0 0
      %6486 = vmatprep.subr.bf16.mxu0 0
      %6487 = vmatpush1.bf16.xpose.msra.mxu0 0
      %6488 = vmatprep.subr.bf16.mxu0 0
      %6489 = vmatpush1.bf16.xpose.msra.mxu0 0
      %6490 = vmatprep.subr.bf16.mxu0 0
      %6491 = vmatpush1.bf16.xpose.msra.mxu0 0
      %6492 = vmatprep.subr.bf16.mxu0 0
      %6493 = vmatpush1.bf16.xpose.msra.mxu0 0
      %6494 = vmatprep.mubr.bf16.mxu0 0
      %6495 = vmatmul.mubr.bf16.gmra.mrb[0].mxu0 %v6457
      %v6496 = vpop.f32.mrb[0].mxu0
      %v6497 = vadd.f32 0.0, %v6496
      %v6498 = vpop.f32.mrb[0].mxu0
      %v6499 = vpop.f32.mrb[0].mxu0
      %v6500 = vpop.f32.mrb[0].mxu0
      %6501 = vdwg.mxu0
      %6502 = vrot.lane.b32.xlu0 %v969, 92
      %v6503 = vpop.permute.xlu0 %6502
      %6504 = vrot.lane.b32.xlu0 %v969, 44
      %v6505 = vpop.permute.xlu0 %6504
      %v6507 = vsel %vm152, %v6503, 0
      %v6510 = vsel %vm152, %v6505, 0
      %6512 = vmatprep.subr.bf16.mxu0 0
      %6513 = vmatpush1.bf16.xpose.msra.mxu0 %v6510
      %6514 = vmatprep.subr.bf16.mxu0 0
      %6515 = vmatpush1.bf16.xpose.msra.mxu0 0
      %6516 = vmatprep.subr.bf16.mxu0 0
      %6517 = vmatpush1.bf16.xpose.msra.mxu0 0
      %6518 = vmatprep.subr.bf16.mxu0 0
      %6519 = vmatpush1.bf16.xpose.msra.mxu0 0
      %6520 = vmatprep.subr.bf16.mxu0 0
      %6521 = vmatpush1.bf16.xpose.msra.mxu0 0
      %6522 = vmatprep.subr.bf16.mxu0 0
      %6523 = vmatpush1.bf16.xpose.msra.mxu0 0
      %6524 = vmatprep.subr.bf16.mxu0 0
      %6525 = vmatpush1.bf16.xpose.msra.mxu0 0
      %6526 = vmatprep.subr.bf16.mxu0 0
      %6527 = vmatpush1.bf16.xpose.msra.mxu0 0
      %6528 = vmatprep.subr.bf16.mxu0 0
      %6529 = vmatpush1.bf16.xpose.msra.mxu0 0
      %6530 = vmatprep.subr.bf16.mxu0 0
      %6531 = vmatpush1.bf16.xpose.msra.mxu0 0
      %6532 = vmatprep.subr.bf16.mxu0 0
      %6533 = vmatpush1.bf16.xpose.msra.mxu0 0
      %6534 = vmatprep.subr.bf16.mxu0 0
      %6535 = vmatpush1.bf16.xpose.msra.mxu0 0
      %6536 = vmatprep.subr.bf16.mxu0 0
      %6537 = vmatpush1.bf16.xpose.msra.mxu0 0
      %6538 = vmatprep.subr.bf16.mxu0 0
      %6539 = vmatpush1.bf16.xpose.msra.mxu0 0
      %6540 = vmatprep.subr.bf16.mxu0 0
      %6541 = vmatpush1.bf16.xpose.msra.mxu0 0
      %6542 = vmatprep.subr.bf16.mxu0 0
      %6543 = vmatpush1.bf16.xpose.msra.mxu0 0
      %6544 = vmatprep.mubr.bf16.mxu0 0
      %6545 = vmatmul.mubr.bf16.gmra.mrb[0].mxu0 %v6507
      %v6546 = vpop.f32.mrb[0].mxu0
      %v6547 = vadd.f32 0.0, %v6546
      %v6548 = vpop.f32.mrb[0].mxu0
      %v6549 = vpop.f32.mrb[0].mxu0
      %v6550 = vpop.f32.mrb[0].mxu0
      %6551 = vdwg.mxu0
      %6552 = vrot.lane.b32.xlu0 %v1032, 92
      %v6553 = vpop.permute.xlu0 %6552
      %6554 = vrot.lane.b32.xlu0 %v1032, 44
      %v6555 = vpop.permute.xlu0 %6554
      %v6557 = vsel %vm152, %v6553, 0
      %v6560 = vsel %vm152, %v6555, 0
      %6562 = vmatprep.subr.bf16.mxu0 0
      %6563 = vmatpush1.bf16.xpose.msra.mxu0 %v6560
      %6564 = vmatprep.subr.bf16.mxu0 0
      %6565 = vmatpush1.bf16.xpose.msra.mxu0 0
      %6566 = vmatprep.subr.bf16.mxu0 0
      %6567 = vmatpush1.bf16.xpose.msra.mxu0 0
      %6568 = vmatprep.subr.bf16.mxu0 0
      %6569 = vmatpush1.bf16.xpose.msra.mxu0 0
      %6570 = vmatprep.subr.bf16.mxu0 0
      %6571 = vmatpush1.bf16.xpose.msra.mxu0 0
      %6572 = vmatprep.subr.bf16.mxu0 0
      %6573 = vmatpush1.bf16.xpose.msra.mxu0 0
      %6574 = vmatprep.subr.bf16.mxu0 0
      %6575 = vmatpush1.bf16.xpose.msra.mxu0 0
      %6576 = vmatprep.subr.bf16.mxu0 0
      %6577 = vmatpush1.bf16.xpose.msra.mxu0 0
      %6578 = vmatprep.subr.bf16.mxu0 0
      %6579 = vmatpush1.bf16.xpose.msra.mxu0 0
      %6580 = vmatprep.subr.bf16.mxu0 0
      %6581 = vmatpush1.bf16.xpose.msra.mxu0 0
      %6582 = vmatprep.subr.bf16.mxu0 0
      %6583 = vmatpush1.bf16.xpose.msra.mxu0 0
      %6584 = vmatprep.subr.bf16.mxu0 0
      %6585 = vmatpush1.bf16.xpose.msra.mxu0 0
      %6586 = vmatprep.subr.bf16.mxu0 0
      %6587 = vmatpush1.bf16.xpose.msra.mxu0 0
      %6588 = vmatprep.subr.bf16.mxu0 0
      %6589 = vmatpush1.bf16.xpose.msra.mxu0 0
      %6590 = vmatprep.subr.bf16.mxu0 0
      %6591 = vmatpush1.bf16.xpose.msra.mxu0 0
      %6592 = vmatprep.subr.bf16.mxu0 0
      %6593 = vmatpush1.bf16.xpose.msra.mxu0 0
      %6594 = vmatprep.mubr.bf16.mxu0 0
      %6595 = vmatmul.mubr.bf16.gmra.mrb[0].mxu0 %v6557
      %v6596 = vpop.f32.mrb[0].mxu0
      %v6597 = vadd.f32 0.0, %v6596
      %v6598 = vpop.f32.mrb[0].mxu0
      %v6599 = vpop.f32.mrb[0].mxu0
      %v6600 = vpop.f32.mrb[0].mxu0
      %6601 = vdwg.mxu0
      %6602 = vrot.lane.b32.xlu0 %v1095, 92
      %v6603 = vpop.permute.xlu0 %6602
      %6604 = vrot.lane.b32.xlu0 %v1095, 44
      %v6605 = vpop.permute.xlu0 %6604
      %v6607 = vsel %vm152, %v6603, 0
      %v6610 = vsel %vm152, %v6605, 0
      %6612 = vmatprep.subr.bf16.mxu0 0
      %6613 = vmatpush1.bf16.xpose.msra.mxu0 %v6610
      %6614 = vmatprep.subr.bf16.mxu0 0
      %6615 = vmatpush1.bf16.xpose.msra.mxu0 0
      %6616 = vmatprep.subr.bf16.mxu0 0
      %6617 = vmatpush1.bf16.xpose.msra.mxu0 0
      %6618 = vmatprep.subr.bf16.mxu0 0
      %6619 = vmatpush1.bf16.xpose.msra.mxu0 0
      %6620 = vmatprep.subr.bf16.mxu0 0
      %6621 = vmatpush1.bf16.xpose.msra.mxu0 0
      %6622 = vmatprep.subr.bf16.mxu0 0
      %6623 = vmatpush1.bf16.xpose.msra.mxu0 0
      %6624 = vmatprep.subr.bf16.mxu0 0
      %6625 = vmatpush1.bf16.xpose.msra.mxu0 0
      %6626 = vmatprep.subr.bf16.mxu0 0
      %6627 = vmatpush1.bf16.xpose.msra.mxu0 0
      %6628 = vmatprep.subr.bf16.mxu0 0
      %6629 = vmatpush1.bf16.xpose.msra.mxu0 0
      %6630 = vmatprep.subr.bf16.mxu0 0
      %6631 = vmatpush1.bf16.xpose.msra.mxu0 0
      %6632 = vmatprep.subr.bf16.mxu0 0
      %6633 = vmatpush1.bf16.xpose.msra.mxu0 0
      %6634 = vmatprep.subr.bf16.mxu0 0
      %6635 = vmatpush1.bf16.xpose.msra.mxu0 0
      %6636 = vmatprep.subr.bf16.mxu0 0
      %6637 = vmatpush1.bf16.xpose.msra.mxu0 0
      %6638 = vmatprep.subr.bf16.mxu0 0
      %6639 = vmatpush1.bf16.xpose.msra.mxu0 0
      %6640 = vmatprep.subr.bf16.mxu0 0
      %6641 = vmatpush1.bf16.xpose.msra.mxu0 0
      %6642 = vmatprep.subr.bf16.mxu0 0
      %6643 = vmatpush1.bf16.xpose.msra.mxu0 0
      %6644 = vmatprep.mubr.bf16.mxu0 0
      %6645 = vmatmul.mubr.bf16.gmra.mrb[0].mxu0 %v6607
      %v6646 = vpop.f32.mrb[0].mxu0
      %v6647 = vadd.f32 0.0, %v6646
      %v6648 = vpop.f32.mrb[0].mxu0
      %v6649 = vpop.f32.mrb[0].mxu0
      %v6650 = vpop.f32.mrb[0].mxu0
      %6651 = vdwg.mxu0
      %v6652 = vmul.f32 %v5897, 0.28867513
      %v6653 = vmul.f32 %v5947, 0.28867513
      %v6654 = vmul.f32 %v5997, 0.28867513
      %v6655 = vmul.f32 %v6047, 0.28867513
      %v6656 = vmul.f32 %v6097, 0.28867513
      %v6657 = vmul.f32 %v6147, 0.28867513
      %v6658 = vmul.f32 %v6197, 0.28867513
      %v6659 = vmul.f32 %v6247, 0.28867513
      %v6660 = vmul.f32 %v6297, 0.28867513
      %v6661 = vmul.f32 %v6347, 0.28867513
      %v6662 = vmul.f32 %v6397, 0.28867513
      %v6663 = vmul.f32 %v6447, 0.28867513
      %v6664 = vmul.f32 %v6497, 0.28867513
      %v6665 = vmul.f32 %v6547, 0.28867513
      %v6666 = vmul.f32 %v6597, 0.28867513
      %v6667 = vmul.f32 %v6647, 0.28867513
      %v6668 = vsel %vm1160, %v6652, -inf
      %6669 = vmax.xlane.f32.xlu0 %v6668
      %v6670 = vpop.xlane.xlu0 %6669
      %v6671 = vsel %vm1160, %v6653, -inf
      %6672 = vmax.xlane.f32.xlu0 %v6671
      %v6673 = vpop.xlane.xlu0 %6672
      %v6674 = vsel %vm1160, %v6654, -inf
      %6675 = vmax.xlane.f32.xlu0 %v6674
      %v6676 = vpop.xlane.xlu0 %6675
      %v6677 = vsel %vm1160, %v6655, -inf
      %6678 = vmax.xlane.f32.xlu0 %v6677
      %v6679 = vpop.xlane.xlu0 %6678
      %v6680 = vsel %vm1160, %v6656, -inf
      %6681 = vmax.xlane.f32.xlu0 %v6680
      %v6682 = vpop.xlane.xlu0 %6681
      %v6683 = vsel %vm1160, %v6657, -inf
      %6684 = vmax.xlane.f32.xlu0 %v6683
      %v6685 = vpop.xlane.xlu0 %6684
      %v6686 = vsel %vm1160, %v6658, -inf
      %6687 = vmax.xlane.f32.xlu0 %v6686
      %v6688 = vpop.xlane.xlu0 %6687
      %v6689 = vsel %vm1160, %v6659, -inf
      %6690 = vmax.xlane.f32.xlu0 %v6689
      %v6691 = vpop.xlane.xlu0 %6690
      %v6692 = vsel %vm1160, %v6660, -inf
      %6693 = vmax.xlane.f32.xlu0 %v6692
      %v6694 = vpop.xlane.xlu0 %6693
      %v6695 = vsel %vm1160, %v6661, -inf
      %6696 = vmax.xlane.f32.xlu0 %v6695
      %v6697 = vpop.xlane.xlu0 %6696
      %v6698 = vsel %vm1160, %v6662, -inf
      %6699 = vmax.xlane.f32.xlu0 %v6698
      %v6700 = vpop.xlane.xlu0 %6699
      %v6701 = vsel %vm1160, %v6663, -inf
      %6702 = vmax.xlane.f32.xlu0 %v6701
      %v6703 = vpop.xlane.xlu0 %6702
      %v6704 = vsel %vm1160, %v6664, -inf
      %6705 = vmax.xlane.f32.xlu0 %v6704
      %v6706 = vpop.xlane.xlu0 %6705
      %v6707 = vsel %vm1160, %v6665, -inf
      %6708 = vmax.xlane.f32.xlu0 %v6707
      %v6709 = vpop.xlane.xlu0 %6708
      %v6710 = vsel %vm1160, %v6666, -inf
      %6711 = vmax.xlane.f32.xlu0 %v6710
      %v6712 = vpop.xlane.xlu0 %6711
      %v6713 = vsel %vm1160, %v6667, -inf
      %6714 = vmax.xlane.f32.xlu0 %v6713
      %v6715 = vpop.xlane.xlu0 %6714
      %v6716 = vsub.f32 %v6652, %v6670
      %v6717 = vsub.f32 %v6653, %v6673
      %v6718 = vsub.f32 %v6654, %v6676
      %v6719 = vsub.f32 %v6655, %v6679
      %v6720 = vsub.f32 %v6656, %v6682
      %v6721 = vsub.f32 %v6657, %v6685
      %v6722 = vsub.f32 %v6658, %v6688
      %v6723 = vsub.f32 %v6659, %v6691
      %v6724 = vsub.f32 %v6660, %v6694
      %v6725 = vsub.f32 %v6661, %v6697
      %v6726 = vsub.f32 %v6662, %v6700
      %v6727 = vsub.f32 %v6663, %v6703
      %v6728 = vsub.f32 %v6664, %v6706
      %v6729 = vsub.f32 %v6665, %v6709
      %v6730 = vsub.f32 %v6666, %v6712
      %v6731 = vsub.f32 %v6667, %v6715
      %v6732 = vmul.f32 %v6716, 1.442695
      %v6733 = vpow.pop %v6732
      %v6734 = vmul.f32 %v6717, 1.442695
      %v6735 = vpow.pop %v6734
      %v6736 = vmul.f32 %v6718, 1.442695
      %v6737 = vpow.pop %v6736
      %v6738 = vmul.f32 %v6719, 1.442695
      %v6739 = vpow.pop %v6738
      %v6740 = vmul.f32 %v6720, 1.442695
      %v6741 = vpow.pop %v6740
      %v6742 = vmul.f32 %v6721, 1.442695
      %v6743 = vpow.pop %v6742
      %v6744 = vmul.f32 %v6722, 1.442695
      %v6745 = vpow.pop %v6744
      %v6746 = vmul.f32 %v6723, 1.442695
      %v6747 = vpow.pop %v6746
      %v6748 = vmul.f32 %v6724, 1.442695
      %v6749 = vpow.pop %v6748
      %v6750 = vmul.f32 %v6725, 1.442695
      %v6751 = vpow.pop %v6750
      %v6752 = vmul.f32 %v6726, 1.442695
      %v6753 = vpow.pop %v6752
      %v6754 = vmul.f32 %v6727, 1.442695
      %v6755 = vpow.pop %v6754
      %v6756 = vmul.f32 %v6728, 1.442695
      %v6757 = vpow.pop %v6756
      %v6758 = vmul.f32 %v6729, 1.442695
      %v6759 = vpow.pop %v6758
      %v6760 = vmul.f32 %v6730, 1.442695
      %v6761 = vpow.pop %v6760
      %v6762 = vmul.f32 %v6731, 1.442695
      %v6763 = vpow.pop %v6762
      %v6764 = vsel %vm1160, %v6733, 0.0
      %6765 = vadd.xlane.f32.xlu0 %v6764
      %v6766 = vpop.xlane.xlu0 %6765
      %v6767 = vsel %vm1160, %v6735, 0.0
      %6768 = vadd.xlane.f32.xlu0 %v6767
      %v6769 = vpop.xlane.xlu0 %6768
      %v6770 = vsel %vm1160, %v6737, 0.0
      %6771 = vadd.xlane.f32.xlu0 %v6770
      %v6772 = vpop.xlane.xlu0 %6771
      %v6773 = vsel %vm1160, %v6739, 0.0
      %6774 = vadd.xlane.f32.xlu0 %v6773
      %v6775 = vpop.xlane.xlu0 %6774
      %v6776 = vsel %vm1160, %v6741, 0.0
      %6777 = vadd.xlane.f32.xlu0 %v6776
      %v6778 = vpop.xlane.xlu0 %6777
      %v6779 = vsel %vm1160, %v6743, 0.0
      %6780 = vadd.xlane.f32.xlu0 %v6779
      %v6781 = vpop.xlane.xlu0 %6780
      %v6782 = vsel %vm1160, %v6745, 0.0
      %6783 = vadd.xlane.f32.xlu0 %v6782
      %v6784 = vpop.xlane.xlu0 %6783
      %v6785 = vsel %vm1160, %v6747, 0.0
      %6786 = vadd.xlane.f32.xlu0 %v6785
      %v6787 = vpop.xlane.xlu0 %6786
      %v6788 = vsel %vm1160, %v6749, 0.0
      %6789 = vadd.xlane.f32.xlu0 %v6788
      %v6790 = vpop.xlane.xlu0 %6789
      %v6791 = vsel %vm1160, %v6751, 0.0
      %6792 = vadd.xlane.f32.xlu0 %v6791
      %v6793 = vpop.xlane.xlu0 %6792
      %v6794 = vsel %vm1160, %v6753, 0.0
      %6795 = vadd.xlane.f32.xlu0 %v6794
      %v6796 = vpop.xlane.xlu0 %6795
      %v6797 = vsel %vm1160, %v6755, 0.0
      %6798 = vadd.xlane.f32.xlu0 %v6797
      %v6799 = vpop.xlane.xlu0 %6798
      %v6800 = vsel %vm1160, %v6757, 0.0
      %6801 = vadd.xlane.f32.xlu0 %v6800
      %v6802 = vpop.xlane.xlu0 %6801
      %v6803 = vsel %vm1160, %v6759, 0.0
      %6804 = vadd.xlane.f32.xlu0 %v6803
      %v6805 = vpop.xlane.xlu0 %6804
      %v6806 = vsel %vm1160, %v6761, 0.0
      %6807 = vadd.xlane.f32.xlu0 %v6806
      %v6808 = vpop.xlane.xlu0 %6807
      %v6809 = vsel %vm1160, %v6763, 0.0
      %6810 = vadd.xlane.f32.xlu0 %v6809
      %v6811 = vpop.xlane.xlu0 %6810
      %v6812 = vrcp.pop %v6766
      %v6813 = vrcp.pop %v6769
      %v6814 = vrcp.pop %v6772
      %v6815 = vrcp.pop %v6775
      %v6816 = vrcp.pop %v6778
      %v6817 = vrcp.pop %v6781
      %v6818 = vrcp.pop %v6784
      %v6819 = vrcp.pop %v6787
      %v6820 = vrcp.pop %v6790
      %v6821 = vrcp.pop %v6793
      %v6822 = vrcp.pop %v6796
      %v6823 = vrcp.pop %v6799
      %v6824 = vrcp.pop %v6802
      %v6825 = vrcp.pop %v6805
      %v6826 = vrcp.pop %v6808
      %v6827 = vrcp.pop %v6811
      %v6828 = vmul.f32 %v6733, %v6812
      %v6829 = vmul.f32 %v6735, %v6813
      %v6830 = vmul.f32 %v6737, %v6814
      %v6831 = vmul.f32 %v6739, %v6815
      %v6832 = vmul.f32 %v6741, %v6816
      %v6833 = vmul.f32 %v6743, %v6817
      %v6834 = vmul.f32 %v6745, %v6818
      %v6835 = vmul.f32 %v6747, %v6819
      %v6836 = vmul.f32 %v6749, %v6820
      %v6837 = vmul.f32 %v6751, %v6821
      %v6838 = vmul.f32 %v6753, %v6822
      %v6839 = vmul.f32 %v6755, %v6823
      %v6840 = vmul.f32 %v6757, %v6824
      %v6841 = vmul.f32 %v6759, %v6825
      %v6842 = vmul.f32 %v6761, %v6826
      %v6843 = vmul.f32 %v6763, %v6827
      %v6844 = vpack.c.bf16 %v6828, %v6828
      %v6845 = vpack.c.bf16 %v6829, %v6829
      %v6846 = vpack.c.bf16 %v6830, %v6830
      %v6847 = vpack.c.bf16 %v6831, %v6831
      %v6848 = vpack.c.bf16 %v6832, %v6832
      %v6849 = vpack.c.bf16 %v6833, %v6833
      %v6850 = vpack.c.bf16 %v6834, %v6834
      %v6851 = vpack.c.bf16 %v6835, %v6835
      %v6852 = vpack.c.bf16 %v6836, %v6836
      %v6853 = vpack.c.bf16 %v6837, %v6837
      %v6854 = vpack.c.bf16 %v6838, %v6838
      %v6855 = vpack.c.bf16 %v6839, %v6839
      %v6856 = vpack.c.bf16 %v6840, %v6840
      %v6857 = vpack.c.bf16 %v6841, %v6841
      %v6858 = vpack.c.bf16 %v6842, %v6842
      %v6859 = vpack.c.bf16 %v6843, %v6843
      %6860 = vrot.lane.b32.xlu0 %v119, 124
      %v6861 = vpop.permute.xlu0 %6860
      %v6862 = vrot.slane %v6861, 1
      %v6864 = vsel %vm1355, %v6844, 0
      %v6867 = vsel %vm1359, %v6862, 0
      %6869 = vmatprep.subr.bf16.mxu0 0
      %6870 = vmatpush1.bf16.msra.mxu0 %v6867
      %6871 = vmatprep.subr.bf16.mxu0 0
      %6872 = vmatpush1.bf16.msra.mxu0 0
      %6873 = vmatprep.subr.bf16.mxu0 0
      %6874 = vmatpush1.bf16.msra.mxu0 0
      %6875 = vmatprep.subr.bf16.mxu0 0
      %6876 = vmatpush1.bf16.msra.mxu0 0
      %6877 = vmatprep.subr.bf16.mxu0 0
      %6878 = vmatpush1.bf16.msra.mxu0 0
      %6879 = vmatprep.subr.bf16.mxu0 0
      %6880 = vmatpush1.bf16.msra.mxu0 0
      %6881 = vmatprep.subr.bf16.mxu0 0
      %6882 = vmatpush1.bf16.msra.mxu0 0
      %6883 = vmatprep.subr.bf16.mxu0 0
      %6884 = vmatpush1.bf16.msra.mxu0 0
      %6885 = vmatprep.subr.bf16.mxu0 0
      %6886 = vmatpush1.bf16.msra.mxu0 0
      %6887 = vmatprep.subr.bf16.mxu0 0
      %6888 = vmatpush1.bf16.msra.mxu0 0
      %6889 = vmatprep.subr.bf16.mxu0 0
      %6890 = vmatpush1.bf16.msra.mxu0 0
      %6891 = vmatprep.subr.bf16.mxu0 0
      %6892 = vmatpush1.bf16.msra.mxu0 0
      %6893 = vmatprep.subr.bf16.mxu0 0
      %6894 = vmatpush1.bf16.msra.mxu0 0
      %6895 = vmatprep.subr.bf16.mxu0 0
      %6896 = vmatpush1.bf16.msra.mxu0 0
      %6897 = vmatprep.subr.bf16.mxu0 0
      %6898 = vmatpush1.bf16.msra.mxu0 0
      %6899 = vmatprep.subr.bf16.mxu0 0
      %6900 = vmatpush1.bf16.msra.mxu0 0
      %6901 = vmatprep.mubr.bf16.mxu0 0
      %6902 = vmatmul.mubr.bf16.gmra.mrb[0].mxu0 %v6864
      %v6903 = vpop.f32.mrb[0].mxu0
      %v6904 = vadd.f32 0.0, %v6903
      %v6905 = vpop.f32.mrb[0].mxu0
      %v6906 = vpop.f32.mrb[0].mxu0
      %v6907 = vpop.f32.mrb[0].mxu0
      %6908 = vdwg.mxu0
      %6909 = vrot.lane.b32.xlu0 %v120, 124
      %v6910 = vpop.permute.xlu0 %6909
      %v6911 = vrot.slane %v6910, 1
      %v6913 = vsel %vm1355, %v6845, 0
      %v6916 = vsel %vm1359, %v6911, 0
      %6918 = vmatprep.subr.bf16.mxu0 0
      %6919 = vmatpush1.bf16.msra.mxu0 %v6916
      %6920 = vmatprep.subr.bf16.mxu0 0
      %6921 = vmatpush1.bf16.msra.mxu0 0
      %6922 = vmatprep.subr.bf16.mxu0 0
      %6923 = vmatpush1.bf16.msra.mxu0 0
      %6924 = vmatprep.subr.bf16.mxu0 0
      %6925 = vmatpush1.bf16.msra.mxu0 0
      %6926 = vmatprep.subr.bf16.mxu0 0
      %6927 = vmatpush1.bf16.msra.mxu0 0
      %6928 = vmatprep.subr.bf16.mxu0 0
      %6929 = vmatpush1.bf16.msra.mxu0 0
      %6930 = vmatprep.subr.bf16.mxu0 0
      %6931 = vmatpush1.bf16.msra.mxu0 0
      %6932 = vmatprep.subr.bf16.mxu0 0
      %6933 = vmatpush1.bf16.msra.mxu0 0
      %6934 = vmatprep.subr.bf16.mxu0 0
      %6935 = vmatpush1.bf16.msra.mxu0 0
      %6936 = vmatprep.subr.bf16.mxu0 0
      %6937 = vmatpush1.bf16.msra.mxu0 0
      %6938 = vmatprep.subr.bf16.mxu0 0
      %6939 = vmatpush1.bf16.msra.mxu0 0
      %6940 = vmatprep.subr.bf16.mxu0 0
      %6941 = vmatpush1.bf16.msra.mxu0 0
      %6942 = vmatprep.subr.bf16.mxu0 0
      %6943 = vmatpush1.bf16.msra.mxu0 0
      %6944 = vmatprep.subr.bf16.mxu0 0
      %6945 = vmatpush1.bf16.msra.mxu0 0
      %6946 = vmatprep.subr.bf16.mxu0 0
      %6947 = vmatpush1.bf16.msra.mxu0 0
      %6948 = vmatprep.subr.bf16.mxu0 0
      %6949 = vmatpush1.bf16.msra.mxu0 0
      %6950 = vmatprep.mubr.bf16.mxu0 0
      %6951 = vmatmul.mubr.bf16.gmra.mrb[0].mxu0 %v6913
      %v6952 = vpop.f32.mrb[0].mxu0
      %v6953 = vadd.f32 0.0, %v6952
      %v6954 = vpop.f32.mrb[0].mxu0
      %v6955 = vpop.f32.mrb[0].mxu0
      %v6956 = vpop.f32.mrb[0].mxu0
      %6957 = vdwg.mxu0
      %6958 = vrot.lane.b32.xlu0 %v121, 124
      %v6959 = vpop.permute.xlu0 %6958
      %v6960 = vrot.slane %v6959, 1
      %v6962 = vsel %vm1355, %v6846, 0
      %v6965 = vsel %vm1359, %v6960, 0
      %6967 = vmatprep.subr.bf16.mxu0 0
      %6968 = vmatpush1.bf16.msra.mxu0 %v6965
      %6969 = vmatprep.subr.bf16.mxu0 0
      %6970 = vmatpush1.bf16.msra.mxu0 0
      %6971 = vmatprep.subr.bf16.mxu0 0
      %6972 = vmatpush1.bf16.msra.mxu0 0
      %6973 = vmatprep.subr.bf16.mxu0 0
      %6974 = vmatpush1.bf16.msra.mxu0 0
      %6975 = vmatprep.subr.bf16.mxu0 0
      %6976 = vmatpush1.bf16.msra.mxu0 0
      %6977 = vmatprep.subr.bf16.mxu0 0
      %6978 = vmatpush1.bf16.msra.mxu0 0
      %6979 = vmatprep.subr.bf16.mxu0 0
      %6980 = vmatpush1.bf16.msra.mxu0 0
      %6981 = vmatprep.subr.bf16.mxu0 0
      %6982 = vmatpush1.bf16.msra.mxu0 0
      %6983 = vmatprep.subr.bf16.mxu0 0
      %6984 = vmatpush1.bf16.msra.mxu0 0
      %6985 = vmatprep.subr.bf16.mxu0 0
      %6986 = vmatpush1.bf16.msra.mxu0 0
      %6987 = vmatprep.subr.bf16.mxu0 0
      %6988 = vmatpush1.bf16.msra.mxu0 0
      %6989 = vmatprep.subr.bf16.mxu0 0
      %6990 = vmatpush1.bf16.msra.mxu0 0
      %6991 = vmatprep.subr.bf16.mxu0 0
      %6992 = vmatpush1.bf16.msra.mxu0 0
      %6993 = vmatprep.subr.bf16.mxu0 0
      %6994 = vmatpush1.bf16.msra.mxu0 0
      %6995 = vmatprep.subr.bf16.mxu0 0
      %6996 = vmatpush1.bf16.msra.mxu0 0
      %6997 = vmatprep.subr.bf16.mxu0 0
      %6998 = vmatpush1.bf16.msra.mxu0 0
      %6999 = vmatprep.mubr.bf16.mxu0 0
      %7000 = vmatmul.mubr.bf16.gmra.mrb[0].mxu0 %v6962
      %v7001 = vpop.f32.mrb[0].mxu0
      %v7002 = vadd.f32 0.0, %v7001
      %v7003 = vpop.f32.mrb[0].mxu0
      %v7004 = vpop.f32.mrb[0].mxu0
      %v7005 = vpop.f32.mrb[0].mxu0
      %7006 = vdwg.mxu0
      %7007 = vrot.lane.b32.xlu0 %v122, 124
      %v7008 = vpop.permute.xlu0 %7007
      %v7009 = vrot.slane %v7008, 1
      %v7011 = vsel %vm1355, %v6847, 0
      %v7014 = vsel %vm1359, %v7009, 0
      %7016 = vmatprep.subr.bf16.mxu0 0
      %7017 = vmatpush1.bf16.msra.mxu0 %v7014
      %7018 = vmatprep.subr.bf16.mxu0 0
      %7019 = vmatpush1.bf16.msra.mxu0 0
      %7020 = vmatprep.subr.bf16.mxu0 0
      %7021 = vmatpush1.bf16.msra.mxu0 0
      %7022 = vmatprep.subr.bf16.mxu0 0
      %7023 = vmatpush1.bf16.msra.mxu0 0
      %7024 = vmatprep.subr.bf16.mxu0 0
      %7025 = vmatpush1.bf16.msra.mxu0 0
      %7026 = vmatprep.subr.bf16.mxu0 0
      %7027 = vmatpush1.bf16.msra.mxu0 0
      %7028 = vmatprep.subr.bf16.mxu0 0
      %7029 = vmatpush1.bf16.msra.mxu0 0
      %7030 = vmatprep.subr.bf16.mxu0 0
      %7031 = vmatpush1.bf16.msra.mxu0 0
      %7032 = vmatprep.subr.bf16.mxu0 0
      %7033 = vmatpush1.bf16.msra.mxu0 0
      %7034 = vmatprep.subr.bf16.mxu0 0
      %7035 = vmatpush1.bf16.msra.mxu0 0
      %7036 = vmatprep.subr.bf16.mxu0 0
      %7037 = vmatpush1.bf16.msra.mxu0 0
      %7038 = vmatprep.subr.bf16.mxu0 0
      %7039 = vmatpush1.bf16.msra.mxu0 0
      %7040 = vmatprep.subr.bf16.mxu0 0
      %7041 = vmatpush1.bf16.msra.mxu0 0
      %7042 = vmatprep.subr.bf16.mxu0 0
      %7043 = vmatpush1.bf16.msra.mxu0 0
      %7044 = vmatprep.subr.bf16.mxu0 0
      %7045 = vmatpush1.bf16.msra.mxu0 0
      %7046 = vmatprep.subr.bf16.mxu0 0
      %7047 = vmatpush1.bf16.msra.mxu0 0
      %7048 = vmatprep.mubr.bf16.mxu0 0
      %7049 = vmatmul.mubr.bf16.gmra.mrb[0].mxu0 %v7011
      %v7050 = vpop.f32.mrb[0].mxu0
      %v7051 = vadd.f32 0.0, %v7050
      %v7052 = vpop.f32.mrb[0].mxu0
      %v7053 = vpop.f32.mrb[0].mxu0
      %v7054 = vpop.f32.mrb[0].mxu0
      %7055 = vdwg.mxu0
      %7056 = vrot.lane.b32.xlu0 %v123, 124
      %v7057 = vpop.permute.xlu0 %7056
      %v7058 = vrot.slane %v7057, 1
      %v7060 = vsel %vm1355, %v6848, 0
      %v7063 = vsel %vm1359, %v7058, 0
      %7065 = vmatprep.subr.bf16.mxu0 0
      %7066 = vmatpush1.bf16.msra.mxu0 %v7063
      %7067 = vmatprep.subr.bf16.mxu0 0
      %7068 = vmatpush1.bf16.msra.mxu0 0
      %7069 = vmatprep.subr.bf16.mxu0 0
      %7070 = vmatpush1.bf16.msra.mxu0 0
      %7071 = vmatprep.subr.bf16.mxu0 0
      %7072 = vmatpush1.bf16.msra.mxu0 0
      %7073 = vmatprep.subr.bf16.mxu0 0
      %7074 = vmatpush1.bf16.msra.mxu0 0
      %7075 = vmatprep.subr.bf16.mxu0 0
      %7076 = vmatpush1.bf16.msra.mxu0 0
      %7077 = vmatprep.subr.bf16.mxu0 0
      %7078 = vmatpush1.bf16.msra.mxu0 0
      %7079 = vmatprep.subr.bf16.mxu0 0
      %7080 = vmatpush1.bf16.msra.mxu0 0
      %7081 = vmatprep.subr.bf16.mxu0 0
      %7082 = vmatpush1.bf16.msra.mxu0 0
      %7083 = vmatprep.subr.bf16.mxu0 0
      %7084 = vmatpush1.bf16.msra.mxu0 0
      %7085 = vmatprep.subr.bf16.mxu0 0
      %7086 = vmatpush1.bf16.msra.mxu0 0
      %7087 = vmatprep.subr.bf16.mxu0 0
      %7088 = vmatpush1.bf16.msra.mxu0 0
      %7089 = vmatprep.subr.bf16.mxu0 0
      %7090 = vmatpush1.bf16.msra.mxu0 0
      %7091 = vmatprep.subr.bf16.mxu0 0
      %7092 = vmatpush1.bf16.msra.mxu0 0
      %7093 = vmatprep.subr.bf16.mxu0 0
      %7094 = vmatpush1.bf16.msra.mxu0 0
      %7095 = vmatprep.subr.bf16.mxu0 0
      %7096 = vmatpush1.bf16.msra.mxu0 0
      %7097 = vmatprep.mubr.bf16.mxu0 0
      %7098 = vmatmul.mubr.bf16.gmra.mrb[0].mxu0 %v7060
      %v7099 = vpop.f32.mrb[0].mxu0
      %v7100 = vadd.f32 0.0, %v7099
      %v7101 = vpop.f32.mrb[0].mxu0
      %v7102 = vpop.f32.mrb[0].mxu0
      %v7103 = vpop.f32.mrb[0].mxu0
      %7104 = vdwg.mxu0
      %7105 = vrot.lane.b32.xlu0 %v124, 124
      %v7106 = vpop.permute.xlu0 %7105
      %v7107 = vrot.slane %v7106, 1
      %v7109 = vsel %vm1355, %v6849, 0
      %v7112 = vsel %vm1359, %v7107, 0
      %7114 = vmatprep.subr.bf16.mxu0 0
      %7115 = vmatpush1.bf16.msra.mxu0 %v7112
      %7116 = vmatprep.subr.bf16.mxu0 0
      %7117 = vmatpush1.bf16.msra.mxu0 0
      %7118 = vmatprep.subr.bf16.mxu0 0
      %7119 = vmatpush1.bf16.msra.mxu0 0
      %7120 = vmatprep.subr.bf16.mxu0 0
      %7121 = vmatpush1.bf16.msra.mxu0 0
      %7122 = vmatprep.subr.bf16.mxu0 0
      %7123 = vmatpush1.bf16.msra.mxu0 0
      %7124 = vmatprep.subr.bf16.mxu0 0
      %7125 = vmatpush1.bf16.msra.mxu0 0
      %7126 = vmatprep.subr.bf16.mxu0 0
      %7127 = vmatpush1.bf16.msra.mxu0 0
      %7128 = vmatprep.subr.bf16.mxu0 0
      %7129 = vmatpush1.bf16.msra.mxu0 0
      %7130 = vmatprep.subr.bf16.mxu0 0
      %7131 = vmatpush1.bf16.msra.mxu0 0
      %7132 = vmatprep.subr.bf16.mxu0 0
      %7133 = vmatpush1.bf16.msra.mxu0 0
      %7134 = vmatprep.subr.bf16.mxu0 0
      %7135 = vmatpush1.bf16.msra.mxu0 0
      %7136 = vmatprep.subr.bf16.mxu0 0
      %7137 = vmatpush1.bf16.msra.mxu0 0
      %7138 = vmatprep.subr.bf16.mxu0 0
      %7139 = vmatpush1.bf16.msra.mxu0 0
      %7140 = vmatprep.subr.bf16.mxu0 0
      %7141 = vmatpush1.bf16.msra.mxu0 0
      %7142 = vmatprep.subr.bf16.mxu0 0
      %7143 = vmatpush1.bf16.msra.mxu0 0
      %7144 = vmatprep.subr.bf16.mxu0 0
      %7145 = vmatpush1.bf16.msra.mxu0 0
      %7146 = vmatprep.mubr.bf16.mxu0 0
      %7147 = vmatmul.mubr.bf16.gmra.mrb[0].mxu0 %v7109
      %v7148 = vpop.f32.mrb[0].mxu0
      %v7149 = vadd.f32 0.0, %v7148
      %v7150 = vpop.f32.mrb[0].mxu0
      %v7151 = vpop.f32.mrb[0].mxu0
      %v7152 = vpop.f32.mrb[0].mxu0
      %7153 = vdwg.mxu0
      %7154 = vrot.lane.b32.xlu0 %v125, 124
      %v7155 = vpop.permute.xlu0 %7154
      %v7156 = vrot.slane %v7155, 1
      %v7158 = vsel %vm1355, %v6850, 0
      %v7161 = vsel %vm1359, %v7156, 0
      %7163 = vmatprep.subr.bf16.mxu0 0
      %7164 = vmatpush1.bf16.msra.mxu0 %v7161
      %7165 = vmatprep.subr.bf16.mxu0 0
      %7166 = vmatpush1.bf16.msra.mxu0 0
      %7167 = vmatprep.subr.bf16.mxu0 0
      %7168 = vmatpush1.bf16.msra.mxu0 0
      %7169 = vmatprep.subr.bf16.mxu0 0
      %7170 = vmatpush1.bf16.msra.mxu0 0
      %7171 = vmatprep.subr.bf16.mxu0 0
      %7172 = vmatpush1.bf16.msra.mxu0 0
      %7173 = vmatprep.subr.bf16.mxu0 0
      %7174 = vmatpush1.bf16.msra.mxu0 0
      %7175 = vmatprep.subr.bf16.mxu0 0
      %7176 = vmatpush1.bf16.msra.mxu0 0
      %7177 = vmatprep.subr.bf16.mxu0 0
      %7178 = vmatpush1.bf16.msra.mxu0 0
      %7179 = vmatprep.subr.bf16.mxu0 0
      %7180 = vmatpush1.bf16.msra.mxu0 0
      %7181 = vmatprep.subr.bf16.mxu0 0
      %7182 = vmatpush1.bf16.msra.mxu0 0
      %7183 = vmatprep.subr.bf16.mxu0 0
      %7184 = vmatpush1.bf16.msra.mxu0 0
      %7185 = vmatprep.subr.bf16.mxu0 0
      %7186 = vmatpush1.bf16.msra.mxu0 0
      %7187 = vmatprep.subr.bf16.mxu0 0
      %7188 = vmatpush1.bf16.msra.mxu0 0
      %7189 = vmatprep.subr.bf16.mxu0 0
      %7190 = vmatpush1.bf16.msra.mxu0 0
      %7191 = vmatprep.subr.bf16.mxu0 0
      %7192 = vmatpush1.bf16.msra.mxu0 0
      %7193 = vmatprep.subr.bf16.mxu0 0
      %7194 = vmatpush1.bf16.msra.mxu0 0
      %7195 = vmatprep.mubr.bf16.mxu0 0
      %7196 = vmatmul.mubr.bf16.gmra.mrb[0].mxu0 %v7158
      %v7197 = vpop.f32.mrb[0].mxu0
      %v7198 = vadd.f32 0.0, %v7197
      %v7199 = vpop.f32.mrb[0].mxu0
      %v7200 = vpop.f32.mrb[0].mxu0
      %v7201 = vpop.f32.mrb[0].mxu0
      %7202 = vdwg.mxu0
      %7203 = vrot.lane.b32.xlu0 %v126, 124
      %v7204 = vpop.permute.xlu0 %7203
      %v7205 = vrot.slane %v7204, 1
      %v7207 = vsel %vm1355, %v6851, 0
      %v7210 = vsel %vm1359, %v7205, 0
      %7212 = vmatprep.subr.bf16.mxu0 0
      %7213 = vmatpush1.bf16.msra.mxu0 %v7210
      %7214 = vmatprep.subr.bf16.mxu0 0
      %7215 = vmatpush1.bf16.msra.mxu0 0
      %7216 = vmatprep.subr.bf16.mxu0 0
      %7217 = vmatpush1.bf16.msra.mxu0 0
      %7218 = vmatprep.subr.bf16.mxu0 0
      %7219 = vmatpush1.bf16.msra.mxu0 0
      %7220 = vmatprep.subr.bf16.mxu0 0
      %7221 = vmatpush1.bf16.msra.mxu0 0
      %7222 = vmatprep.subr.bf16.mxu0 0
      %7223 = vmatpush1.bf16.msra.mxu0 0
      %7224 = vmatprep.subr.bf16.mxu0 0
      %7225 = vmatpush1.bf16.msra.mxu0 0
      %7226 = vmatprep.subr.bf16.mxu0 0
      %7227 = vmatpush1.bf16.msra.mxu0 0
      %7228 = vmatprep.subr.bf16.mxu0 0
      %7229 = vmatpush1.bf16.msra.mxu0 0
      %7230 = vmatprep.subr.bf16.mxu0 0
      %7231 = vmatpush1.bf16.msra.mxu0 0
      %7232 = vmatprep.subr.bf16.mxu0 0
      %7233 = vmatpush1.bf16.msra.mxu0 0
      %7234 = vmatprep.subr.bf16.mxu0 0
      %7235 = vmatpush1.bf16.msra.mxu0 0
      %7236 = vmatprep.subr.bf16.mxu0 0
      %7237 = vmatpush1.bf16.msra.mxu0 0
      %7238 = vmatprep.subr.bf16.mxu0 0
      %7239 = vmatpush1.bf16.msra.mxu0 0
      %7240 = vmatprep.subr.bf16.mxu0 0
      %7241 = vmatpush1.bf16.msra.mxu0 0
      %7242 = vmatprep.subr.bf16.mxu0 0
      %7243 = vmatpush1.bf16.msra.mxu0 0
      %7244 = vmatprep.mubr.bf16.mxu0 0
      %7245 = vmatmul.mubr.bf16.gmra.mrb[0].mxu0 %v7207
      %v7246 = vpop.f32.mrb[0].mxu0
      %v7247 = vadd.f32 0.0, %v7246
      %v7248 = vpop.f32.mrb[0].mxu0
      %v7249 = vpop.f32.mrb[0].mxu0
      %v7250 = vpop.f32.mrb[0].mxu0
      %7251 = vdwg.mxu0
      %7252 = vrot.lane.b32.xlu0 %v127, 124
      %v7253 = vpop.permute.xlu0 %7252
      %v7254 = vrot.slane %v7253, 1
      %v7256 = vsel %vm1355, %v6852, 0
      %v7259 = vsel %vm1359, %v7254, 0
      %7261 = vmatprep.subr.bf16.mxu0 0
      %7262 = vmatpush1.bf16.msra.mxu0 %v7259
      %7263 = vmatprep.subr.bf16.mxu0 0
      %7264 = vmatpush1.bf16.msra.mxu0 0
      %7265 = vmatprep.subr.bf16.mxu0 0
      %7266 = vmatpush1.bf16.msra.mxu0 0
      %7267 = vmatprep.subr.bf16.mxu0 0
      %7268 = vmatpush1.bf16.msra.mxu0 0
      %7269 = vmatprep.subr.bf16.mxu0 0
      %7270 = vmatpush1.bf16.msra.mxu0 0
      %7271 = vmatprep.subr.bf16.mxu0 0
      %7272 = vmatpush1.bf16.msra.mxu0 0
      %7273 = vmatprep.subr.bf16.mxu0 0
      %7274 = vmatpush1.bf16.msra.mxu0 0
      %7275 = vmatprep.subr.bf16.mxu0 0
      %7276 = vmatpush1.bf16.msra.mxu0 0
      %7277 = vmatprep.subr.bf16.mxu0 0
      %7278 = vmatpush1.bf16.msra.mxu0 0
      %7279 = vmatprep.subr.bf16.mxu0 0
      %7280 = vmatpush1.bf16.msra.mxu0 0
      %7281 = vmatprep.subr.bf16.mxu0 0
      %7282 = vmatpush1.bf16.msra.mxu0 0
      %7283 = vmatprep.subr.bf16.mxu0 0
      %7284 = vmatpush1.bf16.msra.mxu0 0
      %7285 = vmatprep.subr.bf16.mxu0 0
      %7286 = vmatpush1.bf16.msra.mxu0 0
      %7287 = vmatprep.subr.bf16.mxu0 0
      %7288 = vmatpush1.bf16.msra.mxu0 0
      %7289 = vmatprep.subr.bf16.mxu0 0
      %7290 = vmatpush1.bf16.msra.mxu0 0
      %7291 = vmatprep.subr.bf16.mxu0 0
      %7292 = vmatpush1.bf16.msra.mxu0 0
      %7293 = vmatprep.mubr.bf16.mxu0 0
      %7294 = vmatmul.mubr.bf16.gmra.mrb[0].mxu0 %v7256
      %v7295 = vpop.f32.mrb[0].mxu0
      %v7296 = vadd.f32 0.0, %v7295
      %v7297 = vpop.f32.mrb[0].mxu0
      %v7298 = vpop.f32.mrb[0].mxu0
      %v7299 = vpop.f32.mrb[0].mxu0
      %7300 = vdwg.mxu0
      %7301 = vrot.lane.b32.xlu0 %v128, 124
      %v7302 = vpop.permute.xlu0 %7301
      %v7303 = vrot.slane %v7302, 1
      %v7305 = vsel %vm1355, %v6853, 0
      %v7308 = vsel %vm1359, %v7303, 0
      %7310 = vmatprep.subr.bf16.mxu0 0
      %7311 = vmatpush1.bf16.msra.mxu0 %v7308
      %7312 = vmatprep.subr.bf16.mxu0 0
      %7313 = vmatpush1.bf16.msra.mxu0 0
      %7314 = vmatprep.subr.bf16.mxu0 0
      %7315 = vmatpush1.bf16.msra.mxu0 0
      %7316 = vmatprep.subr.bf16.mxu0 0
      %7317 = vmatpush1.bf16.msra.mxu0 0
      %7318 = vmatprep.subr.bf16.mxu0 0
      %7319 = vmatpush1.bf16.msra.mxu0 0
      %7320 = vmatprep.subr.bf16.mxu0 0
      %7321 = vmatpush1.bf16.msra.mxu0 0
      %7322 = vmatprep.subr.bf16.mxu0 0
      %7323 = vmatpush1.bf16.msra.mxu0 0
      %7324 = vmatprep.subr.bf16.mxu0 0
      %7325 = vmatpush1.bf16.msra.mxu0 0
      %7326 = vmatprep.subr.bf16.mxu0 0
      %7327 = vmatpush1.bf16.msra.mxu0 0
      %7328 = vmatprep.subr.bf16.mxu0 0
      %7329 = vmatpush1.bf16.msra.mxu0 0
      %7330 = vmatprep.subr.bf16.mxu0 0
      %7331 = vmatpush1.bf16.msra.mxu0 0
      %7332 = vmatprep.subr.bf16.mxu0 0
      %7333 = vmatpush1.bf16.msra.mxu0 0
      %7334 = vmatprep.subr.bf16.mxu0 0
      %7335 = vmatpush1.bf16.msra.mxu0 0
      %7336 = vmatprep.subr.bf16.mxu0 0
      %7337 = vmatpush1.bf16.msra.mxu0 0
      %7338 = vmatprep.subr.bf16.mxu0 0
      %7339 = vmatpush1.bf16.msra.mxu0 0
      %7340 = vmatprep.subr.bf16.mxu0 0
      %7341 = vmatpush1.bf16.msra.mxu0 0
      %7342 = vmatprep.mubr.bf16.mxu0 0
      %7343 = vmatmul.mubr.bf16.gmra.mrb[0].mxu0 %v7305
      %v7344 = vpop.f32.mrb[0].mxu0
      %v7345 = vadd.f32 0.0, %v7344
      %v7346 = vpop.f32.mrb[0].mxu0
      %v7347 = vpop.f32.mrb[0].mxu0
      %v7348 = vpop.f32.mrb[0].mxu0
      %7349 = vdwg.mxu0
      %7350 = vrot.lane.b32.xlu0 %v129, 124
      %v7351 = vpop.permute.xlu0 %7350
      %v7352 = vrot.slane %v7351, 1
      %v7354 = vsel %vm1355, %v6854, 0
      %v7357 = vsel %vm1359, %v7352, 0
      %7359 = vmatprep.subr.bf16.mxu0 0
      %7360 = vmatpush1.bf16.msra.mxu0 %v7357
      %7361 = vmatprep.subr.bf16.mxu0 0
      %7362 = vmatpush1.bf16.msra.mxu0 0
      %7363 = vmatprep.subr.bf16.mxu0 0
      %7364 = vmatpush1.bf16.msra.mxu0 0
      %7365 = vmatprep.subr.bf16.mxu0 0
      %7366 = vmatpush1.bf16.msra.mxu0 0
      %7367 = vmatprep.subr.bf16.mxu0 0
      %7368 = vmatpush1.bf16.msra.mxu0 0
      %7369 = vmatprep.subr.bf16.mxu0 0
      %7370 = vmatpush1.bf16.msra.mxu0 0
      %7371 = vmatprep.subr.bf16.mxu0 0
      %7372 = vmatpush1.bf16.msra.mxu0 0
      %7373 = vmatprep.subr.bf16.mxu0 0
      %7374 = vmatpush1.bf16.msra.mxu0 0
      %7375 = vmatprep.subr.bf16.mxu0 0
      %7376 = vmatpush1.bf16.msra.mxu0 0
      %7377 = vmatprep.subr.bf16.mxu0 0
      %7378 = vmatpush1.bf16.msra.mxu0 0
      %7379 = vmatprep.subr.bf16.mxu0 0
      %7380 = vmatpush1.bf16.msra.mxu0 0
      %7381 = vmatprep.subr.bf16.mxu0 0
      %7382 = vmatpush1.bf16.msra.mxu0 0
      %7383 = vmatprep.subr.bf16.mxu0 0
      %7384 = vmatpush1.bf16.msra.mxu0 0
      %7385 = vmatprep.subr.bf16.mxu0 0
      %7386 = vmatpush1.bf16.msra.mxu0 0
      %7387 = vmatprep.subr.bf16.mxu0 0
      %7388 = vmatpush1.bf16.msra.mxu0 0
      %7389 = vmatprep.subr.bf16.mxu0 0
      %7390 = vmatpush1.bf16.msra.mxu0 0
      %7391 = vmatprep.mubr.bf16.mxu0 0
      %7392 = vmatmul.mubr.bf16.gmra.mrb[0].mxu0 %v7354
      %v7393 = vpop.f32.mrb[0].mxu0
      %v7394 = vadd.f32 0.0, %v7393
      %v7395 = vpop.f32.mrb[0].mxu0
      %v7396 = vpop.f32.mrb[0].mxu0
      %v7397 = vpop.f32.mrb[0].mxu0
      %7398 = vdwg.mxu0
      %7399 = vrot.lane.b32.xlu0 %v130, 124
      %v7400 = vpop.permute.xlu0 %7399
      %v7401 = vrot.slane %v7400, 1
      %v7403 = vsel %vm1355, %v6855, 0
      %v7406 = vsel %vm1359, %v7401, 0
      %7408 = vmatprep.subr.bf16.mxu0 0
      %7409 = vmatpush1.bf16.msra.mxu0 %v7406
      %7410 = vmatprep.subr.bf16.mxu0 0
      %7411 = vmatpush1.bf16.msra.mxu0 0
      %7412 = vmatprep.subr.bf16.mxu0 0
      %7413 = vmatpush1.bf16.msra.mxu0 0
      %7414 = vmatprep.subr.bf16.mxu0 0
      %7415 = vmatpush1.bf16.msra.mxu0 0
      %7416 = vmatprep.subr.bf16.mxu0 0
      %7417 = vmatpush1.bf16.msra.mxu0 0
      %7418 = vmatprep.subr.bf16.mxu0 0
      %7419 = vmatpush1.bf16.msra.mxu0 0
      %7420 = vmatprep.subr.bf16.mxu0 0
      %7421 = vmatpush1.bf16.msra.mxu0 0
      %7422 = vmatprep.subr.bf16.mxu0 0
      %7423 = vmatpush1.bf16.msra.mxu0 0
      %7424 = vmatprep.subr.bf16.mxu0 0
      %7425 = vmatpush1.bf16.msra.mxu0 0
      %7426 = vmatprep.subr.bf16.mxu0 0
      %7427 = vmatpush1.bf16.msra.mxu0 0
      %7428 = vmatprep.subr.bf16.mxu0 0
      %7429 = vmatpush1.bf16.msra.mxu0 0
      %7430 = vmatprep.subr.bf16.mxu0 0
      %7431 = vmatpush1.bf16.msra.mxu0 0
      %7432 = vmatprep.subr.bf16.mxu0 0
      %7433 = vmatpush1.bf16.msra.mxu0 0
      %7434 = vmatprep.subr.bf16.mxu0 0
      %7435 = vmatpush1.bf16.msra.mxu0 0
      %7436 = vmatprep.subr.bf16.mxu0 0
      %7437 = vmatpush1.bf16.msra.mxu0 0
      %7438 = vmatprep.subr.bf16.mxu0 0
      %7439 = vmatpush1.bf16.msra.mxu0 0
      %7440 = vmatprep.mubr.bf16.mxu0 0
      %7441 = vmatmul.mubr.bf16.gmra.mrb[0].mxu0 %v7403
      %v7442 = vpop.f32.mrb[0].mxu0
      %v7443 = vadd.f32 0.0, %v7442
      %v7444 = vpop.f32.mrb[0].mxu0
      %v7445 = vpop.f32.mrb[0].mxu0
      %v7446 = vpop.f32.mrb[0].mxu0
      %7447 = vdwg.mxu0
      %7448 = vrot.lane.b32.xlu0 %v131, 124
      %v7449 = vpop.permute.xlu0 %7448
      %v7450 = vrot.slane %v7449, 1
      %v7452 = vsel %vm1355, %v6856, 0
      %v7455 = vsel %vm1359, %v7450, 0
      %7457 = vmatprep.subr.bf16.mxu0 0
      %7458 = vmatpush1.bf16.msra.mxu0 %v7455
      %7459 = vmatprep.subr.bf16.mxu0 0
      %7460 = vmatpush1.bf16.msra.mxu0 0
      %7461 = vmatprep.subr.bf16.mxu0 0
      %7462 = vmatpush1.bf16.msra.mxu0 0
      %7463 = vmatprep.subr.bf16.mxu0 0
      %7464 = vmatpush1.bf16.msra.mxu0 0
      %7465 = vmatprep.subr.bf16.mxu0 0
      %7466 = vmatpush1.bf16.msra.mxu0 0
      %7467 = vmatprep.subr.bf16.mxu0 0
      %7468 = vmatpush1.bf16.msra.mxu0 0
      %7469 = vmatprep.subr.bf16.mxu0 0
      %7470 = vmatpush1.bf16.msra.mxu0 0
      %7471 = vmatprep.subr.bf16.mxu0 0
      %7472 = vmatpush1.bf16.msra.mxu0 0
      %7473 = vmatprep.subr.bf16.mxu0 0
      %7474 = vmatpush1.bf16.msra.mxu0 0
      %7475 = vmatprep.subr.bf16.mxu0 0
      %7476 = vmatpush1.bf16.msra.mxu0 0
      %7477 = vmatprep.subr.bf16.mxu0 0
      %7478 = vmatpush1.bf16.msra.mxu0 0
      %7479 = vmatprep.subr.bf16.mxu0 0
      %7480 = vmatpush1.bf16.msra.mxu0 0
      %7481 = vmatprep.subr.bf16.mxu0 0
      %7482 = vmatpush1.bf16.msra.mxu0 0
      %7483 = vmatprep.subr.bf16.mxu0 0
      %7484 = vmatpush1.bf16.msra.mxu0 0
      %7485 = vmatprep.subr.bf16.mxu0 0
      %7486 = vmatpush1.bf16.msra.mxu0 0
      %7487 = vmatprep.subr.bf16.mxu0 0
      %7488 = vmatpush1.bf16.msra.mxu0 0
      %7489 = vmatprep.mubr.bf16.mxu0 0
      %7490 = vmatmul.mubr.bf16.gmra.mrb[0].mxu0 %v7452
      %v7491 = vpop.f32.mrb[0].mxu0
      %v7492 = vadd.f32 0.0, %v7491
      %v7493 = vpop.f32.mrb[0].mxu0
      %v7494 = vpop.f32.mrb[0].mxu0
      %v7495 = vpop.f32.mrb[0].mxu0
      %7496 = vdwg.mxu0
      %7497 = vrot.lane.b32.xlu0 %v132, 124
      %v7498 = vpop.permute.xlu0 %7497
      %v7499 = vrot.slane %v7498, 1
      %v7501 = vsel %vm1355, %v6857, 0
      %v7504 = vsel %vm1359, %v7499, 0
      %7506 = vmatprep.subr.bf16.mxu0 0
      %7507 = vmatpush1.bf16.msra.mxu0 %v7504
      %7508 = vmatprep.subr.bf16.mxu0 0
      %7509 = vmatpush1.bf16.msra.mxu0 0
      %7510 = vmatprep.subr.bf16.mxu0 0
      %7511 = vmatpush1.bf16.msra.mxu0 0
      %7512 = vmatprep.subr.bf16.mxu0 0
      %7513 = vmatpush1.bf16.msra.mxu0 0
      %7514 = vmatprep.subr.bf16.mxu0 0
      %7515 = vmatpush1.bf16.msra.mxu0 0
      %7516 = vmatprep.subr.bf16.mxu0 0
      %7517 = vmatpush1.bf16.msra.mxu0 0
      %7518 = vmatprep.subr.bf16.mxu0 0
      %7519 = vmatpush1.bf16.msra.mxu0 0
      %7520 = vmatprep.subr.bf16.mxu0 0
      %7521 = vmatpush1.bf16.msra.mxu0 0
      %7522 = vmatprep.subr.bf16.mxu0 0
      %7523 = vmatpush1.bf16.msra.mxu0 0
      %7524 = vmatprep.subr.bf16.mxu0 0
      %7525 = vmatpush1.bf16.msra.mxu0 0
      %7526 = vmatprep.subr.bf16.mxu0 0
      %7527 = vmatpush1.bf16.msra.mxu0 0
      %7528 = vmatprep.subr.bf16.mxu0 0
      %7529 = vmatpush1.bf16.msra.mxu0 0
      %7530 = vmatprep.subr.bf16.mxu0 0
      %7531 = vmatpush1.bf16.msra.mxu0 0
      %7532 = vmatprep.subr.bf16.mxu0 0
      %7533 = vmatpush1.bf16.msra.mxu0 0
      %7534 = vmatprep.subr.bf16.mxu0 0
      %7535 = vmatpush1.bf16.msra.mxu0 0
      %7536 = vmatprep.subr.bf16.mxu0 0
      %7537 = vmatpush1.bf16.msra.mxu0 0
      %7538 = vmatprep.mubr.bf16.mxu0 0
      %7539 = vmatmul.mubr.bf16.gmra.mrb[0].mxu0 %v7501
      %v7540 = vpop.f32.mrb[0].mxu0
      %v7541 = vadd.f32 0.0, %v7540
      %v7542 = vpop.f32.mrb[0].mxu0
      %v7543 = vpop.f32.mrb[0].mxu0
      %v7544 = vpop.f32.mrb[0].mxu0
      %7545 = vdwg.mxu0
      %7546 = vrot.lane.b32.xlu0 %v133, 124
      %v7547 = vpop.permute.xlu0 %7546
      %v7548 = vrot.slane %v7547, 1
      %v7550 = vsel %vm1355, %v6858, 0
      %v7553 = vsel %vm1359, %v7548, 0
      %7555 = vmatprep.subr.bf16.mxu0 0
      %7556 = vmatpush1.bf16.msra.mxu0 %v7553
      %7557 = vmatprep.subr.bf16.mxu0 0
      %7558 = vmatpush1.bf16.msra.mxu0 0
      %7559 = vmatprep.subr.bf16.mxu0 0
      %7560 = vmatpush1.bf16.msra.mxu0 0
      %7561 = vmatprep.subr.bf16.mxu0 0
      %7562 = vmatpush1.bf16.msra.mxu0 0
      %7563 = vmatprep.subr.bf16.mxu0 0
      %7564 = vmatpush1.bf16.msra.mxu0 0
      %7565 = vmatprep.subr.bf16.mxu0 0
      %7566 = vmatpush1.bf16.msra.mxu0 0
      %7567 = vmatprep.subr.bf16.mxu0 0
      %7568 = vmatpush1.bf16.msra.mxu0 0
      %7569 = vmatprep.subr.bf16.mxu0 0
      %7570 = vmatpush1.bf16.msra.mxu0 0
      %7571 = vmatprep.subr.bf16.mxu0 0
      %7572 = vmatpush1.bf16.msra.mxu0 0
      %7573 = vmatprep.subr.bf16.mxu0 0
      %7574 = vmatpush1.bf16.msra.mxu0 0
      %7575 = vmatprep.subr.bf16.mxu0 0
      %7576 = vmatpush1.bf16.msra.mxu0 0
      %7577 = vmatprep.subr.bf16.mxu0 0
      %7578 = vmatpush1.bf16.msra.mxu0 0
      %7579 = vmatprep.subr.bf16.mxu0 0
      %7580 = vmatpush1.bf16.msra.mxu0 0
      %7581 = vmatprep.subr.bf16.mxu0 0
      %7582 = vmatpush1.bf16.msra.mxu0 0
      %7583 = vmatprep.subr.bf16.mxu0 0
      %7584 = vmatpush1.bf16.msra.mxu0 0
      %7585 = vmatprep.subr.bf16.mxu0 0
      %7586 = vmatpush1.bf16.msra.mxu0 0
      %7587 = vmatprep.mubr.bf16.mxu0 0
      %7588 = vmatmul.mubr.bf16.gmra.mrb[0].mxu0 %v7550
      %v7589 = vpop.f32.mrb[0].mxu0
      %v7590 = vadd.f32 0.0, %v7589
      %v7591 = vpop.f32.mrb[0].mxu0
      %v7592 = vpop.f32.mrb[0].mxu0
      %v7593 = vpop.f32.mrb[0].mxu0
      %7594 = vdwg.mxu0
      %7595 = vrot.lane.b32.xlu0 %v134, 124
      %v7596 = vpop.permute.xlu0 %7595
      %v7597 = vrot.slane %v7596, 1
      %v7599 = vsel %vm1355, %v6859, 0
      %v7602 = vsel %vm1359, %v7597, 0
      %7604 = vmatprep.subr.bf16.mxu0 0
      %7605 = vmatpush1.bf16.msra.mxu0 %v7602
      %7606 = vmatprep.subr.bf16.mxu0 0
      %7607 = vmatpush1.bf16.msra.mxu0 0
      %7608 = vmatprep.subr.bf16.mxu0 0
      %7609 = vmatpush1.bf16.msra.mxu0 0
      %7610 = vmatprep.subr.bf16.mxu0 0
      %7611 = vmatpush1.bf16.msra.mxu0 0
      %7612 = vmatprep.subr.bf16.mxu0 0
      %7613 = vmatpush1.bf16.msra.mxu0 0
      %7614 = vmatprep.subr.bf16.mxu0 0
      %7615 = vmatpush1.bf16.msra.mxu0 0
      %7616 = vmatprep.subr.bf16.mxu0 0
      %7617 = vmatpush1.bf16.msra.mxu0 0
      %7618 = vmatprep.subr.bf16.mxu0 0
      %7619 = vmatpush1.bf16.msra.mxu0 0
      %7620 = vmatprep.subr.bf16.mxu0 0
      %7621 = vmatpush1.bf16.msra.mxu0 0
      %7622 = vmatprep.subr.bf16.mxu0 0
      %7623 = vmatpush1.bf16.msra.mxu0 0
      %7624 = vmatprep.subr.bf16.mxu0 0
      %7625 = vmatpush1.bf16.msra.mxu0 0
      %7626 = vmatprep.subr.bf16.mxu0 0
      %7627 = vmatpush1.bf16.msra.mxu0 0
      %7628 = vmatprep.subr.bf16.mxu0 0
      %7629 = vmatpush1.bf16.msra.mxu0 0
      %7630 = vmatprep.subr.bf16.mxu0 0
      %7631 = vmatpush1.bf16.msra.mxu0 0
      %7632 = vmatprep.subr.bf16.mxu0 0
      %7633 = vmatpush1.bf16.msra.mxu0 0
      %7634 = vmatprep.subr.bf16.mxu0 0
      %7635 = vmatpush1.bf16.msra.mxu0 0
      %7636 = vmatprep.mubr.bf16.mxu0 0
      %7637 = vmatmul.mubr.bf16.gmra.mrb[0].mxu0 %v7599
      %v7638 = vpop.f32.mrb[0].mxu0
      %v7639 = vadd.f32 0.0, %v7638
      %v7640 = vpop.f32.mrb[0].mxu0
      %v7641 = vpop.f32.mrb[0].mxu0
      %v7642 = vpop.f32.mrb[0].mxu0
      %7643 = vdwg.mxu0
      %7660 = vrot.lane.b32.xlu0 %v3174, 12
      %v7661 = vpop.permute.xlu0 %7660
      %7662 = vrot.lane.b32.xlu0 %v3222, 12
      %v7663 = vpop.permute.xlu0 %7662
      %7664 = vrot.lane.b32.xlu0 %v3270, 12
      %v7665 = vpop.permute.xlu0 %7664
      %7666 = vrot.lane.b32.xlu0 %v3318, 12
      %v7667 = vpop.permute.xlu0 %7666
      %7668 = vrot.lane.b32.xlu0 %v3366, 12
      %v7669 = vpop.permute.xlu0 %7668
      %7670 = vrot.lane.b32.xlu0 %v3414, 12
      %v7671 = vpop.permute.xlu0 %7670
      %7672 = vrot.lane.b32.xlu0 %v3462, 12
      %v7673 = vpop.permute.xlu0 %7672
      %7674 = vrot.lane.b32.xlu0 %v3510, 12
      %v7675 = vpop.permute.xlu0 %7674
      %7676 = vrot.lane.b32.xlu0 %v3558, 12
      %v7677 = vpop.permute.xlu0 %7676
      %7678 = vrot.lane.b32.xlu0 %v3606, 12
      %v7679 = vpop.permute.xlu0 %7678
      %7680 = vrot.lane.b32.xlu0 %v3654, 12
      %v7681 = vpop.permute.xlu0 %7680
      %7682 = vrot.lane.b32.xlu0 %v3702, 12
      %v7683 = vpop.permute.xlu0 %7682
      %7684 = vrot.lane.b32.xlu0 %v3750, 12
      %v7685 = vpop.permute.xlu0 %7684
      %7686 = vrot.lane.b32.xlu0 %v3798, 12
      %v7687 = vpop.permute.xlu0 %7686
      %7688 = vrot.lane.b32.xlu0 %v3846, 12
      %v7689 = vpop.permute.xlu0 %7688
      %7690 = vrot.lane.b32.xlu0 %v3894, 12
      %v7691 = vpop.permute.xlu0 %7690
      %7724 = vrot.lane.b32.xlu0 %v4962, 24
      %v7725 = vpop.permute.xlu0 %7724
      %7726 = vrot.lane.b32.xlu0 %v5021, 24
      %v7727 = vpop.permute.xlu0 %7726
      %7728 = vrot.lane.b32.xlu0 %v5080, 24
      %v7729 = vpop.permute.xlu0 %7728
      %7730 = vrot.lane.b32.xlu0 %v5139, 24
      %v7731 = vpop.permute.xlu0 %7730
      %7732 = vrot.lane.b32.xlu0 %v5198, 24
      %v7733 = vpop.permute.xlu0 %7732
      %7734 = vrot.lane.b32.xlu0 %v5257, 24
      %v7735 = vpop.permute.xlu0 %7734
      %7736 = vrot.lane.b32.xlu0 %v5316, 24
      %v7737 = vpop.permute.xlu0 %7736
      %7738 = vrot.lane.b32.xlu0 %v5375, 24
      %v7739 = vpop.permute.xlu0 %7738
      %7740 = vrot.lane.b32.xlu0 %v5434, 24
      %v7741 = vpop.permute.xlu0 %7740
      %7742 = vrot.lane.b32.xlu0 %v5493, 24
      %v7743 = vpop.permute.xlu0 %7742
      %7744 = vrot.lane.b32.xlu0 %v5552, 24
      %v7745 = vpop.permute.xlu0 %7744
      %7746 = vrot.lane.b32.xlu0 %v5611, 24
      %v7747 = vpop.permute.xlu0 %7746
      %7748 = vrot.lane.b32.xlu0 %v5670, 24
      %v7749 = vpop.permute.xlu0 %7748
      %7750 = vrot.lane.b32.xlu0 %v5729, 24
      %v7751 = vpop.permute.xlu0 %7750
      %7752 = vrot.lane.b32.xlu0 %v5788, 24
      %v7753 = vpop.permute.xlu0 %7752
      %7754 = vrot.lane.b32.xlu0 %v5847, 24
      %v7755 = vpop.permute.xlu0 %7754
      %7788 = vrot.lane.b32.xlu0 %v6904, 36
      %v7789 = vpop.permute.xlu0 %7788
      %7790 = vrot.lane.b32.xlu0 %v6953, 36
      %v7791 = vpop.permute.xlu0 %7790
      %7792 = vrot.lane.b32.xlu0 %v7002, 36
      %v7793 = vpop.permute.xlu0 %7792
      %7794 = vrot.lane.b32.xlu0 %v7051, 36
      %v7795 = vpop.permute.xlu0 %7794
      %7796 = vrot.lane.b32.xlu0 %v7100, 36
      %v7797 = vpop.permute.xlu0 %7796
      %7798 = vrot.lane.b32.xlu0 %v7149, 36
      %v7799 = vpop.permute.xlu0 %7798
      %7800 = vrot.lane.b32.xlu0 %v7198, 36
      %v7801 = vpop.permute.xlu0 %7800
      %7802 = vrot.lane.b32.xlu0 %v7247, 36
      %v7803 = vpop.permute.xlu0 %7802
      %7804 = vrot.lane.b32.xlu0 %v7296, 36
      %v7805 = vpop.permute.xlu0 %7804
      %7806 = vrot.lane.b32.xlu0 %v7345, 36
      %v7807 = vpop.permute.xlu0 %7806
      %7808 = vrot.lane.b32.xlu0 %v7394, 36
      %v7809 = vpop.permute.xlu0 %7808
      %7810 = vrot.lane.b32.xlu0 %v7443, 36
      %v7811 = vpop.permute.xlu0 %7810
      %7812 = vrot.lane.b32.xlu0 %v7492, 36
      %v7813 = vpop.permute.xlu0 %7812
      %7814 = vrot.lane.b32.xlu0 %v7541, 36
      %v7815 = vpop.permute.xlu0 %7814
      %7816 = vrot.lane.b32.xlu0 %v7590, 36
      %v7817 = vpop.permute.xlu0 %7816
      %7818 = vrot.lane.b32.xlu0 %v7639, 36
      %v7819 = vpop.permute.xlu0 %7818
      %v7836 = vsel %vm152, %v1398, %v7661
      %v7837 = vsel %vm152, %v1446, %v7663
      %v7838 = vsel %vm152, %v1494, %v7665
      %v7839 = vsel %vm152, %v1542, %v7667
      %v7840 = vsel %vm152, %v1590, %v7669
      %v7841 = vsel %vm152, %v1638, %v7671
      %v7842 = vsel %vm152, %v1686, %v7673
      %v7843 = vsel %vm152, %v1734, %v7675
      %v7844 = vsel %vm152, %v1782, %v7677
      %v7845 = vsel %vm152, %v1830, %v7679
      %v7846 = vsel %vm152, %v1878, %v7681
      %v7847 = vsel %vm152, %v1926, %v7683
      %v7848 = vsel %vm152, %v1974, %v7685
      %v7849 = vsel %vm152, %v2022, %v7687
      %v7850 = vsel %vm152, %v2070, %v7689
      %v7851 = vsel %vm152, %v2118, %v7691
      %vm7852 = vcmask 195584
      %v7853 = vsel %vm7852, %v7836, %v7725
      %v7854 = vsel %vm7852, %v7837, %v7727
      %v7855 = vsel %vm7852, %v7838, %v7729
      %v7856 = vsel %vm7852, %v7839, %v7731
      %v7857 = vsel %vm7852, %v7840, %v7733
      %v7858 = vsel %vm7852, %v7841, %v7735
      %v7859 = vsel %vm7852, %v7842, %v7737
      %v7860 = vsel %vm7852, %v7843, %v7739
      %v7861 = vsel %vm7852, %v7844, %v7741
      %v7862 = vsel %vm7852, %v7845, %v7743
      %v7863 = vsel %vm7852, %v7846, %v7745
      %v7864 = vsel %vm7852, %v7847, %v7747
      %v7865 = vsel %vm7852, %v7848, %v7749
      %v7866 = vsel %vm7852, %v7849, %v7751
      %v7867 = vsel %vm7852, %v7850, %v7753
      %v7868 = vsel %vm7852, %v7851, %v7755
      %vm7869 = vcmask 293888
      %v7870 = vsel %vm7869, %v7853, %v7789
      %v7871 = vsel %vm7869, %v7854, %v7791
      %v7872 = vsel %vm7869, %v7855, %v7793
      %v7873 = vsel %vm7869, %v7856, %v7795
      %v7874 = vsel %vm7869, %v7857, %v7797
      %v7875 = vsel %vm7869, %v7858, %v7799
      %v7876 = vsel %vm7869, %v7859, %v7801
      %v7877 = vsel %vm7869, %v7860, %v7803
      %v7878 = vsel %vm7869, %v7861, %v7805
      %v7879 = vsel %vm7869, %v7862, %v7807
      %v7880 = vsel %vm7869, %v7863, %v7809
      %v7881 = vsel %vm7869, %v7864, %v7811
      %v7882 = vsel %vm7869, %v7865, %v7813
      %v7883 = vsel %vm7869, %v7866, %v7815
      %v7884 = vsel %vm7869, %v7867, %v7817
      %v7885 = vsel %vm7869, %v7868, %v7819
      %v7886 = vpack.c.bf16 %v7870, %v7870
      %v7887 = vpack.c.bf16 %v7871, %v7871
      %v7888 = vpack.c.bf16 %v7872, %v7872
      %v7889 = vpack.c.bf16 %v7873, %v7873
      %v7890 = vpack.c.bf16 %v7874, %v7874
      %v7891 = vpack.c.bf16 %v7875, %v7875
      %v7892 = vpack.c.bf16 %v7876, %v7876
      %v7893 = vpack.c.bf16 %v7877, %v7877
      %v7894 = vpack.c.bf16 %v7878, %v7878
      %v7895 = vpack.c.bf16 %v7879, %v7879
      %v7896 = vpack.c.bf16 %v7880, %v7880
      %v7897 = vpack.c.bf16 %v7881, %v7881
      %v7898 = vpack.c.bf16 %v7882, %v7882
      %v7899 = vpack.c.bf16 %v7883, %v7883
      %v7900 = vpack.c.bf16 %v7884, %v7884
      %v7901 = vpack.c.bf16 %v7885, %v7885
      %vm7902 = vcmask 385024
      %7903 = vst.msk [vmem:[%s116] sm:$0x1] %vm7902, %v7886
      %7904 = vst.msk [vmem:[%s116 + $0x1] sm:$0x1] %vm7902, %v7887
      %7905 = vst.msk [vmem:[%s116 + $0x2] sm:$0x1] %vm7902, %v7888
      %7906 = vst.msk [vmem:[%s116 + $0x3] sm:$0x1] %vm7902, %v7889
      %7907 = vst.msk [vmem:[%s116 + $0x4] sm:$0x1] %vm7902, %v7890
      %7908 = vst.msk [vmem:[%s116 + $0x5] sm:$0x1] %vm7902, %v7891
      %7909 = vst.msk [vmem:[%s116 + $0x6] sm:$0x1] %vm7902, %v7892
      %7910 = vst.msk [vmem:[%s116 + $0x7] sm:$0x1] %vm7902, %v7893
      %7911 = vst.msk [vmem:[%s116 + $0x8] sm:$0x1] %vm7902, %v7894
      %7912 = vst.msk [vmem:[%s116 + $0x9] sm:$0x1] %vm7902, %v7895
      %7913 = vst.msk [vmem:[%s116 + $0xa] sm:$0x1] %vm7902, %v7896
      %7914 = vst.msk [vmem:[%s116 + $0xb] sm:$0x1] %vm7902, %v7897
      %7915 = vst.msk [vmem:[%s116 + $0xc] sm:$0x1] %vm7902, %v7898
      %7916 = vst.msk [vmem:[%s116 + $0xd] sm:$0x1] %vm7902, %v7899
      %7917 = vst.msk [vmem:[%s116 + $0xe] sm:$0x1] %vm7902, %v7900
      %7918 = vst.msk [vmem:[%s116 + $0xf] sm:$0x1] %vm7902, %v7901
      %s7919 = smul.u32 16, %s12
      %p7920 = scmp.lt.s32.totalorder %s7919, 31
      %s7921 = scalar_select %p7920, %s7919, 31
      %s7922 = scalar_lea.vmem %s1, %s7921
      // Predicated region
      $region25: #{vit_forward.14} parent=23 // pred_check
        %p7923 = pneg %p56
      $region26: #{vit_forward.14} parent=23 // pred_check_branch
        %7925 = sbr.rel (%p7923) target = $region28
      $region27: #{vit_forward.14} parent=23 // pred_region
        %s7926 = smul.u32 16, %s12
      $region28: #{vit_forward.14} parent=23 // pred_fallthru
        _
    $region24: #{vit_forward.14} parent=5 // pred_fallthru
      _
    %p7927 = scmp.le.s32.totalorder 2, %s7
    // Predicated region
    $region29: #{vit_forward.14} parent=5 // pred_check
      %p7928 = pneg %p7927
    $region30: #{vit_forward.14} parent=5 // pred_check_branch
      %7930 = sbr.rel (%p7928) target = $region32
    $region31: #{vit_forward.14} parent=5 // pred_region
      %s7931 = ssub.s32 %s7, 2
      // Predicated region
      $region33: #{vit_forward.14} parent=31 // pred_check
        %p7932 = pneg %p62
      $region34: #{vit_forward.14} parent=31 // pred_check_branch
        %7934 = sbr.rel (%p7932) target = $region36
      $region35: #{vit_forward.14} parent=31 // pred_region
        %s7935 = smul.u32 16, %s13
        %p7936 = scmp.lt.s32.totalorder %s7935, 31
        %s7937 = scalar_select %p7936, %s7935, 31
        %s7938 = scalar_lea.vmem %s1, %s7937
      $region36: #{vit_forward.14} parent=31 // pred_fallthru
        _
    $region32: #{vit_forward.14} parent=5 // pred_fallthru
      _
  $region6: #{vit_forward.14} parent=0 // loop_footer
    %s11 = sadd.s32 1, %s7
  $region7: #{vit_forward.14} parent=0 // loop_footer_branch
    %6 = sbr.rel target = $region3
  $region8: #{vit_forward.14} parent=0 // loop_exit
    _

</llo_original>
